<compile_context>
chip_gen: v5e
topology: v5e:2x2
jax: 0.10.0
libtpu: 0.0.40
codegen_flags: <defaults>
</compile_context>

<pallas_src>
import functools
import math

import jax
import jax.numpy as jnp
from jax.experimental import pallas as pl
from jax.experimental.pallas import tpu as pltpu


# ----------------------------- in-kernel helpers ---------------------------

def _ln_f32(x, gamma, beta, eps):
    """LayerNorm over last dim; x [R, D] f32, gamma/beta [1, D]."""
    mean = jnp.mean(x, axis=-1, keepdims=True)
    xc = x - mean
    var = jnp.mean(xc * xc, axis=-1, keepdims=True)
    return xc * jax.lax.rsqrt(var + eps) * gamma + beta


def _attention(q, k, v, mask, wo, bo, num_heads):
    """All-head attention + output projection, entirely in VMEM.

    q [Sq, D], k/v [Skv, D], mask [Sq, Skv] (additive), wo [D, D], bo [1, D].
    Output projection is folded into the head loop:
        concat_h(ctx_h) @ Wo == sum_h ctx_h @ Wo[h*hd:(h+1)*hd, :]
    which avoids in-kernel concatenation along the lane axis.
    """
    Sq, D = q.shape
    hd = D // num_heads
    scale = 1.0 / math.sqrt(hd)
    acc = jnp.zeros((Sq, D), jnp.float32)
    for h in range(num_heads):                      # static unrolled loop, tiny
        cols = slice(h * hd, (h + 1) * hd)
        qh, kh, vh = q[:, cols], k[:, cols], v[:, cols]
        s = jax.lax.dot_general(qh, kh, (((1,), (1,)), ((), ())),
                                preferred_element_type=jnp.float32) * scale
        s = s + mask
        s = s - jnp.max(s, axis=-1, keepdims=True)
        p = jnp.exp(s)
        p = p / jnp.sum(p, axis=-1, keepdims=True)
        ctx_h = jnp.dot(p, vh, preferred_element_type=jnp.float32)      # [Sq, hd]
        acc = acc + jnp.dot(ctx_h, wo[cols, :],
                            preferred_element_type=jnp.float32)
    return acc + bo


# ------------------------------ Pallas kernels ------------------------------

def _embed_ln_kernel(w_ref, p_ref, t_ref, g_ref, b_ref, o_ref, *, eps):
    x = (w_ref[...] + p_ref[...] + t_ref[...]).astype(jnp.float32)
    o_ref[...] = _ln_f32(x, g_ref[...], b_ref[...], eps).astype(o_ref.dtype)


def _encoder_block_kernel(x_ref, mask_ref,
                          ln1_g, ln1_b, wqkv, bqkv, wo, bo,
                          ln2_g, ln2_b, w1, b1, w2, b2,
                          o_ref, *, num_heads, eps):
    x = x_ref[0].astype(jnp.float32)                 # [S, D]
    mask = mask_ref[0].astype(jnp.float32)           # [S, S]
    D = x.shape[-1]
    # self-attention sub-block (pre-LN)
    h = _ln_f32(x, ln1_g[...], ln1_b[...], eps)
    qkv = jnp.dot(h, wqkv[...], preferred_element_type=jnp.float32) + bqkv[...]
    x = x + _attention(qkv[:, :D], qkv[:, D:2 * D], qkv[:, 2 * D:],
                       mask, wo[...], bo[...], num_heads)
    # FFN sub-block (pre-LN)
    h = _ln_f32(x, ln2_g[...], ln2_b[...], eps)
    h = jnp.dot(h, w1[...], preferred_element_type=jnp.float32) + b1[...]
    h = jax.nn.gelu(h)
    h = jnp.dot(h, w2[...], preferred_element_type=jnp.float32) + b2[...]
    x = x + h
    o_ref[0] = x.astype(o_ref.dtype)


def _decoder_block_kernel(x_ref, enc_ref, smask_ref, cmask_ref,
                          ln1_g, ln1_b, sa_wqkv, sa_bqkv, sa_wo, sa_bo,
                          ln2_g, ln2_b, ca_wq, ca_bq, ca_wkv, ca_bkv, ca_wo, ca_bo,
                          ln3_g, ln3_b, w1, b1, w2, b2,
                          o_ref, *, num_heads, eps):
    x = x_ref[0].astype(jnp.float32)                 # [S_ita, D]
    enc = enc_ref[0].astype(jnp.float32)             # [S_eng, D]
    smask = smask_ref[0].astype(jnp.float32)         # [S_ita, S_ita]
    cmask = cmask_ref[0].astype(jnp.float32)         # [S_ita, S_eng]
    D = x.shape[-1]
    # self-attention
    h = _ln_f32(x, ln1_g[...], ln1_b[...], eps)
    qkv = jnp.dot(h, sa_wqkv[...], preferred_element_type=jnp.float32) + sa_bqkv[...]
    x = x + _attention(qkv[:, :D], qkv[:, D:2 * D], qkv[:, 2 * D:],
                       smask, sa_wo[...], sa_bo[...], num_heads)
    # cross-attention (query: decoder stream, key/value: raw encoder output)
    h = _ln_f32(x, ln2_g[...], ln2_b[...], eps)
    q = jnp.dot(h, ca_wq[...], preferred_element_type=jnp.float32) + ca_bq[...]
    kv = jnp.dot(enc, ca_wkv[...], preferred_element_type=jnp.float32) + ca_bkv[...]
    x = x + _attention(q, kv[:, :D], kv[:, D:],
                       cmask, ca_wo[...], ca_bo[...], num_heads)
    # FFN
    h = _ln_f32(x, ln3_g[...], ln3_b[...], eps)
    h = jnp.dot(h, w1[...], preferred_element_type=jnp.float32) + b1[...]
    h = jax.nn.gelu(h)
    h = jnp.dot(h, w2[...], preferred_element_type=jnp.float32) + b2[...]
    x = x + h
    o_ref[0] = x.astype(o_ref.dtype)


def _out_proj_kernel(x_ref, w_ref, b_ref, o_ref):
    y = jnp.dot(x_ref[...], w_ref[...], preferred_element_type=jnp.float32)
    o_ref[...] = (y + b_ref[...]).astype(o_ref.dtype)


# ------------------------------ spec helpers --------------------------------

def _rep_spec(shape):
    """Full array, same block for every grid step (weights / biases / LN params)."""
    n = len(shape)
    return pl.BlockSpec(shape, lambda i: (0,) * n)


def _batch_spec(shape):
    """Per-batch block along the leading axis."""
    n = len(shape)
    return pl.BlockSpec(shape, lambda i: (i,) + (0,) * (n - 1))


# ------------------------------ model wrappers -------------------------------

def bert_embeddings(p, input_ids, token_type_ids=None, eps=1e-6):
    B, S = input_ids.shape
    D = p["word"].shape[1]
    word = jnp.take(p["word"], input_ids.reshape(-1), axis=0)          # [B*S, D]
    pos = jnp.tile(p["pos"][:S], (B, 1))                               # [B*S, D]
    if token_type_ids is None:
        token_type_ids = jnp.zeros_like(input_ids)
    typ = jnp.take(p["type"], token_type_ids.reshape(-1), axis=0)      # [B*S, D]
    kernel = functools.partial(_embed_ln_kernel, eps=eps)
    out = pl.pallas_call(
        kernel,
        out_shape=jax.ShapeDtypeStruct((B * S, D), jnp.float32),
        grid=(1,),
        in_specs=[_rep_spec((B * S, D)), _rep_spec((B * S, D)), _rep_spec((B * S, D)),
                  _rep_spec((1, D)), _rep_spec((1, D))],
        out_specs=_rep_spec((B * S, D)),
    )(word, pos, typ, p["ln"]["gamma"], p["ln"]["beta"])
    return out.reshape(B, S, D)


def encoder_block(blk, x, mask, num_heads, eps=1e-6):
    B, S, D = x.shape
    d_ff = blk["ffn"]["w1"].shape[1]
    kernel = functools.partial(_encoder_block_kernel, num_heads=num_heads, eps=eps)
    return pl.pallas_call(
        kernel,
        out_shape=jax.ShapeDtypeStruct((B, S, D), x.dtype),
        grid=(B,),
        in_specs=[
            _batch_spec((1, S, D)), _batch_spec((1, S, S)),
            _rep_spec((1, D)), _rep_spec((1, D)),
            _rep_spec((D, 3 * D)), _rep_spec((1, 3 * D)),
            _rep_spec((D, D)), _rep_spec((1, D)),
            _rep_spec((1, D)), _rep_spec((1, D)),
            _rep_spec((D, d_ff)), _rep_spec((1, d_ff)),
            _rep_spec((d_ff, D)), _rep_spec((1, D)),
        ],
        out_specs=_batch_spec((1, S, D)),
        compiler_params=pltpu.CompilerParams(dimension_semantics=("parallel",)),
    )(x, mask,
      blk["ln1"]["gamma"], blk["ln1"]["beta"],
      blk["attn"]["wqkv"], blk["attn"]["bqkv"], blk["attn"]["wo"], blk["attn"]["bo"],
      blk["ln2"]["gamma"], blk["ln2"]["beta"],
      blk["ffn"]["w1"], blk["ffn"]["b1"], blk["ffn"]["w2"], blk["ffn"]["b2"])


def decoder_block(blk, x, enc_out, self_mask, cross_mask, num_heads, eps=1e-6):
    B, Sq, D = x.shape
    Skv = enc_out.shape[1]
    d_ff = blk["ffn"]["w1"].shape[1]
    kernel = functools.partial(_decoder_block_kernel, num_heads=num_heads, eps=eps)
    return pl.pallas_call(
        kernel,
        out_shape=jax.ShapeDtypeStruct((B, Sq, D), x.dtype),
        grid=(B,),
        in_specs=[
            _batch_spec((1, Sq, D)), _batch_spec((1, Skv, D)),
            _batch_spec((1, Sq, Sq)), _batch_spec((1, Sq, Skv)),
            _rep_spec((1, D)), _rep_spec((1, D)),
            _rep_spec((D, 3 * D)), _rep_spec((1, 3 * D)),
            _rep_spec((D, D)), _rep_spec((1, D)),
            _rep_spec((1, D)), _rep_spec((1, D)),
            _rep_spec((D, D)), _rep_spec((1, D)),
            _rep_spec((D, 2 * D)), _rep_spec((1, 2 * D)),
            _rep_spec((D, D)), _rep_spec((1, D)),
            _rep_spec((1, D)), _rep_spec((1, D)),
            _rep_spec((D, d_ff)), _rep_spec((1, d_ff)),
            _rep_spec((d_ff, D)), _rep_spec((1, D)),
        ],
        out_specs=_batch_spec((1, Sq, D)),
        compiler_params=pltpu.CompilerParams(dimension_semantics=("parallel",)),
    )(x, enc_out, self_mask, cross_mask,
      blk["ln1"]["gamma"], blk["ln1"]["beta"],
      blk["self_attn"]["wqkv"], blk["self_attn"]["bqkv"],
      blk["self_attn"]["wo"], blk["self_attn"]["bo"],
      blk["ln2"]["gamma"], blk["ln2"]["beta"],
      blk["cross_attn"]["wq"], blk["cross_attn"]["bq"],
      blk["cross_attn"]["wkv"], blk["cross_attn"]["bkv"],
      blk["cross_attn"]["wo"], blk["cross_attn"]["bo"],
      blk["ln3"]["gamma"], blk["ln3"]["beta"],
      blk["ffn"]["w1"], blk["ffn"]["b1"], blk["ffn"]["w2"], blk["ffn"]["b2"])


def output_projection(p, x3d):
    B, S, D = x3d.shape
    V = p["b"].shape[1]
    Vpad = ((V + 127) // 128) * 128          # lane-dense output stores
    w, b = p["w"], p["b"]
    if Vpad != V:
        w = jnp.pad(w, ((0, 0), (0, Vpad - V)))
        b = jnp.pad(b, ((0, 0), (0, Vpad - V)))
    out = pl.pallas_call(
        _out_proj_kernel,
        out_shape=jax.ShapeDtypeStruct((B * S, Vpad), x3d.dtype),
        grid=(1,),
        in_specs=[_rep_spec((B * S, D)), _rep_spec((D, Vpad)), _rep_spec((1, Vpad))],
        out_specs=_rep_spec((B * S, Vpad)),
    )(x3d.reshape(B * S, D), w, b)
    return out[:, :V].reshape(B, S, V)


def _norm_mask(mask, B, Sq, Skv):
    """Normalize any additive mask broadcastable to [B, 1, Sq, Skv] -> [B, Sq, Skv]."""
    if mask is None:
        return jnp.zeros((B, Sq, Skv), jnp.float32)
    m = jnp.asarray(mask, jnp.float32)
    if m.ndim == 4:
        # TODO(synk): head-dependent masks (head dim > 1) are not supported.
        m = m[:, 0]
    while m.ndim < 3:
        m = m[None]
    return jnp.broadcast_to(m, (B, Sq, Skv))


def bert_translation_forward(params, eng_ids, ita_ids, eng_mask=None, ita_mask=None,
                             eng_token_type_ids=None, ita_token_type_ids=None,
                             num_heads=4):
    B, S_eng = eng_ids.shape
    S_ita = ita_ids.shape[1]
    enc_self_mask = _norm_mask(eng_mask, B, S_eng, S_eng)
    dec_self_mask = _norm_mask(ita_mask, B, S_ita, S_ita)
    dec_cross_mask = _norm_mask(eng_mask, B, S_ita, S_eng)

    # encoder (Bert) — dropout is identity in inference mode
    enc = bert_embeddings(params["encoder"]["emb"], eng_ids, eng_token_type_ids)
    for blk in params["encoder"]["blocks"]:
        enc = encoder_block(blk, enc, enc_self_mask, num_heads)

    # decoder
    x = bert_embeddings(params["dec_emb"], ita_ids, ita_token_type_ids)
    for blk in params["dec_blocks"]:
        x = decoder_block(blk, x, enc, dec_self_mask, dec_cross_mask, num_heads)

    return output_projection(params["out_proj"], x)


# --------------------------------- init --------------------------------------

def init_params(key, ita_vocab, eng_vocab, max_seq_len, d_model, num_layers,
                num_heads, d_ff):
    keys = iter(jax.random.split(key, 4096))

    def w(din, dout):
        return jax.random.normal(next(keys), (din, dout), jnp.float32) * 0.02

    def lin(din, dout):
        return {"w": w(din, dout), "b": jnp.zeros((1, dout), jnp.float32)}

    def ln(d):
        return {"gamma": jnp.ones((1, d), jnp.float32),
                "beta": jnp.zeros((1, d), jnp.float32)}

    def emb(vocab):
        return {"word": jax.random.normal(next(keys), (vocab, d_model), jnp.float32) * 0.02,
                "pos": jax.random.normal(next(keys), (max_seq_len, d_model), jnp.float32) * 0.02,
                "type": jax.random.normal(next(keys), (2, d_model), jnp.float32) * 0.02,
                "ln": ln(d_model)}

    def self_attn():
        # fused [Wq | Wk | Wv] — numerically identical to three separate Linears
        return {"wqkv": w(d_model, 3 * d_model),
                "bqkv": jnp.zeros((1, 3 * d_model), jnp.float32),
                "wo": w(d_model, d_model),
                "bo": jnp.zeros((1, d_model), jnp.float32)}

    def cross_attn():
        return {"wq": w(d_model, d_model), "bq": jnp.zeros((1, d_model), jnp.float32),
                "wkv": w(d_model, 2 * d_model), "bkv": jnp.zeros((1, 2 * d_model), jnp.float32),
                "wo": w(d_model, d_model), "bo": jnp.zeros((1, d_model), jnp.float32)}

    def ffn():
        return {"w1": w(d_model, d_ff), "b1": jnp.zeros((1, d_ff), jnp.float32),
                "w2": w(d_ff, d_model), "b2": jnp.zeros((1, d_model), jnp.float32)}

    enc_blocks = [{"ln1": ln(d_model), "attn": self_attn(), "ln2": ln(d_model),
                   "ffn": ffn()} for _ in range(num_layers)]
    dec_blocks = [{"ln1": ln(d_model), "self_attn": self_attn(), "ln2": ln(d_model),
                   "cross_attn": cross_attn(), "ln3": ln(d_model), "ffn": ffn()}
                  for _ in range(num_layers)]
    return {"encoder": {"emb": emb(eng_vocab), "blocks": enc_blocks},
            "dec_emb": emb(ita_vocab),
            "dec_blocks": dec_blocks,
            "out_proj": lin(d_model, ita_vocab)}


# --------------------------------- main ---------------------------------------

if __name__ == "__main__":
    d_model, num_heads, num_layers, d_ff = 32, 4, 2, 128
    max_seq_len = 16
    eng_vocab, ita_vocab = 80, 96
    B, S_eng, S_ita = 2, 8, 8

    key = jax.random.PRNGKey(0)
    kp, ke, ki = jax.random.split(key, 3)
    params = init_params(kp, ita_vocab, eng_vocab, max_seq_len, d_model,
                         num_layers, num_heads, d_ff)

    eng_ids = jax.random.randint(ke, (B, S_eng), 0, eng_vocab)
    ita_ids = jax.random.randint(ki, (B, S_ita), 0, ita_vocab)

    # additive masks, broadcast onto scores exactly like PyTorch `scores + mask`
    eng_valid = jnp.array([[1.0] * 8, [1.0] * 6 + [0.0] * 2], jnp.float32)
    eng_mask = (1.0 - eng_valid)[:, None, None, :] * -1e9          # [B,1,1,S_eng]
    causal = jnp.tril(jnp.ones((S_ita, S_ita), jnp.float32))
    ita_mask = (1.0 - causal)[None, None, :, :] * -1e9             # [1,1,S_ita,S_ita]

    fwd = jax.jit(functools.partial(bert_translation_forward, num_heads=num_heads))
    logits = fwd(params, eng_ids, ita_ids, eng_mask, ita_mask)
    jax.block_until_ready(logits)
    assert logits.shape == (B, S_ita, ita_vocab)
    assert bool(jnp.all(jnp.isfinite(logits)))
    print("KERNEL_OK")
</pallas_src>

<mosaic_0001>
module attributes {stable_mosaic.version = 11 : i64} {
  func.func @_embed_ln_kernel(%arg0: i32, %arg1: memref<16x32xf32, #tpu.memory_space<vmem>>, %arg2: memref<16x32xf32, #tpu.memory_space<vmem>>, %arg3: memref<16x32xf32, #tpu.memory_space<vmem>>, %arg4: memref<1x32xf32, #tpu.memory_space<vmem>>, %arg5: memref<1x32xf32, #tpu.memory_space<vmem>>, %arg6: memref<16x32xf32, #tpu.memory_space<vmem>>) attributes {dimension_semantics = [#tpu.dimension_semantics<arbitrary>], iteration_bounds = array<i64: 1>, scalar_prefetch = 0 : i64, scratch_operands = 0 : i64, tpu.core_type = #tpu.core_type<tc>, window_params = [{pipeline_mode = #tpu.pipeline_mode<synchronous>, transform_indices = @transform_0, window_bounds = array<i64: 16, 32>}, {pipeline_mode = #tpu.pipeline_mode<synchronous>, transform_indices = @transform_1, window_bounds = array<i64: 16, 32>}, {pipeline_mode = #tpu.pipeline_mode<synchronous>, transform_indices = @transform_2, window_bounds = array<i64: 16, 32>}, {pipeline_mode = #tpu.pipeline_mode<synchronous>, transform_indices = @transform_3, window_bounds = array<i64: 1, 32>}, {pipeline_mode = #tpu.pipeline_mode<synchronous>, transform_indices = @transform_4, window_bounds = array<i64: 1, 32>}, {pipeline_mode = #tpu.pipeline_mode<synchronous>, transform_indices = @transform_5, window_bounds = array<i64: 16, 32>}]} {
    %c0 = arith.constant 0 : index
    %c0_0 = arith.constant 0 : index
    %0 = vector.load %arg1[%c0, %c0_0] : memref<16x32xf32, #tpu.memory_space<vmem>>, vector<16x32xf32>
    %c0_1 = arith.constant 0 : index
    %c0_2 = arith.constant 0 : index
    %1 = vector.load %arg2[%c0_1, %c0_2] : memref<16x32xf32, #tpu.memory_space<vmem>>, vector<16x32xf32>
    %2 = arith.addf %0, %1 : vector<16x32xf32>
    %c0_3 = arith.constant 0 : index
    %c0_4 = arith.constant 0 : index
    %3 = vector.load %arg3[%c0_3, %c0_4] : memref<16x32xf32, #tpu.memory_space<vmem>>, vector<16x32xf32>
    %4 = arith.addf %2, %3 : vector<16x32xf32>
    %c0_5 = arith.constant 0 : index
    %c0_6 = arith.constant 0 : index
    %5 = vector.load %arg4[%c0_5, %c0_6] : memref<1x32xf32, #tpu.memory_space<vmem>>, vector<1x32xf32>
    %c0_7 = arith.constant 0 : index
    %c0_8 = arith.constant 0 : index
    %6 = vector.load %arg5[%c0_7, %c0_8] : memref<1x32xf32, #tpu.memory_space<vmem>>, vector<1x32xf32>
    %cst = arith.constant dense<0.000000e+00> : vector<16xf32>
    %7 = vector.multi_reduction <add>, %4, %cst [1] : vector<16x32xf32> to vector<16xf32>
    %8 = vector.shape_cast %7 : vector<16xf32> to vector<16x1xf32>
    %cst_9 = arith.constant 3.200000e+01 : f32
    %9 = vector.broadcast %cst_9 : f32 to vector<16x1xf32>
    %10 = arith.divf %8, %9 : vector<16x1xf32>
    %11 = vector.broadcast %10 : vector<16x1xf32> to vector<16x32xf32>
    %12 = arith.subf %4, %11 : vector<16x32xf32>
    %13 = arith.mulf %12, %12 : vector<16x32xf32>
    %cst_10 = arith.constant dense<0.000000e+00> : vector<16xf32>
    %14 = vector.multi_reduction <add>, %13, %cst_10 [1] : vector<16x32xf32> to vector<16xf32>
    %15 = vector.shape_cast %14 : vector<16xf32> to vector<16x1xf32>
    %cst_11 = arith.constant 3.200000e+01 : f32
    %16 = vector.broadcast %cst_11 : f32 to vector<16x1xf32>
    %17 = arith.divf %15, %16 : vector<16x1xf32>
    %cst_12 = arith.constant 9.99999997E-7 : f32
    %18 = vector.broadcast %cst_12 : f32 to vector<16x1xf32>
    %19 = arith.addf %17, %18 : vector<16x1xf32>
    %20 = math.rsqrt %19 : vector<16x1xf32>
    %21 = vector.broadcast %20 : vector<16x1xf32> to vector<16x32xf32>
    %22 = arith.mulf %12, %21 : vector<16x32xf32>
    %23 = vector.broadcast %5 : vector<1x32xf32> to vector<16x32xf32>
    %24 = arith.mulf %22, %23 : vector<16x32xf32>
    %25 = vector.broadcast %6 : vector<1x32xf32> to vector<16x32xf32>
    %26 = arith.addf %24, %25 : vector<16x32xf32>
    %c0_13 = arith.constant 0 : index
    %c0_14 = arith.constant 0 : index
    %27 = vector.load %arg6[%c0_13, %c0_14] : memref<16x32xf32, #tpu.memory_space<vmem>>, vector<16x32xf32>
    tpu.vector_store %arg6[%c0_13, %c0_14], %26 {strides = array<i32>} : memref<16x32xf32, #tpu.memory_space<vmem>>, vector<16x32xf32>,
    return
  }
  func.func @transform_0(%arg0: i32) -> (i32, i32) {
    %c0_i32 = arith.constant 0 : i32
    %c0_i32_0 = arith.constant 0 : i32
    %c0_i32_1 = arith.constant 0 : i32
    return %c0_i32, %c0_i32_0 : i32, i32
  }
  func.func @transform_1(%arg0: i32) -> (i32, i32) {
    %c0_i32 = arith.constant 0 : i32
    %c0_i32_0 = arith.constant 0 : i32
    %c0_i32_1 = arith.constant 0 : i32
    return %c0_i32, %c0_i32_0 : i32, i32
  }
  func.func @transform_2(%arg0: i32) -> (i32, i32) {
    %c0_i32 = arith.constant 0 : i32
    %c0_i32_0 = arith.constant 0 : i32
    %c0_i32_1 = arith.constant 0 : i32
    return %c0_i32, %c0_i32_0 : i32, i32
  }
  func.func @transform_3(%arg0: i32) -> (i32, i32) {
    %c0_i32 = arith.constant 0 : i32
    %c0_i32_0 = arith.constant 0 : i32
    %c0_i32_1 = arith.constant 0 : i32
    return %c0_i32, %c0_i32_0 : i32, i32
  }
  func.func @transform_4(%arg0: i32) -> (i32, i32) {
    %c0_i32 = arith.constant 0 : i32
    %c0_i32_0 = arith.constant 0 : i32
    %c0_i32_1 = arith.constant 0 : i32
    return %c0_i32, %c0_i32_0 : i32, i32
  }
  func.func @transform_5(%arg0: i32) -> (i32, i32) {
    %c0_i32 = arith.constant 0 : i32
    %c0_i32_0 = arith.constant 0 : i32
    %c0_i32_1 = arith.constant 0 : i32
    return %c0_i32, %c0_i32_0 : i32, i32
  }
}

module attributes {stable_mosaic.version = 11 : i64} {
  func.func @_encoder_block_kernel(%arg0: i32, %arg1: memref<1x8x32xf32, #tpu.memory_space<vmem>>, %arg2: memref<1x8x8xf32, #tpu.memory_space<vmem>>, %arg3: memref<1x32xf32, #tpu.memory_space<vmem>>, %arg4: memref<1x32xf32, #tpu.memory_space<vmem>>, %arg5: memref<32x96xf32, #tpu.memory_space<vmem>>, %arg6: memref<1x96xf32, #tpu.memory_space<vmem>>, %arg7: memref<32x32xf32, #tpu.memory_space<vmem>>, %arg8: memref<1x32xf32, #tpu.memory_space<vmem>>, %arg9: memref<1x32xf32, #tpu.memory_space<vmem>>, %arg10: memref<1x32xf32, #tpu.memory_space<vmem>>, %arg11: memref<32x128xf32, #tpu.memory_space<vmem>>, %arg12: memref<1x128xf32, #tpu.memory_space<vmem>>, %arg13: memref<128x32xf32, #tpu.memory_space<vmem>>, %arg14: memref<1x32xf32, #tpu.memory_space<vmem>>, %arg15: memref<1x8x32xf32, #tpu.memory_space<vmem>>) attributes {dimension_semantics = [#tpu.dimension_semantics<parallel>], iteration_bounds = array<i64: 2>, scalar_prefetch = 0 : i64, scratch_operands = 0 : i64, tpu.core_type = #tpu.core_type<tc>, window_params = [{transform_indices = @transform_0, window_bounds = array<i64: 1, 8, 32>}, {transform_indices = @transform_1, window_bounds = array<i64: 1, 8, 8>}, {pipeline_mode = #tpu.pipeline_mode<synchronous>, transform_indices = @transform_2, window_bounds = array<i64: 1, 32>}, {pipeline_mode = #tpu.pipeline_mode<synchronous>, transform_indices = @transform_3, window_bounds = array<i64: 1, 32>}, {pipeline_mode = #tpu.pipeline_mode<synchronous>, transform_indices = @transform_4, window_bounds = array<i64: 32, 96>}, {pipeline_mode = #tpu.pipeline_mode<synchronous>, transform_indices = @transform_5, window_bounds = array<i64: 1, 96>}, {pipeline_mode = #tpu.pipeline_mode<synchronous>, transform_indices = @transform_6, window_bounds = array<i64: 32, 32>}, {pipeline_mode = #tpu.pipeline_mode<synchronous>, transform_indices = @transform_7, window_bounds = array<i64: 1, 32>}, {pipeline_mode = #tpu.pipeline_mode<synchronous>, transform_indices = @transform_8, window_bounds = array<i64: 1, 32>}, {pipeline_mode = #tpu.pipeline_mode<synchronous>, transform_indices = @transform_9, window_bounds = array<i64: 1, 32>}, {pipeline_mode = #tpu.pipeline_mode<synchronous>, transform_indices = @transform_10, window_bounds = array<i64: 32, 128>}, {pipeline_mode = #tpu.pipeline_mode<synchronous>, transform_indices = @transform_11, window_bounds = array<i64: 1, 128>}, {pipeline_mode = #tpu.pipeline_mode<synchronous>, transform_indices = @transform_12, window_bounds = array<i64: 128, 32>}, {pipeline_mode = #tpu.pipeline_mode<synchronous>, transform_indices = @transform_13, window_bounds = array<i64: 1, 32>}, {transform_indices = @transform_14, window_bounds = array<i64: 1, 8, 32>}]} {
    %c0 = arith.constant 0 : index
    %c0_0 = arith.constant 0 : index
    %c0_1 = arith.constant 0 : index
    %0 = vector.load %arg1[%c0, %c0_0, %c0_1] : memref<1x8x32xf32, #tpu.memory_space<vmem>>, vector<1x8x32xf32>
    %1 = vector.shape_cast %0 : vector<1x8x32xf32> to vector<8x32xf32>
    %c0_2 = arith.constant 0 : index
    %c0_3 = arith.constant 0 : index
    %c0_4 = arith.constant 0 : index
    %2 = vector.load %arg2[%c0_2, %c0_3, %c0_4] : memref<1x8x8xf32, #tpu.memory_space<vmem>>, vector<1x8x8xf32>
    %3 = vector.shape_cast %2 : vector<1x8x8xf32> to vector<8x8xf32>
    %c0_5 = arith.constant 0 : index
    %c0_6 = arith.constant 0 : index
    %4 = vector.load %arg3[%c0_5, %c0_6] : memref<1x32xf32, #tpu.memory_space<vmem>>, vector<1x32xf32>
    %c0_7 = arith.constant 0 : index
    %c0_8 = arith.constant 0 : index
    %5 = vector.load %arg4[%c0_7, %c0_8] : memref<1x32xf32, #tpu.memory_space<vmem>>, vector<1x32xf32>
    %cst = arith.constant dense<0.000000e+00> : vector<8xf32>
    %6 = vector.multi_reduction <add>, %1, %cst [1] : vector<8x32xf32> to vector<8xf32>
    %7 = vector.shape_cast %6 : vector<8xf32> to vector<8x1xf32>
    %cst_9 = arith.constant 3.200000e+01 : f32
    %8 = vector.broadcast %cst_9 : f32 to vector<8x1xf32>
    %9 = arith.divf %7, %8 : vector<8x1xf32>
    %10 = vector.broadcast %9 : vector<8x1xf32> to vector<8x32xf32>
    %11 = arith.subf %1, %10 : vector<8x32xf32>
    %12 = arith.mulf %11, %11 : vector<8x32xf32>
    %cst_10 = arith.constant dense<0.000000e+00> : vector<8xf32>
    %13 = vector.multi_reduction <add>, %12, %cst_10 [1] : vector<8x32xf32> to vector<8xf32>
    %14 = vector.shape_cast %13 : vector<8xf32> to vector<8x1xf32>
    %cst_11 = arith.constant 3.200000e+01 : f32
    %15 = vector.broadcast %cst_11 : f32 to vector<8x1xf32>
    %16 = arith.divf %14, %15 : vector<8x1xf32>
    %cst_12 = arith.constant 9.99999997E-7 : f32
    %17 = vector.broadcast %cst_12 : f32 to vector<8x1xf32>
    %18 = arith.addf %16, %17 : vector<8x1xf32>
    %19 = math.rsqrt %18 : vector<8x1xf32>
    %20 = vector.broadcast %19 : vector<8x1xf32> to vector<8x32xf32>
    %21 = arith.mulf %11, %20 : vector<8x32xf32>
    %22 = vector.broadcast %4 : vector<1x32xf32> to vector<8x32xf32>
    %23 = arith.mulf %21, %22 : vector<8x32xf32>
    %24 = vector.broadcast %5 : vector<1x32xf32> to vector<8x32xf32>
    %25 = arith.addf %23, %24 : vector<8x32xf32>
    %c0_13 = arith.constant 0 : index
    %c0_14 = arith.constant 0 : index
    %26 = vector.load %arg5[%c0_13, %c0_14] : memref<32x96xf32, #tpu.memory_space<vmem>>, vector<32x96xf32>
    %cst_15 = arith.constant dense<0.000000e+00> : vector<8x96xf32>
    %27 = tpu.matmul %25, %26, %cst_15 {dimension_numbers = #tpu.dot_dimension_numbers<[1], [0], [0], [1], [0, 0, 1, 1], [], []>} : vector<8x32xf32>, vector<32x96xf32>, vector<8x96xf32> -> vector<8x96xf32>
    %c0_16 = arith.constant 0 : index
    %c0_17 = arith.constant 0 : index
    %28 = vector.load %arg6[%c0_16, %c0_17] : memref<1x96xf32, #tpu.memory_space<vmem>>, vector<1x96xf32>
    %29 = vector.broadcast %28 : vector<1x96xf32> to vector<8x96xf32>
    %30 = arith.addf %27, %29 : vector<8x96xf32>
    %31 = vector.extract_strided_slice %30 {offsets = [0, 0], sizes = [8, 32], strides = [1, 1]} : vector<8x96xf32> to vector<8x32xf32>
    %32 = vector.extract_strided_slice %30 {offsets = [0, 32], sizes = [8, 32], strides = [1, 1]} : vector<8x96xf32> to vector<8x32xf32>
    %33 = vector.extract_strided_slice %30 {offsets = [0, 64], sizes = [8, 32], strides = [1, 1]} : vector<8x96xf32> to vector<8x32xf32>
    %c0_18 = arith.constant 0 : index
    %c0_19 = arith.constant 0 : index
    %34 = vector.load %arg7[%c0_18, %c0_19] : memref<32x32xf32, #tpu.memory_space<vmem>>, vector<32x32xf32>
    %c0_20 = arith.constant 0 : index
    %c0_21 = arith.constant 0 : index
    %35 = vector.load %arg8[%c0_20, %c0_21] : memref<1x32xf32, #tpu.memory_space<vmem>>, vector<1x32xf32>
    %cst_22 = arith.constant 0.000000e+00 : f32
    %36 = vector.broadcast %cst_22 : f32 to vector<8x32xf32>
    %37 = vector.extract_strided_slice %31 {offsets = [0, 0], sizes = [8, 8], strides = [1, 1]} : vector<8x32xf32> to vector<8x8xf32>
    %38 = vector.extract_strided_slice %32 {offsets = [0, 0], sizes = [8, 8], strides = [1, 1]} : vector<8x32xf32> to vector<8x8xf32>
    %39 = vector.extract_strided_slice %33 {offsets = [0, 0], sizes = [8, 8], strides = [1, 1]} : vector<8x32xf32> to vector<8x8xf32>
    %cst_23 = arith.constant dense<0.000000e+00> : vector<8x8xf32>
    %40 = tpu.matmul %37, %38, %cst_23 {dimension_numbers = #tpu.dot_dimension_numbers<[1], [1], [0], [0], [0, 0, 1, 0], [], []>} : vector<8x8xf32>, vector<8x8xf32>, vector<8x8xf32> -> vector<8x8xf32>
    %cst_24 = arith.constant 0.353553385 : f32
    %41 = vector.broadcast %cst_24 : f32 to vector<8x8xf32>
    %42 = arith.mulf %40, %41 : vector<8x8xf32>
    %43 = arith.addf %42, %3 : vector<8x8xf32>
    %cst_25 = arith.constant dense<0xFF800000> : vector<8xf32>
    %44 = vector.multi_reduction <maximumf>, %43, %cst_25 [1] : vector<8x8xf32> to vector<8xf32>
    %45 = vector.shape_cast %44 : vector<8xf32> to vector<8x1xf32>
    %46 = vector.broadcast %45 : vector<8x1xf32> to vector<8x8xf32>
    %47 = arith.subf %43, %46 : vector<8x8xf32>
    %48 = math.exp %47 : vector<8x8xf32>
    %cst_26 = arith.constant dense<0.000000e+00> : vector<8xf32>
    %49 = vector.multi_reduction <add>, %48, %cst_26 [1] : vector<8x8xf32> to vector<8xf32>
    %50 = vector.shape_cast %49 : vector<8xf32> to vector<8x1xf32>
    %51 = vector.broadcast %50 : vector<8x1xf32> to vector<8x8xf32>
    %52 = arith.divf %48, %51 : vector<8x8xf32>
    %cst_27 = arith.constant dense<0.000000e+00> : vector<8x8xf32>
    %53 = tpu.matmul %52, %39, %cst_27 {dimension_numbers = #tpu.dot_dimension_numbers<[1], [0], [0], [1], [0, 0, 1, 1], [], []>} : vector<8x8xf32>, vector<8x8xf32>, vector<8x8xf32> -> vector<8x8xf32>
    %54 = vector.extract_strided_slice %34 {offsets = [0, 0], sizes = [8, 32], strides = [1, 1]} : vector<32x32xf32> to vector<8x32xf32>
    %cst_28 = arith.constant dense<0.000000e+00> : vector<8x32xf32>
    %55 = tpu.matmul %53, %54, %cst_28 {dimension_numbers = #tpu.dot_dimension_numbers<[1], [0], [0], [1], [0, 0, 1, 1], [], []>} : vector<8x8xf32>, vector<8x32xf32>, vector<8x32xf32> -> vector<8x32xf32>
    %56 = arith.addf %36, %55 : vector<8x32xf32>
    %57 = vector.extract_strided_slice %31 {offsets = [0, 8], sizes = [8, 8], strides = [1, 1]} : vector<8x32xf32> to vector<8x8xf32>
    %58 = vector.extract_strided_slice %32 {offsets = [0, 8], sizes = [8, 8], strides = [1, 1]} : vector<8x32xf32> to vector<8x8xf32>
    %59 = vector.extract_strided_slice %33 {offsets = [0, 8], sizes = [8, 8], strides = [1, 1]} : vector<8x32xf32> to vector<8x8xf32>
    %cst_29 = arith.constant dense<0.000000e+00> : vector<8x8xf32>
    %60 = tpu.matmul %57, %58, %cst_29 {dimension_numbers = #tpu.dot_dimension_numbers<[1], [1], [0], [0], [0, 0, 1, 0], [], []>} : vector<8x8xf32>, vector<8x8xf32>, vector<8x8xf32> -> vector<8x8xf32>
    %cst_30 = arith.constant 0.353553385 : f32
    %61 = vector.broadcast %cst_30 : f32 to vector<8x8xf32>
    %62 = arith.mulf %60, %61 : vector<8x8xf32>
    %63 = arith.addf %62, %3 : vector<8x8xf32>
    %cst_31 = arith.constant dense<0xFF800000> : vector<8xf32>
    %64 = vector.multi_reduction <maximumf>, %63, %cst_31 [1] : vector<8x8xf32> to vector<8xf32>
    %65 = vector.shape_cast %64 : vector<8xf32> to vector<8x1xf32>
    %66 = vector.broadcast %65 : vector<8x1xf32> to vector<8x8xf32>
    %67 = arith.subf %63, %66 : vector<8x8xf32>
    %68 = math.exp %67 : vector<8x8xf32>
    %cst_32 = arith.constant dense<0.000000e+00> : vector<8xf32>
    %69 = vector.multi_reduction <add>, %68, %cst_32 [1] : vector<8x8xf32> to vector<8xf32>
    %70 = vector.shape_cast %69 : vector<8xf32> to vector<8x1xf32>
    %71 = vector.broadcast %70 : vector<8x1xf32> to vector<8x8xf32>
    %72 = arith.divf %68, %71 : vector<8x8xf32>
    %cst_33 = arith.constant dense<0.000000e+00> : vector<8x8xf32>
    %73 = tpu.matmul %72, %59, %cst_33 {dimension_numbers = #tpu.dot_dimension_numbers<[1], [0], [0], [1], [0, 0, 1, 1], [], []>} : vector<8x8xf32>, vector<8x8xf32>, vector<8x8xf32> -> vector<8x8xf32>
    %74 = vector.extract_strided_slice %34 {offsets = [8, 0], sizes = [8, 32], strides = [1, 1]} : vector<32x32xf32> to vector<8x32xf32>
    %cst_34 = arith.constant dense<0.000000e+00> : vector<8x32xf32>
    %75 = tpu.matmul %73, %74, %cst_34 {dimension_numbers = #tpu.dot_dimension_numbers<[1], [0], [0], [1], [0, 0, 1, 1], [], []>} : vector<8x8xf32>, vector<8x32xf32>, vector<8x32xf32> -> vector<8x32xf32>
    %76 = arith.addf %56, %75 : vector<8x32xf32>
    %77 = vector.extract_strided_slice %31 {offsets = [0, 16], sizes = [8, 8], strides = [1, 1]} : vector<8x32xf32> to vector<8x8xf32>
    %78 = vector.extract_strided_slice %32 {offsets = [0, 16], sizes = [8, 8], strides = [1, 1]} : vector<8x32xf32> to vector<8x8xf32>
    %79 = vector.extract_strided_slice %33 {offsets = [0, 16], sizes = [8, 8], strides = [1, 1]} : vector<8x32xf32> to vector<8x8xf32>
    %cst_35 = arith.constant dense<0.000000e+00> : vector<8x8xf32>
    %80 = tpu.matmul %77, %78, %cst_35 {dimension_numbers = #tpu.dot_dimension_numbers<[1], [1], [0], [0], [0, 0, 1, 0], [], []>} : vector<8x8xf32>, vector<8x8xf32>, vector<8x8xf32> -> vector<8x8xf32>
    %cst_36 = arith.constant 0.353553385 : f32
    %81 = vector.broadcast %cst_36 : f32 to vector<8x8xf32>
    %82 = arith.mulf %80, %81 : vector<8x8xf32>
    %83 = arith.addf %82, %3 : vector<8x8xf32>
    %cst_37 = arith.constant dense<0xFF800000> : vector<8xf32>
    %84 = vector.multi_reduction <maximumf>, %83, %cst_37 [1] : vector<8x8xf32> to vector<8xf32>
    %85 = vector.shape_cast %84 : vector<8xf32> to vector<8x1xf32>
    %86 = vector.broadcast %85 : vector<8x1xf32> to vector<8x8xf32>
    %87 = arith.subf %83, %86 : vector<8x8xf32>
    %88 = math.exp %87 : vector<8x8xf32>
    %cst_38 = arith.constant dense<0.000000e+00> : vector<8xf32>
    %89 = vector.multi_reduction <add>, %88, %cst_38 [1] : vector<8x8xf32> to vector<8xf32>
    %90 = vector.shape_cast %89 : vector<8xf32> to vector<8x1xf32>
    %91 = vector.broadcast %90 : vector<8x1xf32> to vector<8x8xf32>
    %92 = arith.divf %88, %91 : vector<8x8xf32>
    %cst_39 = arith.constant dense<0.000000e+00> : vector<8x8xf32>
    %93 = tpu.matmul %92, %79, %cst_39 {dimension_numbers = #tpu.dot_dimension_numbers<[1], [0], [0], [1], [0, 0, 1, 1], [], []>} : vector<8x8xf32>, vector<8x8xf32>, vector<8x8xf32> -> vector<8x8xf32>
    %94 = vector.extract_strided_slice %34 {offsets = [16, 0], sizes = [8, 32], strides = [1, 1]} : vector<32x32xf32> to vector<8x32xf32>
    %cst_40 = arith.constant dense<0.000000e+00> : vector<8x32xf32>
    %95 = tpu.matmul %93, %94, %cst_40 {dimension_numbers = #tpu.dot_dimension_numbers<[1], [0], [0], [1], [0, 0, 1, 1], [], []>} : vector<8x8xf32>, vector<8x32xf32>, vector<8x32xf32> -> vector<8x32xf32>
    %96 = arith.addf %76, %95 : vector<8x32xf32>
    %97 = vector.extract_strided_slice %31 {offsets = [0, 24], sizes = [8, 8], strides = [1, 1]} : vector<8x32xf32> to vector<8x8xf32>
    %98 = vector.extract_strided_slice %32 {offsets = [0, 24], sizes = [8, 8], strides = [1, 1]} : vector<8x32xf32> to vector<8x8xf32>
    %99 = vector.extract_strided_slice %33 {offsets = [0, 24], sizes = [8, 8], strides = [1, 1]} : vector<8x32xf32> to vector<8x8xf32>
    %cst_41 = arith.constant dense<0.000000e+00> : vector<8x8xf32>
    %100 = tpu.matmul %97, %98, %cst_41 {dimension_numbers = #tpu.dot_dimension_numbers<[1], [1], [0], [0], [0, 0, 1, 0], [], []>} : vector<8x8xf32>, vector<8x8xf32>, vector<8x8xf32> -> vector<8x8xf32>
    %cst_42 = arith.constant 0.353553385 : f32
    %101 = vector.broadcast %cst_42 : f32 to vector<8x8xf32>
    %102 = arith.mulf %100, %101 : vector<8x8xf32>
    %103 = arith.addf %102, %3 : vector<8x8xf32>
    %cst_43 = arith.constant dense<0xFF800000> : vector<8xf32>
    %104 = vector.multi_reduction <maximumf>, %103, %cst_43 [1] : vector<8x8xf32> to vector<8xf32>
    %105 = vector.shape_cast %104 : vector<8xf32> to vector<8x1xf32>
    %106 = vector.broadcast %105 : vector<8x1xf32> to vector<8x8xf32>
    %107 = arith.subf %103, %106 : vector<8x8xf32>
    %108 = math.exp %107 : vector<8x8xf32>
    %cst_44 = arith.constant dense<0.000000e+00> : vector<8xf32>
    %109 = vector.multi_reduction <add>, %108, %cst_44 [1] : vector<8x8xf32> to vector<8xf32>
    %110 = vector.shape_cast %109 : vector<8xf32> to vector<8x1xf32>
    %111 = vector.broadcast %110 : vector<8x1xf32> to vector<8x8xf32>
    %112 = arith.divf %108, %111 : vector<8x8xf32>
    %cst_45 = arith.constant dense<0.000000e+00> : vector<8x8xf32>
    %113 = tpu.matmul %112, %99, %cst_45 {dimension_numbers = #tpu.dot_dimension_numbers<[1], [0], [0], [1], [0, 0, 1, 1], [], []>} : vector<8x8xf32>, vector<8x8xf32>, vector<8x8xf32> -> vector<8x8xf32>
    %114 = vector.extract_strided_slice %34 {offsets = [24, 0], sizes = [8, 32], strides = [1, 1]} : vector<32x32xf32> to vector<8x32xf32>
    %cst_46 = arith.constant dense<0.000000e+00> : vector<8x32xf32>
    %115 = tpu.matmul %113, %114, %cst_46 {dimension_numbers = #tpu.dot_dimension_numbers<[1], [0], [0], [1], [0, 0, 1, 1], [], []>} : vector<8x8xf32>, vector<8x32xf32>, vector<8x32xf32> -> vector<8x32xf32>
    %116 = arith.addf %96, %115 : vector<8x32xf32>
    %117 = vector.broadcast %35 : vector<1x32xf32> to vector<8x32xf32>
    %118 = arith.addf %116, %117 : vector<8x32xf32>
    %119 = arith.addf %1, %118 : vector<8x32xf32>
    %c0_47 = arith.constant 0 : index
    %c0_48 = arith.constant 0 : index
    %120 = vector.load %arg9[%c0_47, %c0_48] : memref<1x32xf32, #tpu.memory_space<vmem>>, vector<1x32xf32>
    %c0_49 = arith.constant 0 : index
    %c0_50 = arith.constant 0 : index
    %121 = vector.load %arg10[%c0_49, %c0_50] : memref<1x32xf32, #tpu.memory_space<vmem>>, vector<1x32xf32>
    %cst_51 = arith.constant dense<0.000000e+00> : vector<8xf32>
    %122 = vector.multi_reduction <add>, %119, %cst_51 [1] : vector<8x32xf32> to vector<8xf32>
    %123 = vector.shape_cast %122 : vector<8xf32> to vector<8x1xf32>
    %cst_52 = arith.constant 3.200000e+01 : f32
    %124 = vector.broadcast %cst_52 : f32 to vector<8x1xf32>
    %125 = arith.divf %123, %124 : vector<8x1xf32>
    %126 = vector.broadcast %125 : vector<8x1xf32> to vector<8x32xf32>
    %127 = arith.subf %119, %126 : vector<8x32xf32>
    %128 = arith.mulf %127, %127 : vector<8x32xf32>
    %cst_53 = arith.constant dense<0.000000e+00> : vector<8xf32>
    %129 = vector.multi_reduction <add>, %128, %cst_53 [1] : vector<8x32xf32> to vector<8xf32>
    %130 = vector.shape_cast %129 : vector<8xf32> to vector<8x1xf32>
    %cst_54 = arith.constant 3.200000e+01 : f32
    %131 = vector.broadcast %cst_54 : f32 to vector<8x1xf32>
    %132 = arith.divf %130, %131 : vector<8x1xf32>
    %cst_55 = arith.constant 9.99999997E-7 : f32
    %133 = vector.broadcast %cst_55 : f32 to vector<8x1xf32>
    %134 = arith.addf %132, %133 : vector<8x1xf32>
    %135 = math.rsqrt %134 : vector<8x1xf32>
    %136 = vector.broadcast %135 : vector<8x1xf32> to vector<8x32xf32>
    %137 = arith.mulf %127, %136 : vector<8x32xf32>
    %138 = vector.broadcast %120 : vector<1x32xf32> to vector<8x32xf32>
    %139 = arith.mulf %137, %138 : vector<8x32xf32>
    %140 = vector.broadcast %121 : vector<1x32xf32> to vector<8x32xf32>
    %141 = arith.addf %139, %140 : vector<8x32xf32>
    %c0_56 = arith.constant 0 : index
    %c0_57 = arith.constant 0 : index
    %142 = vector.load %arg11[%c0_56, %c0_57] : memref<32x128xf32, #tpu.memory_space<vmem>>, vector<32x128xf32>
    %cst_58 = arith.constant dense<0.000000e+00> : vector<8x128xf32>
    %143 = tpu.matmul %141, %142, %cst_58 {dimension_numbers = #tpu.dot_dimension_numbers<[1], [0], [0], [1], [0, 0, 1, 1], [], []>} : vector<8x32xf32>, vector<32x128xf32>, vector<8x128xf32> -> vector<8x128xf32>
    %c0_59 = arith.constant 0 : index
    %c0_60 = arith.constant 0 : index
    %144 = vector.load %arg12[%c0_59, %c0_60] : memref<1x128xf32, #tpu.memory_space<vmem>>, vector<1x128xf32>
    %145 = vector.broadcast %144 : vector<1x128xf32> to vector<8x128xf32>
    %146 = arith.addf %143, %145 : vector<8x128xf32>
    %147 = arith.mulf %146, %146 : vector<8x128xf32>
    %148 = arith.mulf %146, %147 : vector<8x128xf32>
    %cst_61 = arith.constant 4.471500e-02 : f32
    %149 = vector.broadcast %cst_61 : f32 to vector<8x128xf32>
    %150 = arith.mulf %149, %148 : vector<8x128xf32>
    %151 = arith.addf %146, %150 : vector<8x128xf32>
    %cst_62 = arith.constant 0.797884583 : f32
    %152 = vector.broadcast %cst_62 : f32 to vector<8x128xf32>
    %153 = arith.mulf %152, %151 : vector<8x128xf32>
    %154 = math.tanh %153 : vector<8x128xf32>
    %cst_63 = arith.constant 1.000000e+00 : f32
    %155 = vector.broadcast %cst_63 : f32 to vector<8x128xf32>
    %156 = arith.addf %155, %154 : vector<8x128xf32>
    %cst_64 = arith.constant 5.000000e-01 : f32
    %157 = vector.broadcast %cst_64 : f32 to vector<8x128xf32>
    %158 = arith.mulf %157, %156 : vector<8x128xf32>
    %159 = arith.mulf %146, %158 : vector<8x128xf32>
    %c0_65 = arith.constant 0 : index
    %c0_66 = arith.constant 0 : index
    %160 = vector.load %arg13[%c0_65, %c0_66] : memref<128x32xf32, #tpu.memory_space<vmem>>, vector<128x32xf32>
    %cst_67 = arith.constant dense<0.000000e+00> : vector<8x32xf32>
    %161 = tpu.matmul %159, %160, %cst_67 {dimension_numbers = #tpu.dot_dimension_numbers<[1], [0], [0], [1], [0, 0, 1, 1], [], []>} : vector<8x128xf32>, vector<128x32xf32>, vector<8x32xf32> -> vector<8x32xf32>
    %c0_68 = arith.constant 0 : index
    %c0_69 = arith.constant 0 : index
    %162 = vector.load %arg14[%c0_68, %c0_69] : memref<1x32xf32, #tpu.memory_space<vmem>>, vector<1x32xf32>
    %163 = vector.broadcast %162 : vector<1x32xf32> to vector<8x32xf32>
    %164 = arith.addf %161, %163 : vector<8x32xf32>
    %165 = arith.addf %119, %164 : vector<8x32xf32>
    %c0_70 = arith.constant 0 : index
    %c0_71 = arith.constant 0 : index
    %c0_72 = arith.constant 0 : index
    %166 = vector.load %arg15[%c0_70, %c0_71, %c0_72] : memref<1x8x32xf32, #tpu.memory_space<vmem>>, vector<1x8x32xf32>
    %167 = vector.shape_cast %166 : vector<1x8x32xf32> to vector<8x32xf32>
    %168 = vector.shape_cast %165 : vector<8x32xf32> to vector<1x8x32xf32>
    tpu.vector_store %arg15[%c0_70, %c0_71, %c0_72], %168 {strides = array<i32>} : memref<1x8x32xf32, #tpu.memory_space<vmem>>, vector<1x8x32xf32>,
    return
  }
  func.func @transform_0(%arg0: i32) -> (i32, i32, i32) {
    %c0_i32 = arith.constant 0 : i32
    %c0_i32_0 = arith.constant 0 : i32
    %c0_i32_1 = arith.constant 0 : i32
    return %arg0, %c0_i32, %c0_i32_0 : i32, i32, i32
  }
  func.func @transform_1(%arg0: i32) -> (i32, i32, i32) {
    %c0_i32 = arith.constant 0 : i32
    %c0_i32_0 = arith.constant 0 : i32
    %c0_i32_1 = arith.constant 0 : i32
    return %arg0, %c0_i32, %c0_i32_0 : i32, i32, i32
  }
  func.func @transform_2(%arg0: i32) -> (i32, i32) {
    %c0_i32 = arith.constant 0 : i32
    %c0_i32_0 = arith.constant 0 : i32
    %c0_i32_1 = arith.constant 0 : i32
    return %c0_i32, %c0_i32_0 : i32, i32
  }
  func.func @transform_3(%arg0: i32) -> (i32, i32) {
    %c0_i32 = arith.constant 0 : i32
    %c0_i32_0 = arith.constant 0 : i32
    %c0_i32_1 = arith.constant 0 : i32
    return %c0_i32, %c0_i32_0 : i32, i32
  }
  func.func @transform_4(%arg0: i32) -> (i32, i32) {
    %c0_i32 = arith.constant 0 : i32
    %c0_i32_0 = arith.constant 0 : i32
    %c0_i32_1 = arith.constant 0 : i32
    return %c0_i32, %c0_i32_0 : i32, i32
  }
  func.func @transform_5(%arg0: i32) -> (i32, i32) {
    %c0_i32 = arith.constant 0 : i32
    %c0_i32_0 = arith.constant 0 : i32
    %c0_i32_1 = arith.constant 0 : i32
    return %c0_i32, %c0_i32_0 : i32, i32
  }
  func.func @transform_6(%arg0: i32) -> (i32, i32) {
    %c0_i32 = arith.constant 0 : i32
    %c0_i32_0 = arith.constant 0 : i32
    %c0_i32_1 = arith.constant 0 : i32
    return %c0_i32, %c0_i32_0 : i32, i32
  }
  func.func @transform_7(%arg0: i32) -> (i32, i32) {
    %c0_i32 = arith.constant 0 : i32
    %c0_i32_0 = arith.constant 0 : i32
    %c0_i32_1 = arith.constant 0 : i32
    return %c0_i32, %c0_i32_0 : i32, i32
  }
  func.func @transform_8(%arg0: i32) -> (i32, i32) {
    %c0_i32 = arith.constant 0 : i32
    %c0_i32_0 = arith.constant 0 : i32
    %c0_i32_1 = arith.constant 0 : i32
    return %c0_i32, %c0_i32_0 : i32, i32
  }
  func.func @transform_9(%arg0: i32) -> (i32, i32) {
    %c0_i32 = arith.constant 0 : i32
    %c0_i32_0 = arith.constant 0 : i32
    %c0_i32_1 = arith.constant 0 : i32
    return %c0_i32, %c0_i32_0 : i32, i32
  }
  func.func @transform_10(%arg0: i32) -> (i32, i32) {
    %c0_i32 = arith.constant 0 : i32
    %c0_i32_0 = arith.constant 0 : i32
    %c0_i32_1 = arith.constant 0 : i32
    return %c0_i32, %c0_i32_0 : i32, i32
  }
  func.func @transform_11(%arg0: i32) -> (i32, i32) {
    %c0_i32 = arith.constant 0 : i32
    %c0_i32_0 = arith.constant 0 : i32
    %c0_i32_1 = arith.constant 0 : i32
    return %c0_i32, %c0_i32_0 : i32, i32
  }
  func.func @transform_12(%arg0: i32) -> (i32, i32) {
    %c0_i32 = arith.constant 0 : i32
    %c0_i32_0 = arith.constant 0 : i32
    %c0_i32_1 = arith.constant 0 : i32
    return %c0_i32, %c0_i32_0 : i32, i32
  }
  func.func @transform_13(%arg0: i32) -> (i32, i32) {
    %c0_i32 = arith.constant 0 : i32
    %c0_i32_0 = arith.constant 0 : i32
    %c0_i32_1 = arith.constant 0 : i32
    return %c0_i32, %c0_i32_0 : i32, i32
  }
  func.func @transform_14(%arg0: i32) -> (i32, i32, i32) {
    %c0_i32 = arith.constant 0 : i32
    %c0_i32_0 = arith.constant 0 : i32
    %c0_i32_1 = arith.constant 0 : i32
    return %arg0, %c0_i32, %c0_i32_0 : i32, i32, i32
  }
}

module attributes {stable_mosaic.version = 11 : i64} {
  func.func @_decoder_block_kernel(%arg0: i32, %arg1: memref<1x8x32xf32, #tpu.memory_space<vmem>>, %arg2: memref<1x8x32xf32, #tpu.memory_space<vmem>>, %arg3: memref<1x8x8xf32, #tpu.memory_space<vmem>>, %arg4: memref<1x8x8xf32, #tpu.memory_space<vmem>>, %arg5: memref<1x32xf32, #tpu.memory_space<vmem>>, %arg6: memref<1x32xf32, #tpu.memory_space<vmem>>, %arg7: memref<32x96xf32, #tpu.memory_space<vmem>>, %arg8: memref<1x96xf32, #tpu.memory_space<vmem>>, %arg9: memref<32x32xf32, #tpu.memory_space<vmem>>, %arg10: memref<1x32xf32, #tpu.memory_space<vmem>>, %arg11: memref<1x32xf32, #tpu.memory_space<vmem>>, %arg12: memref<1x32xf32, #tpu.memory_space<vmem>>, %arg13: memref<32x32xf32, #tpu.memory_space<vmem>>, %arg14: memref<1x32xf32, #tpu.memory_space<vmem>>, %arg15: memref<32x64xf32, #tpu.memory_space<vmem>>, %arg16: memref<1x64xf32, #tpu.memory_space<vmem>>, %arg17: memref<32x32xf32, #tpu.memory_space<vmem>>, %arg18: memref<1x32xf32, #tpu.memory_space<vmem>>, %arg19: memref<1x32xf32, #tpu.memory_space<vmem>>, %arg20: memref<1x32xf32, #tpu.memory_space<vmem>>, %arg21: memref<32x128xf32, #tpu.memory_space<vmem>>, %arg22: memref<1x128xf32, #tpu.memory_space<vmem>>, %arg23: memref<128x32xf32, #tpu.memory_space<vmem>>, %arg24: memref<1x32xf32, #tpu.memory_space<vmem>>, %arg25: memref<1x8x32xf32, #tpu.memory_space<vmem>>) attributes {dimension_semantics = [#tpu.dimension_semantics<parallel>], iteration_bounds = array<i64: 2>, scalar_prefetch = 0 : i64, scratch_operands = 0 : i64, tpu.core_type = #tpu.core_type<tc>, window_params = [{transform_indices = @transform_0, window_bounds = array<i64: 1, 8, 32>}, {transform_indices = @transform_1, window_bounds = array<i64: 1, 8, 32>}, {transform_indices = @transform_2, window_bounds = array<i64: 1, 8, 8>}, {transform_indices = @transform_3, window_bounds = array<i64: 1, 8, 8>}, {pipeline_mode = #tpu.pipeline_mode<synchronous>, transform_indices = @transform_4, window_bounds = array<i64: 1, 32>}, {pipeline_mode = #tpu.pipeline_mode<synchronous>, transform_indices = @transform_5, window_bounds = array<i64: 1, 32>}, {pipeline_mode = #tpu.pipeline_mode<synchronous>, transform_indices = @transform_6, window_bounds = array<i64: 32, 96>}, {pipeline_mode = #tpu.pipeline_mode<synchronous>, transform_indices = @transform_7, window_bounds = array<i64: 1, 96>}, {pipeline_mode = #tpu.pipeline_mode<synchronous>, transform_indices = @transform_8, window_bounds = array<i64: 32, 32>}, {pipeline_mode = #tpu.pipeline_mode<synchronous>, transform_indices = @transform_9, window_bounds = array<i64: 1, 32>}, {pipeline_mode = #tpu.pipeline_mode<synchronous>, transform_indices = @transform_10, window_bounds = array<i64: 1, 32>}, {pipeline_mode = #tpu.pipeline_mode<synchronous>, transform_indices = @transform_11, window_bounds = array<i64: 1, 32>}, {pipeline_mode = #tpu.pipeline_mode<synchronous>, transform_indices = @transform_12, window_bounds = array<i64: 32, 32>}, {pipeline_mode = #tpu.pipeline_mode<synchronous>, transform_indices = @transform_13, window_bounds = array<i64: 1, 32>}, {pipeline_mode = #tpu.pipeline_mode<synchronous>, transform_indices = @transform_14, window_bounds = array<i64: 32, 64>}, {pipeline_mode = #tpu.pipeline_mode<synchronous>, transform_indices = @transform_15, window_bounds = array<i64: 1, 64>}, {pipeline_mode = #tpu.pipeline_mode<synchronous>, transform_indices = @transform_16, window_bounds = array<i64: 32, 32>}, {pipeline_mode = #tpu.pipeline_mode<synchronous>, transform_indices = @transform_17, window_bounds = array<i64: 1, 32>}, {pipeline_mode = #tpu.pipeline_mode<synchronous>, transform_indices = @transform_18, window_bounds = array<i64: 1, 32>}, {pipeline_mode = #tpu.pipeline_mode<synchronous>, transform_indices = @transform_19, window_bounds = array<i64: 1, 32>}, {pipeline_mode = #tpu.pipeline_mode<synchronous>, transform_indices = @transform_20, window_bounds = array<i64: 32, 128>}, {pipeline_mode = #tpu.pipeline_mode<synchronous>, transform_indices = @transform_21, window_bounds = array<i64: 1, 128>}, {pipeline_mode = #tpu.pipeline_mode<synchronous>, transform_indices = @transform_22, window_bounds = array<i64: 128, 32>}, {pipeline_mode = #tpu.pipeline_mode<synchronous>, transform_indices = @transform_23, window_bounds = array<i64: 1, 32>}, {transform_indices = @transform_24, window_bounds = array<i64: 1, 8, 32>}]} {
    %c0 = arith.constant 0 : index
    %c0_0 = arith.constant 0 : index
    %c0_1 = arith.constant 0 : index
    %0 = vector.load %arg1[%c0, %c0_0, %c0_1] : memref<1x8x32xf32, #tpu.memory_space<vmem>>, vector<1x8x32xf32>
    %1 = vector.shape_cast %0 : vector<1x8x32xf32> to vector<8x32xf32>
    %c0_2 = arith.constant 0 : index
    %c0_3 = arith.constant 0 : index
    %c0_4 = arith.constant 0 : index
    %2 = vector.load %arg2[%c0_2, %c0_3, %c0_4] : memref<1x8x32xf32, #tpu.memory_space<vmem>>, vector<1x8x32xf32>
    %3 = vector.shape_cast %2 : vector<1x8x32xf32> to vector<8x32xf32>
    %c0_5 = arith.constant 0 : index
    %c0_6 = arith.constant 0 : index
    %c0_7 = arith.constant 0 : index
    %4 = vector.load %arg3[%c0_5, %c0_6, %c0_7] : memref<1x8x8xf32, #tpu.memory_space<vmem>>, vector<1x8x8xf32>
    %5 = vector.shape_cast %4 : vector<1x8x8xf32> to vector<8x8xf32>
    %c0_8 = arith.constant 0 : index
    %c0_9 = arith.constant 0 : index
    %c0_10 = arith.constant 0 : index
    %6 = vector.load %arg4[%c0_8, %c0_9, %c0_10] : memref<1x8x8xf32, #tpu.memory_space<vmem>>, vector<1x8x8xf32>
    %7 = vector.shape_cast %6 : vector<1x8x8xf32> to vector<8x8xf32>
    %c0_11 = arith.constant 0 : index
    %c0_12 = arith.constant 0 : index
    %8 = vector.load %arg5[%c0_11, %c0_12] : memref<1x32xf32, #tpu.memory_space<vmem>>, vector<1x32xf32>
    %c0_13 = arith.constant 0 : index
    %c0_14 = arith.constant 0 : index
    %9 = vector.load %arg6[%c0_13, %c0_14] : memref<1x32xf32, #tpu.memory_space<vmem>>, vector<1x32xf32>
    %cst = arith.constant dense<0.000000e+00> : vector<8xf32>
    %10 = vector.multi_reduction <add>, %1, %cst [1] : vector<8x32xf32> to vector<8xf32>
    %11 = vector.shape_cast %10 : vector<8xf32> to vector<8x1xf32>
    %cst_15 = arith.constant 3.200000e+01 : f32
    %12 = vector.broadcast %cst_15 : f32 to vector<8x1xf32>
    %13 = arith.divf %11, %12 : vector<8x1xf32>
    %14 = vector.broadcast %13 : vector<8x1xf32> to vector<8x32xf32>
    %15 = arith.subf %1, %14 : vector<8x32xf32>
    %16 = arith.mulf %15, %15 : vector<8x32xf32>
    %cst_16 = arith.constant dense<0.000000e+00> : vector<8xf32>
    %17 = vector.multi_reduction <add>, %16, %cst_16 [1] : vector<8x32xf32> to vector<8xf32>
    %18 = vector.shape_cast %17 : vector<8xf32> to vector<8x1xf32>
    %cst_17 = arith.constant 3.200000e+01 : f32
    %19 = vector.broadcast %cst_17 : f32 to vector<8x1xf32>
    %20 = arith.divf %18, %19 : vector<8x1xf32>
    %cst_18 = arith.constant 9.99999997E-7 : f32
    %21 = vector.broadcast %cst_18 : f32 to vector<8x1xf32>
    %22 = arith.addf %20, %21 : vector<8x1xf32>
    %23 = math.rsqrt %22 : vector<8x1xf32>
    %24 = vector.broadcast %23 : vector<8x1xf32> to vector<8x32xf32>
    %25 = arith.mulf %15, %24 : vector<8x32xf32>
    %26 = vector.broadcast %8 : vector<1x32xf32> to vector<8x32xf32>
    %27 = arith.mulf %25, %26 : vector<8x32xf32>
    %28 = vector.broadcast %9 : vector<1x32xf32> to vector<8x32xf32>
    %29 = arith.addf %27, %28 : vector<8x32xf32>
    %c0_19 = arith.constant 0 : index
    %c0_20 = arith.constant 0 : index
    %30 = vector.load %arg7[%c0_19, %c0_20] : memref<32x96xf32, #tpu.memory_space<vmem>>, vector<32x96xf32>
    %cst_21 = arith.constant dense<0.000000e+00> : vector<8x96xf32>
    %31 = tpu.matmul %29, %30, %cst_21 {dimension_numbers = #tpu.dot_dimension_numbers<[1], [0], [0], [1], [0, 0, 1, 1], [], []>} : vector<8x32xf32>, vector<32x96xf32>, vector<8x96xf32> -> vector<8x96xf32>
    %c0_22 = arith.constant 0 : index
    %c0_23 = arith.constant 0 : index
    %32 = vector.load %arg8[%c0_22, %c0_23] : memref<1x96xf32, #tpu.memory_space<vmem>>, vector<1x96xf32>
    %33 = vector.broadcast %32 : vector<1x96xf32> to vector<8x96xf32>
    %34 = arith.addf %31, %33 : vector<8x96xf32>
    %35 = vector.extract_strided_slice %34 {offsets = [0, 0], sizes = [8, 32], strides = [1, 1]} : vector<8x96xf32> to vector<8x32xf32>
    %36 = vector.extract_strided_slice %34 {offsets = [0, 32], sizes = [8, 32], strides = [1, 1]} : vector<8x96xf32> to vector<8x32xf32>
    %37 = vector.extract_strided_slice %34 {offsets = [0, 64], sizes = [8, 32], strides = [1, 1]} : vector<8x96xf32> to vector<8x32xf32>
    %c0_24 = arith.constant 0 : index
    %c0_25 = arith.constant 0 : index
    %38 = vector.load %arg9[%c0_24, %c0_25] : memref<32x32xf32, #tpu.memory_space<vmem>>, vector<32x32xf32>
    %c0_26 = arith.constant 0 : index
    %c0_27 = arith.constant 0 : index
    %39 = vector.load %arg10[%c0_26, %c0_27] : memref<1x32xf32, #tpu.memory_space<vmem>>, vector<1x32xf32>
    %cst_28 = arith.constant 0.000000e+00 : f32
    %40 = vector.broadcast %cst_28 : f32 to vector<8x32xf32>
    %41 = vector.extract_strided_slice %35 {offsets = [0, 0], sizes = [8, 8], strides = [1, 1]} : vector<8x32xf32> to vector<8x8xf32>
    %42 = vector.extract_strided_slice %36 {offsets = [0, 0], sizes = [8, 8], strides = [1, 1]} : vector<8x32xf32> to vector<8x8xf32>
    %43 = vector.extract_strided_slice %37 {offsets = [0, 0], sizes = [8, 8], strides = [1, 1]} : vector<8x32xf32> to vector<8x8xf32>
    %cst_29 = arith.constant dense<0.000000e+00> : vector<8x8xf32>
    %44 = tpu.matmul %41, %42, %cst_29 {dimension_numbers = #tpu.dot_dimension_numbers<[1], [1], [0], [0], [0, 0, 1, 0], [], []>} : vector<8x8xf32>, vector<8x8xf32>, vector<8x8xf32> -> vector<8x8xf32>
    %cst_30 = arith.constant 0.353553385 : f32
    %45 = vector.broadcast %cst_30 : f32 to vector<8x8xf32>
    %46 = arith.mulf %44, %45 : vector<8x8xf32>
    %47 = arith.addf %46, %5 : vector<8x8xf32>
    %cst_31 = arith.constant dense<0xFF800000> : vector<8xf32>
    %48 = vector.multi_reduction <maximumf>, %47, %cst_31 [1] : vector<8x8xf32> to vector<8xf32>
    %49 = vector.shape_cast %48 : vector<8xf32> to vector<8x1xf32>
    %50 = vector.broadcast %49 : vector<8x1xf32> to vector<8x8xf32>
    %51 = arith.subf %47, %50 : vector<8x8xf32>
    %52 = math.exp %51 : vector<8x8xf32>
    %cst_32 = arith.constant dense<0.000000e+00> : vector<8xf32>
    %53 = vector.multi_reduction <add>, %52, %cst_32 [1] : vector<8x8xf32> to vector<8xf32>
    %54 = vector.shape_cast %53 : vector<8xf32> to vector<8x1xf32>
    %55 = vector.broadcast %54 : vector<8x1xf32> to vector<8x8xf32>
    %56 = arith.divf %52, %55 : vector<8x8xf32>
    %cst_33 = arith.constant dense<0.000000e+00> : vector<8x8xf32>
    %57 = tpu.matmul %56, %43, %cst_33 {dimension_numbers = #tpu.dot_dimension_numbers<[1], [0], [0], [1], [0, 0, 1, 1], [], []>} : vector<8x8xf32>, vector<8x8xf32>, vector<8x8xf32> -> vector<8x8xf32>
    %58 = vector.extract_strided_slice %38 {offsets = [0, 0], sizes = [8, 32], strides = [1, 1]} : vector<32x32xf32> to vector<8x32xf32>
    %cst_34 = arith.constant dense<0.000000e+00> : vector<8x32xf32>
    %59 = tpu.matmul %57, %58, %cst_34 {dimension_numbers = #tpu.dot_dimension_numbers<[1], [0], [0], [1], [0, 0, 1, 1], [], []>} : vector<8x8xf32>, vector<8x32xf32>, vector<8x32xf32> -> vector<8x32xf32>
    %60 = arith.addf %40, %59 : vector<8x32xf32>
    %61 = vector.extract_strided_slice %35 {offsets = [0, 8], sizes = [8, 8], strides = [1, 1]} : vector<8x32xf32> to vector<8x8xf32>
    %62 = vector.extract_strided_slice %36 {offsets = [0, 8], sizes = [8, 8], strides = [1, 1]} : vector<8x32xf32> to vector<8x8xf32>
    %63 = vector.extract_strided_slice %37 {offsets = [0, 8], sizes = [8, 8], strides = [1, 1]} : vector<8x32xf32> to vector<8x8xf32>
    %cst_35 = arith.constant dense<0.000000e+00> : vector<8x8xf32>
    %64 = tpu.matmul %61, %62, %cst_35 {dimension_numbers = #tpu.dot_dimension_numbers<[1], [1], [0], [0], [0, 0, 1, 0], [], []>} : vector<8x8xf32>, vector<8x8xf32>, vector<8x8xf32> -> vector<8x8xf32>
    %cst_36 = arith.constant 0.353553385 : f32
    %65 = vector.broadcast %cst_36 : f32 to vector<8x8xf32>
    %66 = arith.mulf %64, %65 : vector<8x8xf32>
    %67 = arith.addf %66, %5 : vector<8x8xf32>
    %cst_37 = arith.constant dense<0xFF800000> : vector<8xf32>
    %68 = vector.multi_reduction <maximumf>, %67, %cst_37 [1] : vector<8x8xf32> to vector<8xf32>
    %69 = vector.shape_cast %68 : vector<8xf32> to vector<8x1xf32>
    %70 = vector.broadcast %69 : vector<8x1xf32> to vector<8x8xf32>
    %71 = arith.subf %67, %70 : vector<8x8xf32>
    %72 = math.exp %71 : vector<8x8xf32>
    %cst_38 = arith.constant dense<0.000000e+00> : vector<8xf32>
    %73 = vector.multi_reduction <add>, %72, %cst_38 [1] : vector<8x8xf32> to vector<8xf32>
    %74 = vector.shape_cast %73 : vector<8xf32> to vector<8x1xf32>
    %75 = vector.broadcast %74 : vector<8x1xf32> to vector<8x8xf32>
    %76 = arith.divf %72, %75 : vector<8x8xf32>
    %cst_39 = arith.constant dense<0.000000e+00> : vector<8x8xf32>
    %77 = tpu.matmul %76, %63, %cst_39 {dimension_numbers = #tpu.dot_dimension_numbers<[1], [0], [0], [1], [0, 0, 1, 1], [], []>} : vector<8x8xf32>, vector<8x8xf32>, vector<8x8xf32> -> vector<8x8xf32>
    %78 = vector.extract_strided_slice %38 {offsets = [8, 0], sizes = [8, 32], strides = [1, 1]} : vector<32x32xf32> to vector<8x32xf32>
    %cst_40 = arith.constant dense<0.000000e+00> : vector<8x32xf32>
    %79 = tpu.matmul %77, %78, %cst_40 {dimension_numbers = #tpu.dot_dimension_numbers<[1], [0], [0], [1], [0, 0, 1, 1], [], []>} : vector<8x8xf32>, vector<8x32xf32>, vector<8x32xf32> -> vector<8x32xf32>
    %80 = arith.addf %60, %79 : vector<8x32xf32>
    %81 = vector.extract_strided_slice %35 {offsets = [0, 16], sizes = [8, 8], strides = [1, 1]} : vector<8x32xf32> to vector<8x8xf32>
    %82 = vector.extract_strided_slice %36 {offsets = [0, 16], sizes = [8, 8], strides = [1, 1]} : vector<8x32xf32> to vector<8x8xf32>
    %83 = vector.extract_strided_slice %37 {offsets = [0, 16], sizes = [8, 8], strides = [1, 1]} : vector<8x32xf32> to vector<8x8xf32>
    %cst_41 = arith.constant dense<0.000000e+00> : vector<8x8xf32>
    %84 = tpu.matmul %81, %82, %cst_41 {dimension_numbers = #tpu.dot_dimension_numbers<[1], [1], [0], [0], [0, 0, 1, 0], [], []>} : vector<8x8xf32>, vector<8x8xf32>, vector<8x8xf32> -> vector<8x8xf32>
    %cst_42 = arith.constant 0.353553385 : f32
    %85 = vector.broadcast %cst_42 : f32 to vector<8x8xf32>
    %86 = arith.mulf %84, %85 : vector<8x8xf32>
    %87 = arith.addf %86, %5 : vector<8x8xf32>
    %cst_43 = arith.constant dense<0xFF800000> : vector<8xf32>
    %88 = vector.multi_reduction <maximumf>, %87, %cst_43 [1] : vector<8x8xf32> to vector<8xf32>
    %89 = vector.shape_cast %88 : vector<8xf32> to vector<8x1xf32>
    %90 = vector.broadcast %89 : vector<8x1xf32> to vector<8x8xf32>
    %91 = arith.subf %87, %90 : vector<8x8xf32>
    %92 = math.exp %91 : vector<8x8xf32>
    %cst_44 = arith.constant dense<0.000000e+00> : vector<8xf32>
    %93 = vector.multi_reduction <add>, %92, %cst_44 [1] : vector<8x8xf32> to vector<8xf32>
    %94 = vector.shape_cast %93 : vector<8xf32> to vector<8x1xf32>
    %95 = vector.broadcast %94 : vector<8x1xf32> to vector<8x8xf32>
    %96 = arith.divf %92, %95 : vector<8x8xf32>
    %cst_45 = arith.constant dense<0.000000e+00> : vector<8x8xf32>
    %97 = tpu.matmul %96, %83, %cst_45 {dimension_numbers = #tpu.dot_dimension_numbers<[1], [0], [0], [1], [0, 0, 1, 1], [], []>} : vector<8x8xf32>, vector<8x8xf32>, vector<8x8xf32> -> vector<8x8xf32>
    %98 = vector.extract_strided_slice %38 {offsets = [16, 0], sizes = [8, 32], strides = [1, 1]} : vector<32x32xf32> to vector<8x32xf32>
    %cst_46 = arith.constant dense<0.000000e+00> : vector<8x32xf32>
    %99 = tpu.matmul %97, %98, %cst_46 {dimension_numbers = #tpu.dot_dimension_numbers<[1], [0], [0], [1], [0, 0, 1, 1], [], []>} : vector<8x8xf32>, vector<8x32xf32>, vector<8x32xf32> -> vector<8x32xf32>
    %100 = arith.addf %80, %99 : vector<8x32xf32>
    %101 = vector.extract_strided_slice %35 {offsets = [0, 24], sizes = [8, 8], strides = [1, 1]} : vector<8x32xf32> to vector<8x8xf32>
    %102 = vector.extract_strided_slice %36 {offsets = [0, 24], sizes = [8, 8], strides = [1, 1]} : vector<8x32xf32> to vector<8x8xf32>
    %103 = vector.extract_strided_slice %37 {offsets = [0, 24], sizes = [8, 8], strides = [1, 1]} : vector<8x32xf32> to vector<8x8xf32>
    %cst_47 = arith.constant dense<0.000000e+00> : vector<8x8xf32>
    %104 = tpu.matmul %101, %102, %cst_47 {dimension_numbers = #tpu.dot_dimension_numbers<[1], [1], [0], [0], [0, 0, 1, 0], [], []>} : vector<8x8xf32>, vector<8x8xf32>, vector<8x8xf32> -> vector<8x8xf32>
    %cst_48 = arith.constant 0.353553385 : f32
    %105 = vector.broadcast %cst_48 : f32 to vector<8x8xf32>
    %106 = arith.mulf %104, %105 : vector<8x8xf32>
    %107 = arith.addf %106, %5 : vector<8x8xf32>
    %cst_49 = arith.constant dense<0xFF800000> : vector<8xf32>
    %108 = vector.multi_reduction <maximumf>, %107, %cst_49 [1] : vector<8x8xf32> to vector<8xf32>
    %109 = vector.shape_cast %108 : vector<8xf32> to vector<8x1xf32>
    %110 = vector.broadcast %109 : vector<8x1xf32> to vector<8x8xf32>
    %111 = arith.subf %107, %110 : vector<8x8xf32>
    %112 = math.exp %111 : vector<8x8xf32>
    %cst_50 = arith.constant dense<0.000000e+00> : vector<8xf32>
    %113 = vector.multi_reduction <add>, %112, %cst_50 [1] : vector<8x8xf32> to vector<8xf32>
    %114 = vector.shape_cast %113 : vector<8xf32> to vector<8x1xf32>
    %115 = vector.broadcast %114 : vector<8x1xf32> to vector<8x8xf32>
    %116 = arith.divf %112, %115 : vector<8x8xf32>
    %cst_51 = arith.constant dense<0.000000e+00> : vector<8x8xf32>
    %117 = tpu.matmul %116, %103, %cst_51 {dimension_numbers = #tpu.dot_dimension_numbers<[1], [0], [0], [1], [0, 0, 1, 1], [], []>} : vector<8x8xf32>, vector<8x8xf32>, vector<8x8xf32> -> vector<8x8xf32>
    %118 = vector.extract_strided_slice %38 {offsets = [24, 0], sizes = [8, 32], strides = [1, 1]} : vector<32x32xf32> to vector<8x32xf32>
    %cst_52 = arith.constant dense<0.000000e+00> : vector<8x32xf32>
    %119 = tpu.matmul %117, %118, %cst_52 {dimension_numbers = #tpu.dot_dimension_numbers<[1], [0], [0], [1], [0, 0, 1, 1], [], []>} : vector<8x8xf32>, vector<8x32xf32>, vector<8x32xf32> -> vector<8x32xf32>
    %120 = arith.addf %100, %119 : vector<8x32xf32>
    %121 = vector.broadcast %39 : vector<1x32xf32> to vector<8x32xf32>
    %122 = arith.addf %120, %121 : vector<8x32xf32>
    %123 = arith.addf %1, %122 : vector<8x32xf32>
    %c0_53 = arith.constant 0 : index
    %c0_54 = arith.constant 0 : index
    %124 = vector.load %arg11[%c0_53, %c0_54] : memref<1x32xf32, #tpu.memory_space<vmem>>, vector<1x32xf32>
    %c0_55 = arith.constant 0 : index
    %c0_56 = arith.constant 0 : index
    %125 = vector.load %arg12[%c0_55, %c0_56] : memref<1x32xf32, #tpu.memory_space<vmem>>, vector<1x32xf32>
    %cst_57 = arith.constant dense<0.000000e+00> : vector<8xf32>
    %126 = vector.multi_reduction <add>, %123, %cst_57 [1] : vector<8x32xf32> to vector<8xf32>
    %127 = vector.shape_cast %126 : vector<8xf32> to vector<8x1xf32>
    %cst_58 = arith.constant 3.200000e+01 : f32
    %128 = vector.broadcast %cst_58 : f32 to vector<8x1xf32>
    %129 = arith.divf %127, %128 : vector<8x1xf32>
    %130 = vector.broadcast %129 : vector<8x1xf32> to vector<8x32xf32>
    %131 = arith.subf %123, %130 : vector<8x32xf32>
    %132 = arith.mulf %131, %131 : vector<8x32xf32>
    %cst_59 = arith.constant dense<0.000000e+00> : vector<8xf32>
    %133 = vector.multi_reduction <add>, %132, %cst_59 [1] : vector<8x32xf32> to vector<8xf32>
    %134 = vector.shape_cast %133 : vector<8xf32> to vector<8x1xf32>
    %cst_60 = arith.constant 3.200000e+01 : f32
    %135 = vector.broadcast %cst_60 : f32 to vector<8x1xf32>
    %136 = arith.divf %134, %135 : vector<8x1xf32>
    %cst_61 = arith.constant 9.99999997E-7 : f32
    %137 = vector.broadcast %cst_61 : f32 to vector<8x1xf32>
    %138 = arith.addf %136, %137 : vector<8x1xf32>
    %139 = math.rsqrt %138 : vector<8x1xf32>
    %140 = vector.broadcast %139 : vector<8x1xf32> to vector<8x32xf32>
    %141 = arith.mulf %131, %140 : vector<8x32xf32>
    %142 = vector.broadcast %124 : vector<1x32xf32> to vector<8x32xf32>
    %143 = arith.mulf %141, %142 : vector<8x32xf32>
    %144 = vector.broadcast %125 : vector<1x32xf32> to vector<8x32xf32>
    %145 = arith.addf %143, %144 : vector<8x32xf32>
    %c0_62 = arith.constant 0 : index
    %c0_63 = arith.constant 0 : index
    %146 = vector.load %arg13[%c0_62, %c0_63] : memref<32x32xf32, #tpu.memory_space<vmem>>, vector<32x32xf32>
    %cst_64 = arith.constant dense<0.000000e+00> : vector<8x32xf32>
    %147 = tpu.matmul %145, %146, %cst_64 {dimension_numbers = #tpu.dot_dimension_numbers<[1], [0], [0], [1], [0, 0, 1, 1], [], []>} : vector<8x32xf32>, vector<32x32xf32>, vector<8x32xf32> -> vector<8x32xf32>
    %c0_65 = arith.constant 0 : index
    %c0_66 = arith.constant 0 : index
    %148 = vector.load %arg14[%c0_65, %c0_66] : memref<1x32xf32, #tpu.memory_space<vmem>>, vector<1x32xf32>
    %149 = vector.broadcast %148 : vector<1x32xf32> to vector<8x32xf32>
    %150 = arith.addf %147, %149 : vector<8x32xf32>
    %c0_67 = arith.constant 0 : index
    %c0_68 = arith.constant 0 : index
    %151 = vector.load %arg15[%c0_67, %c0_68] : memref<32x64xf32, #tpu.memory_space<vmem>>, vector<32x64xf32>
    %cst_69 = arith.constant dense<0.000000e+00> : vector<8x64xf32>
    %152 = tpu.matmul %3, %151, %cst_69 {dimension_numbers = #tpu.dot_dimension_numbers<[1], [0], [0], [1], [0, 0, 1, 1], [], []>} : vector<8x32xf32>, vector<32x64xf32>, vector<8x64xf32> -> vector<8x64xf32>
    %c0_70 = arith.constant 0 : index
    %c0_71 = arith.constant 0 : index
    %153 = vector.load %arg16[%c0_70, %c0_71] : memref<1x64xf32, #tpu.memory_space<vmem>>, vector<1x64xf32>
    %154 = vector.broadcast %153 : vector<1x64xf32> to vector<8x64xf32>
    %155 = arith.addf %152, %154 : vector<8x64xf32>
    %156 = vector.extract_strided_slice %155 {offsets = [0, 0], sizes = [8, 32], strides = [1, 1]} : vector<8x64xf32> to vector<8x32xf32>
    %157 = vector.extract_strided_slice %155 {offsets = [0, 32], sizes = [8, 32], strides = [1, 1]} : vector<8x64xf32> to vector<8x32xf32>
    %c0_72 = arith.constant 0 : index
    %c0_73 = arith.constant 0 : index
    %158 = vector.load %arg17[%c0_72, %c0_73] : memref<32x32xf32, #tpu.memory_space<vmem>>, vector<32x32xf32>
    %c0_74 = arith.constant 0 : index
    %c0_75 = arith.constant 0 : index
    %159 = vector.load %arg18[%c0_74, %c0_75] : memref<1x32xf32, #tpu.memory_space<vmem>>, vector<1x32xf32>
    %cst_76 = arith.constant 0.000000e+00 : f32
    %160 = vector.broadcast %cst_76 : f32 to vector<8x32xf32>
    %161 = vector.extract_strided_slice %150 {offsets = [0, 0], sizes = [8, 8], strides = [1, 1]} : vector<8x32xf32> to vector<8x8xf32>
    %162 = vector.extract_strided_slice %156 {offsets = [0, 0], sizes = [8, 8], strides = [1, 1]} : vector<8x32xf32> to vector<8x8xf32>
    %163 = vector.extract_strided_slice %157 {offsets = [0, 0], sizes = [8, 8], strides = [1, 1]} : vector<8x32xf32> to vector<8x8xf32>
    %cst_77 = arith.constant dense<0.000000e+00> : vector<8x8xf32>
    %164 = tpu.matmul %161, %162, %cst_77 {dimension_numbers = #tpu.dot_dimension_numbers<[1], [1], [0], [0], [0, 0, 1, 0], [], []>} : vector<8x8xf32>, vector<8x8xf32>, vector<8x8xf32> -> vector<8x8xf32>
    %cst_78 = arith.constant 0.353553385 : f32
    %165 = vector.broadcast %cst_78 : f32 to vector<8x8xf32>
    %166 = arith.mulf %164, %165 : vector<8x8xf32>
    %167 = arith.addf %166, %7 : vector<8x8xf32>
    %cst_79 = arith.constant dense<0xFF800000> : vector<8xf32>
    %168 = vector.multi_reduction <maximumf>, %167, %cst_79 [1] : vector<8x8xf32> to vector<8xf32>
    %169 = vector.shape_cast %168 : vector<8xf32> to vector<8x1xf32>
    %170 = vector.broadcast %169 : vector<8x1xf32> to vector<8x8xf32>
    %171 = arith.subf %167, %170 : vector<8x8xf32>
    %172 = math.exp %171 : vector<8x8xf32>
    %cst_80 = arith.constant dense<0.000000e+00> : vector<8xf32>
    %173 = vector.multi_reduction <add>, %172, %cst_80 [1] : vector<8x8xf32> to vector<8xf32>
    %174 = vector.shape_cast %173 : vector<8xf32> to vector<8x1xf32>
    %175 = vector.broadcast %174 : vector<8x1xf32> to vector<8x8xf32>
    %176 = arith.divf %172, %175 : vector<8x8xf32>
    %cst_81 = arith.constant dense<0.000000e+00> : vector<8x8xf32>
    %177 = tpu.matmul %176, %163, %cst_81 {dimension_numbers = #tpu.dot_dimension_numbers<[1], [0], [0], [1], [0, 0, 1, 1], [], []>} : vector<8x8xf32>, vector<8x8xf32>, vector<8x8xf32> -> vector<8x8xf32>
    %178 = vector.extract_strided_slice %158 {offsets = [0, 0], sizes = [8, 32], strides = [1, 1]} : vector<32x32xf32> to vector<8x32xf32>
    %cst_82 = arith.constant dense<0.000000e+00> : vector<8x32xf32>
    %179 = tpu.matmul %177, %178, %cst_82 {dimension_numbers = #tpu.dot_dimension_numbers<[1], [0], [0], [1], [0, 0, 1, 1], [], []>} : vector<8x8xf32>, vector<8x32xf32>, vector<8x32xf32> -> vector<8x32xf32>
    %180 = arith.addf %160, %179 : vector<8x32xf32>
    %181 = vector.extract_strided_slice %150 {offsets = [0, 8], sizes = [8, 8], strides = [1, 1]} : vector<8x32xf32> to vector<8x8xf32>
    %182 = vector.extract_strided_slice %156 {offsets = [0, 8], sizes = [8, 8], strides = [1, 1]} : vector<8x32xf32> to vector<8x8xf32>
    %183 = vector.extract_strided_slice %157 {offsets = [0, 8], sizes = [8, 8], strides = [1, 1]} : vector<8x32xf32> to vector<8x8xf32>
    %cst_83 = arith.constant dense<0.000000e+00> : vector<8x8xf32>
    %184 = tpu.matmul %181, %182, %cst_83 {dimension_numbers = #tpu.dot_dimension_numbers<[1], [1], [0], [0], [0, 0, 1, 0], [], []>} : vector<8x8xf32>, vector<8x8xf32>, vector<8x8xf32> -> vector<8x8xf32>
    %cst_84 = arith.constant 0.353553385 : f32
    %185 = vector.broadcast %cst_84 : f32 to vector<8x8xf32>
    %186 = arith.mulf %184, %185 : vector<8x8xf32>
    %187 = arith.addf %186, %7 : vector<8x8xf32>
    %cst_85 = arith.constant dense<0xFF800000> : vector<8xf32>
    %188 = vector.multi_reduction <maximumf>, %187, %cst_85 [1] : vector<8x8xf32> to vector<8xf32>
    %189 = vector.shape_cast %188 : vector<8xf32> to vector<8x1xf32>
    %190 = vector.broadcast %189 : vector<8x1xf32> to vector<8x8xf32>
    %191 = arith.subf %187, %190 : vector<8x8xf32>
    %192 = math.exp %191 : vector<8x8xf32>
    %cst_86 = arith.constant dense<0.000000e+00> : vector<8xf32>
    %193 = vector.multi_reduction <add>, %192, %cst_86 [1] : vector<8x8xf32> to vector<8xf32>
    %194 = vector.shape_cast %193 : vector<8xf32> to vector<8x1xf32>
    %195 = vector.broadcast %194 : vector<8x1xf32> to vector<8x8xf32>
    %196 = arith.divf %192, %195 : vector<8x8xf32>
    %cst_87 = arith.constant dense<0.000000e+00> : vector<8x8xf32>
    %197 = tpu.matmul %196, %183, %cst_87 {dimension_numbers = #tpu.dot_dimension_numbers<[1], [0], [0], [1], [0, 0, 1, 1], [], []>} : vector<8x8xf32>, vector<8x8xf32>, vector<8x8xf32> -> vector<8x8xf32>
    %198 = vector.extract_strided_slice %158 {offsets = [8, 0], sizes = [8, 32], strides = [1, 1]} : vector<32x32xf32> to vector<8x32xf32>
    %cst_88 = arith.constant dense<0.000000e+00> : vector<8x32xf32>
    %199 = tpu.matmul %197, %198, %cst_88 {dimension_numbers = #tpu.dot_dimension_numbers<[1], [0], [0], [1], [0, 0, 1, 1], [], []>} : vector<8x8xf32>, vector<8x32xf32>, vector<8x32xf32> -> vector<8x32xf32>
    %200 = arith.addf %180, %199 : vector<8x32xf32>
    %201 = vector.extract_strided_slice %150 {offsets = [0, 16], sizes = [8, 8], strides = [1, 1]} : vector<8x32xf32> to vector<8x8xf32>
    %202 = vector.extract_strided_slice %156 {offsets = [0, 16], sizes = [8, 8], strides = [1, 1]} : vector<8x32xf32> to vector<8x8xf32>
    %203 = vector.extract_strided_slice %157 {offsets = [0, 16], sizes = [8, 8], strides = [1, 1]} : vector<8x32xf32> to vector<8x8xf32>
    %cst_89 = arith.constant dense<0.000000e+00> : vector<8x8xf32>
    %204 = tpu.matmul %201, %202, %cst_89 {dimension_numbers = #tpu.dot_dimension_numbers<[1], [1], [0], [0], [0, 0, 1, 0], [], []>} : vector<8x8xf32>, vector<8x8xf32>, vector<8x8xf32> -> vector<8x8xf32>
    %cst_90 = arith.constant 0.353553385 : f32
    %205 = vector.broadcast %cst_90 : f32 to vector<8x8xf32>
    %206 = arith.mulf %204, %205 : vector<8x8xf32>
    %207 = arith.addf %206, %7 : vector<8x8xf32>
    %cst_91 = arith.constant dense<0xFF800000> : vector<8xf32>
    %208 = vector.multi_reduction <maximumf>, %207, %cst_91 [1] : vector<8x8xf32> to vector<8xf32>
    %209 = vector.shape_cast %208 : vector<8xf32> to vector<8x1xf32>
    %210 = vector.broadcast %209 : vector<8x1xf32> to vector<8x8xf32>
    %211 = arith.subf %207, %210 : vector<8x8xf32>
    %212 = math.exp %211 : vector<8x8xf32>
    %cst_92 = arith.constant dense<0.000000e+00> : vector<8xf32>
    %213 = vector.multi_reduction <add>, %212, %cst_92 [1] : vector<8x8xf32> to vector<8xf32>
    %214 = vector.shape_cast %213 : vector<8xf32> to vector<8x1xf32>
    %215 = vector.broadcast %214 : vector<8x1xf32> to vector<8x8xf32>
    %216 = arith.divf %212, %215 : vector<8x8xf32>
    %cst_93 = arith.constant dense<0.000000e+00> : vector<8x8xf32>
    %217 = tpu.matmul %216, %203, %cst_93 {dimension_numbers = #tpu.dot_dimension_numbers<[1], [0], [0], [1], [0, 0, 1, 1], [], []>} : vector<8x8xf32>, vector<8x8xf32>, vector<8x8xf32> -> vector<8x8xf32>
    %218 = vector.extract_strided_slice %158 {offsets = [16, 0], sizes = [8, 32], strides = [1, 1]} : vector<32x32xf32> to vector<8x32xf32>
    %cst_94 = arith.constant dense<0.000000e+00> : vector<8x32xf32>
    %219 = tpu.matmul %217, %218, %cst_94 {dimension_numbers = #tpu.dot_dimension_numbers<[1], [0], [0], [1], [0, 0, 1, 1], [], []>} : vector<8x8xf32>, vector<8x32xf32>, vector<8x32xf32> -> vector<8x32xf32>
    %220 = arith.addf %200, %219 : vector<8x32xf32>
    %221 = vector.extract_strided_slice %150 {offsets = [0, 24], sizes = [8, 8], strides = [1, 1]} : vector<8x32xf32> to vector<8x8xf32>
    %222 = vector.extract_strided_slice %156 {offsets = [0, 24], sizes = [8, 8], strides = [1, 1]} : vector<8x32xf32> to vector<8x8xf32>
    %223 = vector.extract_strided_slice %157 {offsets = [0, 24], sizes = [8, 8], strides = [1, 1]} : vector<8x32xf32> to vector<8x8xf32>
    %cst_95 = arith.constant dense<0.000000e+00> : vector<8x8xf32>
    %224 = tpu.matmul %221, %222, %cst_95 {dimension_numbers = #tpu.dot_dimension_numbers<[1], [1], [0], [0], [0, 0, 1, 0], [], []>} : vector<8x8xf32>, vector<8x8xf32>, vector<8x8xf32> -> vector<8x8xf32>
    %cst_96 = arith.constant 0.353553385 : f32
    %225 = vector.broadcast %cst_96 : f32 to vector<8x8xf32>
    %226 = arith.mulf %224, %225 : vector<8x8xf32>
    %227 = arith.addf %226, %7 : vector<8x8xf32>
    %cst_97 = arith.constant dense<0xFF800000> : vector<8xf32>
    %228 = vector.multi_reduction <maximumf>, %227, %cst_97 [1] : vector<8x8xf32> to vector<8xf32>
    %229 = vector.shape_cast %228 : vector<8xf32> to vector<8x1xf32>
    %230 = vector.broadcast %229 : vector<8x1xf32> to vector<8x8xf32>
    %231 = arith.subf %227, %230 : vector<8x8xf32>
    %232 = math.exp %231 : vector<8x8xf32>
    %cst_98 = arith.constant dense<0.000000e+00> : vector<8xf32>
    %233 = vector.multi_reduction <add>, %232, %cst_98 [1] : vector<8x8xf32> to vector<8xf32>
    %234 = vector.shape_cast %233 : vector<8xf32> to vector<8x1xf32>
    %235 = vector.broadcast %234 : vector<8x1xf32> to vector<8x8xf32>
    %236 = arith.divf %232, %235 : vector<8x8xf32>
    %cst_99 = arith.constant dense<0.000000e+00> : vector<8x8xf32>
    %237 = tpu.matmul %236, %223, %cst_99 {dimension_numbers = #tpu.dot_dimension_numbers<[1], [0], [0], [1], [0, 0, 1, 1], [], []>} : vector<8x8xf32>, vector<8x8xf32>, vector<8x8xf32> -> vector<8x8xf32>
    %238 = vector.extract_strided_slice %158 {offsets = [24, 0], sizes = [8, 32], strides = [1, 1]} : vector<32x32xf32> to vector<8x32xf32>
    %cst_100 = arith.constant dense<0.000000e+00> : vector<8x32xf32>
    %239 = tpu.matmul %237, %238, %cst_100 {dimension_numbers = #tpu.dot_dimension_numbers<[1], [0], [0], [1], [0, 0, 1, 1], [], []>} : vector<8x8xf32>, vector<8x32xf32>, vector<8x32xf32> -> vector<8x32xf32>
    %240 = arith.addf %220, %239 : vector<8x32xf32>
    %241 = vector.broadcast %159 : vector<1x32xf32> to vector<8x32xf32>
    %242 = arith.addf %240, %241 : vector<8x32xf32>
    %243 = arith.addf %123, %242 : vector<8x32xf32>
    %c0_101 = arith.constant 0 : index
    %c0_102 = arith.constant 0 : index
    %244 = vector.load %arg19[%c0_101, %c0_102] : memref<1x32xf32, #tpu.memory_space<vmem>>, vector<1x32xf32>
    %c0_103 = arith.constant 0 : index
    %c0_104 = arith.constant 0 : index
    %245 = vector.load %arg20[%c0_103, %c0_104] : memref<1x32xf32, #tpu.memory_space<vmem>>, vector<1x32xf32>
    %cst_105 = arith.constant dense<0.000000e+00> : vector<8xf32>
    %246 = vector.multi_reduction <add>, %243, %cst_105 [1] : vector<8x32xf32> to vector<8xf32>
    %247 = vector.shape_cast %246 : vector<8xf32> to vector<8x1xf32>
    %cst_106 = arith.constant 3.200000e+01 : f32
    %248 = vector.broadcast %cst_106 : f32 to vector<8x1xf32>
    %249 = arith.divf %247, %248 : vector<8x1xf32>
    %250 = vector.broadcast %249 : vector<8x1xf32> to vector<8x32xf32>
    %251 = arith.subf %243, %250 : vector<8x32xf32>
    %252 = arith.mulf %251, %251 : vector<8x32xf32>
    %cst_107 = arith.constant dense<0.000000e+00> : vector<8xf32>
    %253 = vector.multi_reduction <add>, %252, %cst_107 [1] : vector<8x32xf32> to vector<8xf32>
    %254 = vector.shape_cast %253 : vector<8xf32> to vector<8x1xf32>
    %cst_108 = arith.constant 3.200000e+01 : f32
    %255 = vector.broadcast %cst_108 : f32 to vector<8x1xf32>
    %256 = arith.divf %254, %255 : vector<8x1xf32>
    %cst_109 = arith.constant 9.99999997E-7 : f32
    %257 = vector.broadcast %cst_109 : f32 to vector<8x1xf32>
    %258 = arith.addf %256, %257 : vector<8x1xf32>
    %259 = math.rsqrt %258 : vector<8x1xf32>
    %260 = vector.broadcast %259 : vector<8x1xf32> to vector<8x32xf32>
    %261 = arith.mulf %251, %260 : vector<8x32xf32>
    %262 = vector.broadcast %244 : vector<1x32xf32> to vector<8x32xf32>
    %263 = arith.mulf %261, %262 : vector<8x32xf32>
    %264 = vector.broadcast %245 : vector<1x32xf32> to vector<8x32xf32>
    %265 = arith.addf %263, %264 : vector<8x32xf32>
    %c0_110 = arith.constant 0 : index
    %c0_111 = arith.constant 0 : index
    %266 = vector.load %arg21[%c0_110, %c0_111] : memref<32x128xf32, #tpu.memory_space<vmem>>, vector<32x128xf32>
    %cst_112 = arith.constant dense<0.000000e+00> : vector<8x128xf32>
    %267 = tpu.matmul %265, %266, %cst_112 {dimension_numbers = #tpu.dot_dimension_numbers<[1], [0], [0], [1], [0, 0, 1, 1], [], []>} : vector<8x32xf32>, vector<32x128xf32>, vector<8x128xf32> -> vector<8x128xf32>
    %c0_113 = arith.constant 0 : index
    %c0_114 = arith.constant 0 : index
    %268 = vector.load %arg22[%c0_113, %c0_114] : memref<1x128xf32, #tpu.memory_space<vmem>>, vector<1x128xf32>
    %269 = vector.broadcast %268 : vector<1x128xf32> to vector<8x128xf32>
    %270 = arith.addf %267, %269 : vector<8x128xf32>
    %271 = arith.mulf %270, %270 : vector<8x128xf32>
    %272 = arith.mulf %270, %271 : vector<8x128xf32>
    %cst_115 = arith.constant 4.471500e-02 : f32
    %273 = vector.broadcast %cst_115 : f32 to vector<8x128xf32>
    %274 = arith.mulf %273, %272 : vector<8x128xf32>
    %275 = arith.addf %270, %274 : vector<8x128xf32>
    %cst_116 = arith.constant 0.797884583 : f32
    %276 = vector.broadcast %cst_116 : f32 to vector<8x128xf32>
    %277 = arith.mulf %276, %275 : vector<8x128xf32>
    %278 = math.tanh %277 : vector<8x128xf32>
    %cst_117 = arith.constant 1.000000e+00 : f32
    %279 = vector.broadcast %cst_117 : f32 to vector<8x128xf32>
    %280 = arith.addf %279, %278 : vector<8x128xf32>
    %cst_118 = arith.constant 5.000000e-01 : f32
    %281 = vector.broadcast %cst_118 : f32 to vector<8x128xf32>
    %282 = arith.mulf %281, %280 : vector<8x128xf32>
    %283 = arith.mulf %270, %282 : vector<8x128xf32>
    %c0_119 = arith.constant 0 : index
    %c0_120 = arith.constant 0 : index
    %284 = vector.load %arg23[%c0_119, %c0_120] : memref<128x32xf32, #tpu.memory_space<vmem>>, vector<128x32xf32>
    %cst_121 = arith.constant dense<0.000000e+00> : vector<8x32xf32>
    %285 = tpu.matmul %283, %284, %cst_121 {dimension_numbers = #tpu.dot_dimension_numbers<[1], [0], [0], [1], [0, 0, 1, 1], [], []>} : vector<8x128xf32>, vector<128x32xf32>, vector<8x32xf32> -> vector<8x32xf32>
    %c0_122 = arith.constant 0 : index
    %c0_123 = arith.constant 0 : index
    %286 = vector.load %arg24[%c0_122, %c0_123] : memref<1x32xf32, #tpu.memory_space<vmem>>, vector<1x32xf32>
    %287 = vector.broadcast %286 : vector<1x32xf32> to vector<8x32xf32>
    %288 = arith.addf %285, %287 : vector<8x32xf32>
    %289 = arith.addf %243, %288 : vector<8x32xf32>
    %c0_124 = arith.constant 0 : index
    %c0_125 = arith.constant 0 : index
    %c0_126 = arith.constant 0 : index
    %290 = vector.load %arg25[%c0_124, %c0_125, %c0_126] : memref<1x8x32xf32, #tpu.memory_space<vmem>>, vector<1x8x32xf32>
    %291 = vector.shape_cast %290 : vector<1x8x32xf32> to vector<8x32xf32>
    %292 = vector.shape_cast %289 : vector<8x32xf32> to vector<1x8x32xf32>
    tpu.vector_store %arg25[%c0_124, %c0_125, %c0_126], %292 {strides = array<i32>} : memref<1x8x32xf32, #tpu.memory_space<vmem>>, vector<1x8x32xf32>,
    return
  }
  func.func @transform_0(%arg0: i32) -> (i32, i32, i32) {
    %c0_i32 = arith.constant 0 : i32
    %c0_i32_0 = arith.constant 0 : i32
    %c0_i32_1 = arith.constant 0 : i32
    return %arg0, %c0_i32, %c0_i32_0 : i32, i32, i32
  }
  func.func @transform_1(%arg0: i32) -> (i32, i32, i32) {
    %c0_i32 = arith.constant 0 : i32
    %c0_i32_0 = arith.constant 0 : i32
    %c0_i32_1 = arith.constant 0 : i32
    return %arg0, %c0_i32, %c0_i32_0 : i32, i32, i32
  }
  func.func @transform_2(%arg0: i32) -> (i32, i32, i32) {
    %c0_i32 = arith.constant 0 : i32
    %c0_i32_0 = arith.constant 0 : i32
    %c0_i32_1 = arith.constant 0 : i32
    return %arg0, %c0_i32, %c0_i32_0 : i32, i32, i32
  }
  func.func @transform_3(%arg0: i32) -> (i32, i32, i32) {
    %c0_i32 = arith.constant 0 : i32
    %c0_i32_0 = arith.constant 0 : i32
    %c0_i32_1 = arith.constant 0 : i32
    return %arg0, %c0_i32, %c0_i32_0 : i32, i32, i32
  }
  func.func @transform_4(%arg0: i32) -> (i32, i32) {
    %c0_i32 = arith.constant 0 : i32
    %c0_i32_0 = arith.constant 0 : i32
    %c0_i32_1 = arith.constant 0 : i32
    return %c0_i32, %c0_i32_0 : i32, i32
  }
  func.func @transform_5(%arg0: i32) -> (i32, i32) {
    %c0_i32 = arith.constant 0 : i32
    %c0_i32_0 = arith.constant 0 : i32
    %c0_i32_1 = arith.constant 0 : i32
    return %c0_i32, %c0_i32_0 : i32, i32
  }
  func.func @transform_6(%arg0: i32) -> (i32, i32) {
    %c0_i32 = arith.constant 0 : i32
    %c0_i32_0 = arith.constant 0 : i32
    %c0_i32_1 = arith.constant 0 : i32
    return %c0_i32, %c0_i32_0 : i32, i32
  }
  func.func @transform_7(%arg0: i32) -> (i32, i32) {
    %c0_i32 = arith.constant 0 : i32
    %c0_i32_0 = arith.constant 0 : i32
    %c0_i32_1 = arith.constant 0 : i32
    return %c0_i32, %c0_i32_0 : i32, i32
  }
  func.func @transform_8(%arg0: i32) -> (i32, i32) {
    %c0_i32 = arith.constant 0 : i32
    %c0_i32_0 = arith.constant 0 : i32
    %c0_i32_1 = arith.constant 0 : i32
    return %c0_i32, %c0_i32_0 : i32, i32
  }
  func.func @transform_9(%arg0: i32) -> (i32, i32) {
    %c0_i32 = arith.constant 0 : i32
    %c0_i32_0 = arith.constant 0 : i32
    %c0_i32_1 = arith.constant 0 : i32
    return %c0_i32, %c0_i32_0 : i32, i32
  }
  func.func @transform_10(%arg0: i32) -> (i32, i32) {
    %c0_i32 = arith.constant 0 : i32
    %c0_i32_0 = arith.constant 0 : i32
    %c0_i32_1 = arith.constant 0 : i32
    return %c0_i32, %c0_i32_0 : i32, i32
  }
  func.func @transform_11(%arg0: i32) -> (i32, i32) {
    %c0_i32 = arith.constant 0 : i32
    %c0_i32_0 = arith.constant 0 : i32
    %c0_i32_1 = arith.constant 0 : i32
    return %c0_i32, %c0_i32_0 : i32, i32
  }
  func.func @transform_12(%arg0: i32) -> (i32, i32) {
    %c0_i32 = arith.constant 0 : i32
    %c0_i32_0 = arith.constant 0 : i32
    %c0_i32_1 = arith.constant 0 : i32
    return %c0_i32, %c0_i32_0 : i32, i32
  }
  func.func @transform_13(%arg0: i32) -> (i32, i32) {
    %c0_i32 = arith.constant 0 : i32
    %c0_i32_0 = arith.constant 0 : i32
    %c0_i32_1 = arith.constant 0 : i32
    return %c0_i32, %c0_i32_0 : i32, i32
  }
  func.func @transform_14(%arg0: i32) -> (i32, i32) {
    %c0_i32 = arith.constant 0 : i32
    %c0_i32_0 = arith.constant 0 : i32
    %c0_i32_1 = arith.constant 0 : i32
    return %c0_i32, %c0_i32_0 : i32, i32
  }
  func.func @transform_15(%arg0: i32) -> (i32, i32) {
    %c0_i32 = arith.constant 0 : i32
    %c0_i32_0 = arith.constant 0 : i32
    %c0_i32_1 = arith.constant 0 : i32
    return %c0_i32, %c0_i32_0 : i32, i32
  }
  func.func @transform_16(%arg0: i32) -> (i32, i32) {
    %c0_i32 = arith.constant 0 : i32
    %c0_i32_0 = arith.constant 0 : i32
    %c0_i32_1 = arith.constant 0 : i32
    return %c0_i32, %c0_i32_0 : i32, i32
  }
  func.func @transform_17(%arg0: i32) -> (i32, i32) {
    %c0_i32 = arith.constant 0 : i32
    %c0_i32_0 = arith.constant 0 : i32
    %c0_i32_1 = arith.constant 0 : i32
    return %c0_i32, %c0_i32_0 : i32, i32
  }
  func.func @transform_18(%arg0: i32) -> (i32, i32) {
    %c0_i32 = arith.constant 0 : i32
    %c0_i32_0 = arith.constant 0 : i32
    %c0_i32_1 = arith.constant 0 : i32
    return %c0_i32, %c0_i32_0 : i32, i32
  }
  func.func @transform_19(%arg0: i32) -> (i32, i32) {
    %c0_i32 = arith.constant 0 : i32
    %c0_i32_0 = arith.constant 0 : i32
    %c0_i32_1 = arith.constant 0 : i32
    return %c0_i32, %c0_i32_0 : i32, i32
  }
  func.func @transform_20(%arg0: i32) -> (i32, i32) {
    %c0_i32 = arith.constant 0 : i32
    %c0_i32_0 = arith.constant 0 : i32
    %c0_i32_1 = arith.constant 0 : i32
    return %c0_i32, %c0_i32_0 : i32, i32
  }
  func.func @transform_21(%arg0: i32) -> (i32, i32) {
    %c0_i32 = arith.constant 0 : i32
    %c0_i32_0 = arith.constant 0 : i32
    %c0_i32_1 = arith.constant 0 : i32
    return %c0_i32, %c0_i32_0 : i32, i32
  }
  func.func @transform_22(%arg0: i32) -> (i32, i32) {
    %c0_i32 = arith.constant 0 : i32
    %c0_i32_0 = arith.constant 0 : i32
    %c0_i32_1 = arith.constant 0 : i32
    return %c0_i32, %c0_i32_0 : i32, i32
  }
  func.func @transform_23(%arg0: i32) -> (i32, i32) {
    %c0_i32 = arith.constant 0 : i32
    %c0_i32_0 = arith.constant 0 : i32
    %c0_i32_1 = arith.constant 0 : i32
    return %c0_i32, %c0_i32_0 : i32, i32
  }
  func.func @transform_24(%arg0: i32) -> (i32, i32, i32) {
    %c0_i32 = arith.constant 0 : i32
    %c0_i32_0 = arith.constant 0 : i32
    %c0_i32_1 = arith.constant 0 : i32
    return %arg0, %c0_i32, %c0_i32_0 : i32, i32, i32
  }
}

module attributes {stable_mosaic.version = 11 : i64} {
  func.func @_decoder_block_kernel(%arg0: i32, %arg1: memref<1x8x32xf32, #tpu.memory_space<vmem>>, %arg2: memref<1x8x32xf32, #tpu.memory_space<vmem>>, %arg3: memref<1x8x8xf32, #tpu.memory_space<vmem>>, %arg4: memref<1x8x8xf32, #tpu.memory_space<vmem>>, %arg5: memref<1x32xf32, #tpu.memory_space<vmem>>, %arg6: memref<1x32xf32, #tpu.memory_space<vmem>>, %arg7: memref<32x96xf32, #tpu.memory_space<vmem>>, %arg8: memref<1x96xf32, #tpu.memory_space<vmem>>, %arg9: memref<32x32xf32, #tpu.memory_space<vmem>>, %arg10: memref<1x32xf32, #tpu.memory_space<vmem>>, %arg11: memref<1x32xf32, #tpu.memory_space<vmem>>, %arg12: memref<1x32xf32, #tpu.memory_space<vmem>>, %arg13: memref<32x32xf32, #tpu.memory_space<vmem>>, %arg14: memref<1x32xf32, #tpu.memory_space<vmem>>, %arg15: memref<32x64xf32, #tpu.memory_space<vmem>>, %arg16: memref<1x64xf32, #tpu.memory_space<vmem>>, %arg17: memref<32x32xf32, #tpu.memory_space<vmem>>, %arg18: memref<1x32xf32, #tpu.memory_space<vmem>>, %arg19: memref<1x32xf32, #tpu.memory_space<vmem>>, %arg20: memref<1x32xf32, #tpu.memory_space<vmem>>, %arg21: memref<32x128xf32, #tpu.memory_space<vmem>>, %arg22: memref<1x128xf32, #tpu.memory_space<vmem>>, %arg23: memref<128x32xf32, #tpu.memory_space<vmem>>, %arg24: memref<1x32xf32, #tpu.memory_space<vmem>>, %arg25: memref<1x8x32xf32, #tpu.memory_space<vmem>>) attributes {dimension_semantics = [#tpu.dimension_semantics<parallel>], iteration_bounds = array<i64: 2>, scalar_prefetch = 0 : i64, scratch_operands = 0 : i64, tpu.core_type = #tpu.core_type<tc>, window_params = [{transform_indices = @transform_0, window_bounds = array<i64: 1, 8, 32>}, {transform_indices = @transform_1, window_bounds = array<i64: 1, 8, 32>}, {transform_indices = @transform_2, window_bounds = array<i64: 1, 8, 8>}, {transform_indices = @transform_3, window_bounds = array<i64: 1, 8, 8>}, {pipeline_mode = #tpu.pipeline_mode<synchronous>, transform_indices = @transform_4, window_bounds = array<i64: 1, 32>}, {pipeline_mode = #tpu.pipeline_mode<synchronous>, transform_indices = @transform_5, window_bounds = array<i64: 1, 32>}, {pipeline_mode = #tpu.pipeline_mode<synchronous>, transform_indices = @transform_6, window_bounds = array<i64: 32, 96>}, {pipeline_mode = #tpu.pipeline_mode<synchronous>, transform_indices = @transform_7, window_bounds = array<i64: 1, 96>}, {pipeline_mode = #tpu.pipeline_mode<synchronous>, transform_indices = @transform_8, window_bounds = array<i64: 32, 32>}, {pipeline_mode = #tpu.pipeline_mode<synchronous>, transform_indices = @transform_9, window_bounds = array<i64: 1, 32>}, {pipeline_mode = #tpu.pipeline_mode<synchronous>, transform_indices = @transform_10, window_bounds = array<i64: 1, 32>}, {pipeline_mode = #tpu.pipeline_mode<synchronous>, transform_indices = @transform_11, window_bounds = array<i64: 1, 32>}, {pipeline_mode = #tpu.pipeline_mode<synchronous>, transform_indices = @transform_12, window_bounds = array<i64: 32, 32>}, {pipeline_mode = #tpu.pipeline_mode<synchronous>, transform_indices = @transform_13, window_bounds = array<i64: 1, 32>}, {pipeline_mode = #tpu.pipeline_mode<synchronous>, transform_indices = @transform_14, window_bounds = array<i64: 32, 64>}, {pipeline_mode = #tpu.pipeline_mode<synchronous>, transform_indices = @transform_15, window_bounds = array<i64: 1, 64>}, {pipeline_mode = #tpu.pipeline_mode<synchronous>, transform_indices = @transform_16, window_bounds = array<i64: 32, 32>}, {pipeline_mode = #tpu.pipeline_mode<synchronous>, transform_indices = @transform_17, window_bounds = array<i64: 1, 32>}, {pipeline_mode = #tpu.pipeline_mode<synchronous>, transform_indices = @transform_18, window_bounds = array<i64: 1, 32>}, {pipeline_mode = #tpu.pipeline_mode<synchronous>, transform_indices = @transform_19, window_bounds = array<i64: 1, 32>}, {pipeline_mode = #tpu.pipeline_mode<synchronous>, transform_indices = @transform_20, window_bounds = array<i64: 32, 128>}, {pipeline_mode = #tpu.pipeline_mode<synchronous>, transform_indices = @transform_21, window_bounds = array<i64: 1, 128>}, {pipeline_mode = #tpu.pipeline_mode<synchronous>, transform_indices = @transform_22, window_bounds = array<i64: 128, 32>}, {pipeline_mode = #tpu.pipeline_mode<synchronous>, transform_indices = @transform_23, window_bounds = array<i64: 1, 32>}, {transform_indices = @transform_24, window_bounds = array<i64: 1, 8, 32>}]} {
    %c0 = arith.constant 0 : index
    %c0_0 = arith.constant 0 : index
    %c0_1 = arith.constant 0 : index
    %0 = vector.load %arg1[%c0, %c0_0, %c0_1] : memref<1x8x32xf32, #tpu.memory_space<vmem>>, vector<1x8x32xf32>
    %1 = vector.shape_cast %0 : vector<1x8x32xf32> to vector<8x32xf32>
    %c0_2 = arith.constant 0 : index
    %c0_3 = arith.constant 0 : index
    %c0_4 = arith.constant 0 : index
    %2 = vector.load %arg2[%c0_2, %c0_3, %c0_4] : memref<1x8x32xf32, #tpu.memory_space<vmem>>, vector<1x8x32xf32>
    %3 = vector.shape_cast %2 : vector<1x8x32xf32> to vector<8x32xf32>
    %c0_5 = arith.constant 0 : index
    %c0_6 = arith.constant 0 : index
    %c0_7 = arith.constant 0 : index
    %4 = vector.load %arg3[%c0_5, %c0_6, %c0_7] : memref<1x8x8xf32, #tpu.memory_space<vmem>>, vector<1x8x8xf32>
    %5 = vector.shape_cast %4 : vector<1x8x8xf32> to vector<8x8xf32>
    %c0_8 = arith.constant 0 : index
    %c0_9 = arith.constant 0 : index
    %c0_10 = arith.constant 0 : index
    %6 = vector.load %arg4[%c0_8, %c0_9, %c0_10] : memref<1x8x8xf32, #tpu.memory_space<vmem>>, vector<1x8x8xf32>
    %7 = vector.shape_cast %6 : vector<1x8x8xf32> to vector<8x8xf32>
    %c0_11 = arith.constant 0 : index
    %c0_12 = arith.constant 0 : index
    %8 = vector.load %arg5[%c0_11, %c0_12] : memref<1x32xf32, #tpu.memory_space<vmem>>, vector<1x32xf32>
    %c0_13 = arith.constant 0 : index
    %c0_14 = arith.constant 0 : index
    %9 = vector.load %arg6[%c0_13, %c0_14] : memref<1x32xf32, #tpu.memory_space<vmem>>, vector<1x32xf32>
    %cst = arith.constant dense<0.000000e+00> : vector<8xf32>
    %10 = vector.multi_reduction <add>, %1, %cst [1] : vector<8x32xf32> to vector<8xf32>
    %11 = vector.shape_cast %10 : vector<8xf32> to vector<8x1xf32>
    %cst_15 = arith.constant 3.200000e+01 : f32
    %12 = vector.broadcast %cst_15 : f32 to vector<8x1xf32>
    %13 = arith.divf %11, %12 : vector<8x1xf32>
    %14 = vector.broadcast %13 : vector<8x1xf32> to vector<8x32xf32>
    %15 = arith.subf %1, %14 : vector<8x32xf32>
    %16 = arith.mulf %15, %15 : vector<8x32xf32>
    %cst_16 = arith.constant dense<0.000000e+00> : vector<8xf32>
    %17 = vector.multi_reduction <add>, %16, %cst_16 [1] : vector<8x32xf32> to vector<8xf32>
    %18 = vector.shape_cast %17 : vector<8xf32> to vector<8x1xf32>
    %cst_17 = arith.constant 3.200000e+01 : f32
    %19 = vector.broadcast %cst_17 : f32 to vector<8x1xf32>
    %20 = arith.divf %18, %19 : vector<8x1xf32>
    %cst_18 = arith.constant 9.99999997E-7 : f32
    %21 = vector.broadcast %cst_18 : f32 to vector<8x1xf32>
    %22 = arith.addf %20, %21 : vector<8x1xf32>
    %23 = math.rsqrt %22 : vector<8x1xf32>
    %24 = vector.broadcast %23 : vector<8x1xf32> to vector<8x32xf32>
    %25 = arith.mulf %15, %24 : vector<8x32xf32>
    %26 = vector.broadcast %8 : vector<1x32xf32> to vector<8x32xf32>
    %27 = arith.mulf %25, %26 : vector<8x32xf32>
    %28 = vector.broadcast %9 : vector<1x32xf32> to vector<8x32xf32>
    %29 = arith.addf %27, %28 : vector<8x32xf32>
    %c0_19 = arith.constant 0 : index
    %c0_20 = arith.constant 0 : index
    %30 = vector.load %arg7[%c0_19, %c0_20] : memref<32x96xf32, #tpu.memory_space<vmem>>, vector<32x96xf32>
    %cst_21 = arith.constant dense<0.000000e+00> : vector<8x96xf32>
    %31 = tpu.matmul %29, %30, %cst_21 {dimension_numbers = #tpu.dot_dimension_numbers<[1], [0], [0], [1], [0, 0, 1, 1], [], []>} : vector<8x32xf32>, vector<32x96xf32>, vector<8x96xf32> -> vector<8x96xf32>
    %c0_22 = arith.constant 0 : index
    %c0_23 = arith.constant 0 : index
    %32 = vector.load %arg8[%c0_22, %c0_23] : memref<1x96xf32, #tpu.memory_space<vmem>>, vector<1x96xf32>
    %33 = vector.broadcast %32 : vector<1x96xf32> to vector<8x96xf32>
    %34 = arith.addf %31, %33 : vector<8x96xf32>
    %35 = vector.extract_strided_slice %34 {offsets = [0, 0], sizes = [8, 32], strides = [1, 1]} : vector<8x96xf32> to vector<8x32xf32>
    %36 = vector.extract_strided_slice %34 {offsets = [0, 32], sizes = [8, 32], strides = [1, 1]} : vector<8x96xf32> to vector<8x32xf32>
    %37 = vector.extract_strided_slice %34 {offsets = [0, 64], sizes = [8, 32], strides = [1, 1]} : vector<8x96xf32> to vector<8x32xf32>
    %c0_24 = arith.constant 0 : index
    %c0_25 = arith.constant 0 : index
    %38 = vector.load %arg9[%c0_24, %c0_25] : memref<32x32xf32, #tpu.memory_space<vmem>>, vector<32x32xf32>
    %c0_26 = arith.constant 0 : index
    %c0_27 = arith.constant 0 : index
    %39 = vector.load %arg10[%c0_26, %c0_27] : memref<1x32xf32, #tpu.memory_space<vmem>>, vector<1x32xf32>
    %cst_28 = arith.constant 0.000000e+00 : f32
    %40 = vector.broadcast %cst_28 : f32 to vector<8x32xf32>
    %41 = vector.extract_strided_slice %35 {offsets = [0, 0], sizes = [8, 8], strides = [1, 1]} : vector<8x32xf32> to vector<8x8xf32>
    %42 = vector.extract_strided_slice %36 {offsets = [0, 0], sizes = [8, 8], strides = [1, 1]} : vector<8x32xf32> to vector<8x8xf32>
    %43 = vector.extract_strided_slice %37 {offsets = [0, 0], sizes = [8, 8], strides = [1, 1]} : vector<8x32xf32> to vector<8x8xf32>
    %cst_29 = arith.constant dense<0.000000e+00> : vector<8x8xf32>
    %44 = tpu.matmul %41, %42, %cst_29 {dimension_numbers = #tpu.dot_dimension_numbers<[1], [1], [0], [0], [0, 0, 1, 0], [], []>} : vector<8x8xf32>, vector<8x8xf32>, vector<8x8xf32> -> vector<8x8xf32>
    %cst_30 = arith.constant 0.353553385 : f32
    %45 = vector.broadcast %cst_30 : f32 to vector<8x8xf32>
    %46 = arith.mulf %44, %45 : vector<8x8xf32>
    %47 = arith.addf %46, %5 : vector<8x8xf32>
    %cst_31 = arith.constant dense<0xFF800000> : vector<8xf32>
    %48 = vector.multi_reduction <maximumf>, %47, %cst_31 [1] : vector<8x8xf32> to vector<8xf32>
    %49 = vector.shape_cast %48 : vector<8xf32> to vector<8x1xf32>
    %50 = vector.broadcast %49 : vector<8x1xf32> to vector<8x8xf32>
    %51 = arith.subf %47, %50 : vector<8x8xf32>
    %52 = math.exp %51 : vector<8x8xf32>
    %cst_32 = arith.constant dense<0.000000e+00> : vector<8xf32>
    %53 = vector.multi_reduction <add>, %52, %cst_32 [1] : vector<8x8xf32> to vector<8xf32>
    %54 = vector.shape_cast %53 : vector<8xf32> to vector<8x1xf32>
    %55 = vector.broadcast %54 : vector<8x1xf32> to vector<8x8xf32>
    %56 = arith.divf %52, %55 : vector<8x8xf32>
    %cst_33 = arith.constant dense<0.000000e+00> : vector<8x8xf32>
    %57 = tpu.matmul %56, %43, %cst_33 {dimension_numbers = #tpu.dot_dimension_numbers<[1], [0], [0], [1], [0, 0, 1, 1], [], []>} : vector<8x8xf32>, vector<8x8xf32>, vector<8x8xf32> -> vector<8x8xf32>
    %58 = vector.extract_strided_slice %38 {offsets = [0, 0], sizes = [8, 32], strides = [1, 1]} : vector<32x32xf32> to vector<8x32xf32>
    %cst_34 = arith.constant dense<0.000000e+00> : vector<8x32xf32>
    %59 = tpu.matmul %57, %58, %cst_34 {dimension_numbers = #tpu.dot_dimension_numbers<[1], [0], [0], [1], [0, 0, 1, 1], [], []>} : vector<8x8xf32>, vector<8x32xf32>, vector<8x32xf32> -> vector<8x32xf32>
    %60 = arith.addf %40, %59 : vector<8x32xf32>
    %61 = vector.extract_strided_slice %35 {offsets = [0, 8], sizes = [8, 8], strides = [1, 1]} : vector<8x32xf32> to vector<8x8xf32>
    %62 = vector.extract_strided_slice %36 {offsets = [0, 8], sizes = [8, 8], strides = [1, 1]} : vector<8x32xf32> to vector<8x8xf32>
    %63 = vector.extract_strided_slice %37 {offsets = [0, 8], sizes = [8, 8], strides = [1, 1]} : vector<8x32xf32> to vector<8x8xf32>
    %cst_35 = arith.constant dense<0.000000e+00> : vector<8x8xf32>
    %64 = tpu.matmul %61, %62, %cst_35 {dimension_numbers = #tpu.dot_dimension_numbers<[1], [1], [0], [0], [0, 0, 1, 0], [], []>} : vector<8x8xf32>, vector<8x8xf32>, vector<8x8xf32> -> vector<8x8xf32>
    %cst_36 = arith.constant 0.353553385 : f32
    %65 = vector.broadcast %cst_36 : f32 to vector<8x8xf32>
    %66 = arith.mulf %64, %65 : vector<8x8xf32>
    %67 = arith.addf %66, %5 : vector<8x8xf32>
    %cst_37 = arith.constant dense<0xFF800000> : vector<8xf32>
    %68 = vector.multi_reduction <maximumf>, %67, %cst_37 [1] : vector<8x8xf32> to vector<8xf32>
    %69 = vector.shape_cast %68 : vector<8xf32> to vector<8x1xf32>
    %70 = vector.broadcast %69 : vector<8x1xf32> to vector<8x8xf32>
    %71 = arith.subf %67, %70 : vector<8x8xf32>
    %72 = math.exp %71 : vector<8x8xf32>
    %cst_38 = arith.constant dense<0.000000e+00> : vector<8xf32>
    %73 = vector.multi_reduction <add>, %72, %cst_38 [1] : vector<8x8xf32> to vector<8xf32>
    %74 = vector.shape_cast %73 : vector<8xf32> to vector<8x1xf32>
    %75 = vector.broadcast %74 : vector<8x1xf32> to vector<8x8xf32>
    %76 = arith.divf %72, %75 : vector<8x8xf32>
    %cst_39 = arith.constant dense<0.000000e+00> : vector<8x8xf32>
    %77 = tpu.matmul %76, %63, %cst_39 {dimension_numbers = #tpu.dot_dimension_numbers<[1], [0], [0], [1], [0, 0, 1, 1], [], []>} : vector<8x8xf32>, vector<8x8xf32>, vector<8x8xf32> -> vector<8x8xf32>
    %78 = vector.extract_strided_slice %38 {offsets = [8, 0], sizes = [8, 32], strides = [1, 1]} : vector<32x32xf32> to vector<8x32xf32>
    %cst_40 = arith.constant dense<0.000000e+00> : vector<8x32xf32>
    %79 = tpu.matmul %77, %78, %cst_40 {dimension_numbers = #tpu.dot_dimension_numbers<[1], [0], [0], [1], [0, 0, 1, 1], [], []>} : vector<8x8xf32>, vector<8x32xf32>, vector<8x32xf32> -> vector<8x32xf32>
    %80 = arith.addf %60, %79 : vector<8x32xf32>
    %81 = vector.extract_strided_slice %35 {offsets = [0, 16], sizes = [8, 8], strides = [1, 1]} : vector<8x32xf32> to vector<8x8xf32>
    %82 = vector.extract_strided_slice %36 {offsets = [0, 16], sizes = [8, 8], strides = [1, 1]} : vector<8x32xf32> to vector<8x8xf32>
    %83 = vector.extract_strided_slice %37 {offsets = [0, 16], sizes = [8, 8], strides = [1, 1]} : vector<8x32xf32> to vector<8x8xf32>
    %cst_41 = arith.constant dense<0.000000e+00> : vector<8x8xf32>
    %84 = tpu.matmul %81, %82, %cst_41 {dimension_numbers = #tpu.dot_dimension_numbers<[1], [1], [0], [0], [0, 0, 1, 0], [], []>} : vector<8x8xf32>, vector<8x8xf32>, vector<8x8xf32> -> vector<8x8xf32>
    %cst_42 = arith.constant 0.353553385 : f32
    %85 = vector.broadcast %cst_42 : f32 to vector<8x8xf32>
    %86 = arith.mulf %84, %85 : vector<8x8xf32>
    %87 = arith.addf %86, %5 : vector<8x8xf32>
    %cst_43 = arith.constant dense<0xFF800000> : vector<8xf32>
    %88 = vector.multi_reduction <maximumf>, %87, %cst_43 [1] : vector<8x8xf32> to vector<8xf32>
    %89 = vector.shape_cast %88 : vector<8xf32> to vector<8x1xf32>
    %90 = vector.broadcast %89 : vector<8x1xf32> to vector<8x8xf32>
    %91 = arith.subf %87, %90 : vector<8x8xf32>
    %92 = math.exp %91 : vector<8x8xf32>
    %cst_44 = arith.constant dense<0.000000e+00> : vector<8xf32>
    %93 = vector.multi_reduction <add>, %92, %cst_44 [1] : vector<8x8xf32> to vector<8xf32>
    %94 = vector.shape_cast %93 : vector<8xf32> to vector<8x1xf32>
    %95 = vector.broadcast %94 : vector<8x1xf32> to vector<8x8xf32>
    %96 = arith.divf %92, %95 : vector<8x8xf32>
    %cst_45 = arith.constant dense<0.000000e+00> : vector<8x8xf32>
    %97 = tpu.matmul %96, %83, %cst_45 {dimension_numbers = #tpu.dot_dimension_numbers<[1], [0], [0], [1], [0, 0, 1, 1], [], []>} : vector<8x8xf32>, vector<8x8xf32>, vector<8x8xf32> -> vector<8x8xf32>
    %98 = vector.extract_strided_slice %38 {offsets = [16, 0], sizes = [8, 32], strides = [1, 1]} : vector<32x32xf32> to vector<8x32xf32>
    %cst_46 = arith.constant dense<0.000000e+00> : vector<8x32xf32>
    %99 = tpu.matmul %97, %98, %cst_46 {dimension_numbers = #tpu.dot_dimension_numbers<[1], [0], [0], [1], [0, 0, 1, 1], [], []>} : vector<8x8xf32>, vector<8x32xf32>, vector<8x32xf32> -> vector<8x32xf32>
    %100 = arith.addf %80, %99 : vector<8x32xf32>
    %101 = vector.extract_strided_slice %35 {offsets = [0, 24], sizes = [8, 8], strides = [1, 1]} : vector<8x32xf32> to vector<8x8xf32>
    %102 = vector.extract_strided_slice %36 {offsets = [0, 24], sizes = [8, 8], strides = [1, 1]} : vector<8x32xf32> to vector<8x8xf32>
    %103 = vector.extract_strided_slice %37 {offsets = [0, 24], sizes = [8, 8], strides = [1, 1]} : vector<8x32xf32> to vector<8x8xf32>
    %cst_47 = arith.constant dense<0.000000e+00> : vector<8x8xf32>
    %104 = tpu.matmul %101, %102, %cst_47 {dimension_numbers = #tpu.dot_dimension_numbers<[1], [1], [0], [0], [0, 0, 1, 0], [], []>} : vector<8x8xf32>, vector<8x8xf32>, vector<8x8xf32> -> vector<8x8xf32>
    %cst_48 = arith.constant 0.353553385 : f32
    %105 = vector.broadcast %cst_48 : f32 to vector<8x8xf32>
    %106 = arith.mulf %104, %105 : vector<8x8xf32>
    %107 = arith.addf %106, %5 : vector<8x8xf32>
    %cst_49 = arith.constant dense<0xFF800000> : vector<8xf32>
    %108 = vector.multi_reduction <maximumf>, %107, %cst_49 [1] : vector<8x8xf32> to vector<8xf32>
    %109 = vector.shape_cast %108 : vector<8xf32> to vector<8x1xf32>
    %110 = vector.broadcast %109 : vector<8x1xf32> to vector<8x8xf32>
    %111 = arith.subf %107, %110 : vector<8x8xf32>
    %112 = math.exp %111 : vector<8x8xf32>
    %cst_50 = arith.constant dense<0.000000e+00> : vector<8xf32>
    %113 = vector.multi_reduction <add>, %112, %cst_50 [1] : vector<8x8xf32> to vector<8xf32>
    %114 = vector.shape_cast %113 : vector<8xf32> to vector<8x1xf32>
    %115 = vector.broadcast %114 : vector<8x1xf32> to vector<8x8xf32>
    %116 = arith.divf %112, %115 : vector<8x8xf32>
    %cst_51 = arith.constant dense<0.000000e+00> : vector<8x8xf32>
    %117 = tpu.matmul %116, %103, %cst_51 {dimension_numbers = #tpu.dot_dimension_numbers<[1], [0], [0], [1], [0, 0, 1, 1], [], []>} : vector<8x8xf32>, vector<8x8xf32>, vector<8x8xf32> -> vector<8x8xf32>
    %118 = vector.extract_strided_slice %38 {offsets = [24, 0], sizes = [8, 32], strides = [1, 1]} : vector<32x32xf32> to vector<8x32xf32>
    %cst_52 = arith.constant dense<0.000000e+00> : vector<8x32xf32>
    %119 = tpu.matmul %117, %118, %cst_52 {dimension_numbers = #tpu.dot_dimension_numbers<[1], [0], [0], [1], [0, 0, 1, 1], [], []>} : vector<8x8xf32>, vector<8x32xf32>, vector<8x32xf32> -> vector<8x32xf32>
    %120 = arith.addf %100, %119 : vector<8x32xf32>
    %121 = vector.broadcast %39 : vector<1x32xf32> to vector<8x32xf32>
    %122 = arith.addf %120, %121 : vector<8x32xf32>
    %123 = arith.addf %1, %122 : vector<8x32xf32>
    %c0_53 = arith.constant 0 : index
    %c0_54 = arith.constant 0 : index
    %124 = vector.load %arg11[%c0_53, %c0_54] : memref<1x32xf32, #tpu.memory_space<vmem>>, vector<1x32xf32>
    %c0_55 = arith.constant 0 : index
    %c0_56 = arith.constant 0 : index
    %125 = vector.load %arg12[%c0_55, %c0_56] : memref<1x32xf32, #tpu.memory_space<vmem>>, vector<1x32xf32>
    %cst_57 = arith.constant dense<0.000000e+00> : vector<8xf32>
    %126 = vector.multi_reduction <add>, %123, %cst_57 [1] : vector<8x32xf32> to vector<8xf32>
    %127 = vector.shape_cast %126 : vector<8xf32> to vector<8x1xf32>
    %cst_58 = arith.constant 3.200000e+01 : f32
    %128 = vector.broadcast %cst_58 : f32 to vector<8x1xf32>
    %129 = arith.divf %127, %128 : vector<8x1xf32>
    %130 = vector.broadcast %129 : vector<8x1xf32> to vector<8x32xf32>
    %131 = arith.subf %123, %130 : vector<8x32xf32>
    %132 = arith.mulf %131, %131 : vector<8x32xf32>
    %cst_59 = arith.constant dense<0.000000e+00> : vector<8xf32>
    %133 = vector.multi_reduction <add>, %132, %cst_59 [1] : vector<8x32xf32> to vector<8xf32>
    %134 = vector.shape_cast %133 : vector<8xf32> to vector<8x1xf32>
    %cst_60 = arith.constant 3.200000e+01 : f32
    %135 = vector.broadcast %cst_60 : f32 to vector<8x1xf32>
    %136 = arith.divf %134, %135 : vector<8x1xf32>
    %cst_61 = arith.constant 9.99999997E-7 : f32
    %137 = vector.broadcast %cst_61 : f32 to vector<8x1xf32>
    %138 = arith.addf %136, %137 : vector<8x1xf32>
    %139 = math.rsqrt %138 : vector<8x1xf32>
    %140 = vector.broadcast %139 : vector<8x1xf32> to vector<8x32xf32>
    %141 = arith.mulf %131, %140 : vector<8x32xf32>
    %142 = vector.broadcast %124 : vector<1x32xf32> to vector<8x32xf32>
    %143 = arith.mulf %141, %142 : vector<8x32xf32>
    %144 = vector.broadcast %125 : vector<1x32xf32> to vector<8x32xf32>
    %145 = arith.addf %143, %144 : vector<8x32xf32>
    %c0_62 = arith.constant 0 : index
    %c0_63 = arith.constant 0 : index
    %146 = vector.load %arg13[%c0_62, %c0_63] : memref<32x32xf32, #tpu.memory_space<vmem>>, vector<32x32xf32>
    %cst_64 = arith.constant dense<0.000000e+00> : vector<8x32xf32>
    %147 = tpu.matmul %145, %146, %cst_64 {dimension_numbers = #tpu.dot_dimension_numbers<[1], [0], [0], [1], [0, 0, 1, 1], [], []>} : vector<8x32xf32>, vector<32x32xf32>, vector<8x32xf32> -> vector<8x32xf32>
    %c0_65 = arith.constant 0 : index
    %c0_66 = arith.constant 0 : index
    %148 = vector.load %arg14[%c0_65, %c0_66] : memref<1x32xf32, #tpu.memory_space<vmem>>, vector<1x32xf32>
    %149 = vector.broadcast %148 : vector<1x32xf32> to vector<8x32xf32>
    %150 = arith.addf %147, %149 : vector<8x32xf32>
    %c0_67 = arith.constant 0 : index
    %c0_68 = arith.constant 0 : index
    %151 = vector.load %arg15[%c0_67, %c0_68] : memref<32x64xf32, #tpu.memory_space<vmem>>, vector<32x64xf32>
    %cst_69 = arith.constant dense<0.000000e+00> : vector<8x64xf32>
    %152 = tpu.matmul %3, %151, %cst_69 {dimension_numbers = #tpu.dot_dimension_numbers<[1], [0], [0], [1], [0, 0, 1, 1], [], []>} : vector<8x32xf32>, vector<32x64xf32>, vector<8x64xf32> -> vector<8x64xf32>
    %c0_70 = arith.constant 0 : index
    %c0_71 = arith.constant 0 : index
    %153 = vector.load %arg16[%c0_70, %c0_71] : memref<1x64xf32, #tpu.memory_space<vmem>>, vector<1x64xf32>
    %154 = vector.broadcast %153 : vector<1x64xf32> to vector<8x64xf32>
    %155 = arith.addf %152, %154 : vector<8x64xf32>
    %156 = vector.extract_strided_slice %155 {offsets = [0, 0], sizes = [8, 32], strides = [1, 1]} : vector<8x64xf32> to vector<8x32xf32>
    %157 = vector.extract_strided_slice %155 {offsets = [0, 32], sizes = [8, 32], strides = [1, 1]} : vector<8x64xf32> to vector<8x32xf32>
    %c0_72 = arith.constant 0 : index
    %c0_73 = arith.constant 0 : index
    %158 = vector.load %arg17[%c0_72, %c0_73] : memref<32x32xf32, #tpu.memory_space<vmem>>, vector<32x32xf32>
    %c0_74 = arith.constant 0 : index
    %c0_75 = arith.constant 0 : index
    %159 = vector.load %arg18[%c0_74, %c0_75] : memref<1x32xf32, #tpu.memory_space<vmem>>, vector<1x32xf32>
    %cst_76 = arith.constant 0.000000e+00 : f32
    %160 = vector.broadcast %cst_76 : f32 to vector<8x32xf32>
    %161 = vector.extract_strided_slice %150 {offsets = [0, 0], sizes = [8, 8], strides = [1, 1]} : vector<8x32xf32> to vector<8x8xf32>
    %162 = vector.extract_strided_slice %156 {offsets = [0, 0], sizes = [8, 8], strides = [1, 1]} : vector<8x32xf32> to vector<8x8xf32>
    %163 = vector.extract_strided_slice %157 {offsets = [0, 0], sizes = [8, 8], strides = [1, 1]} : vector<8x32xf32> to vector<8x8xf32>
    %cst_77 = arith.constant dense<0.000000e+00> : vector<8x8xf32>
    %164 = tpu.matmul %161, %162, %cst_77 {dimension_numbers = #tpu.dot_dimension_numbers<[1], [1], [0], [0], [0, 0, 1, 0], [], []>} : vector<8x8xf32>, vector<8x8xf32>, vector<8x8xf32> -> vector<8x8xf32>
    %cst_78 = arith.constant 0.353553385 : f32
    %165 = vector.broadcast %cst_78 : f32 to vector<8x8xf32>
    %166 = arith.mulf %164, %165 : vector<8x8xf32>
    %167 = arith.addf %166, %7 : vector<8x8xf32>
    %cst_79 = arith.constant dense<0xFF800000> : vector<8xf32>
    %168 = vector.multi_reduction <maximumf>, %167, %cst_79 [1] : vector<8x8xf32> to vector<8xf32>
    %169 = vector.shape_cast %168 : vector<8xf32> to vector<8x1xf32>
    %170 = vector.broadcast %169 : vector<8x1xf32> to vector<8x8xf32>
    %171 = arith.subf %167, %170 : vector<8x8xf32>
    %172 = math.exp %171 : vector<8x8xf32>
    %cst_80 = arith.constant dense<0.000000e+00> : vector<8xf32>
    %173 = vector.multi_reduction <add>, %172, %cst_80 [1] : vector<8x8xf32> to vector<8xf32>
    %174 = vector.shape_cast %173 : vector<8xf32> to vector<8x1xf32>
    %175 = vector.broadcast %174 : vector<8x1xf32> to vector<8x8xf32>
    %176 = arith.divf %172, %175 : vector<8x8xf32>
    %cst_81 = arith.constant dense<0.000000e+00> : vector<8x8xf32>
    %177 = tpu.matmul %176, %163, %cst_81 {dimension_numbers = #tpu.dot_dimension_numbers<[1], [0], [0], [1], [0, 0, 1, 1], [], []>} : vector<8x8xf32>, vector<8x8xf32>, vector<8x8xf32> -> vector<8x8xf32>
    %178 = vector.extract_strided_slice %158 {offsets = [0, 0], sizes = [8, 32], strides = [1, 1]} : vector<32x32xf32> to vector<8x32xf32>
    %cst_82 = arith.constant dense<0.000000e+00> : vector<8x32xf32>
    %179 = tpu.matmul %177, %178, %cst_82 {dimension_numbers = #tpu.dot_dimension_numbers<[1], [0], [0], [1], [0, 0, 1, 1], [], []>} : vector<8x8xf32>, vector<8x32xf32>, vector<8x32xf32> -> vector<8x32xf32>
    %180 = arith.addf %160, %179 : vector<8x32xf32>
    %181 = vector.extract_strided_slice %150 {offsets = [0, 8], sizes = [8, 8], strides = [1, 1]} : vector<8x32xf32> to vector<8x8xf32>
    %182 = vector.extract_strided_slice %156 {offsets = [0, 8], sizes = [8, 8], strides = [1, 1]} : vector<8x32xf32> to vector<8x8xf32>
    %183 = vector.extract_strided_slice %157 {offsets = [0, 8], sizes = [8, 8], strides = [1, 1]} : vector<8x32xf32> to vector<8x8xf32>
    %cst_83 = arith.constant dense<0.000000e+00> : vector<8x8xf32>
    %184 = tpu.matmul %181, %182, %cst_83 {dimension_numbers = #tpu.dot_dimension_numbers<[1], [1], [0], [0], [0, 0, 1, 0], [], []>} : vector<8x8xf32>, vector<8x8xf32>, vector<8x8xf32> -> vector<8x8xf32>
    %cst_84 = arith.constant 0.353553385 : f32
    %185 = vector.broadcast %cst_84 : f32 to vector<8x8xf32>
    %186 = arith.mulf %184, %185 : vector<8x8xf32>
    %187 = arith.addf %186, %7 : vector<8x8xf32>
    %cst_85 = arith.constant dense<0xFF800000> : vector<8xf32>
    %188 = vector.multi_reduction <maximumf>, %187, %cst_85 [1] : vector<8x8xf32> to vector<8xf32>
    %189 = vector.shape_cast %188 : vector<8xf32> to vector<8x1xf32>
    %190 = vector.broadcast %189 : vector<8x1xf32> to vector<8x8xf32>
    %191 = arith.subf %187, %190 : vector<8x8xf32>
    %192 = math.exp %191 : vector<8x8xf32>
    %cst_86 = arith.constant dense<0.000000e+00> : vector<8xf32>
    %193 = vector.multi_reduction <add>, %192, %cst_86 [1] : vector<8x8xf32> to vector<8xf32>
    %194 = vector.shape_cast %193 : vector<8xf32> to vector<8x1xf32>
    %195 = vector.broadcast %194 : vector<8x1xf32> to vector<8x8xf32>
    %196 = arith.divf %192, %195 : vector<8x8xf32>
    %cst_87 = arith.constant dense<0.000000e+00> : vector<8x8xf32>
    %197 = tpu.matmul %196, %183, %cst_87 {dimension_numbers = #tpu.dot_dimension_numbers<[1], [0], [0], [1], [0, 0, 1, 1], [], []>} : vector<8x8xf32>, vector<8x8xf32>, vector<8x8xf32> -> vector<8x8xf32>
    %198 = vector.extract_strided_slice %158 {offsets = [8, 0], sizes = [8, 32], strides = [1, 1]} : vector<32x32xf32> to vector<8x32xf32>
    %cst_88 = arith.constant dense<0.000000e+00> : vector<8x32xf32>
    %199 = tpu.matmul %197, %198, %cst_88 {dimension_numbers = #tpu.dot_dimension_numbers<[1], [0], [0], [1], [0, 0, 1, 1], [], []>} : vector<8x8xf32>, vector<8x32xf32>, vector<8x32xf32> -> vector<8x32xf32>
    %200 = arith.addf %180, %199 : vector<8x32xf32>
    %201 = vector.extract_strided_slice %150 {offsets = [0, 16], sizes = [8, 8], strides = [1, 1]} : vector<8x32xf32> to vector<8x8xf32>
    %202 = vector.extract_strided_slice %156 {offsets = [0, 16], sizes = [8, 8], strides = [1, 1]} : vector<8x32xf32> to vector<8x8xf32>
    %203 = vector.extract_strided_slice %157 {offsets = [0, 16], sizes = [8, 8], strides = [1, 1]} : vector<8x32xf32> to vector<8x8xf32>
    %cst_89 = arith.constant dense<0.000000e+00> : vector<8x8xf32>
    %204 = tpu.matmul %201, %202, %cst_89 {dimension_numbers = #tpu.dot_dimension_numbers<[1], [1], [0], [0], [0, 0, 1, 0], [], []>} : vector<8x8xf32>, vector<8x8xf32>, vector<8x8xf32> -> vector<8x8xf32>
    %cst_90 = arith.constant 0.353553385 : f32
    %205 = vector.broadcast %cst_90 : f32 to vector<8x8xf32>
    %206 = arith.mulf %204, %205 : vector<8x8xf32>
    %207 = arith.addf %206, %7 : vector<8x8xf32>
    %cst_91 = arith.constant dense<0xFF800000> : vector<8xf32>
    %208 = vector.multi_reduction <maximumf>, %207, %cst_91 [1] : vector<8x8xf32> to vector<8xf32>
    %209 = vector.shape_cast %208 : vector<8xf32> to vector<8x1xf32>
    %210 = vector.broadcast %209 : vector<8x1xf32> to vector<8x8xf32>
    %211 = arith.subf %207, %210 : vector<8x8xf32>
    %212 = math.exp %211 : vector<8x8xf32>
    %cst_92 = arith.constant dense<0.000000e+00> : vector<8xf32>
    %213 = vector.multi_reduction <add>, %212, %cst_92 [1] : vector<8x8xf32> to vector<8xf32>
    %214 = vector.shape_cast %213 : vector<8xf32> to vector<8x1xf32>
    %215 = vector.broadcast %214 : vector<8x1xf32> to vector<8x8xf32>
    %216 = arith.divf %212, %215 : vector<8x8xf32>
    %cst_93 = arith.constant dense<0.000000e+00> : vector<8x8xf32>
    %217 = tpu.matmul %216, %203, %cst_93 {dimension_numbers = #tpu.dot_dimension_numbers<[1], [0], [0], [1], [0, 0, 1, 1], [], []>} : vector<8x8xf32>, vector<8x8xf32>, vector<8x8xf32> -> vector<8x8xf32>
    %218 = vector.extract_strided_slice %158 {offsets = [16, 0], sizes = [8, 32], strides = [1, 1]} : vector<32x32xf32> to vector<8x32xf32>
    %cst_94 = arith.constant dense<0.000000e+00> : vector<8x32xf32>
    %219 = tpu.matmul %217, %218, %cst_94 {dimension_numbers = #tpu.dot_dimension_numbers<[1], [0], [0], [1], [0, 0, 1, 1], [], []>} : vector<8x8xf32>, vector<8x32xf32>, vector<8x32xf32> -> vector<8x32xf32>
    %220 = arith.addf %200, %219 : vector<8x32xf32>
    %221 = vector.extract_strided_slice %150 {offsets = [0, 24], sizes = [8, 8], strides = [1, 1]} : vector<8x32xf32> to vector<8x8xf32>
    %222 = vector.extract_strided_slice %156 {offsets = [0, 24], sizes = [8, 8], strides = [1, 1]} : vector<8x32xf32> to vector<8x8xf32>
    %223 = vector.extract_strided_slice %157 {offsets = [0, 24], sizes = [8, 8], strides = [1, 1]} : vector<8x32xf32> to vector<8x8xf32>
    %cst_95 = arith.constant dense<0.000000e+00> : vector<8x8xf32>
    %224 = tpu.matmul %221, %222, %cst_95 {dimension_numbers = #tpu.dot_dimension_numbers<[1], [1], [0], [0], [0, 0, 1, 0], [], []>} : vector<8x8xf32>, vector<8x8xf32>, vector<8x8xf32> -> vector<8x8xf32>
    %cst_96 = arith.constant 0.353553385 : f32
    %225 = vector.broadcast %cst_96 : f32 to vector<8x8xf32>
    %226 = arith.mulf %224, %225 : vector<8x8xf32>
    %227 = arith.addf %226, %7 : vector<8x8xf32>
    %cst_97 = arith.constant dense<0xFF800000> : vector<8xf32>
    %228 = vector.multi_reduction <maximumf>, %227, %cst_97 [1] : vector<8x8xf32> to vector<8xf32>
    %229 = vector.shape_cast %228 : vector<8xf32> to vector<8x1xf32>
    %230 = vector.broadcast %229 : vector<8x1xf32> to vector<8x8xf32>
    %231 = arith.subf %227, %230 : vector<8x8xf32>
    %232 = math.exp %231 : vector<8x8xf32>
    %cst_98 = arith.constant dense<0.000000e+00> : vector<8xf32>
    %233 = vector.multi_reduction <add>, %232, %cst_98 [1] : vector<8x8xf32> to vector<8xf32>
    %234 = vector.shape_cast %233 : vector<8xf32> to vector<8x1xf32>
    %235 = vector.broadcast %234 : vector<8x1xf32> to vector<8x8xf32>
    %236 = arith.divf %232, %235 : vector<8x8xf32>
    %cst_99 = arith.constant dense<0.000000e+00> : vector<8x8xf32>
    %237 = tpu.matmul %236, %223, %cst_99 {dimension_numbers = #tpu.dot_dimension_numbers<[1], [0], [0], [1], [0, 0, 1, 1], [], []>} : vector<8x8xf32>, vector<8x8xf32>, vector<8x8xf32> -> vector<8x8xf32>
    %238 = vector.extract_strided_slice %158 {offsets = [24, 0], sizes = [8, 32], strides = [1, 1]} : vector<32x32xf32> to vector<8x32xf32>
    %cst_100 = arith.constant dense<0.000000e+00> : vector<8x32xf32>
    %239 = tpu.matmul %237, %238, %cst_100 {dimension_numbers = #tpu.dot_dimension_numbers<[1], [0], [0], [1], [0, 0, 1, 1], [], []>} : vector<8x8xf32>, vector<8x32xf32>, vector<8x32xf32> -> vector<8x32xf32>
    %240 = arith.addf %220, %239 : vector<8x32xf32>
    %241 = vector.broadcast %159 : vector<1x32xf32> to vector<8x32xf32>
    %242 = arith.addf %240, %241 : vector<8x32xf32>
    %243 = arith.addf %123, %242 : vector<8x32xf32>
    %c0_101 = arith.constant 0 : index
    %c0_102 = arith.constant 0 : index
    %244 = vector.load %arg19[%c0_101, %c0_102] : memref<1x32xf32, #tpu.memory_space<vmem>>, vector<1x32xf32>
    %c0_103 = arith.constant 0 : index
    %c0_104 = arith.constant 0 : index
    %245 = vector.load %arg20[%c0_103, %c0_104] : memref<1x32xf32, #tpu.memory_space<vmem>>, vector<1x32xf32>
    %cst_105 = arith.constant dense<0.000000e+00> : vector<8xf32>
    %246 = vector.multi_reduction <add>, %243, %cst_105 [1] : vector<8x32xf32> to vector<8xf32>
    %247 = vector.shape_cast %246 : vector<8xf32> to vector<8x1xf32>
    %cst_106 = arith.constant 3.200000e+01 : f32
    %248 = vector.broadcast %cst_106 : f32 to vector<8x1xf32>
    %249 = arith.divf %247, %248 : vector<8x1xf32>
    %250 = vector.broadcast %249 : vector<8x1xf32> to vector<8x32xf32>
    %251 = arith.subf %243, %250 : vector<8x32xf32>
    %252 = arith.mulf %251, %251 : vector<8x32xf32>
    %cst_107 = arith.constant dense<0.000000e+00> : vector<8xf32>
    %253 = vector.multi_reduction <add>, %252, %cst_107 [1] : vector<8x32xf32> to vector<8xf32>
    %254 = vector.shape_cast %253 : vector<8xf32> to vector<8x1xf32>
    %cst_108 = arith.constant 3.200000e+01 : f32
    %255 = vector.broadcast %cst_108 : f32 to vector<8x1xf32>
    %256 = arith.divf %254, %255 : vector<8x1xf32>
    %cst_109 = arith.constant 9.99999997E-7 : f32
    %257 = vector.broadcast %cst_109 : f32 to vector<8x1xf32>
    %258 = arith.addf %256, %257 : vector<8x1xf32>
    %259 = math.rsqrt %258 : vector<8x1xf32>
    %260 = vector.broadcast %259 : vector<8x1xf32> to vector<8x32xf32>
    %261 = arith.mulf %251, %260 : vector<8x32xf32>
    %262 = vector.broadcast %244 : vector<1x32xf32> to vector<8x32xf32>
    %263 = arith.mulf %261, %262 : vector<8x32xf32>
    %264 = vector.broadcast %245 : vector<1x32xf32> to vector<8x32xf32>
    %265 = arith.addf %263, %264 : vector<8x32xf32>
    %c0_110 = arith.constant 0 : index
    %c0_111 = arith.constant 0 : index
    %266 = vector.load %arg21[%c0_110, %c0_111] : memref<32x128xf32, #tpu.memory_space<vmem>>, vector<32x128xf32>
    %cst_112 = arith.constant dense<0.000000e+00> : vector<8x128xf32>
    %267 = tpu.matmul %265, %266, %cst_112 {dimension_numbers = #tpu.dot_dimension_numbers<[1], [0], [0], [1], [0, 0, 1, 1], [], []>} : vector<8x32xf32>, vector<32x128xf32>, vector<8x128xf32> -> vector<8x128xf32>
    %c0_113 = arith.constant 0 : index
    %c0_114 = arith.constant 0 : index
    %268 = vector.load %arg22[%c0_113, %c0_114] : memref<1x128xf32, #tpu.memory_space<vmem>>, vector<1x128xf32>
    %269 = vector.broadcast %268 : vector<1x128xf32> to vector<8x128xf32>
    %270 = arith.addf %267, %269 : vector<8x128xf32>
    %271 = arith.mulf %270, %270 : vector<8x128xf32>
    %272 = arith.mulf %270, %271 : vector<8x128xf32>
    %cst_115 = arith.constant 4.471500e-02 : f32
    %273 = vector.broadcast %cst_115 : f32 to vector<8x128xf32>
    %274 = arith.mulf %273, %272 : vector<8x128xf32>
    %275 = arith.addf %270, %274 : vector<8x128xf32>
    %cst_116 = arith.constant 0.797884583 : f32
    %276 = vector.broadcast %cst_116 : f32 to vector<8x128xf32>
    %277 = arith.mulf %276, %275 : vector<8x128xf32>
    %278 = math.tanh %277 : vector<8x128xf32>
    %cst_117 = arith.constant 1.000000e+00 : f32
    %279 = vector.broadcast %cst_117 : f32 to vector<8x128xf32>
    %280 = arith.addf %279, %278 : vector<8x128xf32>
    %cst_118 = arith.constant 5.000000e-01 : f32
    %281 = vector.broadcast %cst_118 : f32 to vector<8x128xf32>
    %282 = arith.mulf %281, %280 : vector<8x128xf32>
    %283 = arith.mulf %270, %282 : vector<8x128xf32>
    %c0_119 = arith.constant 0 : index
    %c0_120 = arith.constant 0 : index
    %284 = vector.load %arg23[%c0_119, %c0_120] : memref<128x32xf32, #tpu.memory_space<vmem>>, vector<128x32xf32>
    %cst_121 = arith.constant dense<0.000000e+00> : vector<8x32xf32>
    %285 = tpu.matmul %283, %284, %cst_121 {dimension_numbers = #tpu.dot_dimension_numbers<[1], [0], [0], [1], [0, 0, 1, 1], [], []>} : vector<8x128xf32>, vector<128x32xf32>, vector<8x32xf32> -> vector<8x32xf32>
    %c0_122 = arith.constant 0 : index
    %c0_123 = arith.constant 0 : index
    %286 = vector.load %arg24[%c0_122, %c0_123] : memref<1x32xf32, #tpu.memory_space<vmem>>, vector<1x32xf32>
    %287 = vector.broadcast %286 : vector<1x32xf32> to vector<8x32xf32>
    %288 = arith.addf %285, %287 : vector<8x32xf32>
    %289 = arith.addf %243, %288 : vector<8x32xf32>
    %c0_124 = arith.constant 0 : index
    %c0_125 = arith.constant 0 : index
    %c0_126 = arith.constant 0 : index
    %290 = vector.load %arg25[%c0_124, %c0_125, %c0_126] : memref<1x8x32xf32, #tpu.memory_space<vmem>>, vector<1x8x32xf32>
    %291 = vector.shape_cast %290 : vector<1x8x32xf32> to vector<8x32xf32>
    %292 = vector.shape_cast %289 : vector<8x32xf32> to vector<1x8x32xf32>
    tpu.vector_store %arg25[%c0_124, %c0_125, %c0_126], %292 {strides = array<i32>} : memref<1x8x32xf32, #tpu.memory_space<vmem>>, vector<1x8x32xf32>,
    return
  }
  func.func @transform_0(%arg0: i32) -> (i32, i32, i32) {
    %c0_i32 = arith.constant 0 : i32
    %c0_i32_0 = arith.constant 0 : i32
    %c0_i32_1 = arith.constant 0 : i32
    return %arg0, %c0_i32, %c0_i32_0 : i32, i32, i32
  }
  func.func @transform_1(%arg0: i32) -> (i32, i32, i32) {
    %c0_i32 = arith.constant 0 : i32
    %c0_i32_0 = arith.constant 0 : i32
    %c0_i32_1 = arith.constant 0 : i32
    return %arg0, %c0_i32, %c0_i32_0 : i32, i32, i32
  }
  func.func @transform_2(%arg0: i32) -> (i32, i32, i32) {
    %c0_i32 = arith.constant 0 : i32
    %c0_i32_0 = arith.constant 0 : i32
    %c0_i32_1 = arith.constant 0 : i32
    return %arg0, %c0_i32, %c0_i32_0 : i32, i32, i32
  }
  func.func @transform_3(%arg0: i32) -> (i32, i32, i32) {
    %c0_i32 = arith.constant 0 : i32
    %c0_i32_0 = arith.constant 0 : i32
    %c0_i32_1 = arith.constant 0 : i32
    return %arg0, %c0_i32, %c0_i32_0 : i32, i32, i32
  }
  func.func @transform_4(%arg0: i32) -> (i32, i32) {
    %c0_i32 = arith.constant 0 : i32
    %c0_i32_0 = arith.constant 0 : i32
    %c0_i32_1 = arith.constant 0 : i32
    return %c0_i32, %c0_i32_0 : i32, i32
  }
  func.func @transform_5(%arg0: i32) -> (i32, i32) {
    %c0_i32 = arith.constant 0 : i32
    %c0_i32_0 = arith.constant 0 : i32
    %c0_i32_1 = arith.constant 0 : i32
    return %c0_i32, %c0_i32_0 : i32, i32
  }
  func.func @transform_6(%arg0: i32) -> (i32, i32) {
    %c0_i32 = arith.constant 0 : i32
    %c0_i32_0 = arith.constant 0 : i32
    %c0_i32_1 = arith.constant 0 : i32
    return %c0_i32, %c0_i32_0 : i32, i32
  }
  func.func @transform_7(%arg0: i32) -> (i32, i32) {
    %c0_i32 = arith.constant 0 : i32
    %c0_i32_0 = arith.constant 0 : i32
    %c0_i32_1 = arith.constant 0 : i32
    return %c0_i32, %c0_i32_0 : i32, i32
  }
  func.func @transform_8(%arg0: i32) -> (i32, i32) {
    %c0_i32 = arith.constant 0 : i32
    %c0_i32_0 = arith.constant 0 : i32
    %c0_i32_1 = arith.constant 0 : i32
    return %c0_i32, %c0_i32_0 : i32, i32
  }
  func.func @transform_9(%arg0: i32) -> (i32, i32) {
    %c0_i32 = arith.constant 0 : i32
    %c0_i32_0 = arith.constant 0 : i32
    %c0_i32_1 = arith.constant 0 : i32
    return %c0_i32, %c0_i32_0 : i32, i32
  }
  func.func @transform_10(%arg0: i32) -> (i32, i32) {
    %c0_i32 = arith.constant 0 : i32
    %c0_i32_0 = arith.constant 0 : i32
    %c0_i32_1 = arith.constant 0 : i32
    return %c0_i32, %c0_i32_0 : i32, i32
  }
  func.func @transform_11(%arg0: i32) -> (i32, i32) {
    %c0_i32 = arith.constant 0 : i32
    %c0_i32_0 = arith.constant 0 : i32
    %c0_i32_1 = arith.constant 0 : i32
    return %c0_i32, %c0_i32_0 : i32, i32
  }
  func.func @transform_12(%arg0: i32) -> (i32, i32) {
    %c0_i32 = arith.constant 0 : i32
    %c0_i32_0 = arith.constant 0 : i32
    %c0_i32_1 = arith.constant 0 : i32
    return %c0_i32, %c0_i32_0 : i32, i32
  }
  func.func @transform_13(%arg0: i32) -> (i32, i32) {
    %c0_i32 = arith.constant 0 : i32
    %c0_i32_0 = arith.constant 0 : i32
    %c0_i32_1 = arith.constant 0 : i32
    return %c0_i32, %c0_i32_0 : i32, i32
  }
  func.func @transform_14(%arg0: i32) -> (i32, i32) {
    %c0_i32 = arith.constant 0 : i32
    %c0_i32_0 = arith.constant 0 : i32
    %c0_i32_1 = arith.constant 0 : i32
    return %c0_i32, %c0_i32_0 : i32, i32
  }
  func.func @transform_15(%arg0: i32) -> (i32, i32) {
    %c0_i32 = arith.constant 0 : i32
    %c0_i32_0 = arith.constant 0 : i32
    %c0_i32_1 = arith.constant 0 : i32
    return %c0_i32, %c0_i32_0 : i32, i32
  }
  func.func @transform_16(%arg0: i32) -> (i32, i32) {
    %c0_i32 = arith.constant 0 : i32
    %c0_i32_0 = arith.constant 0 : i32
    %c0_i32_1 = arith.constant 0 : i32
    return %c0_i32, %c0_i32_0 : i32, i32
  }
  func.func @transform_17(%arg0: i32) -> (i32, i32) {
    %c0_i32 = arith.constant 0 : i32
    %c0_i32_0 = arith.constant 0 : i32
    %c0_i32_1 = arith.constant 0 : i32
    return %c0_i32, %c0_i32_0 : i32, i32
  }
  func.func @transform_18(%arg0: i32) -> (i32, i32) {
    %c0_i32 = arith.constant 0 : i32
    %c0_i32_0 = arith.constant 0 : i32
    %c0_i32_1 = arith.constant 0 : i32
    return %c0_i32, %c0_i32_0 : i32, i32
  }
  func.func @transform_19(%arg0: i32) -> (i32, i32) {
    %c0_i32 = arith.constant 0 : i32
    %c0_i32_0 = arith.constant 0 : i32
    %c0_i32_1 = arith.constant 0 : i32
    return %c0_i32, %c0_i32_0 : i32, i32
  }
  func.func @transform_20(%arg0: i32) -> (i32, i32) {
    %c0_i32 = arith.constant 0 : i32
    %c0_i32_0 = arith.constant 0 : i32
    %c0_i32_1 = arith.constant 0 : i32
    return %c0_i32, %c0_i32_0 : i32, i32
  }
  func.func @transform_21(%arg0: i32) -> (i32, i32) {
    %c0_i32 = arith.constant 0 : i32
    %c0_i32_0 = arith.constant 0 : i32
    %c0_i32_1 = arith.constant 0 : i32
    return %c0_i32, %c0_i32_0 : i32, i32
  }
  func.func @transform_22(%arg0: i32) -> (i32, i32) {
    %c0_i32 = arith.constant 0 : i32
    %c0_i32_0 = arith.constant 0 : i32
    %c0_i32_1 = arith.constant 0 : i32
    return %c0_i32, %c0_i32_0 : i32, i32
  }
  func.func @transform_23(%arg0: i32) -> (i32, i32) {
    %c0_i32 = arith.constant 0 : i32
    %c0_i32_0 = arith.constant 0 : i32
    %c0_i32_1 = arith.constant 0 : i32
    return %c0_i32, %c0_i32_0 : i32, i32
  }
  func.func @transform_24(%arg0: i32) -> (i32, i32, i32) {
    %c0_i32 = arith.constant 0 : i32
    %c0_i32_0 = arith.constant 0 : i32
    %c0_i32_1 = arith.constant 0 : i32
    return %arg0, %c0_i32, %c0_i32_0 : i32, i32, i32
  }
}

module attributes {stable_mosaic.version = 11 : i64} {
  func.func @_out_proj_kernel(%arg0: i32, %arg1: memref<16x32xf32, #tpu.memory_space<vmem>>, %arg2: memref<32x128xf32, #tpu.memory_space<vmem>>, %arg3: memref<1x128xf32, #tpu.memory_space<vmem>>, %arg4: memref<16x128xf32, #tpu.memory_space<vmem>>) attributes {dimension_semantics = [#tpu.dimension_semantics<arbitrary>], iteration_bounds = array<i64: 1>, scalar_prefetch = 0 : i64, scratch_operands = 0 : i64, tpu.core_type = #tpu.core_type<tc>, window_params = [{pipeline_mode = #tpu.pipeline_mode<synchronous>, transform_indices = @transform_0, window_bounds = array<i64: 16, 32>}, {pipeline_mode = #tpu.pipeline_mode<synchronous>, transform_indices = @transform_1, window_bounds = array<i64: 32, 128>}, {pipeline_mode = #tpu.pipeline_mode<synchronous>, transform_indices = @transform_2, window_bounds = array<i64: 1, 128>}, {pipeline_mode = #tpu.pipeline_mode<synchronous>, transform_indices = @transform_3, window_bounds = array<i64: 16, 128>}]} {
    %c0 = arith.constant 0 : index
    %c0_0 = arith.constant 0 : index
    %0 = vector.load %arg1[%c0, %c0_0] : memref<16x32xf32, #tpu.memory_space<vmem>>, vector<16x32xf32>
    %c0_1 = arith.constant 0 : index
    %c0_2 = arith.constant 0 : index
    %1 = vector.load %arg2[%c0_1, %c0_2] : memref<32x128xf32, #tpu.memory_space<vmem>>, vector<32x128xf32>
    %cst = arith.constant dense<0.000000e+00> : vector<16x128xf32>
    %2 = tpu.matmul %0, %1, %cst {dimension_numbers = #tpu.dot_dimension_numbers<[1], [0], [0], [1], [0, 0, 1, 1], [], []>} : vector<16x32xf32>, vector<32x128xf32>, vector<16x128xf32> -> vector<16x128xf32>
    %c0_3 = arith.constant 0 : index
    %c0_4 = arith.constant 0 : index
    %3 = vector.load %arg3[%c0_3, %c0_4] : memref<1x128xf32, #tpu.memory_space<vmem>>, vector<1x128xf32>
    %4 = vector.broadcast %3 : vector<1x128xf32> to vector<16x128xf32>
    %5 = arith.addf %2, %4 : vector<16x128xf32>
    %c0_5 = arith.constant 0 : index
    %c0_6 = arith.constant 0 : index
    %6 = vector.load %arg4[%c0_5, %c0_6] : memref<16x128xf32, #tpu.memory_space<vmem>>, vector<16x128xf32>
    tpu.vector_store %arg4[%c0_5, %c0_6], %5 {strides = array<i32>} : memref<16x128xf32, #tpu.memory_space<vmem>>, vector<16x128xf32>,
    return
  }
  func.func @transform_0(%arg0: i32) -> (i32, i32) {
    %c0_i32 = arith.constant 0 : i32
    %c0_i32_0 = arith.constant 0 : i32
    %c0_i32_1 = arith.constant 0 : i32
    return %c0_i32, %c0_i32_0 : i32, i32
  }
  func.func @transform_1(%arg0: i32) -> (i32, i32) {
    %c0_i32 = arith.constant 0 : i32
    %c0_i32_0 = arith.constant 0 : i32
    %c0_i32_1 = arith.constant 0 : i32
    return %c0_i32, %c0_i32_0 : i32, i32
  }
  func.func @transform_2(%arg0: i32) -> (i32, i32) {
    %c0_i32 = arith.constant 0 : i32
    %c0_i32_0 = arith.constant 0 : i32
    %c0_i32_1 = arith.constant 0 : i32
    return %c0_i32, %c0_i32_0 : i32, i32
  }
  func.func @transform_3(%arg0: i32) -> (i32, i32) {
    %c0_i32 = arith.constant 0 : i32
    %c0_i32_0 = arith.constant 0 : i32
    %c0_i32_1 = arith.constant 0 : i32
    return %c0_i32, %c0_i32_0 : i32, i32
  }
}

</mosaic_0001>

<llo_original>
// kernel: bert_translation_forward.7
$region0: #{bert_translation_forward.7}
  #allocation0 [shape = 'u32[]', space=smem, size = 0x4, offset = 0x4, fixed_abs, tag = 'smem constant byte address 0x4 - core index']
  #allocation1 [shape = 'u32[72,128]{1,0:T(1,128)}', space=vmem, size = 0x9000, scoped, tag = 'internal scratch']
  %s0 = inlined_call_operand.vmem [shape: f32[16,32], index: 0, kind: input, shape index: {}]
  %s1 = inlined_call_operand.vmem [shape: f32[16,32], index: 1, kind: input, shape index: {}]
  %s2 = inlined_call_operand.vmem [shape: f32[16,32], index: 2, kind: input, shape index: {}]
  %s3 = inlined_call_operand.vmem [shape: f32[1,32], index: 3, kind: input, shape index: {}]
  %s4 = inlined_call_operand.vmem [shape: f32[1,32], index: 4, kind: input, shape index: {}]
  %s5 = inlined_call_operand.vmem [shape: f32[16,32], index: 5, kind: output, shape index: {}]
  %s6 = sld [smem:[#allocation0]]
  $region30: #{bert_translation_forward.7} parent=0
    _
  %s8 = ssub.s32 1, %s6
  %s9 = scalar_select 0, %s8, %s6
  // Predicated region
  $region2: #{bert_translation_forward.7} parent=0 // pred_check
    _
  $region3: #{bert_translation_forward.7} parent=0 // pred_check_branch
    %11 = sbr.rel (0) target = $region5
  $region4: #{bert_translation_forward.7} parent=0 // pred_region
    _
  $region5: #{bert_translation_forward.7} parent=0 // pred_fallthru
    _
  // Predicated region
  $region6: #{bert_translation_forward.7} parent=0 // pred_check
    _
  $region7: #{bert_translation_forward.7} parent=0 // pred_check_branch
    %13 = sbr.rel (0) target = $region9
  $region8: #{bert_translation_forward.7} parent=0 // pred_region
    _
  $region9: #{bert_translation_forward.7} parent=0 // pred_fallthru
    _
  // Predicated region
  $region10: #{bert_translation_forward.7} parent=0 // pred_check
    _
  $region11: #{bert_translation_forward.7} parent=0 // pred_check_branch
    %15 = sbr.rel (0) target = $region13
  $region12: #{bert_translation_forward.7} parent=0 // pred_region
    _
  $region13: #{bert_translation_forward.7} parent=0 // pred_fallthru
    _
  // Predicated region
  $region14: #{bert_translation_forward.7} parent=0 // pred_check
    _
  $region15: #{bert_translation_forward.7} parent=0 // pred_check_branch
    %17 = sbr.rel (0) target = $region17
  $region16: #{bert_translation_forward.7} parent=0 // pred_region
    _
  $region17: #{bert_translation_forward.7} parent=0 // pred_fallthru
    _
  // Predicated region
  $region18: #{bert_translation_forward.7} parent=0 // pred_check
    _
  $region19: #{bert_translation_forward.7} parent=0 // pred_check_branch
    %19 = sbr.rel (0) target = $region21
  $region20: #{bert_translation_forward.7} parent=0 // pred_region
    _
  $region21: #{bert_translation_forward.7} parent=0 // pred_fallthru
    _
  %v20 = vld [vmem:[%s0] sm:$0xff]
  %v21 = vld [vmem:[%s0 + $0x8] sm:$0xff]
  %v22 = vld [vmem:[%s1] sm:$0xff]
  %v23 = vld [vmem:[%s1 + $0x8] sm:$0xff]
  %v24 = vadd.f32 %v20, %v22
  %v25 = vadd.f32 %v21, %v23
  %v26 = vld [vmem:[%s2] sm:$0xff]
  %v27 = vld [vmem:[%s2 + $0x8] sm:$0xff]
  %v28 = vadd.f32 %v24, %v26
  %v29 = vadd.f32 %v25, %v27
  %v30 = vld [vmem:[%s3] sm:$0x1]
  %v31 = vld [vmem:[%s4] sm:$0x1]
  %vm32 = vcmask 261120
  %v33 = vsel %vm32, %v28, 0.0
  %34 = vadd.xlane.f32.xlu0 %v33
  %v35 = vpop.xlane.xlu0 %34
  %v36 = vsel %vm32, %v29, 0.0
  %37 = vadd.xlane.f32.xlu0 %v36
  %v38 = vpop.xlane.xlu0 %37
  %v39 = vrcp.pop 32.0
  %v40 = vmul.f32 32.0, %v39
  %v41 = vsub.f32 1.0, %v40
  %v42 = vmul.f32 %v39, %v41
  %v43 = vadd.f32 %v39, %v42
  %vm44 = vweird.f32 %v39
  %v45 = vsel %vm44, %v39, %v43
  %v46 = vmul.f32 %v35, %v45
  %v47 = vmul.f32 %v38, %v45
  %v48 = vsub.f32 %v28, %v46
  %v49 = vsub.f32 %v29, %v47
  %v50 = vmul.f32 %v48, %v48
  %v51 = vmul.f32 %v49, %v49
  %v52 = vsel %vm32, %v50, 0.0
  %53 = vadd.xlane.f32.xlu0 %v52
  %v54 = vpop.xlane.xlu0 %53
  %v55 = vsel %vm32, %v51, 0.0
  %56 = vadd.xlane.f32.xlu0 %v55
  %v57 = vpop.xlane.xlu0 %56
  %v58 = vmul.f32 %v54, %v45
  %v59 = vmul.f32 %v57, %v45
  %v60 = vadd.f32 %v58, 1e-06
  %v61 = vadd.f32 %v59, 1e-06
  %v62 = vrsqrt.pop %v60
  %v63 = vmul.f32 %v62, %v60
  %v64 = vmul.f32 %v63, %v62
  %v65 = vmul.f32 0.5, %v64
  %v66 = vsub.f32 1.5, %v65
  %v67 = vmul.f32 %v62, %v66
  %vm68 = vweird.f32 %v60
  %vm69 = vweird.f32 %v62
  %vm70 = vmor %vm68, %vm69
  %v71 = vsel %vm70, %v62, %v67
  %v72 = vrsqrt.pop %v61
  %v73 = vmul.f32 %v72, %v61
  %v74 = vmul.f32 %v73, %v72
  %v75 = vmul.f32 0.5, %v74
  %v76 = vsub.f32 1.5, %v75
  %v77 = vmul.f32 %v72, %v76
  %vm78 = vweird.f32 %v61
  %vm79 = vweird.f32 %v72
  %vm80 = vmor %vm78, %vm79
  %v81 = vsel %vm80, %v72, %v77
  %v82 = vmul.f32 %v48, %v71
  %v83 = vmul.f32 %v49, %v81
  %v85 = vperm.slane %v30, 0
  %v87 = vmul.f32 %v82, %v85
  %v88 = vmul.f32 %v83, %v85
  %v90 = vperm.slane %v31, 0
  %v92 = vadd.f32 %v87, %v90
  %v93 = vadd.f32 %v88, %v90
  %94 = vst.msk [vmem:[%s5] sm:$0xff] %vm32, %v92
  %95 = vst.msk [vmem:[%s5 + $0x8] sm:$0xff] %vm32, %v93
  // Predicated region
  $region22: #{bert_translation_forward.7} parent=0 // pred_check
    _
  $region23: #{bert_translation_forward.7} parent=0 // pred_check_branch
    %97 = sbr.rel (0) target = $region25
  $region24: #{bert_translation_forward.7} parent=0 // pred_region
    _
  $region25: #{bert_translation_forward.7} parent=0 // pred_fallthru
    _
  // Predicated region
  $region26: #{bert_translation_forward.7} parent=0 // pred_check
    _
  $region27: #{bert_translation_forward.7} parent=0 // pred_check_branch
    %99 = sbr.rel (0) target = $region29
  $region28: #{bert_translation_forward.7} parent=0 // pred_region
    _
  $region29: #{bert_translation_forward.7} parent=0 // pred_fallthru
    _

// kernel: bert_translation_forward.8
$region0: #{bert_translation_forward.8}
  #allocation0 [shape = 'u32[]', space=smem, size = 0x4, offset = 0x4, fixed_abs, tag = 'smem constant byte address 0x4 - core index']
  #allocation1 [shape = 'u32[72,128]{1,0:T(1,128)}', space=vmem, size = 0x9000, scoped, tag = 'internal scratch']
  %s0 = inlined_call_operand.vmem [shape: f32[2,8,32], index: 0, kind: input, shape index: {}]
  %s1 = inlined_call_operand.vmem [shape: f32[2,8,8], index: 1, kind: input, shape index: {}]
  %s2 = inlined_call_operand.vmem [shape: f32[1,32], index: 2, kind: input, shape index: {}]
  %s3 = inlined_call_operand.vmem [shape: f32[1,32], index: 3, kind: input, shape index: {}]
  %s4 = inlined_call_operand.vmem [shape: f32[32,96], index: 4, kind: input, shape index: {}]
  %s5 = inlined_call_operand.vmem [shape: f32[1,96], index: 5, kind: input, shape index: {}]
  %s6 = inlined_call_operand.vmem [shape: f32[32,32], index: 6, kind: input, shape index: {}]
  %s7 = inlined_call_operand.vmem [shape: f32[1,32], index: 7, kind: input, shape index: {}]
  %s8 = inlined_call_operand.vmem [shape: f32[1,32], index: 8, kind: input, shape index: {}]
  %s9 = inlined_call_operand.vmem [shape: f32[1,32], index: 9, kind: input, shape index: {}]
  %s10 = inlined_call_operand.vmem [shape: f32[32,128], index: 10, kind: input, shape index: {}]
  %s11 = inlined_call_operand.vmem [shape: f32[1,128], index: 11, kind: input, shape index: {}]
  %s12 = inlined_call_operand.vmem [shape: f32[128,32], index: 12, kind: input, shape index: {}]
  %s13 = inlined_call_operand.vmem [shape: f32[1,32], index: 13, kind: input, shape index: {}]
  %s14 = inlined_call_operand.vmem [shape: f32[2,8,32], index: 14, kind: output, shape index: {}]
  %s15 = sld [smem:[#allocation0]]
  $region89: #{bert_translation_forward.8} parent=0
    _
  %s17 = ssub.s32 1, %s15
  %s18 = scalar_select 0, %s17, %s15
  loop: start=0, step=1, limit=4
  $region2: #{bert_translation_forward.8} parent=0 // loop_pre_header
    _
  $region3: #{bert_translation_forward.8} parent=0 // loop_header
    %s20 = sphi 0, %s24
    %p21 = scmp.ge.s32.totalorder %s20, 4
    %s30 = sphi 0, %s32
    %s33 = sphi 0, %s30
    %s34 = sphi 0, %s33
    %s50 = sphi 0, %s34
    %s56 = sphi 0, %s58
    %s59 = sphi 0, %s56
    %s60 = sphi 0, %s59
    %s76 = sphi 0, %s60
    %s80 = sphi 0, %s80
    %s82 = sphi 0, %s80
    %s83 = sphi 0, %s82
    %s97 = sphi 0, %s83
    %s101 = sphi 0, %s101
    %s103 = sphi 0, %s101
    %s104 = sphi 0, %s103
    %s118 = sphi 0, %s104
    %s122 = sphi 0, %s122
    %s124 = sphi 0, %s122
    %s125 = sphi 0, %s124
    %s139 = sphi 0, %s125
    %s143 = sphi 0, %s143
    %s145 = sphi 0, %s143
    %s146 = sphi 0, %s145
    %s160 = sphi 0, %s146
    %s164 = sphi 0, %s164
    %s166 = sphi 0, %s164
    %s167 = sphi 0, %s166
    %s181 = sphi 0, %s167
    %s185 = sphi 0, %s185
    %s187 = sphi 0, %s185
    %s188 = sphi 0, %s187
    %s202 = sphi 0, %s188
    %s206 = sphi 0, %s206
    %s208 = sphi 0, %s206
    %s209 = sphi 0, %s208
    %s223 = sphi 0, %s209
    %s227 = sphi 0, %s227
    %s229 = sphi 0, %s227
    %s230 = sphi 0, %s229
    %s244 = sphi 0, %s230
    %s248 = sphi 0, %s248
    %s250 = sphi 0, %s248
    %s251 = sphi 0, %s250
    %s265 = sphi 0, %s251
    %s269 = sphi 0, %s269
    %s271 = sphi 0, %s269
    %s272 = sphi 0, %s271
    %s286 = sphi 0, %s272
    %s290 = sphi 0, %s290
    %s292 = sphi 0, %s290
    %s293 = sphi 0, %s292
    %s307 = sphi 0, %s293
    %s311 = sphi 0, %s311
    %s313 = sphi 0, %s311
    %s314 = sphi 0, %s313
    %s328 = sphi 0, %s314
    %s334 = sphi 0, %s336
    %s337 = sphi 0, %s334
    %s338 = sphi 0, %s337
    %s354 = sphi 0, %s338
  $region4: #{bert_translation_forward.8} parent=0 // loop_header_branch
    %23 = sbr.rel (%p21) target = $region8
  $region5: #{bert_translation_forward.8} parent=0 // loop_body
    %s25 = ssub.s32 %s20, 1
    %s26 = ssub.s32 %s20, 2
    %s27 = sadd.s32 %s20, 1
    %s28 = ssub.s32 %s20, %s27
    %p29 = scmp.eq.s32.totalorder %s28, 0
    %s31 = sadd.s32 %s30, 1
    %s32 = scalar_select %p29, %s30, %s31
    %p35 = pneg %p29
    %p36 = scmp.eq.s32.totalorder %s20, 1
    %p37 = por %p35, %p36
    %p38 = scmp.ne.s32.totalorder %s30, %s33
    %p39 = scmp.eq.s32.totalorder %s20, 0
    %p40 = por %p38, %p39
    %p41 = scmp.ne.s32.totalorder %s30, %s33
    %p42 = scmp.eq.s32.totalorder %s25, 1
    %p43 = por %p41, %p42
    %p44 = scmp.ne.s32.totalorder %s33, %s34
    %p45 = scmp.eq.s32.totalorder %s25, 0
    %p46 = por %p44, %p45
    %p47 = scmp.ne.s32.totalorder %s33, %s34
    %p48 = scmp.eq.s32.totalorder %s26, 1
    %p49 = por %p47, %p48
    %p51 = scmp.ne.s32.totalorder %s34, %s50
    %p52 = scmp.eq.s32.totalorder %s26, 0
    %p53 = por %p51, %p52
    %s54 = ssub.s32 %s20, %s27
    %p55 = scmp.eq.s32.totalorder %s54, 0
    %s57 = sadd.s32 %s56, 1
    %s58 = scalar_select %p55, %s56, %s57
    %p61 = pneg %p55
    %p62 = scmp.eq.s32.totalorder %s20, 1
    %p63 = por %p61, %p62
    %p64 = scmp.ne.s32.totalorder %s56, %s59
    %p65 = scmp.eq.s32.totalorder %s20, 0
    %p66 = por %p64, %p65
    %p67 = scmp.ne.s32.totalorder %s56, %s59
    %p68 = scmp.eq.s32.totalorder %s25, 1
    %p69 = por %p67, %p68
    %p70 = scmp.ne.s32.totalorder %s59, %s60
    %p71 = scmp.eq.s32.totalorder %s25, 0
    %p72 = por %p70, %p71
    %p73 = scmp.ne.s32.totalorder %s59, %s60
    %p74 = scmp.eq.s32.totalorder %s26, 1
    %p75 = por %p73, %p74
    %p77 = scmp.ne.s32.totalorder %s60, %s76
    %p78 = scmp.eq.s32.totalorder %s26, 0
    %p79 = por %p77, %p78
    %s81 = sadd.s32 %s80, 1
    %p84 = scmp.eq.s32.totalorder %s20, 1
    %p85 = scmp.ne.s32.totalorder %s80, %s82
    %p86 = scmp.eq.s32.totalorder %s20, 0
    %p87 = por %p85, %p86
    %p88 = scmp.ne.s32.totalorder %s80, %s82
    %p89 = scmp.eq.s32.totalorder %s25, 1
    %p90 = por %p88, %p89
    %p91 = scmp.ne.s32.totalorder %s82, %s83
    %p92 = scmp.eq.s32.totalorder %s25, 0
    %p93 = por %p91, %p92
    %p94 = scmp.ne.s32.totalorder %s82, %s83
    %p95 = scmp.eq.s32.totalorder %s26, 1
    %p96 = por %p94, %p95
    %p98 = scmp.ne.s32.totalorder %s83, %s97
    %p99 = scmp.eq.s32.totalorder %s26, 0
    %p100 = por %p98, %p99
    %s102 = sadd.s32 %s101, 1
    %p105 = scmp.eq.s32.totalorder %s20, 1
    %p106 = scmp.ne.s32.totalorder %s101, %s103
    %p107 = scmp.eq.s32.totalorder %s20, 0
    %p108 = por %p106, %p107
    %p109 = scmp.ne.s32.totalorder %s101, %s103
    %p110 = scmp.eq.s32.totalorder %s25, 1
    %p111 = por %p109, %p110
    %p112 = scmp.ne.s32.totalorder %s103, %s104
    %p113 = scmp.eq.s32.totalorder %s25, 0
    %p114 = por %p112, %p113
    %p115 = scmp.ne.s32.totalorder %s103, %s104
    %p116 = scmp.eq.s32.totalorder %s26, 1
    %p117 = por %p115, %p116
    %p119 = scmp.ne.s32.totalorder %s104, %s118
    %p120 = scmp.eq.s32.totalorder %s26, 0
    %p121 = por %p119, %p120
    %s123 = sadd.s32 %s122, 1
    %p126 = scmp.eq.s32.totalorder %s20, 1
    %p127 = scmp.ne.s32.totalorder %s122, %s124
    %p128 = scmp.eq.s32.totalorder %s20, 0
    %p129 = por %p127, %p128
    %p130 = scmp.ne.s32.totalorder %s122, %s124
    %p131 = scmp.eq.s32.totalorder %s25, 1
    %p132 = por %p130, %p131
    %p133 = scmp.ne.s32.totalorder %s124, %s125
    %p134 = scmp.eq.s32.totalorder %s25, 0
    %p135 = por %p133, %p134
    %p136 = scmp.ne.s32.totalorder %s124, %s125
    %p137 = scmp.eq.s32.totalorder %s26, 1
    %p138 = por %p136, %p137
    %p140 = scmp.ne.s32.totalorder %s125, %s139
    %p141 = scmp.eq.s32.totalorder %s26, 0
    %p142 = por %p140, %p141
    %s144 = sadd.s32 %s143, 1
    %p147 = scmp.eq.s32.totalorder %s20, 1
    %p148 = scmp.ne.s32.totalorder %s143, %s145
    %p149 = scmp.eq.s32.totalorder %s20, 0
    %p150 = por %p148, %p149
    %p151 = scmp.ne.s32.totalorder %s143, %s145
    %p152 = scmp.eq.s32.totalorder %s25, 1
    %p153 = por %p151, %p152
    %p154 = scmp.ne.s32.totalorder %s145, %s146
    %p155 = scmp.eq.s32.totalorder %s25, 0
    %p156 = por %p154, %p155
    %p157 = scmp.ne.s32.totalorder %s145, %s146
    %p158 = scmp.eq.s32.totalorder %s26, 1
    %p159 = por %p157, %p158
    %p161 = scmp.ne.s32.totalorder %s146, %s160
    %p162 = scmp.eq.s32.totalorder %s26, 0
    %p163 = por %p161, %p162
    %s165 = sadd.s32 %s164, 1
    %p168 = scmp.eq.s32.totalorder %s20, 1
    %p169 = scmp.ne.s32.totalorder %s164, %s166
    %p170 = scmp.eq.s32.totalorder %s20, 0
    %p171 = por %p169, %p170
    %p172 = scmp.ne.s32.totalorder %s164, %s166
    %p173 = scmp.eq.s32.totalorder %s25, 1
    %p174 = por %p172, %p173
    %p175 = scmp.ne.s32.totalorder %s166, %s167
    %p176 = scmp.eq.s32.totalorder %s25, 0
    %p177 = por %p175, %p176
    %p178 = scmp.ne.s32.totalorder %s166, %s167
    %p179 = scmp.eq.s32.totalorder %s26, 1
    %p180 = por %p178, %p179
    %p182 = scmp.ne.s32.totalorder %s167, %s181
    %p183 = scmp.eq.s32.totalorder %s26, 0
    %p184 = por %p182, %p183
    %s186 = sadd.s32 %s185, 1
    %p189 = scmp.eq.s32.totalorder %s20, 1
    %p190 = scmp.ne.s32.totalorder %s185, %s187
    %p191 = scmp.eq.s32.totalorder %s20, 0
    %p192 = por %p190, %p191
    %p193 = scmp.ne.s32.totalorder %s185, %s187
    %p194 = scmp.eq.s32.totalorder %s25, 1
    %p195 = por %p193, %p194
    %p196 = scmp.ne.s32.totalorder %s187, %s188
    %p197 = scmp.eq.s32.totalorder %s25, 0
    %p198 = por %p196, %p197
    %p199 = scmp.ne.s32.totalorder %s187, %s188
    %p200 = scmp.eq.s32.totalorder %s26, 1
    %p201 = por %p199, %p200
    %p203 = scmp.ne.s32.totalorder %s188, %s202
    %p204 = scmp.eq.s32.totalorder %s26, 0
    %p205 = por %p203, %p204
    %s207 = sadd.s32 %s206, 1
    %p210 = scmp.eq.s32.totalorder %s20, 1
    %p211 = scmp.ne.s32.totalorder %s206, %s208
    %p212 = scmp.eq.s32.totalorder %s20, 0
    %p213 = por %p211, %p212
    %p214 = scmp.ne.s32.totalorder %s206, %s208
    %p215 = scmp.eq.s32.totalorder %s25, 1
    %p216 = por %p214, %p215
    %p217 = scmp.ne.s32.totalorder %s208, %s209
    %p218 = scmp.eq.s32.totalorder %s25, 0
    %p219 = por %p217, %p218
    %p220 = scmp.ne.s32.totalorder %s208, %s209
    %p221 = scmp.eq.s32.totalorder %s26, 1
    %p222 = por %p220, %p221
    %p224 = scmp.ne.s32.totalorder %s209, %s223
    %p225 = scmp.eq.s32.totalorder %s26, 0
    %p226 = por %p224, %p225
    %s228 = sadd.s32 %s227, 1
    %p231 = scmp.eq.s32.totalorder %s20, 1
    %p232 = scmp.ne.s32.totalorder %s227, %s229
    %p233 = scmp.eq.s32.totalorder %s20, 0
    %p234 = por %p232, %p233
    %p235 = scmp.ne.s32.totalorder %s227, %s229
    %p236 = scmp.eq.s32.totalorder %s25, 1
    %p237 = por %p235, %p236
    %p238 = scmp.ne.s32.totalorder %s229, %s230
    %p239 = scmp.eq.s32.totalorder %s25, 0
    %p240 = por %p238, %p239
    %p241 = scmp.ne.s32.totalorder %s229, %s230
    %p242 = scmp.eq.s32.totalorder %s26, 1
    %p243 = por %p241, %p242
    %p245 = scmp.ne.s32.totalorder %s230, %s244
    %p246 = scmp.eq.s32.totalorder %s26, 0
    %p247 = por %p245, %p246
    %s249 = sadd.s32 %s248, 1
    %p252 = scmp.eq.s32.totalorder %s20, 1
    %p253 = scmp.ne.s32.totalorder %s248, %s250
    %p254 = scmp.eq.s32.totalorder %s20, 0
    %p255 = por %p253, %p254
    %p256 = scmp.ne.s32.totalorder %s248, %s250
    %p257 = scmp.eq.s32.totalorder %s25, 1
    %p258 = por %p256, %p257
    %p259 = scmp.ne.s32.totalorder %s250, %s251
    %p260 = scmp.eq.s32.totalorder %s25, 0
    %p261 = por %p259, %p260
    %p262 = scmp.ne.s32.totalorder %s250, %s251
    %p263 = scmp.eq.s32.totalorder %s26, 1
    %p264 = por %p262, %p263
    %p266 = scmp.ne.s32.totalorder %s251, %s265
    %p267 = scmp.eq.s32.totalorder %s26, 0
    %p268 = por %p266, %p267
    %s270 = sadd.s32 %s269, 1
    %p273 = scmp.eq.s32.totalorder %s20, 1
    %p274 = scmp.ne.s32.totalorder %s269, %s271
    %p275 = scmp.eq.s32.totalorder %s20, 0
    %p276 = por %p274, %p275
    %p277 = scmp.ne.s32.totalorder %s269, %s271
    %p278 = scmp.eq.s32.totalorder %s25, 1
    %p279 = por %p277, %p278
    %p280 = scmp.ne.s32.totalorder %s271, %s272
    %p281 = scmp.eq.s32.totalorder %s25, 0
    %p282 = por %p280, %p281
    %p283 = scmp.ne.s32.totalorder %s271, %s272
    %p284 = scmp.eq.s32.totalorder %s26, 1
    %p285 = por %p283, %p284
    %p287 = scmp.ne.s32.totalorder %s272, %s286
    %p288 = scmp.eq.s32.totalorder %s26, 0
    %p289 = por %p287, %p288
    %s291 = sadd.s32 %s290, 1
    %p294 = scmp.eq.s32.totalorder %s20, 1
    %p295 = scmp.ne.s32.totalorder %s290, %s292
    %p296 = scmp.eq.s32.totalorder %s20, 0
    %p297 = por %p295, %p296
    %p298 = scmp.ne.s32.totalorder %s290, %s292
    %p299 = scmp.eq.s32.totalorder %s25, 1
    %p300 = por %p298, %p299
    %p301 = scmp.ne.s32.totalorder %s292, %s293
    %p302 = scmp.eq.s32.totalorder %s25, 0
    %p303 = por %p301, %p302
    %p304 = scmp.ne.s32.totalorder %s292, %s293
    %p305 = scmp.eq.s32.totalorder %s26, 1
    %p306 = por %p304, %p305
    %p308 = scmp.ne.s32.totalorder %s293, %s307
    %p309 = scmp.eq.s32.totalorder %s26, 0
    %p310 = por %p308, %p309
    %s312 = sadd.s32 %s311, 1
    %p315 = scmp.eq.s32.totalorder %s20, 1
    %p316 = scmp.ne.s32.totalorder %s311, %s313
    %p317 = scmp.eq.s32.totalorder %s20, 0
    %p318 = por %p316, %p317
    %p319 = scmp.ne.s32.totalorder %s311, %s313
    %p320 = scmp.eq.s32.totalorder %s25, 1
    %p321 = por %p319, %p320
    %p322 = scmp.ne.s32.totalorder %s313, %s314
    %p323 = scmp.eq.s32.totalorder %s25, 0
    %p324 = por %p322, %p323
    %p325 = scmp.ne.s32.totalorder %s313, %s314
    %p326 = scmp.eq.s32.totalorder %s26, 1
    %p327 = por %p325, %p326
    %p329 = scmp.ne.s32.totalorder %s314, %s328
    %p330 = scmp.eq.s32.totalorder %s26, 0
    %p331 = por %p329, %p330
    %s332 = ssub.s32 %s20, %s27
    %p333 = scmp.eq.s32.totalorder %s332, 0
    %s335 = sadd.s32 %s334, 1
    %s336 = scalar_select %p333, %s334, %s335
    %p339 = pneg %p333
    %p340 = scmp.eq.s32.totalorder %s20, 1
    %p341 = por %p339, %p340
    %p342 = scmp.ne.s32.totalorder %s334, %s337
    %p343 = scmp.eq.s32.totalorder %s20, 0
    %p344 = por %p342, %p343
    %p345 = scmp.ne.s32.totalorder %s334, %s337
    %p346 = scmp.eq.s32.totalorder %s25, 1
    %p347 = por %p345, %p346
    %p348 = scmp.ne.s32.totalorder %s337, %s338
    %p349 = scmp.eq.s32.totalorder %s25, 0
    %p350 = por %p348, %p349
    %p351 = scmp.ne.s32.totalorder %s337, %s338
    %p352 = scmp.eq.s32.totalorder %s26, 1
    %p353 = por %p351, %p352
    %p355 = scmp.ne.s32.totalorder %s338, %s354
    %p356 = scmp.eq.s32.totalorder %s26, 0
    %p357 = por %p355, %p356
    %p358 = scmp.le.s32.totalorder 1, %s20
    %p359 = scmp.lt.s32.totalorder %s20, 3
    %p360 = pnand %p358, %p359
    %p361 = pneg %p360
    // Predicated region
    $region9: #{bert_translation_forward.8} parent=5 // pred_check
      _
    $region10: #{bert_translation_forward.8} parent=5 // pred_check_branch
      %363 = sbr.rel (%p360) target = $region12
    $region11: #{bert_translation_forward.8} parent=5 // pred_region
      %s364 = ssub.s32 %s20, 1
      // Predicated region
      $region13: #{bert_translation_forward.8} parent=11 // pred_check
        %p365 = pneg %p93
      $region14: #{bert_translation_forward.8} parent=11 // pred_check_branch
        %367 = sbr.rel (%p365) target = $region16
      $region15: #{bert_translation_forward.8} parent=11 // pred_region
        _
      $region16: #{bert_translation_forward.8} parent=11 // pred_fallthru
        _
      // Predicated region
      $region17: #{bert_translation_forward.8} parent=11 // pred_check
        %p368 = pneg %p114
      $region18: #{bert_translation_forward.8} parent=11 // pred_check_branch
        %370 = sbr.rel (%p368) target = $region20
      $region19: #{bert_translation_forward.8} parent=11 // pred_region
        _
      $region20: #{bert_translation_forward.8} parent=11 // pred_fallthru
        _
      // Predicated region
      $region21: #{bert_translation_forward.8} parent=11 // pred_check
        %p371 = pneg %p135
      $region22: #{bert_translation_forward.8} parent=11 // pred_check_branch
        %373 = sbr.rel (%p371) target = $region24
      $region23: #{bert_translation_forward.8} parent=11 // pred_region
        _
      $region24: #{bert_translation_forward.8} parent=11 // pred_fallthru
        _
      // Predicated region
      $region25: #{bert_translation_forward.8} parent=11 // pred_check
        %p374 = pneg %p156
      $region26: #{bert_translation_forward.8} parent=11 // pred_check_branch
        %376 = sbr.rel (%p374) target = $region28
      $region27: #{bert_translation_forward.8} parent=11 // pred_region
        _
      $region28: #{bert_translation_forward.8} parent=11 // pred_fallthru
        _
      // Predicated region
      $region29: #{bert_translation_forward.8} parent=11 // pred_check
        %p377 = pneg %p177
      $region30: #{bert_translation_forward.8} parent=11 // pred_check_branch
        %379 = sbr.rel (%p377) target = $region32
      $region31: #{bert_translation_forward.8} parent=11 // pred_region
        _
      $region32: #{bert_translation_forward.8} parent=11 // pred_fallthru
        _
      // Predicated region
      $region33: #{bert_translation_forward.8} parent=11 // pred_check
        %p380 = pneg %p198
      $region34: #{bert_translation_forward.8} parent=11 // pred_check_branch
        %382 = sbr.rel (%p380) target = $region36
      $region35: #{bert_translation_forward.8} parent=11 // pred_region
        _
      $region36: #{bert_translation_forward.8} parent=11 // pred_fallthru
        _
      // Predicated region
      $region37: #{bert_translation_forward.8} parent=11 // pred_check
        %p383 = pneg %p219
      $region38: #{bert_translation_forward.8} parent=11 // pred_check_branch
        %385 = sbr.rel (%p383) target = $region40
      $region39: #{bert_translation_forward.8} parent=11 // pred_region
        _
      $region40: #{bert_translation_forward.8} parent=11 // pred_fallthru
        _
      // Predicated region
      $region41: #{bert_translation_forward.8} parent=11 // pred_check
        %p386 = pneg %p240
      $region42: #{bert_translation_forward.8} parent=11 // pred_check_branch
        %388 = sbr.rel (%p386) target = $region44
      $region43: #{bert_translation_forward.8} parent=11 // pred_region
        _
      $region44: #{bert_translation_forward.8} parent=11 // pred_fallthru
        _
      // Predicated region
      $region45: #{bert_translation_forward.8} parent=11 // pred_check
        %p389 = pneg %p261
      $region46: #{bert_translation_forward.8} parent=11 // pred_check_branch
        %391 = sbr.rel (%p389) target = $region48
      $region47: #{bert_translation_forward.8} parent=11 // pred_region
        _
      $region48: #{bert_translation_forward.8} parent=11 // pred_fallthru
        _
      // Predicated region
      $region49: #{bert_translation_forward.8} parent=11 // pred_check
        %p392 = pneg %p282
      $region50: #{bert_translation_forward.8} parent=11 // pred_check_branch
        %394 = sbr.rel (%p392) target = $region52
      $region51: #{bert_translation_forward.8} parent=11 // pred_region
        _
      $region52: #{bert_translation_forward.8} parent=11 // pred_fallthru
        _
      // Predicated region
      $region53: #{bert_translation_forward.8} parent=11 // pred_check
        %p395 = pneg %p303
      $region54: #{bert_translation_forward.8} parent=11 // pred_check_branch
        %397 = sbr.rel (%p395) target = $region56
      $region55: #{bert_translation_forward.8} parent=11 // pred_region
        _
      $region56: #{bert_translation_forward.8} parent=11 // pred_fallthru
        _
      // Predicated region
      $region57: #{bert_translation_forward.8} parent=11 // pred_check
        %p398 = pneg %p324
      $region58: #{bert_translation_forward.8} parent=11 // pred_check_branch
        %400 = sbr.rel (%p398) target = $region60
      $region59: #{bert_translation_forward.8} parent=11 // pred_region
        _
      $region60: #{bert_translation_forward.8} parent=11 // pred_fallthru
        _
    $region12: #{bert_translation_forward.8} parent=5 // pred_fallthru
      _
    %p401 = scmp.lt.s32.totalorder %s20, 2
    // Predicated region
    $region61: #{bert_translation_forward.8} parent=5 // pred_check
      %p402 = pneg %p401
    $region62: #{bert_translation_forward.8} parent=5 // pred_check_branch
      %404 = sbr.rel (%p402) target = $region64
    $region63: #{bert_translation_forward.8} parent=5 // pred_region
      // Predicated region
      $region65: #{bert_translation_forward.8} parent=63 // pred_check
        %p405 = pneg %p40
      $region66: #{bert_translation_forward.8} parent=63 // pred_check_branch
        %407 = sbr.rel (%p405) target = $region68
      $region67: #{bert_translation_forward.8} parent=63 // pred_region
        %p408 = scmp.lt.s32.totalorder %s20, 1
        %s409 = scalar_select %p408, %s20, 1
        %s410 = smul.addr %s409, 8
        %s411 = scalar_lea.vmem %s0, %s410
      $region68: #{bert_translation_forward.8} parent=63 // pred_fallthru
        _
      // Predicated region
      $region69: #{bert_translation_forward.8} parent=63 // pred_check
        %p412 = pneg %p66
      $region70: #{bert_translation_forward.8} parent=63 // pred_check_branch
        %414 = sbr.rel (%p412) target = $region72
      $region71: #{bert_translation_forward.8} parent=63 // pred_region
        %p415 = scmp.lt.s32.totalorder %s20, 1
        %s416 = scalar_select %p415, %s20, 1
        %s417 = smul.addr %s416, 8
        %s418 = scalar_lea.vmem %s1, %s417
      $region72: #{bert_translation_forward.8} parent=63 // pred_fallthru
        _
    $region64: #{bert_translation_forward.8} parent=5 // pred_fallthru
      _
    %p419 = scmp.le.s32.totalorder 1, %s20
    %p420 = scmp.lt.s32.totalorder %s20, 3
    %p421 = pnand %p419, %p420
    %p422 = pneg %p421
    // Predicated region
    $region73: #{bert_translation_forward.8} parent=5 // pred_check
      _
    $region74: #{bert_translation_forward.8} parent=5 // pred_check_branch
      %424 = sbr.rel (%p421) target = $region76
    $region75: #{bert_translation_forward.8} parent=5 // pred_region
      %s425 = ssub.s32 %s20, 1
      %p426 = scmp.lt.s32.totalorder %s25, 1
      %s427 = scalar_select %p426, %s25, 1
      %s428 = smul.addr %s427, 8
      %s429 = scalar_lea.vmem %s0, %s428
      %p430 = pneg %p46
      %p431 = pneg %p43
      %p432 = scmp.lt.s32.totalorder %s25, 1
      %s433 = scalar_select %p432, %s25, 1
      %s434 = smul.addr %s433, 8
      %s435 = scalar_lea.vmem %s1, %s434
      %p436 = pneg %p72
      %p437 = pneg %p69
      %p438 = pneg %p93
      %p439 = pneg %p90
      %p440 = pneg %p114
      %p441 = pneg %p111
      %p442 = pneg %p135
      %p443 = pneg %p132
      %p444 = pneg %p156
      %p445 = pneg %p153
      %p446 = pneg %p177
      %p447 = pneg %p174
      %p448 = pneg %p198
      %p449 = pneg %p195
      %p450 = pneg %p219
      %p451 = pneg %p216
      %p452 = pneg %p240
      %p453 = pneg %p237
      %p454 = pneg %p261
      %p455 = pneg %p258
      %p456 = pneg %p282
      %p457 = pneg %p279
      %p458 = pneg %p303
      %p459 = pneg %p300
      %p460 = pneg %p324
      %p461 = pneg %p321
      %p462 = pneg %p350
      %p463 = pneg %p347
      %p464 = scmp.lt.s32.totalorder %s25, 1
      %s465 = scalar_select %p464, %s25, 1
      %s466 = smul.addr %s465, 8
      %s467 = scalar_lea.vmem %s14, %s466
      %p468 = scmp.lt.s32.totalorder %s25, 1
      %s469 = scalar_select %p468, %s25, 1
      %s470 = smul.addr %s469, 8
      %s471 = scalar_lea.vmem %s0, %s470
      %p472 = scmp.lt.s32.totalorder %s25, 1
      %s473 = scalar_select %p472, %s25, 1
      %s474 = smul.addr %s473, 8
      %s475 = scalar_lea.vmem %s1, %s474
      %p476 = scmp.lt.s32.totalorder %s25, 1
      %s477 = scalar_select %p476, %s25, 1
      %s478 = smul.addr %s477, 8
      %s479 = scalar_lea.vmem %s14, %s478
      %v480 = vld [vmem:[%s471] sm:$0xff]
      %v481 = vld [vmem:[%s475] sm:$0xff]
      %v482 = vld [vmem:[%s2] sm:$0x1]
      %v483 = vld [vmem:[%s3] sm:$0x1]
      %vm484 = vcmask 261120
      %v485 = vsel %vm484, %v480, 0.0
      %486 = vadd.xlane.f32.xlu0 %v485
      %v487 = vpop.xlane.xlu0 %486
      %v488 = vrcp.pop 32.0
      %v489 = vmul.f32 32.0, %v488
      %v490 = vsub.f32 1.0, %v489
      %v491 = vmul.f32 %v488, %v490
      %v492 = vadd.f32 %v488, %v491
      %vm493 = vweird.f32 %v488
      %v494 = vsel %vm493, %v488, %v492
      %v495 = vmul.f32 %v487, %v494
      %v496 = vsub.f32 %v480, %v495
      %v497 = vmul.f32 %v496, %v496
      %v498 = vsel %vm484, %v497, 0.0
      %499 = vadd.xlane.f32.xlu0 %v498
      %v500 = vpop.xlane.xlu0 %499
      %v501 = vmul.f32 %v500, %v494
      %v502 = vadd.f32 %v501, 1e-06
      %v503 = vrsqrt.pop %v502
      %v504 = vmul.f32 %v503, %v502
      %v505 = vmul.f32 %v504, %v503
      %v506 = vmul.f32 0.5, %v505
      %v507 = vsub.f32 1.5, %v506
      %v508 = vmul.f32 %v503, %v507
      %vm509 = vweird.f32 %v502
      %vm510 = vweird.f32 %v503
      %vm511 = vmor %vm509, %vm510
      %v512 = vsel %vm511, %v503, %v508
      %v513 = vmul.f32 %v496, %v512
      %v515 = vperm.slane %v482, 0
      %v517 = vmul.f32 %v513, %v515
      %v519 = vperm.slane %v483, 0
      %v521 = vadd.f32 %v517, %v519
      %v522 = vld [vmem:[%s4] sm:$0xff]
      %v523 = vld [vmem:[%s4 + $0x8] sm:$0xff]
      %v524 = vld [vmem:[%s4 + $0x10] sm:$0xff]
      %v525 = vld [vmem:[%s4 + $0x18] sm:$0xff]
      %v526 = vld [vmem:[%s5] sm:$0x1]
      %v528 = vperm.slane %v526, 0
      %v531 = vsel %vm484, %v521, 0
      %533 = vmatpush.msra.mxu0 0.0
      %534 = vmatpush.msra.mxu0 0.0
      %535 = vmatpush.msra.mxu0 0.0
      %536 = vmatpush.msra.mxu0 0.0
      %537 = vmatpush.msra.mxu0 0.0
      %538 = vmatpush.msra.mxu0 0.0
      %539 = vmatpush.msra.mxu0 0.0
      %540 = vmatpush.msra.mxu0 0.0
      %541 = vmatpush.msra.mxu0 0.0
      %542 = vmatpush.msra.mxu0 0.0
      %543 = vmatpush.msra.mxu0 0.0
      %544 = vmatpush.msra.mxu0 0.0
      %545 = vmatpush.msra.mxu0 %v525
      %546 = vmatpush.msra.mxu0 %v524
      %547 = vmatpush.msra.mxu0 %v523
      %548 = vmatpush.msra.mxu0 %v522
      %549 = vmatmul.f32.gmra.mxu0 %v531
      %v550 = vpop.f32.mrf.mxu0
      %v551 = vadd.f32 %v528, %v550
      %552 = vdwg.mxu0
      %v553 = vld [vmem:[%s6] sm:$0xff]
      %v554 = vld [vmem:[%s6 + $0x8] sm:$0xff]
      %v555 = vld [vmem:[%s6 + $0x10] sm:$0xff]
      %v556 = vld [vmem:[%s6 + $0x18] sm:$0xff]
      %v557 = vld [vmem:[%s7] sm:$0x1]
      %559 = vrot.lane.b32.xlu0 %v551, 96
      %v560 = vpop.permute.xlu0 %559
      %vm561 = vcmask 64512
      %v562 = vsel %vm561, %v551, 0
      %v564 = vsel %vm561, %v560, 0
      %566 = vmatpush.xpose.msra.mxu0 0.0
      %567 = vmatpush.xpose.msra.mxu0 0.0
      %568 = vmatpush.xpose.msra.mxu0 0.0
      %569 = vmatpush.xpose.msra.mxu0 0.0
      %570 = vmatpush.xpose.msra.mxu0 0.0
      %571 = vmatpush.xpose.msra.mxu0 0.0
      %572 = vmatpush.xpose.msra.mxu0 0.0
      %573 = vmatpush.xpose.msra.mxu0 0.0
      %574 = vmatpush.xpose.msra.mxu0 0.0
      %575 = vmatpush.xpose.msra.mxu0 0.0
      %576 = vmatpush.xpose.msra.mxu0 0.0
      %577 = vmatpush.xpose.msra.mxu0 0.0
      %578 = vmatpush.xpose.msra.mxu0 0.0
      %579 = vmatpush.xpose.msra.mxu0 0.0
      %580 = vmatpush.xpose.msra.mxu0 0.0
      %581 = vmatpush.xpose.msra.mxu0 %v564
      %582 = vmatmul.f32.gmra.mxu0 %v562
      %v583 = vpop.f32.mrf.mxu0
      %v584 = vadd.f32 0.0, %v583
      %585 = vdwg.mxu0
      %v586 = vmul.f32 %v584, 0.35355338
      %v587 = vadd.f32 %v586, %v481
      %v588 = vsel %vm561, %v587, -inf
      %589 = vmax.xlane.f32.xlu0 %v588
      %v590 = vpop.xlane.xlu0 %589
      %v591 = vsub.f32 %v587, %v590
      %v592 = vmul.f32 %v591, 1.442695
      %v593 = vpow.pop %v592
      %v594 = vsel %vm561, %v593, 0.0
      %595 = vadd.xlane.f32.xlu0 %v594
      %v596 = vpop.xlane.xlu0 %595
      %v597 = vrcp.pop %v596
      %v598 = vmul.f32 %v596, %v597
      %v599 = vsub.f32 1.0, %v598
      %v600 = vmul.f32 %v597, %v599
      %v601 = vadd.f32 %v597, %v600
      %vm602 = vweird.f32 %v596
      %vm603 = vweird.f32 %v597
      %vm604 = vmor %vm602, %vm603
      %v605 = vsel %vm604, %v597, %v601
      %v606 = vand.u32 2147483647, %v596
      %vm607 = vcmp.eq.f32.partialorder %v606, 8.507059e+37
      %v608 = vand.u32 %v596, 2147483648
      %v609 = vor.u32 1.1754944e-38, %v608
      %v610 = vsel %vm607, %v609, %v605
      %v611 = vmul.f32 %v593, %v610
      %612 = vrot.lane.b32.xlu0 %v551, 64
      %v613 = vpop.permute.xlu0 %612
      %v616 = vsel %vm561, %v611, 0
      %618 = vmatpush.msra.mxu0 0.0
      %619 = vmatpush.msra.mxu0 0.0
      %620 = vmatpush.msra.mxu0 0.0
      %621 = vmatpush.msra.mxu0 0.0
      %622 = vmatpush.msra.mxu0 0.0
      %623 = vmatpush.msra.mxu0 0.0
      %624 = vmatpush.msra.mxu0 0.0
      %625 = vmatpush.msra.mxu0 0.0
      %626 = vmatpush.msra.mxu0 0.0
      %627 = vmatpush.msra.mxu0 0.0
      %628 = vmatpush.msra.mxu0 0.0
      %629 = vmatpush.msra.mxu0 0.0
      %630 = vmatpush.msra.mxu0 0.0
      %631 = vmatpush.msra.mxu0 0.0
      %632 = vmatpush.msra.mxu0 0.0
      %633 = vmatpush.msra.mxu0 %v613
      %634 = vmatmul.f32.gmra.mxu0 %v616
      %v635 = vpop.f32.mrf.mxu0
      %v636 = vadd.f32 0.0, %v635
      %637 = vdwg.mxu0
      %638 = vrot.lane.b32.xlu0 %v551, 120
      %v639 = vpop.permute.xlu0 %638
      %640 = vrot.lane.b32.xlu0 %v551, 88
      %v641 = vpop.permute.xlu0 %640
      %v642 = vsel %vm561, %v639, 0
      %v644 = vsel %vm561, %v641, 0
      %646 = vmatpush.xpose.msra.mxu0 0.0
      %647 = vmatpush.xpose.msra.mxu0 0.0
      %648 = vmatpush.xpose.msra.mxu0 0.0
      %649 = vmatpush.xpose.msra.mxu0 0.0
      %650 = vmatpush.xpose.msra.mxu0 0.0
      %651 = vmatpush.xpose.msra.mxu0 0.0
      %652 = vmatpush.xpose.msra.mxu0 0.0
      %653 = vmatpush.xpose.msra.mxu0 0.0
      %654 = vmatpush.xpose.msra.mxu0 0.0
      %655 = vmatpush.xpose.msra.mxu0 0.0
      %656 = vmatpush.xpose.msra.mxu0 0.0
      %657 = vmatpush.xpose.msra.mxu0 0.0
      %658 = vmatpush.xpose.msra.mxu0 0.0
      %659 = vmatpush.xpose.msra.mxu0 0.0
      %660 = vmatpush.xpose.msra.mxu0 0.0
      %661 = vmatpush.xpose.msra.mxu0 %v644
      %662 = vmatmul.f32.gmra.mxu0 %v642
      %v663 = vpop.f32.mrf.mxu0
      %v664 = vadd.f32 0.0, %v663
      %665 = vdwg.mxu0
      %v666 = vmul.f32 %v664, 0.35355338
      %v667 = vadd.f32 %v666, %v481
      %v668 = vsel %vm561, %v667, -inf
      %669 = vmax.xlane.f32.xlu0 %v668
      %v670 = vpop.xlane.xlu0 %669
      %v671 = vsub.f32 %v667, %v670
      %v672 = vmul.f32 %v671, 1.442695
      %v673 = vpow.pop %v672
      %v674 = vsel %vm561, %v673, 0.0
      %675 = vadd.xlane.f32.xlu0 %v674
      %v676 = vpop.xlane.xlu0 %675
      %v677 = vrcp.pop %v676
      %v678 = vmul.f32 %v676, %v677
      %v679 = vsub.f32 1.0, %v678
      %v680 = vmul.f32 %v677, %v679
      %v681 = vadd.f32 %v677, %v680
      %vm682 = vweird.f32 %v676
      %vm683 = vweird.f32 %v677
      %vm684 = vmor %vm682, %vm683
      %v685 = vsel %vm684, %v677, %v681
      %v686 = vand.u32 2147483647, %v676
      %vm687 = vcmp.eq.f32.partialorder %v686, 8.507059e+37
      %v688 = vand.u32 %v676, 2147483648
      %v689 = vor.u32 1.1754944e-38, %v688
      %v690 = vsel %vm687, %v689, %v685
      %v691 = vmul.f32 %v673, %v690
      %692 = vrot.lane.b32.xlu0 %v551, 56
      %v693 = vpop.permute.xlu0 %692
      %v696 = vsel %vm561, %v691, 0
      %698 = vmatpush.msra.mxu0 0.0
      %699 = vmatpush.msra.mxu0 0.0
      %700 = vmatpush.msra.mxu0 0.0
      %701 = vmatpush.msra.mxu0 0.0
      %702 = vmatpush.msra.mxu0 0.0
      %703 = vmatpush.msra.mxu0 0.0
      %704 = vmatpush.msra.mxu0 0.0
      %705 = vmatpush.msra.mxu0 0.0
      %706 = vmatpush.msra.mxu0 0.0
      %707 = vmatpush.msra.mxu0 0.0
      %708 = vmatpush.msra.mxu0 0.0
      %709 = vmatpush.msra.mxu0 0.0
      %710 = vmatpush.msra.mxu0 0.0
      %711 = vmatpush.msra.mxu0 0.0
      %712 = vmatpush.msra.mxu0 0.0
      %713 = vmatpush.msra.mxu0 %v693
      %714 = vmatmul.f32.gmra.mxu0 %v696
      %v715 = vpop.f32.mrf.mxu0
      %v716 = vadd.f32 0.0, %v715
      %717 = vdwg.mxu0
      %v719 = vsel %vm561, %v716, 0
      %721 = vmatpush.msra.mxu0 0.0
      %722 = vmatpush.msra.mxu0 0.0
      %723 = vmatpush.msra.mxu0 0.0
      %724 = vmatpush.msra.mxu0 0.0
      %725 = vmatpush.msra.mxu0 0.0
      %726 = vmatpush.msra.mxu0 0.0
      %727 = vmatpush.msra.mxu0 0.0
      %728 = vmatpush.msra.mxu0 0.0
      %729 = vmatpush.msra.mxu0 0.0
      %730 = vmatpush.msra.mxu0 0.0
      %731 = vmatpush.msra.mxu0 0.0
      %732 = vmatpush.msra.mxu0 0.0
      %733 = vmatpush.msra.mxu0 0.0
      %734 = vmatpush.msra.mxu0 0.0
      %735 = vmatpush.msra.mxu0 0.0
      %736 = vmatpush.msra.mxu0 %v554
      %737 = vmatmul.f32.gmra.mxu0 %v719
      %v738 = vpop.f32.mrf.mxu0
      %v739 = vadd.f32 0.0, %v738
      %740 = vdwg.mxu0
      %v742 = vsel %vm561, %v636, 0
      %744 = vmatpush.msra.mxu0 0.0
      %745 = vmatpush.msra.mxu0 0.0
      %746 = vmatpush.msra.mxu0 0.0
      %747 = vmatpush.msra.mxu0 0.0
      %748 = vmatpush.msra.mxu0 0.0
      %749 = vmatpush.msra.mxu0 0.0
      %750 = vmatpush.msra.mxu0 0.0
      %751 = vmatpush.msra.mxu0 0.0
      %752 = vmatpush.msra.mxu0 0.0
      %753 = vmatpush.msra.mxu0 0.0
      %754 = vmatpush.msra.mxu0 0.0
      %755 = vmatpush.msra.mxu0 0.0
      %756 = vmatpush.msra.mxu0 0.0
      %757 = vmatpush.msra.mxu0 0.0
      %758 = vmatpush.msra.mxu0 0.0
      %759 = vmatpush.msra.mxu0 %v553
      %760 = vmatmul.f32.gmra.mxu0 %v742
      %v761 = vpop.f32.mrf.mxu0
      %v762 = vadd.f32 %v739, %v761
      %763 = vdwg.mxu0
      %764 = vrot.lane.b32.xlu0 %v551, 112
      %v765 = vpop.permute.xlu0 %764
      %766 = vrot.lane.b32.xlu0 %v551, 80
      %v767 = vpop.permute.xlu0 %766
      %v768 = vsel %vm561, %v765, 0
      %v770 = vsel %vm561, %v767, 0
      %772 = vmatpush.xpose.msra.mxu0 0.0
      %773 = vmatpush.xpose.msra.mxu0 0.0
      %774 = vmatpush.xpose.msra.mxu0 0.0
      %775 = vmatpush.xpose.msra.mxu0 0.0
      %776 = vmatpush.xpose.msra.mxu0 0.0
      %777 = vmatpush.xpose.msra.mxu0 0.0
      %778 = vmatpush.xpose.msra.mxu0 0.0
      %779 = vmatpush.xpose.msra.mxu0 0.0
      %780 = vmatpush.xpose.msra.mxu0 0.0
      %781 = vmatpush.xpose.msra.mxu0 0.0
      %782 = vmatpush.xpose.msra.mxu0 0.0
      %783 = vmatpush.xpose.msra.mxu0 0.0
      %784 = vmatpush.xpose.msra.mxu0 0.0
      %785 = vmatpush.xpose.msra.mxu0 0.0
      %786 = vmatpush.xpose.msra.mxu0 0.0
      %787 = vmatpush.xpose.msra.mxu0 %v770
      %788 = vmatmul.f32.gmra.mxu0 %v768
      %v789 = vpop.f32.mrf.mxu0
      %v790 = vadd.f32 0.0, %v789
      %791 = vdwg.mxu0
      %v792 = vmul.f32 %v790, 0.35355338
      %v793 = vadd.f32 %v792, %v481
      %v794 = vsel %vm561, %v793, -inf
      %795 = vmax.xlane.f32.xlu0 %v794
      %v796 = vpop.xlane.xlu0 %795
      %v797 = vsub.f32 %v793, %v796
      %v798 = vmul.f32 %v797, 1.442695
      %v799 = vpow.pop %v798
      %v800 = vsel %vm561, %v799, 0.0
      %801 = vadd.xlane.f32.xlu0 %v800
      %v802 = vpop.xlane.xlu0 %801
      %v803 = vrcp.pop %v802
      %v804 = vmul.f32 %v802, %v803
      %v805 = vsub.f32 1.0, %v804
      %v806 = vmul.f32 %v803, %v805
      %v807 = vadd.f32 %v803, %v806
      %vm808 = vweird.f32 %v802
      %vm809 = vweird.f32 %v803
      %vm810 = vmor %vm808, %vm809
      %v811 = vsel %vm810, %v803, %v807
      %v812 = vand.u32 2147483647, %v802
      %vm813 = vcmp.eq.f32.partialorder %v812, 8.507059e+37
      %v814 = vand.u32 %v802, 2147483648
      %v815 = vor.u32 1.1754944e-38, %v814
      %v816 = vsel %vm813, %v815, %v811
      %v817 = vmul.f32 %v799, %v816
      %818 = vrot.lane.b32.xlu0 %v551, 48
      %v819 = vpop.permute.xlu0 %818
      %v822 = vsel %vm561, %v817, 0
      %824 = vmatpush.msra.mxu0 0.0
      %825 = vmatpush.msra.mxu0 0.0
      %826 = vmatpush.msra.mxu0 0.0
      %827 = vmatpush.msra.mxu0 0.0
      %828 = vmatpush.msra.mxu0 0.0
      %829 = vmatpush.msra.mxu0 0.0
      %830 = vmatpush.msra.mxu0 0.0
      %831 = vmatpush.msra.mxu0 0.0
      %832 = vmatpush.msra.mxu0 0.0
      %833 = vmatpush.msra.mxu0 0.0
      %834 = vmatpush.msra.mxu0 0.0
      %835 = vmatpush.msra.mxu0 0.0
      %836 = vmatpush.msra.mxu0 0.0
      %837 = vmatpush.msra.mxu0 0.0
      %838 = vmatpush.msra.mxu0 0.0
      %839 = vmatpush.msra.mxu0 %v819
      %840 = vmatmul.f32.gmra.mxu0 %v822
      %v841 = vpop.f32.mrf.mxu0
      %v842 = vadd.f32 0.0, %v841
      %843 = vdwg.mxu0
      %v845 = vsel %vm561, %v842, 0
      %847 = vmatpush.msra.mxu0 0.0
      %848 = vmatpush.msra.mxu0 0.0
      %849 = vmatpush.msra.mxu0 0.0
      %850 = vmatpush.msra.mxu0 0.0
      %851 = vmatpush.msra.mxu0 0.0
      %852 = vmatpush.msra.mxu0 0.0
      %853 = vmatpush.msra.mxu0 0.0
      %854 = vmatpush.msra.mxu0 0.0
      %855 = vmatpush.msra.mxu0 0.0
      %856 = vmatpush.msra.mxu0 0.0
      %857 = vmatpush.msra.mxu0 0.0
      %858 = vmatpush.msra.mxu0 0.0
      %859 = vmatpush.msra.mxu0 0.0
      %860 = vmatpush.msra.mxu0 0.0
      %861 = vmatpush.msra.mxu0 0.0
      %862 = vmatpush.msra.mxu0 %v555
      %863 = vmatmul.f32.gmra.mxu0 %v845
      %v864 = vpop.f32.mrf.mxu0
      %v865 = vadd.f32 0.0, %v864
      %866 = vdwg.mxu0
      %v867 = vadd.f32 %v762, %v865
      %868 = vrot.lane.b32.xlu0 %v551, 104
      %v869 = vpop.permute.xlu0 %868
      %870 = vrot.lane.b32.xlu0 %v551, 72
      %v871 = vpop.permute.xlu0 %870
      %v872 = vsel %vm561, %v869, 0
      %v874 = vsel %vm561, %v871, 0
      %876 = vmatpush.xpose.msra.mxu0 0.0
      %877 = vmatpush.xpose.msra.mxu0 0.0
      %878 = vmatpush.xpose.msra.mxu0 0.0
      %879 = vmatpush.xpose.msra.mxu0 0.0
      %880 = vmatpush.xpose.msra.mxu0 0.0
      %881 = vmatpush.xpose.msra.mxu0 0.0
      %882 = vmatpush.xpose.msra.mxu0 0.0
      %883 = vmatpush.xpose.msra.mxu0 0.0
      %884 = vmatpush.xpose.msra.mxu0 0.0
      %885 = vmatpush.xpose.msra.mxu0 0.0
      %886 = vmatpush.xpose.msra.mxu0 0.0
      %887 = vmatpush.xpose.msra.mxu0 0.0
      %888 = vmatpush.xpose.msra.mxu0 0.0
      %889 = vmatpush.xpose.msra.mxu0 0.0
      %890 = vmatpush.xpose.msra.mxu0 0.0
      %891 = vmatpush.xpose.msra.mxu0 %v874
      %892 = vmatmul.f32.gmra.mxu0 %v872
      %v893 = vpop.f32.mrf.mxu0
      %v894 = vadd.f32 0.0, %v893
      %895 = vdwg.mxu0
      %v896 = vmul.f32 %v894, 0.35355338
      %v897 = vadd.f32 %v896, %v481
      %v898 = vsel %vm561, %v897, -inf
      %899 = vmax.xlane.f32.xlu0 %v898
      %v900 = vpop.xlane.xlu0 %899
      %v901 = vsub.f32 %v897, %v900
      %v902 = vmul.f32 %v901, 1.442695
      %v903 = vpow.pop %v902
      %v904 = vsel %vm561, %v903, 0.0
      %905 = vadd.xlane.f32.xlu0 %v904
      %v906 = vpop.xlane.xlu0 %905
      %v907 = vrcp.pop %v906
      %v908 = vmul.f32 %v906, %v907
      %v909 = vsub.f32 1.0, %v908
      %v910 = vmul.f32 %v907, %v909
      %v911 = vadd.f32 %v907, %v910
      %vm912 = vweird.f32 %v906
      %vm913 = vweird.f32 %v907
      %vm914 = vmor %vm912, %vm913
      %v915 = vsel %vm914, %v907, %v911
      %v916 = vand.u32 2147483647, %v906
      %vm917 = vcmp.eq.f32.partialorder %v916, 8.507059e+37
      %v918 = vand.u32 %v906, 2147483648
      %v919 = vor.u32 1.1754944e-38, %v918
      %v920 = vsel %vm917, %v919, %v915
      %v921 = vmul.f32 %v903, %v920
      %922 = vrot.lane.b32.xlu0 %v551, 40
      %v923 = vpop.permute.xlu0 %922
      %v926 = vsel %vm561, %v921, 0
      %928 = vmatpush.msra.mxu0 0.0
      %929 = vmatpush.msra.mxu0 0.0
      %930 = vmatpush.msra.mxu0 0.0
      %931 = vmatpush.msra.mxu0 0.0
      %932 = vmatpush.msra.mxu0 0.0
      %933 = vmatpush.msra.mxu0 0.0
      %934 = vmatpush.msra.mxu0 0.0
      %935 = vmatpush.msra.mxu0 0.0
      %936 = vmatpush.msra.mxu0 0.0
      %937 = vmatpush.msra.mxu0 0.0
      %938 = vmatpush.msra.mxu0 0.0
      %939 = vmatpush.msra.mxu0 0.0
      %940 = vmatpush.msra.mxu0 0.0
      %941 = vmatpush.msra.mxu0 0.0
      %942 = vmatpush.msra.mxu0 0.0
      %943 = vmatpush.msra.mxu0 %v923
      %944 = vmatmul.f32.gmra.mxu0 %v926
      %v945 = vpop.f32.mrf.mxu0
      %v946 = vadd.f32 0.0, %v945
      %947 = vdwg.mxu0
      %v949 = vsel %vm561, %v946, 0
      %951 = vmatpush.msra.mxu0 0.0
      %952 = vmatpush.msra.mxu0 0.0
      %953 = vmatpush.msra.mxu0 0.0
      %954 = vmatpush.msra.mxu0 0.0
      %955 = vmatpush.msra.mxu0 0.0
      %956 = vmatpush.msra.mxu0 0.0
      %957 = vmatpush.msra.mxu0 0.0
      %958 = vmatpush.msra.mxu0 0.0
      %959 = vmatpush.msra.mxu0 0.0
      %960 = vmatpush.msra.mxu0 0.0
      %961 = vmatpush.msra.mxu0 0.0
      %962 = vmatpush.msra.mxu0 0.0
      %963 = vmatpush.msra.mxu0 0.0
      %964 = vmatpush.msra.mxu0 0.0
      %965 = vmatpush.msra.mxu0 0.0
      %966 = vmatpush.msra.mxu0 %v556
      %967 = vmatmul.f32.gmra.mxu0 %v949
      %v968 = vpop.f32.mrf.mxu0
      %v969 = vadd.f32 0.0, %v968
      %970 = vdwg.mxu0
      %v971 = vadd.f32 %v867, %v969
      %v973 = vperm.slane %v557, 0
      %v975 = vadd.f32 %v971, %v973
      %v976 = vadd.f32 %v480, %v975
      %v977 = vld [vmem:[%s8] sm:$0x1]
      %v978 = vld [vmem:[%s9] sm:$0x1]
      %v979 = vsel %vm484, %v976, 0.0
      %980 = vadd.xlane.f32.xlu0 %v979
      %v981 = vpop.xlane.xlu0 %980
      %v982 = vmul.f32 %v981, %v494
      %v983 = vsub.f32 %v976, %v982
      %v984 = vmul.f32 %v983, %v983
      %v985 = vsel %vm484, %v984, 0.0
      %986 = vadd.xlane.f32.xlu0 %v985
      %v987 = vpop.xlane.xlu0 %986
      %v988 = vmul.f32 %v987, %v494
      %v989 = vadd.f32 %v988, 1e-06
      %v990 = vrsqrt.pop %v989
      %v991 = vmul.f32 %v990, %v989
      %v992 = vmul.f32 %v991, %v990
      %v993 = vmul.f32 0.5, %v992
      %v994 = vsub.f32 1.5, %v993
      %v995 = vmul.f32 %v990, %v994
      %vm996 = vweird.f32 %v989
      %vm997 = vweird.f32 %v990
      %vm998 = vmor %vm996, %vm997
      %v999 = vsel %vm998, %v990, %v995
      %v1000 = vmul.f32 %v983, %v999
      %v1002 = vperm.slane %v977, 0
      %v1004 = vmul.f32 %v1000, %v1002
      %v1006 = vperm.slane %v978, 0
      %v1008 = vadd.f32 %v1004, %v1006
      %v1009 = vld [vmem:[%s10] sm:$0xff]
      %v1010 = vld [vmem:[%s10 + $0x8] sm:$0xff]
      %v1011 = vld [vmem:[%s10 + $0x10] sm:$0xff]
      %v1012 = vld [vmem:[%s10 + $0x18] sm:$0xff]
      %v1013 = vld [vmem:[%s11] sm:$0x1]
      %v1015 = vperm.slane %v1013, 0
      %v1018 = vsel %vm484, %v1008, 0
      %1020 = vmatpush.msra.mxu0 0.0
      %1021 = vmatpush.msra.mxu0 0.0
      %1022 = vmatpush.msra.mxu0 0.0
      %1023 = vmatpush.msra.mxu0 0.0
      %1024 = vmatpush.msra.mxu0 0.0
      %1025 = vmatpush.msra.mxu0 0.0
      %1026 = vmatpush.msra.mxu0 0.0
      %1027 = vmatpush.msra.mxu0 0.0
      %1028 = vmatpush.msra.mxu0 0.0
      %1029 = vmatpush.msra.mxu0 0.0
      %1030 = vmatpush.msra.mxu0 0.0
      %1031 = vmatpush.msra.mxu0 0.0
      %1032 = vmatpush.msra.mxu0 %v1012
      %1033 = vmatpush.msra.mxu0 %v1011
      %1034 = vmatpush.msra.mxu0 %v1010
      %1035 = vmatpush.msra.mxu0 %v1009
      %1036 = vmatmul.f32.gmra.mxu0 %v1018
      %v1037 = vpop.f32.mrf.mxu0
      %v1038 = vadd.f32 %v1015, %v1037
      %1039 = vdwg.mxu0
      %v1040 = vmul.f32 %v1038, %v1038
      %v1041 = vmul.f32 %v1038, %v1040
      %v1042 = vmul.f32 %v1041, 0.044715
      %v1043 = vadd.f32 %v1038, %v1042
      %v1044 = vmul.f32 %v1043, 0.7978846
      %v1045 = vtanh.pop %v1044
      %v1046 = vadd.f32 %v1045, 1.0
      %v1047 = vmul.f32 %v1046, 0.5
      %v1048 = vmul.f32 %v1038, %v1047
      %v1049 = vld [vmem:[%s12] sm:$0xff]
      %v1050 = vld [vmem:[%s12 + $0x8] sm:$0xff]
      %v1051 = vld [vmem:[%s12 + $0x10] sm:$0xff]
      %v1052 = vld [vmem:[%s12 + $0x18] sm:$0xff]
      %v1053 = vld [vmem:[%s12 + $0x20] sm:$0xff]
      %v1054 = vld [vmem:[%s12 + $0x28] sm:$0xff]
      %v1055 = vld [vmem:[%s12 + $0x30] sm:$0xff]
      %v1056 = vld [vmem:[%s12 + $0x38] sm:$0xff]
      %v1057 = vld [vmem:[%s12 + $0x40] sm:$0xff]
      %v1058 = vld [vmem:[%s12 + $0x48] sm:$0xff]
      %v1059 = vld [vmem:[%s12 + $0x50] sm:$0xff]
      %v1060 = vld [vmem:[%s12 + $0x58] sm:$0xff]
      %v1061 = vld [vmem:[%s12 + $0x60] sm:$0xff]
      %v1062 = vld [vmem:[%s12 + $0x68] sm:$0xff]
      %v1063 = vld [vmem:[%s12 + $0x70] sm:$0xff]
      %v1064 = vld [vmem:[%s12 + $0x78] sm:$0xff]
      %v1065 = vld [vmem:[%s13] sm:$0x1]
      %v1067 = vperm.slane %v1065, 0
      %1069 = vmatpush.msra.mxu0 %v1064
      %1070 = vmatpush.msra.mxu0 %v1063
      %1071 = vmatpush.msra.mxu0 %v1062
      %1072 = vmatpush.msra.mxu0 %v1061
      %1073 = vmatpush.msra.mxu0 %v1060
      %1074 = vmatpush.msra.mxu0 %v1059
      %1075 = vmatpush.msra.mxu0 %v1058
      %1076 = vmatpush.msra.mxu0 %v1057
      %1077 = vmatpush.msra.mxu0 %v1056
      %1078 = vmatpush.msra.mxu0 %v1055
      %1079 = vmatpush.msra.mxu0 %v1054
      %1080 = vmatpush.msra.mxu0 %v1053
      %1081 = vmatpush.msra.mxu0 %v1052
      %1082 = vmatpush.msra.mxu0 %v1051
      %1083 = vmatpush.msra.mxu0 %v1050
      %1084 = vmatpush.msra.mxu0 %v1049
      %1085 = vmatmul.f32.gmra.mxu0 %v1048
      %v1086 = vpop.f32.mrf.mxu0
      %v1087 = vadd.f32 %v1067, %v1086
      %1088 = vdwg.mxu0
      %v1089 = vadd.f32 %v976, %v1087
      %1090 = vst.msk [vmem:[%s479] sm:$0xff] %vm484, %v1089
      %p1091 = scmp.lt.s32.totalorder %s25, 1
      %s1092 = scalar_select %p1091, %s25, 1
      %s1093 = smul.addr %s1092, 8
      %s1094 = scalar_lea.vmem %s14, %s1093
      // Predicated region
      $region77: #{bert_translation_forward.8} parent=75 // pred_check
        %p1095 = pneg %p347
      $region78: #{bert_translation_forward.8} parent=75 // pred_check_branch
        %1097 = sbr.rel (%p1095) target = $region80
      $region79: #{bert_translation_forward.8} parent=75 // pred_region
        _
      $region80: #{bert_translation_forward.8} parent=75 // pred_fallthru
        _
    $region76: #{bert_translation_forward.8} parent=5 // pred_fallthru
      _
    %p1098 = scmp.le.s32.totalorder 2, %s20
    // Predicated region
    $region81: #{bert_translation_forward.8} parent=5 // pred_check
      %p1099 = pneg %p1098
    $region82: #{bert_translation_forward.8} parent=5 // pred_check_branch
      %1101 = sbr.rel (%p1099) target = $region84
    $region83: #{bert_translation_forward.8} parent=5 // pred_region
      %s1102 = ssub.s32 %s20, 2
      // Predicated region
      $region85: #{bert_translation_forward.8} parent=83 // pred_check
        %p1103 = pneg %p353
      $region86: #{bert_translation_forward.8} parent=83 // pred_check_branch
        %1105 = sbr.rel (%p1103) target = $region88
      $region87: #{bert_translation_forward.8} parent=83 // pred_region
        %p1106 = scmp.lt.s32.totalorder %s26, 1
        %s1107 = scalar_select %p1106, %s26, 1
        %s1108 = smul.addr %s1107, 8
        %s1109 = scalar_lea.vmem %s14, %s1108
      $region88: #{bert_translation_forward.8} parent=83 // pred_fallthru
        _
    $region84: #{bert_translation_forward.8} parent=5 // pred_fallthru
      _
  $region6: #{bert_translation_forward.8} parent=0 // loop_footer
    %s24 = sadd.s32 1, %s20
  $region7: #{bert_translation_forward.8} parent=0 // loop_footer_branch
    %19 = sbr.rel target = $region3
  $region8: #{bert_translation_forward.8} parent=0 // loop_exit
    _

// kernel: bert_translation_forward.11
$region0: #{bert_translation_forward.11}
  #allocation0 [shape = 'u32[]', space=smem, size = 0x4, offset = 0x4, fixed_abs, tag = 'smem constant byte address 0x4 - core index']
  #allocation1 [shape = 'u32[72,128]{1,0:T(1,128)}', space=vmem, size = 0x9000, scoped, tag = 'internal scratch']
  %s0 = inlined_call_operand.vmem [shape: f32[2,8,32], index: 0, kind: input, shape index: {}]
  %s1 = inlined_call_operand.vmem [shape: f32[2,8,32], index: 1, kind: input, shape index: {}]
  %s2 = inlined_call_operand.vmem [shape: f32[2,8,8], index: 2, kind: input, shape index: {}]
  %s3 = inlined_call_operand.vmem [shape: f32[2,8,8], index: 3, kind: input, shape index: {}]
  %s4 = inlined_call_operand.vmem [shape: f32[1,32], index: 4, kind: input, shape index: {}]
  %s5 = inlined_call_operand.vmem [shape: f32[1,32], index: 5, kind: input, shape index: {}]
  %s6 = inlined_call_operand.vmem [shape: f32[32,96], index: 6, kind: input, shape index: {}]
  %s7 = inlined_call_operand.vmem [shape: f32[1,96], index: 7, kind: input, shape index: {}]
  %s8 = inlined_call_operand.vmem [shape: f32[32,32], index: 8, kind: input, shape index: {}]
  %s9 = inlined_call_operand.vmem [shape: f32[1,32], index: 9, kind: input, shape index: {}]
  %s10 = inlined_call_operand.vmem [shape: f32[1,32], index: 10, kind: input, shape index: {}]
  %s11 = inlined_call_operand.vmem [shape: f32[1,32], index: 11, kind: input, shape index: {}]
  %s12 = inlined_call_operand.vmem [shape: f32[32,32], index: 12, kind: input, shape index: {}]
  %s13 = inlined_call_operand.vmem [shape: f32[1,32], index: 13, kind: input, shape index: {}]
  %s14 = inlined_call_operand.vmem [shape: f32[32,64], index: 14, kind: input, shape index: {}]
  %s15 = inlined_call_operand.vmem [shape: f32[1,64], index: 15, kind: input, shape index: {}]
  %s16 = inlined_call_operand.vmem [shape: f32[32,32], index: 16, kind: input, shape index: {}]
  %s17 = inlined_call_operand.vmem [shape: f32[1,32], index: 17, kind: input, shape index: {}]
  %s18 = inlined_call_operand.vmem [shape: f32[1,32], index: 18, kind: input, shape index: {}]
  %s19 = inlined_call_operand.vmem [shape: f32[1,32], index: 19, kind: input, shape index: {}]
  %s20 = inlined_call_operand.vmem [shape: f32[32,128], index: 20, kind: input, shape index: {}]
  %s21 = inlined_call_operand.vmem [shape: f32[1,128], index: 21, kind: input, shape index: {}]
  %s22 = inlined_call_operand.vmem [shape: f32[128,32], index: 22, kind: input, shape index: {}]
  %s23 = inlined_call_operand.vmem [shape: f32[1,32], index: 23, kind: input, shape index: {}]
  %s24 = inlined_call_operand.vmem [shape: f32[2,8,32], index: 24, kind: output, shape index: {}]
  %s25 = sld [smem:[#allocation0]]
  $region129: #{bert_translation_forward.11} parent=0
    _
  %s27 = ssub.s32 1, %s25
  %s28 = scalar_select 0, %s27, %s25
  loop: start=0, step=1, limit=4
  $region2: #{bert_translation_forward.11} parent=0 // loop_pre_header
    _
  $region3: #{bert_translation_forward.11} parent=0 // loop_header
    %s30 = sphi 0, %s34
    %p31 = scmp.ge.s32.totalorder %s30, 4
    %s40 = sphi 0, %s42
    %s43 = sphi 0, %s40
    %s44 = sphi 0, %s43
    %s60 = sphi 0, %s44
    %s66 = sphi 0, %s68
    %s69 = sphi 0, %s66
    %s70 = sphi 0, %s69
    %s86 = sphi 0, %s70
    %s92 = sphi 0, %s94
    %s95 = sphi 0, %s92
    %s96 = sphi 0, %s95
    %s112 = sphi 0, %s96
    %s118 = sphi 0, %s120
    %s121 = sphi 0, %s118
    %s122 = sphi 0, %s121
    %s138 = sphi 0, %s122
    %s142 = sphi 0, %s142
    %s144 = sphi 0, %s142
    %s145 = sphi 0, %s144
    %s159 = sphi 0, %s145
    %s163 = sphi 0, %s163
    %s165 = sphi 0, %s163
    %s166 = sphi 0, %s165
    %s180 = sphi 0, %s166
    %s184 = sphi 0, %s184
    %s186 = sphi 0, %s184
    %s187 = sphi 0, %s186
    %s201 = sphi 0, %s187
    %s205 = sphi 0, %s205
    %s207 = sphi 0, %s205
    %s208 = sphi 0, %s207
    %s222 = sphi 0, %s208
    %s226 = sphi 0, %s226
    %s228 = sphi 0, %s226
    %s229 = sphi 0, %s228
    %s243 = sphi 0, %s229
    %s247 = sphi 0, %s247
    %s249 = sphi 0, %s247
    %s250 = sphi 0, %s249
    %s264 = sphi 0, %s250
    %s268 = sphi 0, %s268
    %s270 = sphi 0, %s268
    %s271 = sphi 0, %s270
    %s285 = sphi 0, %s271
    %s289 = sphi 0, %s289
    %s291 = sphi 0, %s289
    %s292 = sphi 0, %s291
    %s306 = sphi 0, %s292
    %s310 = sphi 0, %s310
    %s312 = sphi 0, %s310
    %s313 = sphi 0, %s312
    %s327 = sphi 0, %s313
    %s331 = sphi 0, %s331
    %s333 = sphi 0, %s331
    %s334 = sphi 0, %s333
    %s348 = sphi 0, %s334
    %s352 = sphi 0, %s352
    %s354 = sphi 0, %s352
    %s355 = sphi 0, %s354
    %s369 = sphi 0, %s355
    %s373 = sphi 0, %s373
    %s375 = sphi 0, %s373
    %s376 = sphi 0, %s375
    %s390 = sphi 0, %s376
    %s394 = sphi 0, %s394
    %s396 = sphi 0, %s394
    %s397 = sphi 0, %s396
    %s411 = sphi 0, %s397
    %s415 = sphi 0, %s415
    %s417 = sphi 0, %s415
    %s418 = sphi 0, %s417
    %s432 = sphi 0, %s418
    %s436 = sphi 0, %s436
    %s438 = sphi 0, %s436
    %s439 = sphi 0, %s438
    %s453 = sphi 0, %s439
    %s457 = sphi 0, %s457
    %s459 = sphi 0, %s457
    %s460 = sphi 0, %s459
    %s474 = sphi 0, %s460
    %s478 = sphi 0, %s478
    %s480 = sphi 0, %s478
    %s481 = sphi 0, %s480
    %s495 = sphi 0, %s481
    %s499 = sphi 0, %s499
    %s501 = sphi 0, %s499
    %s502 = sphi 0, %s501
    %s516 = sphi 0, %s502
    %s520 = sphi 0, %s520
    %s522 = sphi 0, %s520
    %s523 = sphi 0, %s522
    %s537 = sphi 0, %s523
    %s541 = sphi 0, %s541
    %s543 = sphi 0, %s541
    %s544 = sphi 0, %s543
    %s558 = sphi 0, %s544
    %s564 = sphi 0, %s566
    %s567 = sphi 0, %s564
    %s568 = sphi 0, %s567
    %s584 = sphi 0, %s568
  $region4: #{bert_translation_forward.11} parent=0 // loop_header_branch
    %33 = sbr.rel (%p31) target = $region8
  $region5: #{bert_translation_forward.11} parent=0 // loop_body
    %s35 = ssub.s32 %s30, 1
    %s36 = ssub.s32 %s30, 2
    %s37 = sadd.s32 %s30, 1
    %s38 = ssub.s32 %s30, %s37
    %p39 = scmp.eq.s32.totalorder %s38, 0
    %s41 = sadd.s32 %s40, 1
    %s42 = scalar_select %p39, %s40, %s41
    %p45 = pneg %p39
    %p46 = scmp.eq.s32.totalorder %s30, 1
    %p47 = por %p45, %p46
    %p48 = scmp.ne.s32.totalorder %s40, %s43
    %p49 = scmp.eq.s32.totalorder %s30, 0
    %p50 = por %p48, %p49
    %p51 = scmp.ne.s32.totalorder %s40, %s43
    %p52 = scmp.eq.s32.totalorder %s35, 1
    %p53 = por %p51, %p52
    %p54 = scmp.ne.s32.totalorder %s43, %s44
    %p55 = scmp.eq.s32.totalorder %s35, 0
    %p56 = por %p54, %p55
    %p57 = scmp.ne.s32.totalorder %s43, %s44
    %p58 = scmp.eq.s32.totalorder %s36, 1
    %p59 = por %p57, %p58
    %p61 = scmp.ne.s32.totalorder %s44, %s60
    %p62 = scmp.eq.s32.totalorder %s36, 0
    %p63 = por %p61, %p62
    %s64 = ssub.s32 %s30, %s37
    %p65 = scmp.eq.s32.totalorder %s64, 0
    %s67 = sadd.s32 %s66, 1
    %s68 = scalar_select %p65, %s66, %s67
    %p71 = pneg %p65
    %p72 = scmp.eq.s32.totalorder %s30, 1
    %p73 = por %p71, %p72
    %p74 = scmp.ne.s32.totalorder %s66, %s69
    %p75 = scmp.eq.s32.totalorder %s30, 0
    %p76 = por %p74, %p75
    %p77 = scmp.ne.s32.totalorder %s66, %s69
    %p78 = scmp.eq.s32.totalorder %s35, 1
    %p79 = por %p77, %p78
    %p80 = scmp.ne.s32.totalorder %s69, %s70
    %p81 = scmp.eq.s32.totalorder %s35, 0
    %p82 = por %p80, %p81
    %p83 = scmp.ne.s32.totalorder %s69, %s70
    %p84 = scmp.eq.s32.totalorder %s36, 1
    %p85 = por %p83, %p84
    %p87 = scmp.ne.s32.totalorder %s70, %s86
    %p88 = scmp.eq.s32.totalorder %s36, 0
    %p89 = por %p87, %p88
    %s90 = ssub.s32 %s30, %s37
    %p91 = scmp.eq.s32.totalorder %s90, 0
    %s93 = sadd.s32 %s92, 1
    %s94 = scalar_select %p91, %s92, %s93
    %p97 = pneg %p91
    %p98 = scmp.eq.s32.totalorder %s30, 1
    %p99 = por %p97, %p98
    %p100 = scmp.ne.s32.totalorder %s92, %s95
    %p101 = scmp.eq.s32.totalorder %s30, 0
    %p102 = por %p100, %p101
    %p103 = scmp.ne.s32.totalorder %s92, %s95
    %p104 = scmp.eq.s32.totalorder %s35, 1
    %p105 = por %p103, %p104
    %p106 = scmp.ne.s32.totalorder %s95, %s96
    %p107 = scmp.eq.s32.totalorder %s35, 0
    %p108 = por %p106, %p107
    %p109 = scmp.ne.s32.totalorder %s95, %s96
    %p110 = scmp.eq.s32.totalorder %s36, 1
    %p111 = por %p109, %p110
    %p113 = scmp.ne.s32.totalorder %s96, %s112
    %p114 = scmp.eq.s32.totalorder %s36, 0
    %p115 = por %p113, %p114
    %s116 = ssub.s32 %s30, %s37
    %p117 = scmp.eq.s32.totalorder %s116, 0
    %s119 = sadd.s32 %s118, 1
    %s120 = scalar_select %p117, %s118, %s119
    %p123 = pneg %p117
    %p124 = scmp.eq.s32.totalorder %s30, 1
    %p125 = por %p123, %p124
    %p126 = scmp.ne.s32.totalorder %s118, %s121
    %p127 = scmp.eq.s32.totalorder %s30, 0
    %p128 = por %p126, %p127
    %p129 = scmp.ne.s32.totalorder %s118, %s121
    %p130 = scmp.eq.s32.totalorder %s35, 1
    %p131 = por %p129, %p130
    %p132 = scmp.ne.s32.totalorder %s121, %s122
    %p133 = scmp.eq.s32.totalorder %s35, 0
    %p134 = por %p132, %p133
    %p135 = scmp.ne.s32.totalorder %s121, %s122
    %p136 = scmp.eq.s32.totalorder %s36, 1
    %p137 = por %p135, %p136
    %p139 = scmp.ne.s32.totalorder %s122, %s138
    %p140 = scmp.eq.s32.totalorder %s36, 0
    %p141 = por %p139, %p140
    %s143 = sadd.s32 %s142, 1
    %p146 = scmp.eq.s32.totalorder %s30, 1
    %p147 = scmp.ne.s32.totalorder %s142, %s144
    %p148 = scmp.eq.s32.totalorder %s30, 0
    %p149 = por %p147, %p148
    %p150 = scmp.ne.s32.totalorder %s142, %s144
    %p151 = scmp.eq.s32.totalorder %s35, 1
    %p152 = por %p150, %p151
    %p153 = scmp.ne.s32.totalorder %s144, %s145
    %p154 = scmp.eq.s32.totalorder %s35, 0
    %p155 = por %p153, %p154
    %p156 = scmp.ne.s32.totalorder %s144, %s145
    %p157 = scmp.eq.s32.totalorder %s36, 1
    %p158 = por %p156, %p157
    %p160 = scmp.ne.s32.totalorder %s145, %s159
    %p161 = scmp.eq.s32.totalorder %s36, 0
    %p162 = por %p160, %p161
    %s164 = sadd.s32 %s163, 1
    %p167 = scmp.eq.s32.totalorder %s30, 1
    %p168 = scmp.ne.s32.totalorder %s163, %s165
    %p169 = scmp.eq.s32.totalorder %s30, 0
    %p170 = por %p168, %p169
    %p171 = scmp.ne.s32.totalorder %s163, %s165
    %p172 = scmp.eq.s32.totalorder %s35, 1
    %p173 = por %p171, %p172
    %p174 = scmp.ne.s32.totalorder %s165, %s166
    %p175 = scmp.eq.s32.totalorder %s35, 0
    %p176 = por %p174, %p175
    %p177 = scmp.ne.s32.totalorder %s165, %s166
    %p178 = scmp.eq.s32.totalorder %s36, 1
    %p179 = por %p177, %p178
    %p181 = scmp.ne.s32.totalorder %s166, %s180
    %p182 = scmp.eq.s32.totalorder %s36, 0
    %p183 = por %p181, %p182
    %s185 = sadd.s32 %s184, 1
    %p188 = scmp.eq.s32.totalorder %s30, 1
    %p189 = scmp.ne.s32.totalorder %s184, %s186
    %p190 = scmp.eq.s32.totalorder %s30, 0
    %p191 = por %p189, %p190
    %p192 = scmp.ne.s32.totalorder %s184, %s186
    %p193 = scmp.eq.s32.totalorder %s35, 1
    %p194 = por %p192, %p193
    %p195 = scmp.ne.s32.totalorder %s186, %s187
    %p196 = scmp.eq.s32.totalorder %s35, 0
    %p197 = por %p195, %p196
    %p198 = scmp.ne.s32.totalorder %s186, %s187
    %p199 = scmp.eq.s32.totalorder %s36, 1
    %p200 = por %p198, %p199
    %p202 = scmp.ne.s32.totalorder %s187, %s201
    %p203 = scmp.eq.s32.totalorder %s36, 0
    %p204 = por %p202, %p203
    %s206 = sadd.s32 %s205, 1
    %p209 = scmp.eq.s32.totalorder %s30, 1
    %p210 = scmp.ne.s32.totalorder %s205, %s207
    %p211 = scmp.eq.s32.totalorder %s30, 0
    %p212 = por %p210, %p211
    %p213 = scmp.ne.s32.totalorder %s205, %s207
    %p214 = scmp.eq.s32.totalorder %s35, 1
    %p215 = por %p213, %p214
    %p216 = scmp.ne.s32.totalorder %s207, %s208
    %p217 = scmp.eq.s32.totalorder %s35, 0
    %p218 = por %p216, %p217
    %p219 = scmp.ne.s32.totalorder %s207, %s208
    %p220 = scmp.eq.s32.totalorder %s36, 1
    %p221 = por %p219, %p220
    %p223 = scmp.ne.s32.totalorder %s208, %s222
    %p224 = scmp.eq.s32.totalorder %s36, 0
    %p225 = por %p223, %p224
    %s227 = sadd.s32 %s226, 1
    %p230 = scmp.eq.s32.totalorder %s30, 1
    %p231 = scmp.ne.s32.totalorder %s226, %s228
    %p232 = scmp.eq.s32.totalorder %s30, 0
    %p233 = por %p231, %p232
    %p234 = scmp.ne.s32.totalorder %s226, %s228
    %p235 = scmp.eq.s32.totalorder %s35, 1
    %p236 = por %p234, %p235
    %p237 = scmp.ne.s32.totalorder %s228, %s229
    %p238 = scmp.eq.s32.totalorder %s35, 0
    %p239 = por %p237, %p238
    %p240 = scmp.ne.s32.totalorder %s228, %s229
    %p241 = scmp.eq.s32.totalorder %s36, 1
    %p242 = por %p240, %p241
    %p244 = scmp.ne.s32.totalorder %s229, %s243
    %p245 = scmp.eq.s32.totalorder %s36, 0
    %p246 = por %p244, %p245
    %s248 = sadd.s32 %s247, 1
    %p251 = scmp.eq.s32.totalorder %s30, 1
    %p252 = scmp.ne.s32.totalorder %s247, %s249
    %p253 = scmp.eq.s32.totalorder %s30, 0
    %p254 = por %p252, %p253
    %p255 = scmp.ne.s32.totalorder %s247, %s249
    %p256 = scmp.eq.s32.totalorder %s35, 1
    %p257 = por %p255, %p256
    %p258 = scmp.ne.s32.totalorder %s249, %s250
    %p259 = scmp.eq.s32.totalorder %s35, 0
    %p260 = por %p258, %p259
    %p261 = scmp.ne.s32.totalorder %s249, %s250
    %p262 = scmp.eq.s32.totalorder %s36, 1
    %p263 = por %p261, %p262
    %p265 = scmp.ne.s32.totalorder %s250, %s264
    %p266 = scmp.eq.s32.totalorder %s36, 0
    %p267 = por %p265, %p266
    %s269 = sadd.s32 %s268, 1
    %p272 = scmp.eq.s32.totalorder %s30, 1
    %p273 = scmp.ne.s32.totalorder %s268, %s270
    %p274 = scmp.eq.s32.totalorder %s30, 0
    %p275 = por %p273, %p274
    %p276 = scmp.ne.s32.totalorder %s268, %s270
    %p277 = scmp.eq.s32.totalorder %s35, 1
    %p278 = por %p276, %p277
    %p279 = scmp.ne.s32.totalorder %s270, %s271
    %p280 = scmp.eq.s32.totalorder %s35, 0
    %p281 = por %p279, %p280
    %p282 = scmp.ne.s32.totalorder %s270, %s271
    %p283 = scmp.eq.s32.totalorder %s36, 1
    %p284 = por %p282, %p283
    %p286 = scmp.ne.s32.totalorder %s271, %s285
    %p287 = scmp.eq.s32.totalorder %s36, 0
    %p288 = por %p286, %p287
    %s290 = sadd.s32 %s289, 1
    %p293 = scmp.eq.s32.totalorder %s30, 1
    %p294 = scmp.ne.s32.totalorder %s289, %s291
    %p295 = scmp.eq.s32.totalorder %s30, 0
    %p296 = por %p294, %p295
    %p297 = scmp.ne.s32.totalorder %s289, %s291
    %p298 = scmp.eq.s32.totalorder %s35, 1
    %p299 = por %p297, %p298
    %p300 = scmp.ne.s32.totalorder %s291, %s292
    %p301 = scmp.eq.s32.totalorder %s35, 0
    %p302 = por %p300, %p301
    %p303 = scmp.ne.s32.totalorder %s291, %s292
    %p304 = scmp.eq.s32.totalorder %s36, 1
    %p305 = por %p303, %p304
    %p307 = scmp.ne.s32.totalorder %s292, %s306
    %p308 = scmp.eq.s32.totalorder %s36, 0
    %p309 = por %p307, %p308
    %s311 = sadd.s32 %s310, 1
    %p314 = scmp.eq.s32.totalorder %s30, 1
    %p315 = scmp.ne.s32.totalorder %s310, %s312
    %p316 = scmp.eq.s32.totalorder %s30, 0
    %p317 = por %p315, %p316
    %p318 = scmp.ne.s32.totalorder %s310, %s312
    %p319 = scmp.eq.s32.totalorder %s35, 1
    %p320 = por %p318, %p319
    %p321 = scmp.ne.s32.totalorder %s312, %s313
    %p322 = scmp.eq.s32.totalorder %s35, 0
    %p323 = por %p321, %p322
    %p324 = scmp.ne.s32.totalorder %s312, %s313
    %p325 = scmp.eq.s32.totalorder %s36, 1
    %p326 = por %p324, %p325
    %p328 = scmp.ne.s32.totalorder %s313, %s327
    %p329 = scmp.eq.s32.totalorder %s36, 0
    %p330 = por %p328, %p329
    %s332 = sadd.s32 %s331, 1
    %p335 = scmp.eq.s32.totalorder %s30, 1
    %p336 = scmp.ne.s32.totalorder %s331, %s333
    %p337 = scmp.eq.s32.totalorder %s30, 0
    %p338 = por %p336, %p337
    %p339 = scmp.ne.s32.totalorder %s331, %s333
    %p340 = scmp.eq.s32.totalorder %s35, 1
    %p341 = por %p339, %p340
    %p342 = scmp.ne.s32.totalorder %s333, %s334
    %p343 = scmp.eq.s32.totalorder %s35, 0
    %p344 = por %p342, %p343
    %p345 = scmp.ne.s32.totalorder %s333, %s334
    %p346 = scmp.eq.s32.totalorder %s36, 1
    %p347 = por %p345, %p346
    %p349 = scmp.ne.s32.totalorder %s334, %s348
    %p350 = scmp.eq.s32.totalorder %s36, 0
    %p351 = por %p349, %p350
    %s353 = sadd.s32 %s352, 1
    %p356 = scmp.eq.s32.totalorder %s30, 1
    %p357 = scmp.ne.s32.totalorder %s352, %s354
    %p358 = scmp.eq.s32.totalorder %s30, 0
    %p359 = por %p357, %p358
    %p360 = scmp.ne.s32.totalorder %s352, %s354
    %p361 = scmp.eq.s32.totalorder %s35, 1
    %p362 = por %p360, %p361
    %p363 = scmp.ne.s32.totalorder %s354, %s355
    %p364 = scmp.eq.s32.totalorder %s35, 0
    %p365 = por %p363, %p364
    %p366 = scmp.ne.s32.totalorder %s354, %s355
    %p367 = scmp.eq.s32.totalorder %s36, 1
    %p368 = por %p366, %p367
    %p370 = scmp.ne.s32.totalorder %s355, %s369
    %p371 = scmp.eq.s32.totalorder %s36, 0
    %p372 = por %p370, %p371
    %s374 = sadd.s32 %s373, 1
    %p377 = scmp.eq.s32.totalorder %s30, 1
    %p378 = scmp.ne.s32.totalorder %s373, %s375
    %p379 = scmp.eq.s32.totalorder %s30, 0
    %p380 = por %p378, %p379
    %p381 = scmp.ne.s32.totalorder %s373, %s375
    %p382 = scmp.eq.s32.totalorder %s35, 1
    %p383 = por %p381, %p382
    %p384 = scmp.ne.s32.totalorder %s375, %s376
    %p385 = scmp.eq.s32.totalorder %s35, 0
    %p386 = por %p384, %p385
    %p387 = scmp.ne.s32.totalorder %s375, %s376
    %p388 = scmp.eq.s32.totalorder %s36, 1
    %p389 = por %p387, %p388
    %p391 = scmp.ne.s32.totalorder %s376, %s390
    %p392 = scmp.eq.s32.totalorder %s36, 0
    %p393 = por %p391, %p392
    %s395 = sadd.s32 %s394, 1
    %p398 = scmp.eq.s32.totalorder %s30, 1
    %p399 = scmp.ne.s32.totalorder %s394, %s396
    %p400 = scmp.eq.s32.totalorder %s30, 0
    %p401 = por %p399, %p400
    %p402 = scmp.ne.s32.totalorder %s394, %s396
    %p403 = scmp.eq.s32.totalorder %s35, 1
    %p404 = por %p402, %p403
    %p405 = scmp.ne.s32.totalorder %s396, %s397
    %p406 = scmp.eq.s32.totalorder %s35, 0
    %p407 = por %p405, %p406
    %p408 = scmp.ne.s32.totalorder %s396, %s397
    %p409 = scmp.eq.s32.totalorder %s36, 1
    %p410 = por %p408, %p409
    %p412 = scmp.ne.s32.totalorder %s397, %s411
    %p413 = scmp.eq.s32.totalorder %s36, 0
    %p414 = por %p412, %p413
    %s416 = sadd.s32 %s415, 1
    %p419 = scmp.eq.s32.totalorder %s30, 1
    %p420 = scmp.ne.s32.totalorder %s415, %s417
    %p421 = scmp.eq.s32.totalorder %s30, 0
    %p422 = por %p420, %p421
    %p423 = scmp.ne.s32.totalorder %s415, %s417
    %p424 = scmp.eq.s32.totalorder %s35, 1
    %p425 = por %p423, %p424
    %p426 = scmp.ne.s32.totalorder %s417, %s418
    %p427 = scmp.eq.s32.totalorder %s35, 0
    %p428 = por %p426, %p427
    %p429 = scmp.ne.s32.totalorder %s417, %s418
    %p430 = scmp.eq.s32.totalorder %s36, 1
    %p431 = por %p429, %p430
    %p433 = scmp.ne.s32.totalorder %s418, %s432
    %p434 = scmp.eq.s32.totalorder %s36, 0
    %p435 = por %p433, %p434
    %s437 = sadd.s32 %s436, 1
    %p440 = scmp.eq.s32.totalorder %s30, 1
    %p441 = scmp.ne.s32.totalorder %s436, %s438
    %p442 = scmp.eq.s32.totalorder %s30, 0
    %p443 = por %p441, %p442
    %p444 = scmp.ne.s32.totalorder %s436, %s438
    %p445 = scmp.eq.s32.totalorder %s35, 1
    %p446 = por %p444, %p445
    %p447 = scmp.ne.s32.totalorder %s438, %s439
    %p448 = scmp.eq.s32.totalorder %s35, 0
    %p449 = por %p447, %p448
    %p450 = scmp.ne.s32.totalorder %s438, %s439
    %p451 = scmp.eq.s32.totalorder %s36, 1
    %p452 = por %p450, %p451
    %p454 = scmp.ne.s32.totalorder %s439, %s453
    %p455 = scmp.eq.s32.totalorder %s36, 0
    %p456 = por %p454, %p455
    %s458 = sadd.s32 %s457, 1
    %p461 = scmp.eq.s32.totalorder %s30, 1
    %p462 = scmp.ne.s32.totalorder %s457, %s459
    %p463 = scmp.eq.s32.totalorder %s30, 0
    %p464 = por %p462, %p463
    %p465 = scmp.ne.s32.totalorder %s457, %s459
    %p466 = scmp.eq.s32.totalorder %s35, 1
    %p467 = por %p465, %p466
    %p468 = scmp.ne.s32.totalorder %s459, %s460
    %p469 = scmp.eq.s32.totalorder %s35, 0
    %p470 = por %p468, %p469
    %p471 = scmp.ne.s32.totalorder %s459, %s460
    %p472 = scmp.eq.s32.totalorder %s36, 1
    %p473 = por %p471, %p472
    %p475 = scmp.ne.s32.totalorder %s460, %s474
    %p476 = scmp.eq.s32.totalorder %s36, 0
    %p477 = por %p475, %p476
    %s479 = sadd.s32 %s478, 1
    %p482 = scmp.eq.s32.totalorder %s30, 1
    %p483 = scmp.ne.s32.totalorder %s478, %s480
    %p484 = scmp.eq.s32.totalorder %s30, 0
    %p485 = por %p483, %p484
    %p486 = scmp.ne.s32.totalorder %s478, %s480
    %p487 = scmp.eq.s32.totalorder %s35, 1
    %p488 = por %p486, %p487
    %p489 = scmp.ne.s32.totalorder %s480, %s481
    %p490 = scmp.eq.s32.totalorder %s35, 0
    %p491 = por %p489, %p490
    %p492 = scmp.ne.s32.totalorder %s480, %s481
    %p493 = scmp.eq.s32.totalorder %s36, 1
    %p494 = por %p492, %p493
    %p496 = scmp.ne.s32.totalorder %s481, %s495
    %p497 = scmp.eq.s32.totalorder %s36, 0
    %p498 = por %p496, %p497
    %s500 = sadd.s32 %s499, 1
    %p503 = scmp.eq.s32.totalorder %s30, 1
    %p504 = scmp.ne.s32.totalorder %s499, %s501
    %p505 = scmp.eq.s32.totalorder %s30, 0
    %p506 = por %p504, %p505
    %p507 = scmp.ne.s32.totalorder %s499, %s501
    %p508 = scmp.eq.s32.totalorder %s35, 1
    %p509 = por %p507, %p508
    %p510 = scmp.ne.s32.totalorder %s501, %s502
    %p511 = scmp.eq.s32.totalorder %s35, 0
    %p512 = por %p510, %p511
    %p513 = scmp.ne.s32.totalorder %s501, %s502
    %p514 = scmp.eq.s32.totalorder %s36, 1
    %p515 = por %p513, %p514
    %p517 = scmp.ne.s32.totalorder %s502, %s516
    %p518 = scmp.eq.s32.totalorder %s36, 0
    %p519 = por %p517, %p518
    %s521 = sadd.s32 %s520, 1
    %p524 = scmp.eq.s32.totalorder %s30, 1
    %p525 = scmp.ne.s32.totalorder %s520, %s522
    %p526 = scmp.eq.s32.totalorder %s30, 0
    %p527 = por %p525, %p526
    %p528 = scmp.ne.s32.totalorder %s520, %s522
    %p529 = scmp.eq.s32.totalorder %s35, 1
    %p530 = por %p528, %p529
    %p531 = scmp.ne.s32.totalorder %s522, %s523
    %p532 = scmp.eq.s32.totalorder %s35, 0
    %p533 = por %p531, %p532
    %p534 = scmp.ne.s32.totalorder %s522, %s523
    %p535 = scmp.eq.s32.totalorder %s36, 1
    %p536 = por %p534, %p535
    %p538 = scmp.ne.s32.totalorder %s523, %s537
    %p539 = scmp.eq.s32.totalorder %s36, 0
    %p540 = por %p538, %p539
    %s542 = sadd.s32 %s541, 1
    %p545 = scmp.eq.s32.totalorder %s30, 1
    %p546 = scmp.ne.s32.totalorder %s541, %s543
    %p547 = scmp.eq.s32.totalorder %s30, 0
    %p548 = por %p546, %p547
    %p549 = scmp.ne.s32.totalorder %s541, %s543
    %p550 = scmp.eq.s32.totalorder %s35, 1
    %p551 = por %p549, %p550
    %p552 = scmp.ne.s32.totalorder %s543, %s544
    %p553 = scmp.eq.s32.totalorder %s35, 0
    %p554 = por %p552, %p553
    %p555 = scmp.ne.s32.totalorder %s543, %s544
    %p556 = scmp.eq.s32.totalorder %s36, 1
    %p557 = por %p555, %p556
    %p559 = scmp.ne.s32.totalorder %s544, %s558
    %p560 = scmp.eq.s32.totalorder %s36, 0
    %p561 = por %p559, %p560
    %s562 = ssub.s32 %s30, %s37
    %p563 = scmp.eq.s32.totalorder %s562, 0
    %s565 = sadd.s32 %s564, 1
    %s566 = scalar_select %p563, %s564, %s565
    %p569 = pneg %p563
    %p570 = scmp.eq.s32.totalorder %s30, 1
    %p571 = por %p569, %p570
    %p572 = scmp.ne.s32.totalorder %s564, %s567
    %p573 = scmp.eq.s32.totalorder %s30, 0
    %p574 = por %p572, %p573
    %p575 = scmp.ne.s32.totalorder %s564, %s567
    %p576 = scmp.eq.s32.totalorder %s35, 1
    %p577 = por %p575, %p576
    %p578 = scmp.ne.s32.totalorder %s567, %s568
    %p579 = scmp.eq.s32.totalorder %s35, 0
    %p580 = por %p578, %p579
    %p581 = scmp.ne.s32.totalorder %s567, %s568
    %p582 = scmp.eq.s32.totalorder %s36, 1
    %p583 = por %p581, %p582
    %p585 = scmp.ne.s32.totalorder %s568, %s584
    %p586 = scmp.eq.s32.totalorder %s36, 0
    %p587 = por %p585, %p586
    %p588 = scmp.le.s32.totalorder 1, %s30
    %p589 = scmp.lt.s32.totalorder %s30, 3
    %p590 = pnand %p588, %p589
    %p591 = pneg %p590
    // Predicated region
    $region9: #{bert_translation_forward.11} parent=5 // pred_check
      _
    $region10: #{bert_translation_forward.11} parent=5 // pred_check_branch
      %593 = sbr.rel (%p590) target = $region12
    $region11: #{bert_translation_forward.11} parent=5 // pred_region
      %s594 = ssub.s32 %s30, 1
      // Predicated region
      $region13: #{bert_translation_forward.11} parent=11 // pred_check
        %p595 = pneg %p155
      $region14: #{bert_translation_forward.11} parent=11 // pred_check_branch
        %597 = sbr.rel (%p595) target = $region16
      $region15: #{bert_translation_forward.11} parent=11 // pred_region
        _
      $region16: #{bert_translation_forward.11} parent=11 // pred_fallthru
        _
      // Predicated region
      $region17: #{bert_translation_forward.11} parent=11 // pred_check
        %p598 = pneg %p176
      $region18: #{bert_translation_forward.11} parent=11 // pred_check_branch
        %600 = sbr.rel (%p598) target = $region20
      $region19: #{bert_translation_forward.11} parent=11 // pred_region
        _
      $region20: #{bert_translation_forward.11} parent=11 // pred_fallthru
        _
      // Predicated region
      $region21: #{bert_translation_forward.11} parent=11 // pred_check
        %p601 = pneg %p197
      $region22: #{bert_translation_forward.11} parent=11 // pred_check_branch
        %603 = sbr.rel (%p601) target = $region24
      $region23: #{bert_translation_forward.11} parent=11 // pred_region
        _
      $region24: #{bert_translation_forward.11} parent=11 // pred_fallthru
        _
      // Predicated region
      $region25: #{bert_translation_forward.11} parent=11 // pred_check
        %p604 = pneg %p218
      $region26: #{bert_translation_forward.11} parent=11 // pred_check_branch
        %606 = sbr.rel (%p604) target = $region28
      $region27: #{bert_translation_forward.11} parent=11 // pred_region
        _
      $region28: #{bert_translation_forward.11} parent=11 // pred_fallthru
        _
      // Predicated region
      $region29: #{bert_translation_forward.11} parent=11 // pred_check
        %p607 = pneg %p239
      $region30: #{bert_translation_forward.11} parent=11 // pred_check_branch
        %609 = sbr.rel (%p607) target = $region32
      $region31: #{bert_translation_forward.11} parent=11 // pred_region
        _
      $region32: #{bert_translation_forward.11} parent=11 // pred_fallthru
        _
      // Predicated region
      $region33: #{bert_translation_forward.11} parent=11 // pred_check
        %p610 = pneg %p260
      $region34: #{bert_translation_forward.11} parent=11 // pred_check_branch
        %612 = sbr.rel (%p610) target = $region36
      $region35: #{bert_translation_forward.11} parent=11 // pred_region
        _
      $region36: #{bert_translation_forward.11} parent=11 // pred_fallthru
        _
      // Predicated region
      $region37: #{bert_translation_forward.11} parent=11 // pred_check
        %p613 = pneg %p281
      $region38: #{bert_translation_forward.11} parent=11 // pred_check_branch
        %615 = sbr.rel (%p613) target = $region40
      $region39: #{bert_translation_forward.11} parent=11 // pred_region
        _
      $region40: #{bert_translation_forward.11} parent=11 // pred_fallthru
        _
      // Predicated region
      $region41: #{bert_translation_forward.11} parent=11 // pred_check
        %p616 = pneg %p302
      $region42: #{bert_translation_forward.11} parent=11 // pred_check_branch
        %618 = sbr.rel (%p616) target = $region44
      $region43: #{bert_translation_forward.11} parent=11 // pred_region
        _
      $region44: #{bert_translation_forward.11} parent=11 // pred_fallthru
        _
      // Predicated region
      $region45: #{bert_translation_forward.11} parent=11 // pred_check
        %p619 = pneg %p323
      $region46: #{bert_translation_forward.11} parent=11 // pred_check_branch
        %621 = sbr.rel (%p619) target = $region48
      $region47: #{bert_translation_forward.11} parent=11 // pred_region
        _
      $region48: #{bert_translation_forward.11} parent=11 // pred_fallthru
        _
      // Predicated region
      $region49: #{bert_translation_forward.11} parent=11 // pred_check
        %p622 = pneg %p344
      $region50: #{bert_translation_forward.11} parent=11 // pred_check_branch
        %624 = sbr.rel (%p622) target = $region52
      $region51: #{bert_translation_forward.11} parent=11 // pred_region
        _
      $region52: #{bert_translation_forward.11} parent=11 // pred_fallthru
        _
      // Predicated region
      $region53: #{bert_translation_forward.11} parent=11 // pred_check
        %p625 = pneg %p365
      $region54: #{bert_translation_forward.11} parent=11 // pred_check_branch
        %627 = sbr.rel (%p625) target = $region56
      $region55: #{bert_translation_forward.11} parent=11 // pred_region
        _
      $region56: #{bert_translation_forward.11} parent=11 // pred_fallthru
        _
      // Predicated region
      $region57: #{bert_translation_forward.11} parent=11 // pred_check
        %p628 = pneg %p386
      $region58: #{bert_translation_forward.11} parent=11 // pred_check_branch
        %630 = sbr.rel (%p628) target = $region60
      $region59: #{bert_translation_forward.11} parent=11 // pred_region
        _
      $region60: #{bert_translation_forward.11} parent=11 // pred_fallthru
        _
      // Predicated region
      $region61: #{bert_translation_forward.11} parent=11 // pred_check
        %p631 = pneg %p407
      $region62: #{bert_translation_forward.11} parent=11 // pred_check_branch
        %633 = sbr.rel (%p631) target = $region64
      $region63: #{bert_translation_forward.11} parent=11 // pred_region
        _
      $region64: #{bert_translation_forward.11} parent=11 // pred_fallthru
        _
      // Predicated region
      $region65: #{bert_translation_forward.11} parent=11 // pred_check
        %p634 = pneg %p428
      $region66: #{bert_translation_forward.11} parent=11 // pred_check_branch
        %636 = sbr.rel (%p634) target = $region68
      $region67: #{bert_translation_forward.11} parent=11 // pred_region
        _
      $region68: #{bert_translation_forward.11} parent=11 // pred_fallthru
        _
      // Predicated region
      $region69: #{bert_translation_forward.11} parent=11 // pred_check
        %p637 = pneg %p449
      $region70: #{bert_translation_forward.11} parent=11 // pred_check_branch
        %639 = sbr.rel (%p637) target = $region72
      $region71: #{bert_translation_forward.11} parent=11 // pred_region
        _
      $region72: #{bert_translation_forward.11} parent=11 // pred_fallthru
        _
      // Predicated region
      $region73: #{bert_translation_forward.11} parent=11 // pred_check
        %p640 = pneg %p470
      $region74: #{bert_translation_forward.11} parent=11 // pred_check_branch
        %642 = sbr.rel (%p640) target = $region76
      $region75: #{bert_translation_forward.11} parent=11 // pred_region
        _
      $region76: #{bert_translation_forward.11} parent=11 // pred_fallthru
        _
      // Predicated region
      $region77: #{bert_translation_forward.11} parent=11 // pred_check
        %p643 = pneg %p491
      $region78: #{bert_translation_forward.11} parent=11 // pred_check_branch
        %645 = sbr.rel (%p643) target = $region80
      $region79: #{bert_translation_forward.11} parent=11 // pred_region
        _
      $region80: #{bert_translation_forward.11} parent=11 // pred_fallthru
        _
      // Predicated region
      $region81: #{bert_translation_forward.11} parent=11 // pred_check
        %p646 = pneg %p512
      $region82: #{bert_translation_forward.11} parent=11 // pred_check_branch
        %648 = sbr.rel (%p646) target = $region84
      $region83: #{bert_translation_forward.11} parent=11 // pred_region
        _
      $region84: #{bert_translation_forward.11} parent=11 // pred_fallthru
        _
      // Predicated region
      $region85: #{bert_translation_forward.11} parent=11 // pred_check
        %p649 = pneg %p533
      $region86: #{bert_translation_forward.11} parent=11 // pred_check_branch
        %651 = sbr.rel (%p649) target = $region88
      $region87: #{bert_translation_forward.11} parent=11 // pred_region
        _
      $region88: #{bert_translation_forward.11} parent=11 // pred_fallthru
        _
      // Predicated region
      $region89: #{bert_translation_forward.11} parent=11 // pred_check
        %p652 = pneg %p554
      $region90: #{bert_translation_forward.11} parent=11 // pred_check_branch
        %654 = sbr.rel (%p652) target = $region92
      $region91: #{bert_translation_forward.11} parent=11 // pred_region
        _
      $region92: #{bert_translation_forward.11} parent=11 // pred_fallthru
        _
    $region12: #{bert_translation_forward.11} parent=5 // pred_fallthru
      _
    %p655 = scmp.lt.s32.totalorder %s30, 2
    // Predicated region
    $region93: #{bert_translation_forward.11} parent=5 // pred_check
      %p656 = pneg %p655
    $region94: #{bert_translation_forward.11} parent=5 // pred_check_branch
      %658 = sbr.rel (%p656) target = $region96
    $region95: #{bert_translation_forward.11} parent=5 // pred_region
      // Predicated region
      $region97: #{bert_translation_forward.11} parent=95 // pred_check
        %p659 = pneg %p50
      $region98: #{bert_translation_forward.11} parent=95 // pred_check_branch
        %661 = sbr.rel (%p659) target = $region100
      $region99: #{bert_translation_forward.11} parent=95 // pred_region
        %p662 = scmp.lt.s32.totalorder %s30, 1
        %s663 = scalar_select %p662, %s30, 1
        %s664 = smul.addr %s663, 8
        %s665 = scalar_lea.vmem %s0, %s664
      $region100: #{bert_translation_forward.11} parent=95 // pred_fallthru
        _
      // Predicated region
      $region101: #{bert_translation_forward.11} parent=95 // pred_check
        %p666 = pneg %p76
      $region102: #{bert_translation_forward.11} parent=95 // pred_check_branch
        %668 = sbr.rel (%p666) target = $region104
      $region103: #{bert_translation_forward.11} parent=95 // pred_region
        %p669 = scmp.lt.s32.totalorder %s30, 1
        %s670 = scalar_select %p669, %s30, 1
        %s671 = smul.addr %s670, 8
        %s672 = scalar_lea.vmem %s1, %s671
      $region104: #{bert_translation_forward.11} parent=95 // pred_fallthru
        _
      // Predicated region
      $region105: #{bert_translation_forward.11} parent=95 // pred_check
        %p673 = pneg %p102
      $region106: #{bert_translation_forward.11} parent=95 // pred_check_branch
        %675 = sbr.rel (%p673) target = $region108
      $region107: #{bert_translation_forward.11} parent=95 // pred_region
        %p676 = scmp.lt.s32.totalorder %s30, 1
        %s677 = scalar_select %p676, %s30, 1
        %s678 = smul.addr %s677, 8
        %s679 = scalar_lea.vmem %s2, %s678
      $region108: #{bert_translation_forward.11} parent=95 // pred_fallthru
        _
      // Predicated region
      $region109: #{bert_translation_forward.11} parent=95 // pred_check
        %p680 = pneg %p128
      $region110: #{bert_translation_forward.11} parent=95 // pred_check_branch
        %682 = sbr.rel (%p680) target = $region112
      $region111: #{bert_translation_forward.11} parent=95 // pred_region
        %p683 = scmp.lt.s32.totalorder %s30, 1
        %s684 = scalar_select %p683, %s30, 1
        %s685 = smul.addr %s684, 8
        %s686 = scalar_lea.vmem %s3, %s685
      $region112: #{bert_translation_forward.11} parent=95 // pred_fallthru
        _
    $region96: #{bert_translation_forward.11} parent=5 // pred_fallthru
      _
    %p687 = scmp.le.s32.totalorder 1, %s30
    %p688 = scmp.lt.s32.totalorder %s30, 3
    %p689 = pnand %p687, %p688
    %p690 = pneg %p689
    // Predicated region
    $region113: #{bert_translation_forward.11} parent=5 // pred_check
      _
    $region114: #{bert_translation_forward.11} parent=5 // pred_check_branch
      %692 = sbr.rel (%p689) target = $region116
    $region115: #{bert_translation_forward.11} parent=5 // pred_region
      %s693 = ssub.s32 %s30, 1
      %p694 = scmp.lt.s32.totalorder %s35, 1
      %s695 = scalar_select %p694, %s35, 1
      %s696 = smul.addr %s695, 8
      %s697 = scalar_lea.vmem %s0, %s696
      %p698 = pneg %p56
      %p699 = pneg %p53
      %p700 = scmp.lt.s32.totalorder %s35, 1
      %s701 = scalar_select %p700, %s35, 1
      %s702 = smul.addr %s701, 8
      %s703 = scalar_lea.vmem %s1, %s702
      %p704 = pneg %p82
      %p705 = pneg %p79
      %p706 = scmp.lt.s32.totalorder %s35, 1
      %s707 = scalar_select %p706, %s35, 1
      %s708 = smul.addr %s707, 8
      %s709 = scalar_lea.vmem %s2, %s708
      %p710 = pneg %p108
      %p711 = pneg %p105
      %p712 = scmp.lt.s32.totalorder %s35, 1
      %s713 = scalar_select %p712, %s35, 1
      %s714 = smul.addr %s713, 8
      %s715 = scalar_lea.vmem %s3, %s714
      %p716 = pneg %p134
      %p717 = pneg %p131
      %p718 = pneg %p155
      %p719 = pneg %p152
      %p720 = pneg %p176
      %p721 = pneg %p173
      %p722 = pneg %p197
      %p723 = pneg %p194
      %p724 = pneg %p218
      %p725 = pneg %p215
      %p726 = pneg %p239
      %p727 = pneg %p236
      %p728 = pneg %p260
      %p729 = pneg %p257
      %p730 = pneg %p281
      %p731 = pneg %p278
      %p732 = pneg %p302
      %p733 = pneg %p299
      %p734 = pneg %p323
      %p735 = pneg %p320
      %p736 = pneg %p344
      %p737 = pneg %p341
      %p738 = pneg %p365
      %p739 = pneg %p362
      %p740 = pneg %p386
      %p741 = pneg %p383
      %p742 = pneg %p407
      %p743 = pneg %p404
      %p744 = pneg %p428
      %p745 = pneg %p425
      %p746 = pneg %p449
      %p747 = pneg %p446
      %p748 = pneg %p470
      %p749 = pneg %p467
      %p750 = pneg %p491
      %p751 = pneg %p488
      %p752 = pneg %p512
      %p753 = pneg %p509
      %p754 = pneg %p533
      %p755 = pneg %p530
      %p756 = pneg %p554
      %p757 = pneg %p551
      %p758 = pneg %p580
      %p759 = pneg %p577
      %p760 = scmp.lt.s32.totalorder %s35, 1
      %s761 = scalar_select %p760, %s35, 1
      %s762 = smul.addr %s761, 8
      %s763 = scalar_lea.vmem %s24, %s762
      %p764 = scmp.lt.s32.totalorder %s35, 1
      %s765 = scalar_select %p764, %s35, 1
      %s766 = smul.addr %s765, 8
      %s767 = scalar_lea.vmem %s0, %s766
      %p768 = scmp.lt.s32.totalorder %s35, 1
      %s769 = scalar_select %p768, %s35, 1
      %s770 = smul.addr %s769, 8
      %s771 = scalar_lea.vmem %s1, %s770
      %p772 = scmp.lt.s32.totalorder %s35, 1
      %s773 = scalar_select %p772, %s35, 1
      %s774 = smul.addr %s773, 8
      %s775 = scalar_lea.vmem %s2, %s774
      %p776 = scmp.lt.s32.totalorder %s35, 1
      %s777 = scalar_select %p776, %s35, 1
      %s778 = smul.addr %s777, 8
      %s779 = scalar_lea.vmem %s3, %s778
      %p780 = scmp.lt.s32.totalorder %s35, 1
      %s781 = scalar_select %p780, %s35, 1
      %s782 = smul.addr %s781, 8
      %s783 = scalar_lea.vmem %s24, %s782
      %v784 = vld [vmem:[%s767] sm:$0xff]
      %v785 = vld [vmem:[%s771] sm:$0xff]
      %v786 = vld [vmem:[%s775] sm:$0xff]
      %v787 = vld [vmem:[%s779] sm:$0xff]
      %v788 = vld [vmem:[%s4] sm:$0x1]
      %v789 = vld [vmem:[%s5] sm:$0x1]
      %vm790 = vcmask 261120
      %v791 = vsel %vm790, %v784, 0.0
      %792 = vadd.xlane.f32.xlu0 %v791
      %v793 = vpop.xlane.xlu0 %792
      %v794 = vrcp.pop 32.0
      %v795 = vmul.f32 32.0, %v794
      %v796 = vsub.f32 1.0, %v795
      %v797 = vmul.f32 %v794, %v796
      %v798 = vadd.f32 %v794, %v797
      %vm799 = vweird.f32 %v794
      %v800 = vsel %vm799, %v794, %v798
      %v801 = vmul.f32 %v793, %v800
      %v802 = vsub.f32 %v784, %v801
      %v803 = vmul.f32 %v802, %v802
      %v804 = vsel %vm790, %v803, 0.0
      %805 = vadd.xlane.f32.xlu0 %v804
      %v806 = vpop.xlane.xlu0 %805
      %v807 = vmul.f32 %v806, %v800
      %v808 = vadd.f32 %v807, 1e-06
      %v809 = vrsqrt.pop %v808
      %v810 = vmul.f32 %v809, %v808
      %v811 = vmul.f32 %v810, %v809
      %v812 = vmul.f32 0.5, %v811
      %v813 = vsub.f32 1.5, %v812
      %v814 = vmul.f32 %v809, %v813
      %vm815 = vweird.f32 %v808
      %vm816 = vweird.f32 %v809
      %vm817 = vmor %vm815, %vm816
      %v818 = vsel %vm817, %v809, %v814
      %v819 = vmul.f32 %v802, %v818
      %v821 = vperm.slane %v788, 0
      %v823 = vmul.f32 %v819, %v821
      %v825 = vperm.slane %v789, 0
      %v827 = vadd.f32 %v823, %v825
      %v828 = vld [vmem:[%s6] sm:$0xff]
      %v829 = vld [vmem:[%s6 + $0x8] sm:$0xff]
      %v830 = vld [vmem:[%s6 + $0x10] sm:$0xff]
      %v831 = vld [vmem:[%s6 + $0x18] sm:$0xff]
      %v832 = vld [vmem:[%s7] sm:$0x1]
      %v834 = vperm.slane %v832, 0
      %v837 = vsel %vm790, %v827, 0
      %839 = vmatpush.msra.mxu0 0.0
      %840 = vmatpush.msra.mxu0 0.0
      %841 = vmatpush.msra.mxu0 0.0
      %842 = vmatpush.msra.mxu0 0.0
      %843 = vmatpush.msra.mxu0 0.0
      %844 = vmatpush.msra.mxu0 0.0
      %845 = vmatpush.msra.mxu0 0.0
      %846 = vmatpush.msra.mxu0 0.0
      %847 = vmatpush.msra.mxu0 0.0
      %848 = vmatpush.msra.mxu0 0.0
      %849 = vmatpush.msra.mxu0 0.0
      %850 = vmatpush.msra.mxu0 0.0
      %851 = vmatpush.msra.mxu0 %v831
      %852 = vmatpush.msra.mxu0 %v830
      %853 = vmatpush.msra.mxu0 %v829
      %854 = vmatpush.msra.mxu0 %v828
      %855 = vmatmul.f32.gmra.mxu0 %v837
      %v856 = vpop.f32.mrf.mxu0
      %v857 = vadd.f32 %v834, %v856
      %858 = vdwg.mxu0
      %v859 = vld [vmem:[%s8] sm:$0xff]
      %v860 = vld [vmem:[%s8 + $0x8] sm:$0xff]
      %v861 = vld [vmem:[%s8 + $0x10] sm:$0xff]
      %v862 = vld [vmem:[%s8 + $0x18] sm:$0xff]
      %v863 = vld [vmem:[%s9] sm:$0x1]
      %865 = vrot.lane.b32.xlu0 %v857, 96
      %v866 = vpop.permute.xlu0 %865
      %vm867 = vcmask 64512
      %v868 = vsel %vm867, %v857, 0
      %v870 = vsel %vm867, %v866, 0
      %872 = vmatpush.xpose.msra.mxu0 0.0
      %873 = vmatpush.xpose.msra.mxu0 0.0
      %874 = vmatpush.xpose.msra.mxu0 0.0
      %875 = vmatpush.xpose.msra.mxu0 0.0
      %876 = vmatpush.xpose.msra.mxu0 0.0
      %877 = vmatpush.xpose.msra.mxu0 0.0
      %878 = vmatpush.xpose.msra.mxu0 0.0
      %879 = vmatpush.xpose.msra.mxu0 0.0
      %880 = vmatpush.xpose.msra.mxu0 0.0
      %881 = vmatpush.xpose.msra.mxu0 0.0
      %882 = vmatpush.xpose.msra.mxu0 0.0
      %883 = vmatpush.xpose.msra.mxu0 0.0
      %884 = vmatpush.xpose.msra.mxu0 0.0
      %885 = vmatpush.xpose.msra.mxu0 0.0
      %886 = vmatpush.xpose.msra.mxu0 0.0
      %887 = vmatpush.xpose.msra.mxu0 %v870
      %888 = vmatmul.f32.gmra.mxu0 %v868
      %v889 = vpop.f32.mrf.mxu0
      %v890 = vadd.f32 0.0, %v889
      %891 = vdwg.mxu0
      %v892 = vmul.f32 %v890, 0.35355338
      %v893 = vadd.f32 %v892, %v786
      %v894 = vsel %vm867, %v893, -inf
      %895 = vmax.xlane.f32.xlu0 %v894
      %v896 = vpop.xlane.xlu0 %895
      %v897 = vsub.f32 %v893, %v896
      %v898 = vmul.f32 %v897, 1.442695
      %v899 = vpow.pop %v898
      %v900 = vsel %vm867, %v899, 0.0
      %901 = vadd.xlane.f32.xlu0 %v900
      %v902 = vpop.xlane.xlu0 %901
      %v903 = vrcp.pop %v902
      %v904 = vmul.f32 %v902, %v903
      %v905 = vsub.f32 1.0, %v904
      %v906 = vmul.f32 %v903, %v905
      %v907 = vadd.f32 %v903, %v906
      %vm908 = vweird.f32 %v902
      %vm909 = vweird.f32 %v903
      %vm910 = vmor %vm908, %vm909
      %v911 = vsel %vm910, %v903, %v907
      %v912 = vand.u32 2147483647, %v902
      %vm913 = vcmp.eq.f32.partialorder %v912, 8.507059e+37
      %v914 = vand.u32 %v902, 2147483648
      %v915 = vor.u32 1.1754944e-38, %v914
      %v916 = vsel %vm913, %v915, %v911
      %v917 = vmul.f32 %v899, %v916
      %918 = vrot.lane.b32.xlu0 %v857, 64
      %v919 = vpop.permute.xlu0 %918
      %v922 = vsel %vm867, %v917, 0
      %924 = vmatpush.msra.mxu0 0.0
      %925 = vmatpush.msra.mxu0 0.0
      %926 = vmatpush.msra.mxu0 0.0
      %927 = vmatpush.msra.mxu0 0.0
      %928 = vmatpush.msra.mxu0 0.0
      %929 = vmatpush.msra.mxu0 0.0
      %930 = vmatpush.msra.mxu0 0.0
      %931 = vmatpush.msra.mxu0 0.0
      %932 = vmatpush.msra.mxu0 0.0
      %933 = vmatpush.msra.mxu0 0.0
      %934 = vmatpush.msra.mxu0 0.0
      %935 = vmatpush.msra.mxu0 0.0
      %936 = vmatpush.msra.mxu0 0.0
      %937 = vmatpush.msra.mxu0 0.0
      %938 = vmatpush.msra.mxu0 0.0
      %939 = vmatpush.msra.mxu0 %v919
      %940 = vmatmul.f32.gmra.mxu0 %v922
      %v941 = vpop.f32.mrf.mxu0
      %v942 = vadd.f32 0.0, %v941
      %943 = vdwg.mxu0
      %944 = vrot.lane.b32.xlu0 %v857, 120
      %v945 = vpop.permute.xlu0 %944
      %946 = vrot.lane.b32.xlu0 %v857, 88
      %v947 = vpop.permute.xlu0 %946
      %v948 = vsel %vm867, %v945, 0
      %v950 = vsel %vm867, %v947, 0
      %952 = vmatpush.xpose.msra.mxu0 0.0
      %953 = vmatpush.xpose.msra.mxu0 0.0
      %954 = vmatpush.xpose.msra.mxu0 0.0
      %955 = vmatpush.xpose.msra.mxu0 0.0
      %956 = vmatpush.xpose.msra.mxu0 0.0
      %957 = vmatpush.xpose.msra.mxu0 0.0
      %958 = vmatpush.xpose.msra.mxu0 0.0
      %959 = vmatpush.xpose.msra.mxu0 0.0
      %960 = vmatpush.xpose.msra.mxu0 0.0
      %961 = vmatpush.xpose.msra.mxu0 0.0
      %962 = vmatpush.xpose.msra.mxu0 0.0
      %963 = vmatpush.xpose.msra.mxu0 0.0
      %964 = vmatpush.xpose.msra.mxu0 0.0
      %965 = vmatpush.xpose.msra.mxu0 0.0
      %966 = vmatpush.xpose.msra.mxu0 0.0
      %967 = vmatpush.xpose.msra.mxu0 %v950
      %968 = vmatmul.f32.gmra.mxu0 %v948
      %v969 = vpop.f32.mrf.mxu0
      %v970 = vadd.f32 0.0, %v969
      %971 = vdwg.mxu0
      %v972 = vmul.f32 %v970, 0.35355338
      %v973 = vadd.f32 %v972, %v786
      %v974 = vsel %vm867, %v973, -inf
      %975 = vmax.xlane.f32.xlu0 %v974
      %v976 = vpop.xlane.xlu0 %975
      %v977 = vsub.f32 %v973, %v976
      %v978 = vmul.f32 %v977, 1.442695
      %v979 = vpow.pop %v978
      %v980 = vsel %vm867, %v979, 0.0
      %981 = vadd.xlane.f32.xlu0 %v980
      %v982 = vpop.xlane.xlu0 %981
      %v983 = vrcp.pop %v982
      %v984 = vmul.f32 %v982, %v983
      %v985 = vsub.f32 1.0, %v984
      %v986 = vmul.f32 %v983, %v985
      %v987 = vadd.f32 %v983, %v986
      %vm988 = vweird.f32 %v982
      %vm989 = vweird.f32 %v983
      %vm990 = vmor %vm988, %vm989
      %v991 = vsel %vm990, %v983, %v987
      %v992 = vand.u32 2147483647, %v982
      %vm993 = vcmp.eq.f32.partialorder %v992, 8.507059e+37
      %v994 = vand.u32 %v982, 2147483648
      %v995 = vor.u32 1.1754944e-38, %v994
      %v996 = vsel %vm993, %v995, %v991
      %v997 = vmul.f32 %v979, %v996
      %998 = vrot.lane.b32.xlu0 %v857, 56
      %v999 = vpop.permute.xlu0 %998
      %v1002 = vsel %vm867, %v997, 0
      %1004 = vmatpush.msra.mxu0 0.0
      %1005 = vmatpush.msra.mxu0 0.0
      %1006 = vmatpush.msra.mxu0 0.0
      %1007 = vmatpush.msra.mxu0 0.0
      %1008 = vmatpush.msra.mxu0 0.0
      %1009 = vmatpush.msra.mxu0 0.0
      %1010 = vmatpush.msra.mxu0 0.0
      %1011 = vmatpush.msra.mxu0 0.0
      %1012 = vmatpush.msra.mxu0 0.0
      %1013 = vmatpush.msra.mxu0 0.0
      %1014 = vmatpush.msra.mxu0 0.0
      %1015 = vmatpush.msra.mxu0 0.0
      %1016 = vmatpush.msra.mxu0 0.0
      %1017 = vmatpush.msra.mxu0 0.0
      %1018 = vmatpush.msra.mxu0 0.0
      %1019 = vmatpush.msra.mxu0 %v999
      %1020 = vmatmul.f32.gmra.mxu0 %v1002
      %v1021 = vpop.f32.mrf.mxu0
      %v1022 = vadd.f32 0.0, %v1021
      %1023 = vdwg.mxu0
      %v1025 = vsel %vm867, %v1022, 0
      %1027 = vmatpush.msra.mxu0 0.0
      %1028 = vmatpush.msra.mxu0 0.0
      %1029 = vmatpush.msra.mxu0 0.0
      %1030 = vmatpush.msra.mxu0 0.0
      %1031 = vmatpush.msra.mxu0 0.0
      %1032 = vmatpush.msra.mxu0 0.0
      %1033 = vmatpush.msra.mxu0 0.0
      %1034 = vmatpush.msra.mxu0 0.0
      %1035 = vmatpush.msra.mxu0 0.0
      %1036 = vmatpush.msra.mxu0 0.0
      %1037 = vmatpush.msra.mxu0 0.0
      %1038 = vmatpush.msra.mxu0 0.0
      %1039 = vmatpush.msra.mxu0 0.0
      %1040 = vmatpush.msra.mxu0 0.0
      %1041 = vmatpush.msra.mxu0 0.0
      %1042 = vmatpush.msra.mxu0 %v860
      %1043 = vmatmul.f32.gmra.mxu0 %v1025
      %v1044 = vpop.f32.mrf.mxu0
      %v1045 = vadd.f32 0.0, %v1044
      %1046 = vdwg.mxu0
      %v1048 = vsel %vm867, %v942, 0
      %1050 = vmatpush.msra.mxu0 0.0
      %1051 = vmatpush.msra.mxu0 0.0
      %1052 = vmatpush.msra.mxu0 0.0
      %1053 = vmatpush.msra.mxu0 0.0
      %1054 = vmatpush.msra.mxu0 0.0
      %1055 = vmatpush.msra.mxu0 0.0
      %1056 = vmatpush.msra.mxu0 0.0
      %1057 = vmatpush.msra.mxu0 0.0
      %1058 = vmatpush.msra.mxu0 0.0
      %1059 = vmatpush.msra.mxu0 0.0
      %1060 = vmatpush.msra.mxu0 0.0
      %1061 = vmatpush.msra.mxu0 0.0
      %1062 = vmatpush.msra.mxu0 0.0
      %1063 = vmatpush.msra.mxu0 0.0
      %1064 = vmatpush.msra.mxu0 0.0
      %1065 = vmatpush.msra.mxu0 %v859
      %1066 = vmatmul.f32.gmra.mxu0 %v1048
      %v1067 = vpop.f32.mrf.mxu0
      %v1068 = vadd.f32 %v1045, %v1067
      %1069 = vdwg.mxu0
      %1070 = vrot.lane.b32.xlu0 %v857, 112
      %v1071 = vpop.permute.xlu0 %1070
      %1072 = vrot.lane.b32.xlu0 %v857, 80
      %v1073 = vpop.permute.xlu0 %1072
      %v1074 = vsel %vm867, %v1071, 0
      %v1076 = vsel %vm867, %v1073, 0
      %1078 = vmatpush.xpose.msra.mxu0 0.0
      %1079 = vmatpush.xpose.msra.mxu0 0.0
      %1080 = vmatpush.xpose.msra.mxu0 0.0
      %1081 = vmatpush.xpose.msra.mxu0 0.0
      %1082 = vmatpush.xpose.msra.mxu0 0.0
      %1083 = vmatpush.xpose.msra.mxu0 0.0
      %1084 = vmatpush.xpose.msra.mxu0 0.0
      %1085 = vmatpush.xpose.msra.mxu0 0.0
      %1086 = vmatpush.xpose.msra.mxu0 0.0
      %1087 = vmatpush.xpose.msra.mxu0 0.0
      %1088 = vmatpush.xpose.msra.mxu0 0.0
      %1089 = vmatpush.xpose.msra.mxu0 0.0
      %1090 = vmatpush.xpose.msra.mxu0 0.0
      %1091 = vmatpush.xpose.msra.mxu0 0.0
      %1092 = vmatpush.xpose.msra.mxu0 0.0
      %1093 = vmatpush.xpose.msra.mxu0 %v1076
      %1094 = vmatmul.f32.gmra.mxu0 %v1074
      %v1095 = vpop.f32.mrf.mxu0
      %v1096 = vadd.f32 0.0, %v1095
      %1097 = vdwg.mxu0
      %v1098 = vmul.f32 %v1096, 0.35355338
      %v1099 = vadd.f32 %v1098, %v786
      %v1100 = vsel %vm867, %v1099, -inf
      %1101 = vmax.xlane.f32.xlu0 %v1100
      %v1102 = vpop.xlane.xlu0 %1101
      %v1103 = vsub.f32 %v1099, %v1102
      %v1104 = vmul.f32 %v1103, 1.442695
      %v1105 = vpow.pop %v1104
      %v1106 = vsel %vm867, %v1105, 0.0
      %1107 = vadd.xlane.f32.xlu0 %v1106
      %v1108 = vpop.xlane.xlu0 %1107
      %v1109 = vrcp.pop %v1108
      %v1110 = vmul.f32 %v1108, %v1109
      %v1111 = vsub.f32 1.0, %v1110
      %v1112 = vmul.f32 %v1109, %v1111
      %v1113 = vadd.f32 %v1109, %v1112
      %vm1114 = vweird.f32 %v1108
      %vm1115 = vweird.f32 %v1109
      %vm1116 = vmor %vm1114, %vm1115
      %v1117 = vsel %vm1116, %v1109, %v1113
      %v1118 = vand.u32 2147483647, %v1108
      %vm1119 = vcmp.eq.f32.partialorder %v1118, 8.507059e+37
      %v1120 = vand.u32 %v1108, 2147483648
      %v1121 = vor.u32 1.1754944e-38, %v1120
      %v1122 = vsel %vm1119, %v1121, %v1117
      %v1123 = vmul.f32 %v1105, %v1122
      %1124 = vrot.lane.b32.xlu0 %v857, 48
      %v1125 = vpop.permute.xlu0 %1124
      %v1128 = vsel %vm867, %v1123, 0
      %1130 = vmatpush.msra.mxu0 0.0
      %1131 = vmatpush.msra.mxu0 0.0
      %1132 = vmatpush.msra.mxu0 0.0
      %1133 = vmatpush.msra.mxu0 0.0
      %1134 = vmatpush.msra.mxu0 0.0
      %1135 = vmatpush.msra.mxu0 0.0
      %1136 = vmatpush.msra.mxu0 0.0
      %1137 = vmatpush.msra.mxu0 0.0
      %1138 = vmatpush.msra.mxu0 0.0
      %1139 = vmatpush.msra.mxu0 0.0
      %1140 = vmatpush.msra.mxu0 0.0
      %1141 = vmatpush.msra.mxu0 0.0
      %1142 = vmatpush.msra.mxu0 0.0
      %1143 = vmatpush.msra.mxu0 0.0
      %1144 = vmatpush.msra.mxu0 0.0
      %1145 = vmatpush.msra.mxu0 %v1125
      %1146 = vmatmul.f32.gmra.mxu0 %v1128
      %v1147 = vpop.f32.mrf.mxu0
      %v1148 = vadd.f32 0.0, %v1147
      %1149 = vdwg.mxu0
      %v1151 = vsel %vm867, %v1148, 0
      %1153 = vmatpush.msra.mxu0 0.0
      %1154 = vmatpush.msra.mxu0 0.0
      %1155 = vmatpush.msra.mxu0 0.0
      %1156 = vmatpush.msra.mxu0 0.0
      %1157 = vmatpush.msra.mxu0 0.0
      %1158 = vmatpush.msra.mxu0 0.0
      %1159 = vmatpush.msra.mxu0 0.0
      %1160 = vmatpush.msra.mxu0 0.0
      %1161 = vmatpush.msra.mxu0 0.0
      %1162 = vmatpush.msra.mxu0 0.0
      %1163 = vmatpush.msra.mxu0 0.0
      %1164 = vmatpush.msra.mxu0 0.0
      %1165 = vmatpush.msra.mxu0 0.0
      %1166 = vmatpush.msra.mxu0 0.0
      %1167 = vmatpush.msra.mxu0 0.0
      %1168 = vmatpush.msra.mxu0 %v861
      %1169 = vmatmul.f32.gmra.mxu0 %v1151
      %v1170 = vpop.f32.mrf.mxu0
      %v1171 = vadd.f32 0.0, %v1170
      %1172 = vdwg.mxu0
      %v1173 = vadd.f32 %v1068, %v1171
      %1174 = vrot.lane.b32.xlu0 %v857, 104
      %v1175 = vpop.permute.xlu0 %1174
      %1176 = vrot.lane.b32.xlu0 %v857, 72
      %v1177 = vpop.permute.xlu0 %1176
      %v1178 = vsel %vm867, %v1175, 0
      %v1180 = vsel %vm867, %v1177, 0
      %1182 = vmatpush.xpose.msra.mxu0 0.0
      %1183 = vmatpush.xpose.msra.mxu0 0.0
      %1184 = vmatpush.xpose.msra.mxu0 0.0
      %1185 = vmatpush.xpose.msra.mxu0 0.0
      %1186 = vmatpush.xpose.msra.mxu0 0.0
      %1187 = vmatpush.xpose.msra.mxu0 0.0
      %1188 = vmatpush.xpose.msra.mxu0 0.0
      %1189 = vmatpush.xpose.msra.mxu0 0.0
      %1190 = vmatpush.xpose.msra.mxu0 0.0
      %1191 = vmatpush.xpose.msra.mxu0 0.0
      %1192 = vmatpush.xpose.msra.mxu0 0.0
      %1193 = vmatpush.xpose.msra.mxu0 0.0
      %1194 = vmatpush.xpose.msra.mxu0 0.0
      %1195 = vmatpush.xpose.msra.mxu0 0.0
      %1196 = vmatpush.xpose.msra.mxu0 0.0
      %1197 = vmatpush.xpose.msra.mxu0 %v1180
      %1198 = vmatmul.f32.gmra.mxu0 %v1178
      %v1199 = vpop.f32.mrf.mxu0
      %v1200 = vadd.f32 0.0, %v1199
      %1201 = vdwg.mxu0
      %v1202 = vmul.f32 %v1200, 0.35355338
      %v1203 = vadd.f32 %v1202, %v786
      %v1204 = vsel %vm867, %v1203, -inf
      %1205 = vmax.xlane.f32.xlu0 %v1204
      %v1206 = vpop.xlane.xlu0 %1205
      %v1207 = vsub.f32 %v1203, %v1206
      %v1208 = vmul.f32 %v1207, 1.442695
      %v1209 = vpow.pop %v1208
      %v1210 = vsel %vm867, %v1209, 0.0
      %1211 = vadd.xlane.f32.xlu0 %v1210
      %v1212 = vpop.xlane.xlu0 %1211
      %v1213 = vrcp.pop %v1212
      %v1214 = vmul.f32 %v1212, %v1213
      %v1215 = vsub.f32 1.0, %v1214
      %v1216 = vmul.f32 %v1213, %v1215
      %v1217 = vadd.f32 %v1213, %v1216
      %vm1218 = vweird.f32 %v1212
      %vm1219 = vweird.f32 %v1213
      %vm1220 = vmor %vm1218, %vm1219
      %v1221 = vsel %vm1220, %v1213, %v1217
      %v1222 = vand.u32 2147483647, %v1212
      %vm1223 = vcmp.eq.f32.partialorder %v1222, 8.507059e+37
      %v1224 = vand.u32 %v1212, 2147483648
      %v1225 = vor.u32 1.1754944e-38, %v1224
      %v1226 = vsel %vm1223, %v1225, %v1221
      %v1227 = vmul.f32 %v1209, %v1226
      %1228 = vrot.lane.b32.xlu0 %v857, 40
      %v1229 = vpop.permute.xlu0 %1228
      %v1232 = vsel %vm867, %v1227, 0
      %1234 = vmatpush.msra.mxu0 0.0
      %1235 = vmatpush.msra.mxu0 0.0
      %1236 = vmatpush.msra.mxu0 0.0
      %1237 = vmatpush.msra.mxu0 0.0
      %1238 = vmatpush.msra.mxu0 0.0
      %1239 = vmatpush.msra.mxu0 0.0
      %1240 = vmatpush.msra.mxu0 0.0
      %1241 = vmatpush.msra.mxu0 0.0
      %1242 = vmatpush.msra.mxu0 0.0
      %1243 = vmatpush.msra.mxu0 0.0
      %1244 = vmatpush.msra.mxu0 0.0
      %1245 = vmatpush.msra.mxu0 0.0
      %1246 = vmatpush.msra.mxu0 0.0
      %1247 = vmatpush.msra.mxu0 0.0
      %1248 = vmatpush.msra.mxu0 0.0
      %1249 = vmatpush.msra.mxu0 %v1229
      %1250 = vmatmul.f32.gmra.mxu0 %v1232
      %v1251 = vpop.f32.mrf.mxu0
      %v1252 = vadd.f32 0.0, %v1251
      %1253 = vdwg.mxu0
      %v1255 = vsel %vm867, %v1252, 0
      %1257 = vmatpush.msra.mxu0 0.0
      %1258 = vmatpush.msra.mxu0 0.0
      %1259 = vmatpush.msra.mxu0 0.0
      %1260 = vmatpush.msra.mxu0 0.0
      %1261 = vmatpush.msra.mxu0 0.0
      %1262 = vmatpush.msra.mxu0 0.0
      %1263 = vmatpush.msra.mxu0 0.0
      %1264 = vmatpush.msra.mxu0 0.0
      %1265 = vmatpush.msra.mxu0 0.0
      %1266 = vmatpush.msra.mxu0 0.0
      %1267 = vmatpush.msra.mxu0 0.0
      %1268 = vmatpush.msra.mxu0 0.0
      %1269 = vmatpush.msra.mxu0 0.0
      %1270 = vmatpush.msra.mxu0 0.0
      %1271 = vmatpush.msra.mxu0 0.0
      %1272 = vmatpush.msra.mxu0 %v862
      %1273 = vmatmul.f32.gmra.mxu0 %v1255
      %v1274 = vpop.f32.mrf.mxu0
      %v1275 = vadd.f32 0.0, %v1274
      %1276 = vdwg.mxu0
      %v1277 = vadd.f32 %v1173, %v1275
      %v1279 = vperm.slane %v863, 0
      %v1281 = vadd.f32 %v1277, %v1279
      %v1282 = vadd.f32 %v784, %v1281
      %v1283 = vld [vmem:[%s10] sm:$0x1]
      %v1284 = vld [vmem:[%s11] sm:$0x1]
      %v1285 = vsel %vm790, %v1282, 0.0
      %1286 = vadd.xlane.f32.xlu0 %v1285
      %v1287 = vpop.xlane.xlu0 %1286
      %v1288 = vmul.f32 %v1287, %v800
      %v1289 = vsub.f32 %v1282, %v1288
      %v1290 = vmul.f32 %v1289, %v1289
      %v1291 = vsel %vm790, %v1290, 0.0
      %1292 = vadd.xlane.f32.xlu0 %v1291
      %v1293 = vpop.xlane.xlu0 %1292
      %v1294 = vmul.f32 %v1293, %v800
      %v1295 = vadd.f32 %v1294, 1e-06
      %v1296 = vrsqrt.pop %v1295
      %v1297 = vmul.f32 %v1296, %v1295
      %v1298 = vmul.f32 %v1297, %v1296
      %v1299 = vmul.f32 0.5, %v1298
      %v1300 = vsub.f32 1.5, %v1299
      %v1301 = vmul.f32 %v1296, %v1300
      %vm1302 = vweird.f32 %v1295
      %vm1303 = vweird.f32 %v1296
      %vm1304 = vmor %vm1302, %vm1303
      %v1305 = vsel %vm1304, %v1296, %v1301
      %v1306 = vmul.f32 %v1289, %v1305
      %v1308 = vperm.slane %v1283, 0
      %v1310 = vmul.f32 %v1306, %v1308
      %v1312 = vperm.slane %v1284, 0
      %v1314 = vadd.f32 %v1310, %v1312
      %v1315 = vld [vmem:[%s12] sm:$0xff]
      %v1316 = vld [vmem:[%s12 + $0x8] sm:$0xff]
      %v1317 = vld [vmem:[%s12 + $0x10] sm:$0xff]
      %v1318 = vld [vmem:[%s12 + $0x18] sm:$0xff]
      %v1319 = vld [vmem:[%s13] sm:$0x1]
      %v1321 = vperm.slane %v1319, 0
      %v1324 = vsel %vm790, %v1314, 0
      %1326 = vmatpush.msra.mxu0 0.0
      %1327 = vmatpush.msra.mxu0 0.0
      %1328 = vmatpush.msra.mxu0 0.0
      %1329 = vmatpush.msra.mxu0 0.0
      %1330 = vmatpush.msra.mxu0 0.0
      %1331 = vmatpush.msra.mxu0 0.0
      %1332 = vmatpush.msra.mxu0 0.0
      %1333 = vmatpush.msra.mxu0 0.0
      %1334 = vmatpush.msra.mxu0 0.0
      %1335 = vmatpush.msra.mxu0 0.0
      %1336 = vmatpush.msra.mxu0 0.0
      %1337 = vmatpush.msra.mxu0 0.0
      %1338 = vmatpush.msra.mxu0 %v1318
      %1339 = vmatpush.msra.mxu0 %v1317
      %1340 = vmatpush.msra.mxu0 %v1316
      %1341 = vmatpush.msra.mxu0 %v1315
      %1342 = vmatmul.f32.gmra.mxu0 %v1324
      %v1343 = vpop.f32.mrf.mxu0
      %v1344 = vadd.f32 %v1321, %v1343
      %1345 = vdwg.mxu0
      %v1346 = vld [vmem:[%s14] sm:$0xff]
      %v1347 = vld [vmem:[%s14 + $0x8] sm:$0xff]
      %v1348 = vld [vmem:[%s14 + $0x10] sm:$0xff]
      %v1349 = vld [vmem:[%s14 + $0x18] sm:$0xff]
      %v1350 = vld [vmem:[%s15] sm:$0x1]
      %v1352 = vperm.slane %v1350, 0
      %v1355 = vsel %vm790, %v785, 0
      %1357 = vmatpush.msra.mxu0 0.0
      %1358 = vmatpush.msra.mxu0 0.0
      %1359 = vmatpush.msra.mxu0 0.0
      %1360 = vmatpush.msra.mxu0 0.0
      %1361 = vmatpush.msra.mxu0 0.0
      %1362 = vmatpush.msra.mxu0 0.0
      %1363 = vmatpush.msra.mxu0 0.0
      %1364 = vmatpush.msra.mxu0 0.0
      %1365 = vmatpush.msra.mxu0 0.0
      %1366 = vmatpush.msra.mxu0 0.0
      %1367 = vmatpush.msra.mxu0 0.0
      %1368 = vmatpush.msra.mxu0 0.0
      %1369 = vmatpush.msra.mxu0 %v1349
      %1370 = vmatpush.msra.mxu0 %v1348
      %1371 = vmatpush.msra.mxu0 %v1347
      %1372 = vmatpush.msra.mxu0 %v1346
      %1373 = vmatmul.f32.gmra.mxu0 %v1355
      %v1374 = vpop.f32.mrf.mxu0
      %v1375 = vadd.f32 %v1352, %v1374
      %1376 = vdwg.mxu0
      %v1377 = vld [vmem:[%s16] sm:$0xff]
      %v1378 = vld [vmem:[%s16 + $0x8] sm:$0xff]
      %v1379 = vld [vmem:[%s16 + $0x10] sm:$0xff]
      %v1380 = vld [vmem:[%s16 + $0x18] sm:$0xff]
      %v1381 = vld [vmem:[%s17] sm:$0x1]
      %v1383 = vsel %vm867, %v1344, 0
      %v1386 = vsel %vm867, %v1375, 0
      %1388 = vmatpush.xpose.msra.mxu0 0.0
      %1389 = vmatpush.xpose.msra.mxu0 0.0
      %1390 = vmatpush.xpose.msra.mxu0 0.0
      %1391 = vmatpush.xpose.msra.mxu0 0.0
      %1392 = vmatpush.xpose.msra.mxu0 0.0
      %1393 = vmatpush.xpose.msra.mxu0 0.0
      %1394 = vmatpush.xpose.msra.mxu0 0.0
      %1395 = vmatpush.xpose.msra.mxu0 0.0
      %1396 = vmatpush.xpose.msra.mxu0 0.0
      %1397 = vmatpush.xpose.msra.mxu0 0.0
      %1398 = vmatpush.xpose.msra.mxu0 0.0
      %1399 = vmatpush.xpose.msra.mxu0 0.0
      %1400 = vmatpush.xpose.msra.mxu0 0.0
      %1401 = vmatpush.xpose.msra.mxu0 0.0
      %1402 = vmatpush.xpose.msra.mxu0 0.0
      %1403 = vmatpush.xpose.msra.mxu0 %v1386
      %1404 = vmatmul.f32.gmra.mxu0 %v1383
      %v1405 = vpop.f32.mrf.mxu0
      %v1406 = vadd.f32 0.0, %v1405
      %1407 = vdwg.mxu0
      %v1408 = vmul.f32 %v1406, 0.35355338
      %v1409 = vadd.f32 %v1408, %v787
      %v1410 = vsel %vm867, %v1409, -inf
      %1411 = vmax.xlane.f32.xlu0 %v1410
      %v1412 = vpop.xlane.xlu0 %1411
      %v1413 = vsub.f32 %v1409, %v1412
      %v1414 = vmul.f32 %v1413, 1.442695
      %v1415 = vpow.pop %v1414
      %v1416 = vsel %vm867, %v1415, 0.0
      %1417 = vadd.xlane.f32.xlu0 %v1416
      %v1418 = vpop.xlane.xlu0 %1417
      %v1419 = vrcp.pop %v1418
      %v1420 = vmul.f32 %v1418, %v1419
      %v1421 = vsub.f32 1.0, %v1420
      %v1422 = vmul.f32 %v1419, %v1421
      %v1423 = vadd.f32 %v1419, %v1422
      %vm1424 = vweird.f32 %v1418
      %vm1425 = vweird.f32 %v1419
      %vm1426 = vmor %vm1424, %vm1425
      %v1427 = vsel %vm1426, %v1419, %v1423
      %v1428 = vand.u32 2147483647, %v1418
      %vm1429 = vcmp.eq.f32.partialorder %v1428, 8.507059e+37
      %v1430 = vand.u32 %v1418, 2147483648
      %v1431 = vor.u32 1.1754944e-38, %v1430
      %v1432 = vsel %vm1429, %v1431, %v1427
      %v1433 = vmul.f32 %v1415, %v1432
      %1434 = vrot.lane.b32.xlu0 %v1375, 96
      %v1435 = vpop.permute.xlu0 %1434
      %v1438 = vsel %vm867, %v1433, 0
      %1440 = vmatpush.msra.mxu0 0.0
      %1441 = vmatpush.msra.mxu0 0.0
      %1442 = vmatpush.msra.mxu0 0.0
      %1443 = vmatpush.msra.mxu0 0.0
      %1444 = vmatpush.msra.mxu0 0.0
      %1445 = vmatpush.msra.mxu0 0.0
      %1446 = vmatpush.msra.mxu0 0.0
      %1447 = vmatpush.msra.mxu0 0.0
      %1448 = vmatpush.msra.mxu0 0.0
      %1449 = vmatpush.msra.mxu0 0.0
      %1450 = vmatpush.msra.mxu0 0.0
      %1451 = vmatpush.msra.mxu0 0.0
      %1452 = vmatpush.msra.mxu0 0.0
      %1453 = vmatpush.msra.mxu0 0.0
      %1454 = vmatpush.msra.mxu0 0.0
      %1455 = vmatpush.msra.mxu0 %v1435
      %1456 = vmatmul.f32.gmra.mxu0 %v1438
      %v1457 = vpop.f32.mrf.mxu0
      %v1458 = vadd.f32 0.0, %v1457
      %1459 = vdwg.mxu0
      %1460 = vrot.lane.b32.xlu0 %v1344, 120
      %v1461 = vpop.permute.xlu0 %1460
      %1462 = vrot.lane.b32.xlu0 %v1375, 120
      %v1463 = vpop.permute.xlu0 %1462
      %v1464 = vsel %vm867, %v1461, 0
      %v1466 = vsel %vm867, %v1463, 0
      %1468 = vmatpush.xpose.msra.mxu0 0.0
      %1469 = vmatpush.xpose.msra.mxu0 0.0
      %1470 = vmatpush.xpose.msra.mxu0 0.0
      %1471 = vmatpush.xpose.msra.mxu0 0.0
      %1472 = vmatpush.xpose.msra.mxu0 0.0
      %1473 = vmatpush.xpose.msra.mxu0 0.0
      %1474 = vmatpush.xpose.msra.mxu0 0.0
      %1475 = vmatpush.xpose.msra.mxu0 0.0
      %1476 = vmatpush.xpose.msra.mxu0 0.0
      %1477 = vmatpush.xpose.msra.mxu0 0.0
      %1478 = vmatpush.xpose.msra.mxu0 0.0
      %1479 = vmatpush.xpose.msra.mxu0 0.0
      %1480 = vmatpush.xpose.msra.mxu0 0.0
      %1481 = vmatpush.xpose.msra.mxu0 0.0
      %1482 = vmatpush.xpose.msra.mxu0 0.0
      %1483 = vmatpush.xpose.msra.mxu0 %v1466
      %1484 = vmatmul.f32.gmra.mxu0 %v1464
      %v1485 = vpop.f32.mrf.mxu0
      %v1486 = vadd.f32 0.0, %v1485
      %1487 = vdwg.mxu0
      %v1488 = vmul.f32 %v1486, 0.35355338
      %v1489 = vadd.f32 %v1488, %v787
      %v1490 = vsel %vm867, %v1489, -inf
      %1491 = vmax.xlane.f32.xlu0 %v1490
      %v1492 = vpop.xlane.xlu0 %1491
      %v1493 = vsub.f32 %v1489, %v1492
      %v1494 = vmul.f32 %v1493, 1.442695
      %v1495 = vpow.pop %v1494
      %v1496 = vsel %vm867, %v1495, 0.0
      %1497 = vadd.xlane.f32.xlu0 %v1496
      %v1498 = vpop.xlane.xlu0 %1497
      %v1499 = vrcp.pop %v1498
      %v1500 = vmul.f32 %v1498, %v1499
      %v1501 = vsub.f32 1.0, %v1500
      %v1502 = vmul.f32 %v1499, %v1501
      %v1503 = vadd.f32 %v1499, %v1502
      %vm1504 = vweird.f32 %v1498
      %vm1505 = vweird.f32 %v1499
      %vm1506 = vmor %vm1504, %vm1505
      %v1507 = vsel %vm1506, %v1499, %v1503
      %v1508 = vand.u32 2147483647, %v1498
      %vm1509 = vcmp.eq.f32.partialorder %v1508, 8.507059e+37
      %v1510 = vand.u32 %v1498, 2147483648
      %v1511 = vor.u32 1.1754944e-38, %v1510
      %v1512 = vsel %vm1509, %v1511, %v1507
      %v1513 = vmul.f32 %v1495, %v1512
      %1514 = vrot.lane.b32.xlu0 %v1375, 88
      %v1515 = vpop.permute.xlu0 %1514
      %v1518 = vsel %vm867, %v1513, 0
      %1520 = vmatpush.msra.mxu0 0.0
      %1521 = vmatpush.msra.mxu0 0.0
      %1522 = vmatpush.msra.mxu0 0.0
      %1523 = vmatpush.msra.mxu0 0.0
      %1524 = vmatpush.msra.mxu0 0.0
      %1525 = vmatpush.msra.mxu0 0.0
      %1526 = vmatpush.msra.mxu0 0.0
      %1527 = vmatpush.msra.mxu0 0.0
      %1528 = vmatpush.msra.mxu0 0.0
      %1529 = vmatpush.msra.mxu0 0.0
      %1530 = vmatpush.msra.mxu0 0.0
      %1531 = vmatpush.msra.mxu0 0.0
      %1532 = vmatpush.msra.mxu0 0.0
      %1533 = vmatpush.msra.mxu0 0.0
      %1534 = vmatpush.msra.mxu0 0.0
      %1535 = vmatpush.msra.mxu0 %v1515
      %1536 = vmatmul.f32.gmra.mxu0 %v1518
      %v1537 = vpop.f32.mrf.mxu0
      %v1538 = vadd.f32 0.0, %v1537
      %1539 = vdwg.mxu0
      %v1541 = vsel %vm867, %v1538, 0
      %1543 = vmatpush.msra.mxu0 0.0
      %1544 = vmatpush.msra.mxu0 0.0
      %1545 = vmatpush.msra.mxu0 0.0
      %1546 = vmatpush.msra.mxu0 0.0
      %1547 = vmatpush.msra.mxu0 0.0
      %1548 = vmatpush.msra.mxu0 0.0
      %1549 = vmatpush.msra.mxu0 0.0
      %1550 = vmatpush.msra.mxu0 0.0
      %1551 = vmatpush.msra.mxu0 0.0
      %1552 = vmatpush.msra.mxu0 0.0
      %1553 = vmatpush.msra.mxu0 0.0
      %1554 = vmatpush.msra.mxu0 0.0
      %1555 = vmatpush.msra.mxu0 0.0
      %1556 = vmatpush.msra.mxu0 0.0
      %1557 = vmatpush.msra.mxu0 0.0
      %1558 = vmatpush.msra.mxu0 %v1378
      %1559 = vmatmul.f32.gmra.mxu0 %v1541
      %v1560 = vpop.f32.mrf.mxu0
      %v1561 = vadd.f32 0.0, %v1560
      %1562 = vdwg.mxu0
      %v1564 = vsel %vm867, %v1458, 0
      %1566 = vmatpush.msra.mxu0 0.0
      %1567 = vmatpush.msra.mxu0 0.0
      %1568 = vmatpush.msra.mxu0 0.0
      %1569 = vmatpush.msra.mxu0 0.0
      %1570 = vmatpush.msra.mxu0 0.0
      %1571 = vmatpush.msra.mxu0 0.0
      %1572 = vmatpush.msra.mxu0 0.0
      %1573 = vmatpush.msra.mxu0 0.0
      %1574 = vmatpush.msra.mxu0 0.0
      %1575 = vmatpush.msra.mxu0 0.0
      %1576 = vmatpush.msra.mxu0 0.0
      %1577 = vmatpush.msra.mxu0 0.0
      %1578 = vmatpush.msra.mxu0 0.0
      %1579 = vmatpush.msra.mxu0 0.0
      %1580 = vmatpush.msra.mxu0 0.0
      %1581 = vmatpush.msra.mxu0 %v1377
      %1582 = vmatmul.f32.gmra.mxu0 %v1564
      %v1583 = vpop.f32.mrf.mxu0
      %v1584 = vadd.f32 %v1561, %v1583
      %1585 = vdwg.mxu0
      %1586 = vrot.lane.b32.xlu0 %v1344, 112
      %v1587 = vpop.permute.xlu0 %1586
      %1588 = vrot.lane.b32.xlu0 %v1375, 112
      %v1589 = vpop.permute.xlu0 %1588
      %v1590 = vsel %vm867, %v1587, 0
      %v1592 = vsel %vm867, %v1589, 0
      %1594 = vmatpush.xpose.msra.mxu0 0.0
      %1595 = vmatpush.xpose.msra.mxu0 0.0
      %1596 = vmatpush.xpose.msra.mxu0 0.0
      %1597 = vmatpush.xpose.msra.mxu0 0.0
      %1598 = vmatpush.xpose.msra.mxu0 0.0
      %1599 = vmatpush.xpose.msra.mxu0 0.0
      %1600 = vmatpush.xpose.msra.mxu0 0.0
      %1601 = vmatpush.xpose.msra.mxu0 0.0
      %1602 = vmatpush.xpose.msra.mxu0 0.0
      %1603 = vmatpush.xpose.msra.mxu0 0.0
      %1604 = vmatpush.xpose.msra.mxu0 0.0
      %1605 = vmatpush.xpose.msra.mxu0 0.0
      %1606 = vmatpush.xpose.msra.mxu0 0.0
      %1607 = vmatpush.xpose.msra.mxu0 0.0
      %1608 = vmatpush.xpose.msra.mxu0 0.0
      %1609 = vmatpush.xpose.msra.mxu0 %v1592
      %1610 = vmatmul.f32.gmra.mxu0 %v1590
      %v1611 = vpop.f32.mrf.mxu0
      %v1612 = vadd.f32 0.0, %v1611
      %1613 = vdwg.mxu0
      %v1614 = vmul.f32 %v1612, 0.35355338
      %v1615 = vadd.f32 %v1614, %v787
      %v1616 = vsel %vm867, %v1615, -inf
      %1617 = vmax.xlane.f32.xlu0 %v1616
      %v1618 = vpop.xlane.xlu0 %1617
      %v1619 = vsub.f32 %v1615, %v1618
      %v1620 = vmul.f32 %v1619, 1.442695
      %v1621 = vpow.pop %v1620
      %v1622 = vsel %vm867, %v1621, 0.0
      %1623 = vadd.xlane.f32.xlu0 %v1622
      %v1624 = vpop.xlane.xlu0 %1623
      %v1625 = vrcp.pop %v1624
      %v1626 = vmul.f32 %v1624, %v1625
      %v1627 = vsub.f32 1.0, %v1626
      %v1628 = vmul.f32 %v1625, %v1627
      %v1629 = vadd.f32 %v1625, %v1628
      %vm1630 = vweird.f32 %v1624
      %vm1631 = vweird.f32 %v1625
      %vm1632 = vmor %vm1630, %vm1631
      %v1633 = vsel %vm1632, %v1625, %v1629
      %v1634 = vand.u32 2147483647, %v1624
      %vm1635 = vcmp.eq.f32.partialorder %v1634, 8.507059e+37
      %v1636 = vand.u32 %v1624, 2147483648
      %v1637 = vor.u32 1.1754944e-38, %v1636
      %v1638 = vsel %vm1635, %v1637, %v1633
      %v1639 = vmul.f32 %v1621, %v1638
      %1640 = vrot.lane.b32.xlu0 %v1375, 80
      %v1641 = vpop.permute.xlu0 %1640
      %v1644 = vsel %vm867, %v1639, 0
      %1646 = vmatpush.msra.mxu0 0.0
      %1647 = vmatpush.msra.mxu0 0.0
      %1648 = vmatpush.msra.mxu0 0.0
      %1649 = vmatpush.msra.mxu0 0.0
      %1650 = vmatpush.msra.mxu0 0.0
      %1651 = vmatpush.msra.mxu0 0.0
      %1652 = vmatpush.msra.mxu0 0.0
      %1653 = vmatpush.msra.mxu0 0.0
      %1654 = vmatpush.msra.mxu0 0.0
      %1655 = vmatpush.msra.mxu0 0.0
      %1656 = vmatpush.msra.mxu0 0.0
      %1657 = vmatpush.msra.mxu0 0.0
      %1658 = vmatpush.msra.mxu0 0.0
      %1659 = vmatpush.msra.mxu0 0.0
      %1660 = vmatpush.msra.mxu0 0.0
      %1661 = vmatpush.msra.mxu0 %v1641
      %1662 = vmatmul.f32.gmra.mxu0 %v1644
      %v1663 = vpop.f32.mrf.mxu0
      %v1664 = vadd.f32 0.0, %v1663
      %1665 = vdwg.mxu0
      %v1667 = vsel %vm867, %v1664, 0
      %1669 = vmatpush.msra.mxu0 0.0
      %1670 = vmatpush.msra.mxu0 0.0
      %1671 = vmatpush.msra.mxu0 0.0
      %1672 = vmatpush.msra.mxu0 0.0
      %1673 = vmatpush.msra.mxu0 0.0
      %1674 = vmatpush.msra.mxu0 0.0
      %1675 = vmatpush.msra.mxu0 0.0
      %1676 = vmatpush.msra.mxu0 0.0
      %1677 = vmatpush.msra.mxu0 0.0
      %1678 = vmatpush.msra.mxu0 0.0
      %1679 = vmatpush.msra.mxu0 0.0
      %1680 = vmatpush.msra.mxu0 0.0
      %1681 = vmatpush.msra.mxu0 0.0
      %1682 = vmatpush.msra.mxu0 0.0
      %1683 = vmatpush.msra.mxu0 0.0
      %1684 = vmatpush.msra.mxu0 %v1379
      %1685 = vmatmul.f32.gmra.mxu0 %v1667
      %v1686 = vpop.f32.mrf.mxu0
      %v1687 = vadd.f32 0.0, %v1686
      %1688 = vdwg.mxu0
      %v1689 = vadd.f32 %v1584, %v1687
      %1690 = vrot.lane.b32.xlu0 %v1344, 104
      %v1691 = vpop.permute.xlu0 %1690
      %1692 = vrot.lane.b32.xlu0 %v1375, 104
      %v1693 = vpop.permute.xlu0 %1692
      %v1694 = vsel %vm867, %v1691, 0
      %v1696 = vsel %vm867, %v1693, 0
      %1698 = vmatpush.xpose.msra.mxu0 0.0
      %1699 = vmatpush.xpose.msra.mxu0 0.0
      %1700 = vmatpush.xpose.msra.mxu0 0.0
      %1701 = vmatpush.xpose.msra.mxu0 0.0
      %1702 = vmatpush.xpose.msra.mxu0 0.0
      %1703 = vmatpush.xpose.msra.mxu0 0.0
      %1704 = vmatpush.xpose.msra.mxu0 0.0
      %1705 = vmatpush.xpose.msra.mxu0 0.0
      %1706 = vmatpush.xpose.msra.mxu0 0.0
      %1707 = vmatpush.xpose.msra.mxu0 0.0
      %1708 = vmatpush.xpose.msra.mxu0 0.0
      %1709 = vmatpush.xpose.msra.mxu0 0.0
      %1710 = vmatpush.xpose.msra.mxu0 0.0
      %1711 = vmatpush.xpose.msra.mxu0 0.0
      %1712 = vmatpush.xpose.msra.mxu0 0.0
      %1713 = vmatpush.xpose.msra.mxu0 %v1696
      %1714 = vmatmul.f32.gmra.mxu0 %v1694
      %v1715 = vpop.f32.mrf.mxu0
      %v1716 = vadd.f32 0.0, %v1715
      %1717 = vdwg.mxu0
      %v1718 = vmul.f32 %v1716, 0.35355338
      %v1719 = vadd.f32 %v1718, %v787
      %v1720 = vsel %vm867, %v1719, -inf
      %1721 = vmax.xlane.f32.xlu0 %v1720
      %v1722 = vpop.xlane.xlu0 %1721
      %v1723 = vsub.f32 %v1719, %v1722
      %v1724 = vmul.f32 %v1723, 1.442695
      %v1725 = vpow.pop %v1724
      %v1726 = vsel %vm867, %v1725, 0.0
      %1727 = vadd.xlane.f32.xlu0 %v1726
      %v1728 = vpop.xlane.xlu0 %1727
      %v1729 = vrcp.pop %v1728
      %v1730 = vmul.f32 %v1728, %v1729
      %v1731 = vsub.f32 1.0, %v1730
      %v1732 = vmul.f32 %v1729, %v1731
      %v1733 = vadd.f32 %v1729, %v1732
      %vm1734 = vweird.f32 %v1728
      %vm1735 = vweird.f32 %v1729
      %vm1736 = vmor %vm1734, %vm1735
      %v1737 = vsel %vm1736, %v1729, %v1733
      %v1738 = vand.u32 2147483647, %v1728
      %vm1739 = vcmp.eq.f32.partialorder %v1738, 8.507059e+37
      %v1740 = vand.u32 %v1728, 2147483648
      %v1741 = vor.u32 1.1754944e-38, %v1740
      %v1742 = vsel %vm1739, %v1741, %v1737
      %v1743 = vmul.f32 %v1725, %v1742
      %1744 = vrot.lane.b32.xlu0 %v1375, 72
      %v1745 = vpop.permute.xlu0 %1744
      %v1748 = vsel %vm867, %v1743, 0
      %1750 = vmatpush.msra.mxu0 0.0
      %1751 = vmatpush.msra.mxu0 0.0
      %1752 = vmatpush.msra.mxu0 0.0
      %1753 = vmatpush.msra.mxu0 0.0
      %1754 = vmatpush.msra.mxu0 0.0
      %1755 = vmatpush.msra.mxu0 0.0
      %1756 = vmatpush.msra.mxu0 0.0
      %1757 = vmatpush.msra.mxu0 0.0
      %1758 = vmatpush.msra.mxu0 0.0
      %1759 = vmatpush.msra.mxu0 0.0
      %1760 = vmatpush.msra.mxu0 0.0
      %1761 = vmatpush.msra.mxu0 0.0
      %1762 = vmatpush.msra.mxu0 0.0
      %1763 = vmatpush.msra.mxu0 0.0
      %1764 = vmatpush.msra.mxu0 0.0
      %1765 = vmatpush.msra.mxu0 %v1745
      %1766 = vmatmul.f32.gmra.mxu0 %v1748
      %v1767 = vpop.f32.mrf.mxu0
      %v1768 = vadd.f32 0.0, %v1767
      %1769 = vdwg.mxu0
      %v1771 = vsel %vm867, %v1768, 0
      %1773 = vmatpush.msra.mxu0 0.0
      %1774 = vmatpush.msra.mxu0 0.0
      %1775 = vmatpush.msra.mxu0 0.0
      %1776 = vmatpush.msra.mxu0 0.0
      %1777 = vmatpush.msra.mxu0 0.0
      %1778 = vmatpush.msra.mxu0 0.0
      %1779 = vmatpush.msra.mxu0 0.0
      %1780 = vmatpush.msra.mxu0 0.0
      %1781 = vmatpush.msra.mxu0 0.0
      %1782 = vmatpush.msra.mxu0 0.0
      %1783 = vmatpush.msra.mxu0 0.0
      %1784 = vmatpush.msra.mxu0 0.0
      %1785 = vmatpush.msra.mxu0 0.0
      %1786 = vmatpush.msra.mxu0 0.0
      %1787 = vmatpush.msra.mxu0 0.0
      %1788 = vmatpush.msra.mxu0 %v1380
      %1789 = vmatmul.f32.gmra.mxu0 %v1771
      %v1790 = vpop.f32.mrf.mxu0
      %v1791 = vadd.f32 0.0, %v1790
      %1792 = vdwg.mxu0
      %v1793 = vadd.f32 %v1689, %v1791
      %v1795 = vperm.slane %v1381, 0
      %v1797 = vadd.f32 %v1793, %v1795
      %v1798 = vadd.f32 %v1282, %v1797
      %v1799 = vld [vmem:[%s18] sm:$0x1]
      %v1800 = vld [vmem:[%s19] sm:$0x1]
      %v1801 = vsel %vm790, %v1798, 0.0
      %1802 = vadd.xlane.f32.xlu0 %v1801
      %v1803 = vpop.xlane.xlu0 %1802
      %v1804 = vmul.f32 %v1803, %v800
      %v1805 = vsub.f32 %v1798, %v1804
      %v1806 = vmul.f32 %v1805, %v1805
      %v1807 = vsel %vm790, %v1806, 0.0
      %1808 = vadd.xlane.f32.xlu0 %v1807
      %v1809 = vpop.xlane.xlu0 %1808
      %v1810 = vmul.f32 %v1809, %v800
      %v1811 = vadd.f32 %v1810, 1e-06
      %v1812 = vrsqrt.pop %v1811
      %v1813 = vmul.f32 %v1812, %v1811
      %v1814 = vmul.f32 %v1813, %v1812
      %v1815 = vmul.f32 0.5, %v1814
      %v1816 = vsub.f32 1.5, %v1815
      %v1817 = vmul.f32 %v1812, %v1816
      %vm1818 = vweird.f32 %v1811
      %vm1819 = vweird.f32 %v1812
      %vm1820 = vmor %vm1818, %vm1819
      %v1821 = vsel %vm1820, %v1812, %v1817
      %v1822 = vmul.f32 %v1805, %v1821
      %v1824 = vperm.slane %v1799, 0
      %v1826 = vmul.f32 %v1822, %v1824
      %v1828 = vperm.slane %v1800, 0
      %v1830 = vadd.f32 %v1826, %v1828
      %v1831 = vld [vmem:[%s20] sm:$0xff]
      %v1832 = vld [vmem:[%s20 + $0x8] sm:$0xff]
      %v1833 = vld [vmem:[%s20 + $0x10] sm:$0xff]
      %v1834 = vld [vmem:[%s20 + $0x18] sm:$0xff]
      %v1835 = vld [vmem:[%s21] sm:$0x1]
      %v1837 = vperm.slane %v1835, 0
      %v1840 = vsel %vm790, %v1830, 0
      %1842 = vmatpush.msra.mxu0 0.0
      %1843 = vmatpush.msra.mxu0 0.0
      %1844 = vmatpush.msra.mxu0 0.0
      %1845 = vmatpush.msra.mxu0 0.0
      %1846 = vmatpush.msra.mxu0 0.0
      %1847 = vmatpush.msra.mxu0 0.0
      %1848 = vmatpush.msra.mxu0 0.0
      %1849 = vmatpush.msra.mxu0 0.0
      %1850 = vmatpush.msra.mxu0 0.0
      %1851 = vmatpush.msra.mxu0 0.0
      %1852 = vmatpush.msra.mxu0 0.0
      %1853 = vmatpush.msra.mxu0 0.0
      %1854 = vmatpush.msra.mxu0 %v1834
      %1855 = vmatpush.msra.mxu0 %v1833
      %1856 = vmatpush.msra.mxu0 %v1832
      %1857 = vmatpush.msra.mxu0 %v1831
      %1858 = vmatmul.f32.gmra.mxu0 %v1840
      %v1859 = vpop.f32.mrf.mxu0
      %v1860 = vadd.f32 %v1837, %v1859
      %1861 = vdwg.mxu0
      %v1862 = vmul.f32 %v1860, %v1860
      %v1863 = vmul.f32 %v1860, %v1862
      %v1864 = vmul.f32 %v1863, 0.044715
      %v1865 = vadd.f32 %v1860, %v1864
      %v1866 = vmul.f32 %v1865, 0.7978846
      %v1867 = vtanh.pop %v1866
      %v1868 = vadd.f32 %v1867, 1.0
      %v1869 = vmul.f32 %v1868, 0.5
      %v1870 = vmul.f32 %v1860, %v1869
      %v1871 = vld [vmem:[%s22] sm:$0xff]
      %v1872 = vld [vmem:[%s22 + $0x8] sm:$0xff]
      %v1873 = vld [vmem:[%s22 + $0x10] sm:$0xff]
      %v1874 = vld [vmem:[%s22 + $0x18] sm:$0xff]
      %v1875 = vld [vmem:[%s22 + $0x20] sm:$0xff]
      %v1876 = vld [vmem:[%s22 + $0x28] sm:$0xff]
      %v1877 = vld [vmem:[%s22 + $0x30] sm:$0xff]
      %v1878 = vld [vmem:[%s22 + $0x38] sm:$0xff]
      %v1879 = vld [vmem:[%s22 + $0x40] sm:$0xff]
      %v1880 = vld [vmem:[%s22 + $0x48] sm:$0xff]
      %v1881 = vld [vmem:[%s22 + $0x50] sm:$0xff]
      %v1882 = vld [vmem:[%s22 + $0x58] sm:$0xff]
      %v1883 = vld [vmem:[%s22 + $0x60] sm:$0xff]
      %v1884 = vld [vmem:[%s22 + $0x68] sm:$0xff]
      %v1885 = vld [vmem:[%s22 + $0x70] sm:$0xff]
      %v1886 = vld [vmem:[%s22 + $0x78] sm:$0xff]
      %v1887 = vld [vmem:[%s23] sm:$0x1]
      %v1889 = vperm.slane %v1887, 0
      %1891 = vmatpush.msra.mxu0 %v1886
      %1892 = vmatpush.msra.mxu0 %v1885
      %1893 = vmatpush.msra.mxu0 %v1884
      %1894 = vmatpush.msra.mxu0 %v1883
      %1895 = vmatpush.msra.mxu0 %v1882
      %1896 = vmatpush.msra.mxu0 %v1881
      %1897 = vmatpush.msra.mxu0 %v1880
      %1898 = vmatpush.msra.mxu0 %v1879
      %1899 = vmatpush.msra.mxu0 %v1878
      %1900 = vmatpush.msra.mxu0 %v1877
      %1901 = vmatpush.msra.mxu0 %v1876
      %1902 = vmatpush.msra.mxu0 %v1875
      %1903 = vmatpush.msra.mxu0 %v1874
      %1904 = vmatpush.msra.mxu0 %v1873
      %1905 = vmatpush.msra.mxu0 %v1872
      %1906 = vmatpush.msra.mxu0 %v1871
      %1907 = vmatmul.f32.gmra.mxu0 %v1870
      %v1908 = vpop.f32.mrf.mxu0
      %v1909 = vadd.f32 %v1889, %v1908
      %1910 = vdwg.mxu0
      %v1911 = vadd.f32 %v1798, %v1909
      %1912 = vst.msk [vmem:[%s783] sm:$0xff] %vm790, %v1911
      %p1913 = scmp.lt.s32.totalorder %s35, 1
      %s1914 = scalar_select %p1913, %s35, 1
      %s1915 = smul.addr %s1914, 8
      %s1916 = scalar_lea.vmem %s24, %s1915
      // Predicated region
      $region117: #{bert_translation_forward.11} parent=115 // pred_check
        %p1917 = pneg %p577
      $region118: #{bert_translation_forward.11} parent=115 // pred_check_branch
        %1919 = sbr.rel (%p1917) target = $region120
      $region119: #{bert_translation_forward.11} parent=115 // pred_region
        _
      $region120: #{bert_translation_forward.11} parent=115 // pred_fallthru
        _
    $region116: #{bert_translation_forward.11} parent=5 // pred_fallthru
      _
    %p1920 = scmp.le.s32.totalorder 2, %s30
    // Predicated region
    $region121: #{bert_translation_forward.11} parent=5 // pred_check
      %p1921 = pneg %p1920
    $region122: #{bert_translation_forward.11} parent=5 // pred_check_branch
      %1923 = sbr.rel (%p1921) target = $region124
    $region123: #{bert_translation_forward.11} parent=5 // pred_region
      %s1924 = ssub.s32 %s30, 2
      // Predicated region
      $region125: #{bert_translation_forward.11} parent=123 // pred_check
        %p1925 = pneg %p583
      $region126: #{bert_translation_forward.11} parent=123 // pred_check_branch
        %1927 = sbr.rel (%p1925) target = $region128
      $region127: #{bert_translation_forward.11} parent=123 // pred_region
        %p1928 = scmp.lt.s32.totalorder %s36, 1
        %s1929 = scalar_select %p1928, %s36, 1
        %s1930 = smul.addr %s1929, 8
        %s1931 = scalar_lea.vmem %s24, %s1930
      $region128: #{bert_translation_forward.11} parent=123 // pred_fallthru
        _
    $region124: #{bert_translation_forward.11} parent=5 // pred_fallthru
      _
  $region6: #{bert_translation_forward.11} parent=0 // loop_footer
    %s34 = sadd.s32 1, %s30
  $region7: #{bert_translation_forward.11} parent=0 // loop_footer_branch
    %29 = sbr.rel target = $region3
  $region8: #{bert_translation_forward.11} parent=0 // loop_exit
    _

// kernel: bert_translation_forward.12
$region0: #{bert_translation_forward.12}
  #allocation0 [shape = 'u32[]', space=smem, size = 0x4, offset = 0x4, fixed_abs, tag = 'smem constant byte address 0x4 - core index']
  #allocation1 [shape = 'u32[72,128]{1,0:T(1,128)}', space=vmem, size = 0x9000, scoped, tag = 'internal scratch']
  %s0 = inlined_call_operand.vmem [shape: f32[2,8,32], index: 0, kind: input, shape index: {}]
  %s1 = inlined_call_operand.vmem [shape: f32[2,8,32], index: 1, kind: input, shape index: {}]
  %s2 = inlined_call_operand.vmem [shape: f32[2,8,8], index: 2, kind: input, shape index: {}]
  %s3 = inlined_call_operand.vmem [shape: f32[2,8,8], index: 3, kind: input, shape index: {}]
  %s4 = inlined_call_operand.vmem [shape: f32[1,32], index: 4, kind: input, shape index: {}]
  %s5 = inlined_call_operand.vmem [shape: f32[1,32], index: 5, kind: input, shape index: {}]
  %s6 = inlined_call_operand.vmem [shape: f32[32,96], index: 6, kind: input, shape index: {}]
  %s7 = inlined_call_operand.vmem [shape: f32[1,96], index: 7, kind: input, shape index: {}]
  %s8 = inlined_call_operand.vmem [shape: f32[32,32], index: 8, kind: input, shape index: {}]
  %s9 = inlined_call_operand.vmem [shape: f32[1,32], index: 9, kind: input, shape index: {}]
  %s10 = inlined_call_operand.vmem [shape: f32[1,32], index: 10, kind: input, shape index: {}]
  %s11 = inlined_call_operand.vmem [shape: f32[1,32], index: 11, kind: input, shape index: {}]
  %s12 = inlined_call_operand.vmem [shape: f32[32,32], index: 12, kind: input, shape index: {}]
  %s13 = inlined_call_operand.vmem [shape: f32[1,32], index: 13, kind: input, shape index: {}]
  %s14 = inlined_call_operand.vmem [shape: f32[32,64], index: 14, kind: input, shape index: {}]
  %s15 = inlined_call_operand.vmem [shape: f32[1,64], index: 15, kind: input, shape index: {}]
  %s16 = inlined_call_operand.vmem [shape: f32[32,32], index: 16, kind: input, shape index: {}]
  %s17 = inlined_call_operand.vmem [shape: f32[1,32], index: 17, kind: input, shape index: {}]
  %s18 = inlined_call_operand.vmem [shape: f32[1,32], index: 18, kind: input, shape index: {}]
  %s19 = inlined_call_operand.vmem [shape: f32[1,32], index: 19, kind: input, shape index: {}]
  %s20 = inlined_call_operand.vmem [shape: f32[32,128], index: 20, kind: input, shape index: {}]
  %s21 = inlined_call_operand.hbm [shape: f32[1,128], index: 21, kind: input, shape index: {}]
  %s22 = inlined_call_operand.vmem [shape: f32[128,32], index: 22, kind: input, shape index: {}]
  %s23 = inlined_call_operand.hbm [shape: f32[1,32], index: 23, kind: input, shape index: {}]
  %s24 = inlined_call_operand.vmem [shape: f32[2,8,32], index: 24, kind: output, shape index: {}]
  %s25 = sld [smem:[#allocation0]]
  $region137: #{bert_translation_forward.12} parent=0
    _
  %s27 = ssub.s32 1, %s25
  %s28 = scalar_select 0, %s27, %s25
  $region1: #{bert_translation_forward.12} parent=0
    #allocation2 [shape = 'u8[512]{0}', space=vmem, size = 0x400, scoped, tag = 'input window, operand 21, single buffered']
    #allocation3 [shape = 's32[2]{0}', space=sflag, size = 0x8, scoped, tag = 'scoped memory for bert_translation_forward.12']
    #allocation4 [shape = 'u8[512]{0}', space=vmem, size = 0x400, scoped, tag = 'input window, operand 23, single buffered']
    #allocation5 [shape = 's32[1]{0}', space=sflag, size = 0x4, scoped, tag = 'scoped memory for bert_translation_forward.12']
    %29 = vsyncpa [#allocation3], 0
    %30 = vsyncpa [#allocation5], 0
    loop: start=0, step=1, limit=4
    $region2: #{bert_translation_forward.12} parent=1 // loop_pre_header
      _
    $region3: #{bert_translation_forward.12} parent=1 // loop_header
      %s32 = sphi 0, %s36
      %p33 = scmp.ge.s32.totalorder %s32, 4
      %s42 = sphi 0, %s44
      %s45 = sphi 0, %s42
      %s46 = sphi 0, %s45
      %s62 = sphi 0, %s46
      %s68 = sphi 0, %s70
      %s71 = sphi 0, %s68
      %s72 = sphi 0, %s71
      %s88 = sphi 0, %s72
      %s94 = sphi 0, %s96
      %s97 = sphi 0, %s94
      %s98 = sphi 0, %s97
      %s114 = sphi 0, %s98
      %s120 = sphi 0, %s122
      %s123 = sphi 0, %s120
      %s124 = sphi 0, %s123
      %s140 = sphi 0, %s124
      %s144 = sphi 0, %s144
      %s146 = sphi 0, %s144
      %s147 = sphi 0, %s146
      %s161 = sphi 0, %s147
      %s165 = sphi 0, %s165
      %s167 = sphi 0, %s165
      %s168 = sphi 0, %s167
      %s182 = sphi 0, %s168
      %s186 = sphi 0, %s186
      %s188 = sphi 0, %s186
      %s189 = sphi 0, %s188
      %s203 = sphi 0, %s189
      %s207 = sphi 0, %s207
      %s209 = sphi 0, %s207
      %s210 = sphi 0, %s209
      %s224 = sphi 0, %s210
      %s228 = sphi 0, %s228
      %s230 = sphi 0, %s228
      %s231 = sphi 0, %s230
      %s245 = sphi 0, %s231
      %s249 = sphi 0, %s249
      %s251 = sphi 0, %s249
      %s252 = sphi 0, %s251
      %s266 = sphi 0, %s252
      %s270 = sphi 0, %s270
      %s272 = sphi 0, %s270
      %s273 = sphi 0, %s272
      %s287 = sphi 0, %s273
      %s291 = sphi 0, %s291
      %s293 = sphi 0, %s291
      %s294 = sphi 0, %s293
      %s308 = sphi 0, %s294
      %s312 = sphi 0, %s312
      %s314 = sphi 0, %s312
      %s315 = sphi 0, %s314
      %s329 = sphi 0, %s315
      %s333 = sphi 0, %s333
      %s335 = sphi 0, %s333
      %s336 = sphi 0, %s335
      %s350 = sphi 0, %s336
      %s354 = sphi 0, %s354
      %s356 = sphi 0, %s354
      %s357 = sphi 0, %s356
      %s371 = sphi 0, %s357
      %s375 = sphi 0, %s375
      %s377 = sphi 0, %s375
      %s378 = sphi 0, %s377
      %s392 = sphi 0, %s378
      %s396 = sphi 0, %s396
      %s398 = sphi 0, %s396
      %s399 = sphi 0, %s398
      %s413 = sphi 0, %s399
      %s417 = sphi 0, %s417
      %s419 = sphi 0, %s417
      %s420 = sphi 0, %s419
      %s434 = sphi 0, %s420
      %s438 = sphi 0, %s438
      %s440 = sphi 0, %s438
      %s441 = sphi 0, %s440
      %s455 = sphi 0, %s441
      %s459 = sphi 0, %s459
      %s461 = sphi 0, %s459
      %s462 = sphi 0, %s461
      %s476 = sphi 0, %s462
      %s480 = sphi 0, %s480
      %s482 = sphi 0, %s480
      %s483 = sphi 0, %s482
      %s497 = sphi 0, %s483
      %s501 = sphi 0, %s501
      %s503 = sphi 0, %s501
      %s504 = sphi 0, %s503
      %s518 = sphi 0, %s504
      %s522 = sphi 0, %s522
      %s524 = sphi 0, %s522
      %s525 = sphi 0, %s524
      %s539 = sphi 0, %s525
      %s543 = sphi 0, %s543
      %s545 = sphi 0, %s543
      %s546 = sphi 0, %s545
      %s560 = sphi 0, %s546
      %s566 = sphi 0, %s568
      %s569 = sphi 0, %s566
      %s570 = sphi 0, %s569
      %s586 = sphi 0, %s570
    $region4: #{bert_translation_forward.12} parent=1 // loop_header_branch
      %35 = sbr.rel (%p33) target = $region8
    $region5: #{bert_translation_forward.12} parent=1 // loop_body
      %s37 = ssub.s32 %s32, 1
      %s38 = ssub.s32 %s32, 2
      %s39 = sadd.s32 %s32, 1
      %s40 = ssub.s32 %s32, %s39
      %p41 = scmp.eq.s32.totalorder %s40, 0
      %s43 = sadd.s32 %s42, 1
      %s44 = scalar_select %p41, %s42, %s43
      %p47 = pneg %p41
      %p48 = scmp.eq.s32.totalorder %s32, 1
      %p49 = por %p47, %p48
      %p50 = scmp.ne.s32.totalorder %s42, %s45
      %p51 = scmp.eq.s32.totalorder %s32, 0
      %p52 = por %p50, %p51
      %p53 = scmp.ne.s32.totalorder %s42, %s45
      %p54 = scmp.eq.s32.totalorder %s37, 1
      %p55 = por %p53, %p54
      %p56 = scmp.ne.s32.totalorder %s45, %s46
      %p57 = scmp.eq.s32.totalorder %s37, 0
      %p58 = por %p56, %p57
      %p59 = scmp.ne.s32.totalorder %s45, %s46
      %p60 = scmp.eq.s32.totalorder %s38, 1
      %p61 = por %p59, %p60
      %p63 = scmp.ne.s32.totalorder %s46, %s62
      %p64 = scmp.eq.s32.totalorder %s38, 0
      %p65 = por %p63, %p64
      %s66 = ssub.s32 %s32, %s39
      %p67 = scmp.eq.s32.totalorder %s66, 0
      %s69 = sadd.s32 %s68, 1
      %s70 = scalar_select %p67, %s68, %s69
      %p73 = pneg %p67
      %p74 = scmp.eq.s32.totalorder %s32, 1
      %p75 = por %p73, %p74
      %p76 = scmp.ne.s32.totalorder %s68, %s71
      %p77 = scmp.eq.s32.totalorder %s32, 0
      %p78 = por %p76, %p77
      %p79 = scmp.ne.s32.totalorder %s68, %s71
      %p80 = scmp.eq.s32.totalorder %s37, 1
      %p81 = por %p79, %p80
      %p82 = scmp.ne.s32.totalorder %s71, %s72
      %p83 = scmp.eq.s32.totalorder %s37, 0
      %p84 = por %p82, %p83
      %p85 = scmp.ne.s32.totalorder %s71, %s72
      %p86 = scmp.eq.s32.totalorder %s38, 1
      %p87 = por %p85, %p86
      %p89 = scmp.ne.s32.totalorder %s72, %s88
      %p90 = scmp.eq.s32.totalorder %s38, 0
      %p91 = por %p89, %p90
      %s92 = ssub.s32 %s32, %s39
      %p93 = scmp.eq.s32.totalorder %s92, 0
      %s95 = sadd.s32 %s94, 1
      %s96 = scalar_select %p93, %s94, %s95
      %p99 = pneg %p93
      %p100 = scmp.eq.s32.totalorder %s32, 1
      %p101 = por %p99, %p100
      %p102 = scmp.ne.s32.totalorder %s94, %s97
      %p103 = scmp.eq.s32.totalorder %s32, 0
      %p104 = por %p102, %p103
      %p105 = scmp.ne.s32.totalorder %s94, %s97
      %p106 = scmp.eq.s32.totalorder %s37, 1
      %p107 = por %p105, %p106
      %p108 = scmp.ne.s32.totalorder %s97, %s98
      %p109 = scmp.eq.s32.totalorder %s37, 0
      %p110 = por %p108, %p109
      %p111 = scmp.ne.s32.totalorder %s97, %s98
      %p112 = scmp.eq.s32.totalorder %s38, 1
      %p113 = por %p111, %p112
      %p115 = scmp.ne.s32.totalorder %s98, %s114
      %p116 = scmp.eq.s32.totalorder %s38, 0
      %p117 = por %p115, %p116
      %s118 = ssub.s32 %s32, %s39
      %p119 = scmp.eq.s32.totalorder %s118, 0
      %s121 = sadd.s32 %s120, 1
      %s122 = scalar_select %p119, %s120, %s121
      %p125 = pneg %p119
      %p126 = scmp.eq.s32.totalorder %s32, 1
      %p127 = por %p125, %p126
      %p128 = scmp.ne.s32.totalorder %s120, %s123
      %p129 = scmp.eq.s32.totalorder %s32, 0
      %p130 = por %p128, %p129
      %p131 = scmp.ne.s32.totalorder %s120, %s123
      %p132 = scmp.eq.s32.totalorder %s37, 1
      %p133 = por %p131, %p132
      %p134 = scmp.ne.s32.totalorder %s123, %s124
      %p135 = scmp.eq.s32.totalorder %s37, 0
      %p136 = por %p134, %p135
      %p137 = scmp.ne.s32.totalorder %s123, %s124
      %p138 = scmp.eq.s32.totalorder %s38, 1
      %p139 = por %p137, %p138
      %p141 = scmp.ne.s32.totalorder %s124, %s140
      %p142 = scmp.eq.s32.totalorder %s38, 0
      %p143 = por %p141, %p142
      %s145 = sadd.s32 %s144, 1
      %p148 = scmp.eq.s32.totalorder %s32, 1
      %p149 = scmp.ne.s32.totalorder %s144, %s146
      %p150 = scmp.eq.s32.totalorder %s32, 0
      %p151 = por %p149, %p150
      %p152 = scmp.ne.s32.totalorder %s144, %s146
      %p153 = scmp.eq.s32.totalorder %s37, 1
      %p154 = por %p152, %p153
      %p155 = scmp.ne.s32.totalorder %s146, %s147
      %p156 = scmp.eq.s32.totalorder %s37, 0
      %p157 = por %p155, %p156
      %p158 = scmp.ne.s32.totalorder %s146, %s147
      %p159 = scmp.eq.s32.totalorder %s38, 1
      %p160 = por %p158, %p159
      %p162 = scmp.ne.s32.totalorder %s147, %s161
      %p163 = scmp.eq.s32.totalorder %s38, 0
      %p164 = por %p162, %p163
      %s166 = sadd.s32 %s165, 1
      %p169 = scmp.eq.s32.totalorder %s32, 1
      %p170 = scmp.ne.s32.totalorder %s165, %s167
      %p171 = scmp.eq.s32.totalorder %s32, 0
      %p172 = por %p170, %p171
      %p173 = scmp.ne.s32.totalorder %s165, %s167
      %p174 = scmp.eq.s32.totalorder %s37, 1
      %p175 = por %p173, %p174
      %p176 = scmp.ne.s32.totalorder %s167, %s168
      %p177 = scmp.eq.s32.totalorder %s37, 0
      %p178 = por %p176, %p177
      %p179 = scmp.ne.s32.totalorder %s167, %s168
      %p180 = scmp.eq.s32.totalorder %s38, 1
      %p181 = por %p179, %p180
      %p183 = scmp.ne.s32.totalorder %s168, %s182
      %p184 = scmp.eq.s32.totalorder %s38, 0
      %p185 = por %p183, %p184
      %s187 = sadd.s32 %s186, 1
      %p190 = scmp.eq.s32.totalorder %s32, 1
      %p191 = scmp.ne.s32.totalorder %s186, %s188
      %p192 = scmp.eq.s32.totalorder %s32, 0
      %p193 = por %p191, %p192
      %p194 = scmp.ne.s32.totalorder %s186, %s188
      %p195 = scmp.eq.s32.totalorder %s37, 1
      %p196 = por %p194, %p195
      %p197 = scmp.ne.s32.totalorder %s188, %s189
      %p198 = scmp.eq.s32.totalorder %s37, 0
      %p199 = por %p197, %p198
      %p200 = scmp.ne.s32.totalorder %s188, %s189
      %p201 = scmp.eq.s32.totalorder %s38, 1
      %p202 = por %p200, %p201
      %p204 = scmp.ne.s32.totalorder %s189, %s203
      %p205 = scmp.eq.s32.totalorder %s38, 0
      %p206 = por %p204, %p205
      %s208 = sadd.s32 %s207, 1
      %p211 = scmp.eq.s32.totalorder %s32, 1
      %p212 = scmp.ne.s32.totalorder %s207, %s209
      %p213 = scmp.eq.s32.totalorder %s32, 0
      %p214 = por %p212, %p213
      %p215 = scmp.ne.s32.totalorder %s207, %s209
      %p216 = scmp.eq.s32.totalorder %s37, 1
      %p217 = por %p215, %p216
      %p218 = scmp.ne.s32.totalorder %s209, %s210
      %p219 = scmp.eq.s32.totalorder %s37, 0
      %p220 = por %p218, %p219
      %p221 = scmp.ne.s32.totalorder %s209, %s210
      %p222 = scmp.eq.s32.totalorder %s38, 1
      %p223 = por %p221, %p222
      %p225 = scmp.ne.s32.totalorder %s210, %s224
      %p226 = scmp.eq.s32.totalorder %s38, 0
      %p227 = por %p225, %p226
      %s229 = sadd.s32 %s228, 1
      %p232 = scmp.eq.s32.totalorder %s32, 1
      %p233 = scmp.ne.s32.totalorder %s228, %s230
      %p234 = scmp.eq.s32.totalorder %s32, 0
      %p235 = por %p233, %p234
      %p236 = scmp.ne.s32.totalorder %s228, %s230
      %p237 = scmp.eq.s32.totalorder %s37, 1
      %p238 = por %p236, %p237
      %p239 = scmp.ne.s32.totalorder %s230, %s231
      %p240 = scmp.eq.s32.totalorder %s37, 0
      %p241 = por %p239, %p240
      %p242 = scmp.ne.s32.totalorder %s230, %s231
      %p243 = scmp.eq.s32.totalorder %s38, 1
      %p244 = por %p242, %p243
      %p246 = scmp.ne.s32.totalorder %s231, %s245
      %p247 = scmp.eq.s32.totalorder %s38, 0
      %p248 = por %p246, %p247
      %s250 = sadd.s32 %s249, 1
      %p253 = scmp.eq.s32.totalorder %s32, 1
      %p254 = scmp.ne.s32.totalorder %s249, %s251
      %p255 = scmp.eq.s32.totalorder %s32, 0
      %p256 = por %p254, %p255
      %p257 = scmp.ne.s32.totalorder %s249, %s251
      %p258 = scmp.eq.s32.totalorder %s37, 1
      %p259 = por %p257, %p258
      %p260 = scmp.ne.s32.totalorder %s251, %s252
      %p261 = scmp.eq.s32.totalorder %s37, 0
      %p262 = por %p260, %p261
      %p263 = scmp.ne.s32.totalorder %s251, %s252
      %p264 = scmp.eq.s32.totalorder %s38, 1
      %p265 = por %p263, %p264
      %p267 = scmp.ne.s32.totalorder %s252, %s266
      %p268 = scmp.eq.s32.totalorder %s38, 0
      %p269 = por %p267, %p268
      %s271 = sadd.s32 %s270, 1
      %p274 = scmp.eq.s32.totalorder %s32, 1
      %p275 = scmp.ne.s32.totalorder %s270, %s272
      %p276 = scmp.eq.s32.totalorder %s32, 0
      %p277 = por %p275, %p276
      %p278 = scmp.ne.s32.totalorder %s270, %s272
      %p279 = scmp.eq.s32.totalorder %s37, 1
      %p280 = por %p278, %p279
      %p281 = scmp.ne.s32.totalorder %s272, %s273
      %p282 = scmp.eq.s32.totalorder %s37, 0
      %p283 = por %p281, %p282
      %p284 = scmp.ne.s32.totalorder %s272, %s273
      %p285 = scmp.eq.s32.totalorder %s38, 1
      %p286 = por %p284, %p285
      %p288 = scmp.ne.s32.totalorder %s273, %s287
      %p289 = scmp.eq.s32.totalorder %s38, 0
      %p290 = por %p288, %p289
      %s292 = sadd.s32 %s291, 1
      %p295 = scmp.eq.s32.totalorder %s32, 1
      %p296 = scmp.ne.s32.totalorder %s291, %s293
      %p297 = scmp.eq.s32.totalorder %s32, 0
      %p298 = por %p296, %p297
      %p299 = scmp.ne.s32.totalorder %s291, %s293
      %p300 = scmp.eq.s32.totalorder %s37, 1
      %p301 = por %p299, %p300
      %p302 = scmp.ne.s32.totalorder %s293, %s294
      %p303 = scmp.eq.s32.totalorder %s37, 0
      %p304 = por %p302, %p303
      %p305 = scmp.ne.s32.totalorder %s293, %s294
      %p306 = scmp.eq.s32.totalorder %s38, 1
      %p307 = por %p305, %p306
      %p309 = scmp.ne.s32.totalorder %s294, %s308
      %p310 = scmp.eq.s32.totalorder %s38, 0
      %p311 = por %p309, %p310
      %s313 = sadd.s32 %s312, 1
      %p316 = scmp.eq.s32.totalorder %s32, 1
      %p317 = scmp.ne.s32.totalorder %s312, %s314
      %p318 = scmp.eq.s32.totalorder %s32, 0
      %p319 = por %p317, %p318
      %p320 = scmp.ne.s32.totalorder %s312, %s314
      %p321 = scmp.eq.s32.totalorder %s37, 1
      %p322 = por %p320, %p321
      %p323 = scmp.ne.s32.totalorder %s314, %s315
      %p324 = scmp.eq.s32.totalorder %s37, 0
      %p325 = por %p323, %p324
      %p326 = scmp.ne.s32.totalorder %s314, %s315
      %p327 = scmp.eq.s32.totalorder %s38, 1
      %p328 = por %p326, %p327
      %p330 = scmp.ne.s32.totalorder %s315, %s329
      %p331 = scmp.eq.s32.totalorder %s38, 0
      %p332 = por %p330, %p331
      %s334 = sadd.s32 %s333, 1
      %p337 = scmp.eq.s32.totalorder %s32, 1
      %p338 = scmp.ne.s32.totalorder %s333, %s335
      %p339 = scmp.eq.s32.totalorder %s32, 0
      %p340 = por %p338, %p339
      %p341 = scmp.ne.s32.totalorder %s333, %s335
      %p342 = scmp.eq.s32.totalorder %s37, 1
      %p343 = por %p341, %p342
      %p344 = scmp.ne.s32.totalorder %s335, %s336
      %p345 = scmp.eq.s32.totalorder %s37, 0
      %p346 = por %p344, %p345
      %p347 = scmp.ne.s32.totalorder %s335, %s336
      %p348 = scmp.eq.s32.totalorder %s38, 1
      %p349 = por %p347, %p348
      %p351 = scmp.ne.s32.totalorder %s336, %s350
      %p352 = scmp.eq.s32.totalorder %s38, 0
      %p353 = por %p351, %p352
      %s355 = sadd.s32 %s354, 1
      %p358 = scmp.eq.s32.totalorder %s32, 1
      %p359 = scmp.ne.s32.totalorder %s354, %s356
      %p360 = scmp.eq.s32.totalorder %s32, 0
      %p361 = por %p359, %p360
      %p362 = scmp.ne.s32.totalorder %s354, %s356
      %p363 = scmp.eq.s32.totalorder %s37, 1
      %p364 = por %p362, %p363
      %p365 = scmp.ne.s32.totalorder %s356, %s357
      %p366 = scmp.eq.s32.totalorder %s37, 0
      %p367 = por %p365, %p366
      %p368 = scmp.ne.s32.totalorder %s356, %s357
      %p369 = scmp.eq.s32.totalorder %s38, 1
      %p370 = por %p368, %p369
      %p372 = scmp.ne.s32.totalorder %s357, %s371
      %p373 = scmp.eq.s32.totalorder %s38, 0
      %p374 = por %p372, %p373
      %s376 = sadd.s32 %s375, 1
      %p379 = scmp.eq.s32.totalorder %s32, 1
      %p380 = scmp.ne.s32.totalorder %s375, %s377
      %p381 = scmp.eq.s32.totalorder %s32, 0
      %p382 = por %p380, %p381
      %p383 = scmp.ne.s32.totalorder %s375, %s377
      %p384 = scmp.eq.s32.totalorder %s37, 1
      %p385 = por %p383, %p384
      %p386 = scmp.ne.s32.totalorder %s377, %s378
      %p387 = scmp.eq.s32.totalorder %s37, 0
      %p388 = por %p386, %p387
      %p389 = scmp.ne.s32.totalorder %s377, %s378
      %p390 = scmp.eq.s32.totalorder %s38, 1
      %p391 = por %p389, %p390
      %p393 = scmp.ne.s32.totalorder %s378, %s392
      %p394 = scmp.eq.s32.totalorder %s38, 0
      %p395 = por %p393, %p394
      %s397 = sadd.s32 %s396, 1
      %p400 = scmp.eq.s32.totalorder %s32, 1
      %p401 = scmp.ne.s32.totalorder %s396, %s398
      %p402 = scmp.eq.s32.totalorder %s32, 0
      %p403 = por %p401, %p402
      %p404 = scmp.ne.s32.totalorder %s396, %s398
      %p405 = scmp.eq.s32.totalorder %s37, 1
      %p406 = por %p404, %p405
      %p407 = scmp.ne.s32.totalorder %s398, %s399
      %p408 = scmp.eq.s32.totalorder %s37, 0
      %p409 = por %p407, %p408
      %p410 = scmp.ne.s32.totalorder %s398, %s399
      %p411 = scmp.eq.s32.totalorder %s38, 1
      %p412 = por %p410, %p411
      %p414 = scmp.ne.s32.totalorder %s399, %s413
      %p415 = scmp.eq.s32.totalorder %s38, 0
      %p416 = por %p414, %p415
      %s418 = sadd.s32 %s417, 1
      %p421 = scmp.eq.s32.totalorder %s32, 1
      %p422 = scmp.ne.s32.totalorder %s417, %s419
      %p423 = scmp.eq.s32.totalorder %s32, 0
      %p424 = por %p422, %p423
      %p425 = scmp.ne.s32.totalorder %s417, %s419
      %p426 = scmp.eq.s32.totalorder %s37, 1
      %p427 = por %p425, %p426
      %p428 = scmp.ne.s32.totalorder %s419, %s420
      %p429 = scmp.eq.s32.totalorder %s37, 0
      %p430 = por %p428, %p429
      %p431 = scmp.ne.s32.totalorder %s419, %s420
      %p432 = scmp.eq.s32.totalorder %s38, 1
      %p433 = por %p431, %p432
      %p435 = scmp.ne.s32.totalorder %s420, %s434
      %p436 = scmp.eq.s32.totalorder %s38, 0
      %p437 = por %p435, %p436
      %s439 = sadd.s32 %s438, 1
      %p442 = scmp.eq.s32.totalorder %s32, 1
      %p443 = scmp.ne.s32.totalorder %s438, %s440
      %p444 = scmp.eq.s32.totalorder %s32, 0
      %p445 = por %p443, %p444
      %p446 = scmp.ne.s32.totalorder %s438, %s440
      %p447 = scmp.eq.s32.totalorder %s37, 1
      %p448 = por %p446, %p447
      %p449 = scmp.ne.s32.totalorder %s440, %s441
      %p450 = scmp.eq.s32.totalorder %s37, 0
      %p451 = por %p449, %p450
      %p452 = scmp.ne.s32.totalorder %s440, %s441
      %p453 = scmp.eq.s32.totalorder %s38, 1
      %p454 = por %p452, %p453
      %p456 = scmp.ne.s32.totalorder %s441, %s455
      %p457 = scmp.eq.s32.totalorder %s38, 0
      %p458 = por %p456, %p457
      %s460 = sadd.s32 %s459, 1
      %p463 = scmp.eq.s32.totalorder %s32, 1
      %p464 = scmp.ne.s32.totalorder %s459, %s461
      %p465 = scmp.eq.s32.totalorder %s32, 0
      %p466 = por %p464, %p465
      %p467 = scmp.ne.s32.totalorder %s459, %s461
      %p468 = scmp.eq.s32.totalorder %s37, 1
      %p469 = por %p467, %p468
      %p470 = scmp.ne.s32.totalorder %s461, %s462
      %p471 = scmp.eq.s32.totalorder %s37, 0
      %p472 = por %p470, %p471
      %p473 = scmp.ne.s32.totalorder %s461, %s462
      %p474 = scmp.eq.s32.totalorder %s38, 1
      %p475 = por %p473, %p474
      %p477 = scmp.ne.s32.totalorder %s462, %s476
      %p478 = scmp.eq.s32.totalorder %s38, 0
      %p479 = por %p477, %p478
      %s481 = sadd.s32 %s480, 1
      %p484 = scmp.eq.s32.totalorder %s32, 1
      %p485 = scmp.ne.s32.totalorder %s480, %s482
      %p486 = scmp.eq.s32.totalorder %s32, 0
      %p487 = por %p485, %p486
      %p488 = scmp.ne.s32.totalorder %s480, %s482
      %p489 = scmp.eq.s32.totalorder %s37, 1
      %p490 = por %p488, %p489
      %p491 = scmp.ne.s32.totalorder %s482, %s483
      %p492 = scmp.eq.s32.totalorder %s37, 0
      %p493 = por %p491, %p492
      %p494 = scmp.ne.s32.totalorder %s482, %s483
      %p495 = scmp.eq.s32.totalorder %s38, 1
      %p496 = por %p494, %p495
      %p498 = scmp.ne.s32.totalorder %s483, %s497
      %p499 = scmp.eq.s32.totalorder %s38, 0
      %p500 = por %p498, %p499
      %s502 = sadd.s32 %s501, 1
      %p505 = scmp.eq.s32.totalorder %s32, 1
      %p506 = scmp.ne.s32.totalorder %s501, %s503
      %p507 = scmp.eq.s32.totalorder %s32, 0
      %p508 = por %p506, %p507
      %p509 = scmp.ne.s32.totalorder %s501, %s503
      %p510 = scmp.eq.s32.totalorder %s37, 1
      %p511 = por %p509, %p510
      %p512 = scmp.ne.s32.totalorder %s503, %s504
      %p513 = scmp.eq.s32.totalorder %s37, 0
      %p514 = por %p512, %p513
      %p515 = scmp.ne.s32.totalorder %s503, %s504
      %p516 = scmp.eq.s32.totalorder %s38, 1
      %p517 = por %p515, %p516
      %p519 = scmp.ne.s32.totalorder %s504, %s518
      %p520 = scmp.eq.s32.totalorder %s38, 0
      %p521 = por %p519, %p520
      %s523 = sadd.s32 %s522, 1
      %p526 = scmp.eq.s32.totalorder %s32, 1
      %p527 = scmp.ne.s32.totalorder %s522, %s524
      %p528 = scmp.eq.s32.totalorder %s32, 0
      %p529 = por %p527, %p528
      %p530 = scmp.ne.s32.totalorder %s522, %s524
      %p531 = scmp.eq.s32.totalorder %s37, 1
      %p532 = por %p530, %p531
      %p533 = scmp.ne.s32.totalorder %s524, %s525
      %p534 = scmp.eq.s32.totalorder %s37, 0
      %p535 = por %p533, %p534
      %p536 = scmp.ne.s32.totalorder %s524, %s525
      %p537 = scmp.eq.s32.totalorder %s38, 1
      %p538 = por %p536, %p537
      %p540 = scmp.ne.s32.totalorder %s525, %s539
      %p541 = scmp.eq.s32.totalorder %s38, 0
      %p542 = por %p540, %p541
      %s544 = sadd.s32 %s543, 1
      %p547 = scmp.eq.s32.totalorder %s32, 1
      %p548 = scmp.ne.s32.totalorder %s543, %s545
      %p549 = scmp.eq.s32.totalorder %s32, 0
      %p550 = por %p548, %p549
      %p551 = scmp.ne.s32.totalorder %s543, %s545
      %p552 = scmp.eq.s32.totalorder %s37, 1
      %p553 = por %p551, %p552
      %p554 = scmp.ne.s32.totalorder %s545, %s546
      %p555 = scmp.eq.s32.totalorder %s37, 0
      %p556 = por %p554, %p555
      %p557 = scmp.ne.s32.totalorder %s545, %s546
      %p558 = scmp.eq.s32.totalorder %s38, 1
      %p559 = por %p557, %p558
      %p561 = scmp.ne.s32.totalorder %s546, %s560
      %p562 = scmp.eq.s32.totalorder %s38, 0
      %p563 = por %p561, %p562
      %s564 = ssub.s32 %s32, %s39
      %p565 = scmp.eq.s32.totalorder %s564, 0
      %s567 = sadd.s32 %s566, 1
      %s568 = scalar_select %p565, %s566, %s567
      %p571 = pneg %p565
      %p572 = scmp.eq.s32.totalorder %s32, 1
      %p573 = por %p571, %p572
      %p574 = scmp.ne.s32.totalorder %s566, %s569
      %p575 = scmp.eq.s32.totalorder %s32, 0
      %p576 = por %p574, %p575
      %p577 = scmp.ne.s32.totalorder %s566, %s569
      %p578 = scmp.eq.s32.totalorder %s37, 1
      %p579 = por %p577, %p578
      %p580 = scmp.ne.s32.totalorder %s569, %s570
      %p581 = scmp.eq.s32.totalorder %s37, 0
      %p582 = por %p580, %p581
      %p583 = scmp.ne.s32.totalorder %s569, %s570
      %p584 = scmp.eq.s32.totalorder %s38, 1
      %p585 = por %p583, %p584
      %p587 = scmp.ne.s32.totalorder %s570, %s586
      %p588 = scmp.eq.s32.totalorder %s38, 0
      %p589 = por %p587, %p588
      %p590 = scmp.le.s32.totalorder 1, %s32
      %p591 = scmp.lt.s32.totalorder %s32, 3
      %p592 = pnand %p590, %p591
      %p593 = pneg %p592
      // Predicated region
      $region9: #{bert_translation_forward.12} parent=5 // pred_check
        _
      $region10: #{bert_translation_forward.12} parent=5 // pred_check_branch
        %595 = sbr.rel (%p592) target = $region12
      $region11: #{bert_translation_forward.12} parent=5 // pred_region
        %s596 = ssub.s32 %s32, 1
        // Predicated region
        $region13: #{bert_translation_forward.12} parent=11 // pred_check
          %p597 = pneg %p157
        $region14: #{bert_translation_forward.12} parent=11 // pred_check_branch
          %599 = sbr.rel (%p597) target = $region16
        $region15: #{bert_translation_forward.12} parent=11 // pred_region
          _
        $region16: #{bert_translation_forward.12} parent=11 // pred_fallthru
          _
        // Predicated region
        $region17: #{bert_translation_forward.12} parent=11 // pred_check
          %p600 = pneg %p178
        $region18: #{bert_translation_forward.12} parent=11 // pred_check_branch
          %602 = sbr.rel (%p600) target = $region20
        $region19: #{bert_translation_forward.12} parent=11 // pred_region
          _
        $region20: #{bert_translation_forward.12} parent=11 // pred_fallthru
          _
        // Predicated region
        $region21: #{bert_translation_forward.12} parent=11 // pred_check
          %p603 = pneg %p199
        $region22: #{bert_translation_forward.12} parent=11 // pred_check_branch
          %605 = sbr.rel (%p603) target = $region24
        $region23: #{bert_translation_forward.12} parent=11 // pred_region
          _
        $region24: #{bert_translation_forward.12} parent=11 // pred_fallthru
          _
        // Predicated region
        $region25: #{bert_translation_forward.12} parent=11 // pred_check
          %p606 = pneg %p220
        $region26: #{bert_translation_forward.12} parent=11 // pred_check_branch
          %608 = sbr.rel (%p606) target = $region28
        $region27: #{bert_translation_forward.12} parent=11 // pred_region
          _
        $region28: #{bert_translation_forward.12} parent=11 // pred_fallthru
          _
        // Predicated region
        $region29: #{bert_translation_forward.12} parent=11 // pred_check
          %p609 = pneg %p241
        $region30: #{bert_translation_forward.12} parent=11 // pred_check_branch
          %611 = sbr.rel (%p609) target = $region32
        $region31: #{bert_translation_forward.12} parent=11 // pred_region
          _
        $region32: #{bert_translation_forward.12} parent=11 // pred_fallthru
          _
        // Predicated region
        $region33: #{bert_translation_forward.12} parent=11 // pred_check
          %p612 = pneg %p262
        $region34: #{bert_translation_forward.12} parent=11 // pred_check_branch
          %614 = sbr.rel (%p612) target = $region36
        $region35: #{bert_translation_forward.12} parent=11 // pred_region
          _
        $region36: #{bert_translation_forward.12} parent=11 // pred_fallthru
          _
        // Predicated region
        $region37: #{bert_translation_forward.12} parent=11 // pred_check
          %p615 = pneg %p283
        $region38: #{bert_translation_forward.12} parent=11 // pred_check_branch
          %617 = sbr.rel (%p615) target = $region40
        $region39: #{bert_translation_forward.12} parent=11 // pred_region
          _
        $region40: #{bert_translation_forward.12} parent=11 // pred_fallthru
          _
        // Predicated region
        $region41: #{bert_translation_forward.12} parent=11 // pred_check
          %p618 = pneg %p304
        $region42: #{bert_translation_forward.12} parent=11 // pred_check_branch
          %620 = sbr.rel (%p618) target = $region44
        $region43: #{bert_translation_forward.12} parent=11 // pred_region
          _
        $region44: #{bert_translation_forward.12} parent=11 // pred_fallthru
          _
        // Predicated region
        $region45: #{bert_translation_forward.12} parent=11 // pred_check
          %p621 = pneg %p325
        $region46: #{bert_translation_forward.12} parent=11 // pred_check_branch
          %623 = sbr.rel (%p621) target = $region48
        $region47: #{bert_translation_forward.12} parent=11 // pred_region
          _
        $region48: #{bert_translation_forward.12} parent=11 // pred_fallthru
          _
        // Predicated region
        $region49: #{bert_translation_forward.12} parent=11 // pred_check
          %p624 = pneg %p346
        $region50: #{bert_translation_forward.12} parent=11 // pred_check_branch
          %626 = sbr.rel (%p624) target = $region52
        $region51: #{bert_translation_forward.12} parent=11 // pred_region
          _
        $region52: #{bert_translation_forward.12} parent=11 // pred_fallthru
          _
        // Predicated region
        $region53: #{bert_translation_forward.12} parent=11 // pred_check
          %p627 = pneg %p367
        $region54: #{bert_translation_forward.12} parent=11 // pred_check_branch
          %629 = sbr.rel (%p627) target = $region56
        $region55: #{bert_translation_forward.12} parent=11 // pred_region
          _
        $region56: #{bert_translation_forward.12} parent=11 // pred_fallthru
          _
        // Predicated region
        $region57: #{bert_translation_forward.12} parent=11 // pred_check
          %p630 = pneg %p388
        $region58: #{bert_translation_forward.12} parent=11 // pred_check_branch
          %632 = sbr.rel (%p630) target = $region60
        $region59: #{bert_translation_forward.12} parent=11 // pred_region
          _
        $region60: #{bert_translation_forward.12} parent=11 // pred_fallthru
          _
        // Predicated region
        $region61: #{bert_translation_forward.12} parent=11 // pred_check
          %p633 = pneg %p409
        $region62: #{bert_translation_forward.12} parent=11 // pred_check_branch
          %635 = sbr.rel (%p633) target = $region64
        $region63: #{bert_translation_forward.12} parent=11 // pred_region
          _
        $region64: #{bert_translation_forward.12} parent=11 // pred_fallthru
          _
        // Predicated region
        $region65: #{bert_translation_forward.12} parent=11 // pred_check
          %p636 = pneg %p430
        $region66: #{bert_translation_forward.12} parent=11 // pred_check_branch
          %638 = sbr.rel (%p636) target = $region68
        $region67: #{bert_translation_forward.12} parent=11 // pred_region
          _
        $region68: #{bert_translation_forward.12} parent=11 // pred_fallthru
          _
        // Predicated region
        $region69: #{bert_translation_forward.12} parent=11 // pred_check
          %p639 = pneg %p451
        $region70: #{bert_translation_forward.12} parent=11 // pred_check_branch
          %641 = sbr.rel (%p639) target = $region72
        $region71: #{bert_translation_forward.12} parent=11 // pred_region
          _
        $region72: #{bert_translation_forward.12} parent=11 // pred_fallthru
          _
        // Predicated region
        $region73: #{bert_translation_forward.12} parent=11 // pred_check
          %p642 = pneg %p472
        $region74: #{bert_translation_forward.12} parent=11 // pred_check_branch
          %644 = sbr.rel (%p642) target = $region76
        $region75: #{bert_translation_forward.12} parent=11 // pred_region
          _
        $region76: #{bert_translation_forward.12} parent=11 // pred_fallthru
          _
        // Predicated region
        $region77: #{bert_translation_forward.12} parent=11 // pred_check
          %p645 = pneg %p493
        $region78: #{bert_translation_forward.12} parent=11 // pred_check_branch
          %647 = sbr.rel (%p645) target = $region80
        $region79: #{bert_translation_forward.12} parent=11 // pred_region
          _
        $region80: #{bert_translation_forward.12} parent=11 // pred_fallthru
          _
        // Predicated region
        $region81: #{bert_translation_forward.12} parent=11 // pred_check
          %p648 = pneg %p514
        $region82: #{bert_translation_forward.12} parent=11 // pred_check_branch
          %650 = sbr.rel (%p648) target = $region84
        $region83: #{bert_translation_forward.12} parent=11 // pred_region
          %652 = vsyncadd [#allocation3], 0
          %s654 = sshll.u32 %s21, 4
          %s655 = int_to_ptr.hbm [resolvable:$true] %s654
          %s656 = sshll.u32 [#allocation2], 4
          %s657 = int_to_ptr.vmem [resolvable:$true] %s656
          %659 = dma.hbm_to_vmem [thread:$0]  %s655, 16, %s657, [#allocation3]
        $region84: #{bert_translation_forward.12} parent=11 // pred_fallthru
          _
        // Predicated region
        $region85: #{bert_translation_forward.12} parent=11 // pred_check
          %p660 = pneg %p535
        $region86: #{bert_translation_forward.12} parent=11 // pred_check_branch
          %662 = sbr.rel (%p660) target = $region88
        $region87: #{bert_translation_forward.12} parent=11 // pred_region
          _
        $region88: #{bert_translation_forward.12} parent=11 // pred_fallthru
          _
        // Predicated region
        $region89: #{bert_translation_forward.12} parent=11 // pred_check
          %p663 = pneg %p556
        $region90: #{bert_translation_forward.12} parent=11 // pred_check_branch
          %665 = sbr.rel (%p663) target = $region92
        $region91: #{bert_translation_forward.12} parent=11 // pred_region
          %667 = vsyncadd [#allocation5], 0
          %s669 = sshll.u32 %s23, 4
          %s670 = int_to_ptr.hbm [resolvable:$true] %s669
          %s671 = sshll.u32 [#allocation4], 4
          %s672 = int_to_ptr.vmem [resolvable:$true] %s671
          %674 = dma.hbm_to_vmem [thread:$0]  %s670, 16, %s672, [#allocation5]
        $region92: #{bert_translation_forward.12} parent=11 // pred_fallthru
          _
      $region12: #{bert_translation_forward.12} parent=5 // pred_fallthru
        _
      %p675 = scmp.lt.s32.totalorder %s32, 2
      // Predicated region
      $region93: #{bert_translation_forward.12} parent=5 // pred_check
        %p676 = pneg %p675
      $region94: #{bert_translation_forward.12} parent=5 // pred_check_branch
        %678 = sbr.rel (%p676) target = $region96
      $region95: #{bert_translation_forward.12} parent=5 // pred_region
        // Predicated region
        $region97: #{bert_translation_forward.12} parent=95 // pred_check
          %p679 = pneg %p52
        $region98: #{bert_translation_forward.12} parent=95 // pred_check_branch
          %681 = sbr.rel (%p679) target = $region100
        $region99: #{bert_translation_forward.12} parent=95 // pred_region
          %p682 = scmp.lt.s32.totalorder %s32, 1
          %s683 = scalar_select %p682, %s32, 1
          %s684 = smul.addr %s683, 8
          %s685 = scalar_lea.vmem %s0, %s684
        $region100: #{bert_translation_forward.12} parent=95 // pred_fallthru
          _
        // Predicated region
        $region101: #{bert_translation_forward.12} parent=95 // pred_check
          %p686 = pneg %p78
        $region102: #{bert_translation_forward.12} parent=95 // pred_check_branch
          %688 = sbr.rel (%p686) target = $region104
        $region103: #{bert_translation_forward.12} parent=95 // pred_region
          %p689 = scmp.lt.s32.totalorder %s32, 1
          %s690 = scalar_select %p689, %s32, 1
          %s691 = smul.addr %s690, 8
          %s692 = scalar_lea.vmem %s1, %s691
        $region104: #{bert_translation_forward.12} parent=95 // pred_fallthru
          _
        // Predicated region
        $region105: #{bert_translation_forward.12} parent=95 // pred_check
          %p693 = pneg %p104
        $region106: #{bert_translation_forward.12} parent=95 // pred_check_branch
          %695 = sbr.rel (%p693) target = $region108
        $region107: #{bert_translation_forward.12} parent=95 // pred_region
          %p696 = scmp.lt.s32.totalorder %s32, 1
          %s697 = scalar_select %p696, %s32, 1
          %s698 = smul.addr %s697, 8
          %s699 = scalar_lea.vmem %s2, %s698
        $region108: #{bert_translation_forward.12} parent=95 // pred_fallthru
          _
        // Predicated region
        $region109: #{bert_translation_forward.12} parent=95 // pred_check
          %p700 = pneg %p130
        $region110: #{bert_translation_forward.12} parent=95 // pred_check_branch
          %702 = sbr.rel (%p700) target = $region112
        $region111: #{bert_translation_forward.12} parent=95 // pred_region
          %p703 = scmp.lt.s32.totalorder %s32, 1
          %s704 = scalar_select %p703, %s32, 1
          %s705 = smul.addr %s704, 8
          %s706 = scalar_lea.vmem %s3, %s705
        $region112: #{bert_translation_forward.12} parent=95 // pred_fallthru
          _
      $region96: #{bert_translation_forward.12} parent=5 // pred_fallthru
        _
      %p707 = scmp.le.s32.totalorder 1, %s32
      %p708 = scmp.lt.s32.totalorder %s32, 3
      %p709 = pnand %p707, %p708
      %p710 = pneg %p709
      // Predicated region
      $region113: #{bert_translation_forward.12} parent=5 // pred_check
        _
      $region114: #{bert_translation_forward.12} parent=5 // pred_check_branch
        %712 = sbr.rel (%p709) target = $region116
      $region115: #{bert_translation_forward.12} parent=5 // pred_region
        %s713 = ssub.s32 %s32, 1
        // Predicated region
        $region117: #{bert_translation_forward.12} parent=115 // pred_check
          %p714 = pneg %p514
        $region118: #{bert_translation_forward.12} parent=115 // pred_check_branch
          %716 = sbr.rel (%p714) target = $region120
        $region119: #{bert_translation_forward.12} parent=115 // pred_region
          %718 = dma.done [#allocation3], 16
        $region120: #{bert_translation_forward.12} parent=115 // pred_fallthru
          _
        // Predicated region
        $region121: #{bert_translation_forward.12} parent=115 // pred_check
          %p719 = pneg %p556
        $region122: #{bert_translation_forward.12} parent=115 // pred_check_branch
          %721 = sbr.rel (%p719) target = $region124
        $region123: #{bert_translation_forward.12} parent=115 // pred_region
          %723 = dma.done [#allocation5], 16
        $region124: #{bert_translation_forward.12} parent=115 // pred_fallthru
          _
        %p724 = scmp.lt.s32.totalorder %s37, 1
        %s725 = scalar_select %p724, %s37, 1
        %s726 = smul.addr %s725, 8
        %s727 = scalar_lea.vmem %s0, %s726
        %p728 = pneg %p58
        %p729 = pneg %p55
        %p730 = scmp.lt.s32.totalorder %s37, 1
        %s731 = scalar_select %p730, %s37, 1
        %s732 = smul.addr %s731, 8
        %s733 = scalar_lea.vmem %s1, %s732
        %p734 = pneg %p84
        %p735 = pneg %p81
        %p736 = scmp.lt.s32.totalorder %s37, 1
        %s737 = scalar_select %p736, %s37, 1
        %s738 = smul.addr %s737, 8
        %s739 = scalar_lea.vmem %s2, %s738
        %p740 = pneg %p110
        %p741 = pneg %p107
        %p742 = scmp.lt.s32.totalorder %s37, 1
        %s743 = scalar_select %p742, %s37, 1
        %s744 = smul.addr %s743, 8
        %s745 = scalar_lea.vmem %s3, %s744
        %p746 = pneg %p136
        %p747 = pneg %p133
        %p748 = pneg %p157
        %p749 = pneg %p154
        %p750 = pneg %p178
        %p751 = pneg %p175
        %p752 = pneg %p199
        %p753 = pneg %p196
        %p754 = pneg %p220
        %p755 = pneg %p217
        %p756 = pneg %p241
        %p757 = pneg %p238
        %p758 = pneg %p262
        %p759 = pneg %p259
        %p760 = pneg %p283
        %p761 = pneg %p280
        %p762 = pneg %p304
        %p763 = pneg %p301
        %p764 = pneg %p325
        %p765 = pneg %p322
        %p766 = pneg %p346
        %p767 = pneg %p343
        %p768 = pneg %p367
        %p769 = pneg %p364
        %p770 = pneg %p388
        %p771 = pneg %p385
        %p772 = pneg %p409
        %p773 = pneg %p406
        %p774 = pneg %p430
        %p775 = pneg %p427
        %p776 = pneg %p451
        %p777 = pneg %p448
        %p778 = pneg %p472
        %p779 = pneg %p469
        %p780 = pneg %p493
        %p781 = pneg %p490
        %p782 = pneg %p514
        %p783 = pneg %p511
        %p784 = pneg %p535
        %p785 = pneg %p532
        %p786 = pneg %p556
        %p787 = pneg %p553
        %p788 = pneg %p582
        %p789 = pneg %p579
        %p790 = scmp.lt.s32.totalorder %s37, 1
        %s791 = scalar_select %p790, %s37, 1
        %s792 = smul.addr %s791, 8
        %s793 = scalar_lea.vmem %s24, %s792
        %p794 = scmp.lt.s32.totalorder %s37, 1
        %s795 = scalar_select %p794, %s37, 1
        %s796 = smul.addr %s795, 8
        %s797 = scalar_lea.vmem %s0, %s796
        %p798 = scmp.lt.s32.totalorder %s37, 1
        %s799 = scalar_select %p798, %s37, 1
        %s800 = smul.addr %s799, 8
        %s801 = scalar_lea.vmem %s1, %s800
        %p802 = scmp.lt.s32.totalorder %s37, 1
        %s803 = scalar_select %p802, %s37, 1
        %s804 = smul.addr %s803, 8
        %s805 = scalar_lea.vmem %s2, %s804
        %p806 = scmp.lt.s32.totalorder %s37, 1
        %s807 = scalar_select %p806, %s37, 1
        %s808 = smul.addr %s807, 8
        %s809 = scalar_lea.vmem %s3, %s808
        %p810 = scmp.lt.s32.totalorder %s37, 1
        %s811 = scalar_select %p810, %s37, 1
        %s812 = smul.addr %s811, 8
        %s813 = scalar_lea.vmem %s24, %s812
        %v814 = vld [vmem:[%s797] sm:$0xff]
        %v815 = vld [vmem:[%s801] sm:$0xff]
        %v816 = vld [vmem:[%s805] sm:$0xff]
        %v817 = vld [vmem:[%s809] sm:$0xff]
        %v818 = vld [vmem:[%s4] sm:$0x1]
        %v819 = vld [vmem:[%s5] sm:$0x1]
        %vm820 = vcmask 261120
        %v821 = vsel %vm820, %v814, 0.0
        %822 = vadd.xlane.f32.xlu0 %v821
        %v823 = vpop.xlane.xlu0 %822
        %v824 = vrcp.pop 32.0
        %v825 = vmul.f32 32.0, %v824
        %v826 = vsub.f32 1.0, %v825
        %v827 = vmul.f32 %v824, %v826
        %v828 = vadd.f32 %v824, %v827
        %vm829 = vweird.f32 %v824
        %v830 = vsel %vm829, %v824, %v828
        %v831 = vmul.f32 %v823, %v830
        %v832 = vsub.f32 %v814, %v831
        %v833 = vmul.f32 %v832, %v832
        %v834 = vsel %vm820, %v833, 0.0
        %835 = vadd.xlane.f32.xlu0 %v834
        %v836 = vpop.xlane.xlu0 %835
        %v837 = vmul.f32 %v836, %v830
        %v838 = vadd.f32 %v837, 1e-06
        %v839 = vrsqrt.pop %v838
        %v840 = vmul.f32 %v839, %v838
        %v841 = vmul.f32 %v840, %v839
        %v842 = vmul.f32 0.5, %v841
        %v843 = vsub.f32 1.5, %v842
        %v844 = vmul.f32 %v839, %v843
        %vm845 = vweird.f32 %v838
        %vm846 = vweird.f32 %v839
        %vm847 = vmor %vm845, %vm846
        %v848 = vsel %vm847, %v839, %v844
        %v849 = vmul.f32 %v832, %v848
        %v851 = vperm.slane %v818, 0
        %v853 = vmul.f32 %v849, %v851
        %v855 = vperm.slane %v819, 0
        %v857 = vadd.f32 %v853, %v855
        %v858 = vld [vmem:[%s6] sm:$0xff]
        %v859 = vld [vmem:[%s6 + $0x8] sm:$0xff]
        %v860 = vld [vmem:[%s6 + $0x10] sm:$0xff]
        %v861 = vld [vmem:[%s6 + $0x18] sm:$0xff]
        %v862 = vld [vmem:[%s7] sm:$0x1]
        %v864 = vperm.slane %v862, 0
        %v867 = vsel %vm820, %v857, 0
        %869 = vmatpush.msra.mxu0 0.0
        %870 = vmatpush.msra.mxu0 0.0
        %871 = vmatpush.msra.mxu0 0.0
        %872 = vmatpush.msra.mxu0 0.0
        %873 = vmatpush.msra.mxu0 0.0
        %874 = vmatpush.msra.mxu0 0.0
        %875 = vmatpush.msra.mxu0 0.0
        %876 = vmatpush.msra.mxu0 0.0
        %877 = vmatpush.msra.mxu0 0.0
        %878 = vmatpush.msra.mxu0 0.0
        %879 = vmatpush.msra.mxu0 0.0
        %880 = vmatpush.msra.mxu0 0.0
        %881 = vmatpush.msra.mxu0 %v861
        %882 = vmatpush.msra.mxu0 %v860
        %883 = vmatpush.msra.mxu0 %v859
        %884 = vmatpush.msra.mxu0 %v858
        %885 = vmatmul.f32.gmra.mxu0 %v867
        %v886 = vpop.f32.mrf.mxu0
        %v887 = vadd.f32 %v864, %v886
        %888 = vdwg.mxu0
        %v889 = vld [vmem:[%s8] sm:$0xff]
        %v890 = vld [vmem:[%s8 + $0x8] sm:$0xff]
        %v891 = vld [vmem:[%s8 + $0x10] sm:$0xff]
        %v892 = vld [vmem:[%s8 + $0x18] sm:$0xff]
        %v893 = vld [vmem:[%s9] sm:$0x1]
        %895 = vrot.lane.b32.xlu0 %v887, 96
        %v896 = vpop.permute.xlu0 %895
        %vm897 = vcmask 64512
        %v898 = vsel %vm897, %v887, 0
        %v900 = vsel %vm897, %v896, 0
        %902 = vmatpush.xpose.msra.mxu0 0.0
        %903 = vmatpush.xpose.msra.mxu0 0.0
        %904 = vmatpush.xpose.msra.mxu0 0.0
        %905 = vmatpush.xpose.msra.mxu0 0.0
        %906 = vmatpush.xpose.msra.mxu0 0.0
        %907 = vmatpush.xpose.msra.mxu0 0.0
        %908 = vmatpush.xpose.msra.mxu0 0.0
        %909 = vmatpush.xpose.msra.mxu0 0.0
        %910 = vmatpush.xpose.msra.mxu0 0.0
        %911 = vmatpush.xpose.msra.mxu0 0.0
        %912 = vmatpush.xpose.msra.mxu0 0.0
        %913 = vmatpush.xpose.msra.mxu0 0.0
        %914 = vmatpush.xpose.msra.mxu0 0.0
        %915 = vmatpush.xpose.msra.mxu0 0.0
        %916 = vmatpush.xpose.msra.mxu0 0.0
        %917 = vmatpush.xpose.msra.mxu0 %v900
        %918 = vmatmul.f32.gmra.mxu0 %v898
        %v919 = vpop.f32.mrf.mxu0
        %v920 = vadd.f32 0.0, %v919
        %921 = vdwg.mxu0
        %v922 = vmul.f32 %v920, 0.35355338
        %v923 = vadd.f32 %v922, %v816
        %v924 = vsel %vm897, %v923, -inf
        %925 = vmax.xlane.f32.xlu0 %v924
        %v926 = vpop.xlane.xlu0 %925
        %v927 = vsub.f32 %v923, %v926
        %v928 = vmul.f32 %v927, 1.442695
        %v929 = vpow.pop %v928
        %v930 = vsel %vm897, %v929, 0.0
        %931 = vadd.xlane.f32.xlu0 %v930
        %v932 = vpop.xlane.xlu0 %931
        %v933 = vrcp.pop %v932
        %v934 = vmul.f32 %v932, %v933
        %v935 = vsub.f32 1.0, %v934
        %v936 = vmul.f32 %v933, %v935
        %v937 = vadd.f32 %v933, %v936
        %vm938 = vweird.f32 %v932
        %vm939 = vweird.f32 %v933
        %vm940 = vmor %vm938, %vm939
        %v941 = vsel %vm940, %v933, %v937
        %v942 = vand.u32 2147483647, %v932
        %vm943 = vcmp.eq.f32.partialorder %v942, 8.507059e+37
        %v944 = vand.u32 %v932, 2147483648
        %v945 = vor.u32 1.1754944e-38, %v944
        %v946 = vsel %vm943, %v945, %v941
        %v947 = vmul.f32 %v929, %v946
        %948 = vrot.lane.b32.xlu0 %v887, 64
        %v949 = vpop.permute.xlu0 %948
        %v952 = vsel %vm897, %v947, 0
        %954 = vmatpush.msra.mxu0 0.0
        %955 = vmatpush.msra.mxu0 0.0
        %956 = vmatpush.msra.mxu0 0.0
        %957 = vmatpush.msra.mxu0 0.0
        %958 = vmatpush.msra.mxu0 0.0
        %959 = vmatpush.msra.mxu0 0.0
        %960 = vmatpush.msra.mxu0 0.0
        %961 = vmatpush.msra.mxu0 0.0
        %962 = vmatpush.msra.mxu0 0.0
        %963 = vmatpush.msra.mxu0 0.0
        %964 = vmatpush.msra.mxu0 0.0
        %965 = vmatpush.msra.mxu0 0.0
        %966 = vmatpush.msra.mxu0 0.0
        %967 = vmatpush.msra.mxu0 0.0
        %968 = vmatpush.msra.mxu0 0.0
        %969 = vmatpush.msra.mxu0 %v949
        %970 = vmatmul.f32.gmra.mxu0 %v952
        %v971 = vpop.f32.mrf.mxu0
        %v972 = vadd.f32 0.0, %v971
        %973 = vdwg.mxu0
        %974 = vrot.lane.b32.xlu0 %v887, 120
        %v975 = vpop.permute.xlu0 %974
        %976 = vrot.lane.b32.xlu0 %v887, 88
        %v977 = vpop.permute.xlu0 %976
        %v978 = vsel %vm897, %v975, 0
        %v980 = vsel %vm897, %v977, 0
        %982 = vmatpush.xpose.msra.mxu0 0.0
        %983 = vmatpush.xpose.msra.mxu0 0.0
        %984 = vmatpush.xpose.msra.mxu0 0.0
        %985 = vmatpush.xpose.msra.mxu0 0.0
        %986 = vmatpush.xpose.msra.mxu0 0.0
        %987 = vmatpush.xpose.msra.mxu0 0.0
        %988 = vmatpush.xpose.msra.mxu0 0.0
        %989 = vmatpush.xpose.msra.mxu0 0.0
        %990 = vmatpush.xpose.msra.mxu0 0.0
        %991 = vmatpush.xpose.msra.mxu0 0.0
        %992 = vmatpush.xpose.msra.mxu0 0.0
        %993 = vmatpush.xpose.msra.mxu0 0.0
        %994 = vmatpush.xpose.msra.mxu0 0.0
        %995 = vmatpush.xpose.msra.mxu0 0.0
        %996 = vmatpush.xpose.msra.mxu0 0.0
        %997 = vmatpush.xpose.msra.mxu0 %v980
        %998 = vmatmul.f32.gmra.mxu0 %v978
        %v999 = vpop.f32.mrf.mxu0
        %v1000 = vadd.f32 0.0, %v999
        %1001 = vdwg.mxu0
        %v1002 = vmul.f32 %v1000, 0.35355338
        %v1003 = vadd.f32 %v1002, %v816
        %v1004 = vsel %vm897, %v1003, -inf
        %1005 = vmax.xlane.f32.xlu0 %v1004
        %v1006 = vpop.xlane.xlu0 %1005
        %v1007 = vsub.f32 %v1003, %v1006
        %v1008 = vmul.f32 %v1007, 1.442695
        %v1009 = vpow.pop %v1008
        %v1010 = vsel %vm897, %v1009, 0.0
        %1011 = vadd.xlane.f32.xlu0 %v1010
        %v1012 = vpop.xlane.xlu0 %1011
        %v1013 = vrcp.pop %v1012
        %v1014 = vmul.f32 %v1012, %v1013
        %v1015 = vsub.f32 1.0, %v1014
        %v1016 = vmul.f32 %v1013, %v1015
        %v1017 = vadd.f32 %v1013, %v1016
        %vm1018 = vweird.f32 %v1012
        %vm1019 = vweird.f32 %v1013
        %vm1020 = vmor %vm1018, %vm1019
        %v1021 = vsel %vm1020, %v1013, %v1017
        %v1022 = vand.u32 2147483647, %v1012
        %vm1023 = vcmp.eq.f32.partialorder %v1022, 8.507059e+37
        %v1024 = vand.u32 %v1012, 2147483648
        %v1025 = vor.u32 1.1754944e-38, %v1024
        %v1026 = vsel %vm1023, %v1025, %v1021
        %v1027 = vmul.f32 %v1009, %v1026
        %1028 = vrot.lane.b32.xlu0 %v887, 56
        %v1029 = vpop.permute.xlu0 %1028
        %v1032 = vsel %vm897, %v1027, 0
        %1034 = vmatpush.msra.mxu0 0.0
        %1035 = vmatpush.msra.mxu0 0.0
        %1036 = vmatpush.msra.mxu0 0.0
        %1037 = vmatpush.msra.mxu0 0.0
        %1038 = vmatpush.msra.mxu0 0.0
        %1039 = vmatpush.msra.mxu0 0.0
        %1040 = vmatpush.msra.mxu0 0.0
        %1041 = vmatpush.msra.mxu0 0.0
        %1042 = vmatpush.msra.mxu0 0.0
        %1043 = vmatpush.msra.mxu0 0.0
        %1044 = vmatpush.msra.mxu0 0.0
        %1045 = vmatpush.msra.mxu0 0.0
        %1046 = vmatpush.msra.mxu0 0.0
        %1047 = vmatpush.msra.mxu0 0.0
        %1048 = vmatpush.msra.mxu0 0.0
        %1049 = vmatpush.msra.mxu0 %v1029
        %1050 = vmatmul.f32.gmra.mxu0 %v1032
        %v1051 = vpop.f32.mrf.mxu0
        %v1052 = vadd.f32 0.0, %v1051
        %1053 = vdwg.mxu0
        %v1055 = vsel %vm897, %v1052, 0
        %1057 = vmatpush.msra.mxu0 0.0
        %1058 = vmatpush.msra.mxu0 0.0
        %1059 = vmatpush.msra.mxu0 0.0
        %1060 = vmatpush.msra.mxu0 0.0
        %1061 = vmatpush.msra.mxu0 0.0
        %1062 = vmatpush.msra.mxu0 0.0
        %1063 = vmatpush.msra.mxu0 0.0
        %1064 = vmatpush.msra.mxu0 0.0
        %1065 = vmatpush.msra.mxu0 0.0
        %1066 = vmatpush.msra.mxu0 0.0
        %1067 = vmatpush.msra.mxu0 0.0
        %1068 = vmatpush.msra.mxu0 0.0
        %1069 = vmatpush.msra.mxu0 0.0
        %1070 = vmatpush.msra.mxu0 0.0
        %1071 = vmatpush.msra.mxu0 0.0
        %1072 = vmatpush.msra.mxu0 %v890
        %1073 = vmatmul.f32.gmra.mxu0 %v1055
        %v1074 = vpop.f32.mrf.mxu0
        %v1075 = vadd.f32 0.0, %v1074
        %1076 = vdwg.mxu0
        %v1078 = vsel %vm897, %v972, 0
        %1080 = vmatpush.msra.mxu0 0.0
        %1081 = vmatpush.msra.mxu0 0.0
        %1082 = vmatpush.msra.mxu0 0.0
        %1083 = vmatpush.msra.mxu0 0.0
        %1084 = vmatpush.msra.mxu0 0.0
        %1085 = vmatpush.msra.mxu0 0.0
        %1086 = vmatpush.msra.mxu0 0.0
        %1087 = vmatpush.msra.mxu0 0.0
        %1088 = vmatpush.msra.mxu0 0.0
        %1089 = vmatpush.msra.mxu0 0.0
        %1090 = vmatpush.msra.mxu0 0.0
        %1091 = vmatpush.msra.mxu0 0.0
        %1092 = vmatpush.msra.mxu0 0.0
        %1093 = vmatpush.msra.mxu0 0.0
        %1094 = vmatpush.msra.mxu0 0.0
        %1095 = vmatpush.msra.mxu0 %v889
        %1096 = vmatmul.f32.gmra.mxu0 %v1078
        %v1097 = vpop.f32.mrf.mxu0
        %v1098 = vadd.f32 %v1075, %v1097
        %1099 = vdwg.mxu0
        %1100 = vrot.lane.b32.xlu0 %v887, 112
        %v1101 = vpop.permute.xlu0 %1100
        %1102 = vrot.lane.b32.xlu0 %v887, 80
        %v1103 = vpop.permute.xlu0 %1102
        %v1104 = vsel %vm897, %v1101, 0
        %v1106 = vsel %vm897, %v1103, 0
        %1108 = vmatpush.xpose.msra.mxu0 0.0
        %1109 = vmatpush.xpose.msra.mxu0 0.0
        %1110 = vmatpush.xpose.msra.mxu0 0.0
        %1111 = vmatpush.xpose.msra.mxu0 0.0
        %1112 = vmatpush.xpose.msra.mxu0 0.0
        %1113 = vmatpush.xpose.msra.mxu0 0.0
        %1114 = vmatpush.xpose.msra.mxu0 0.0
        %1115 = vmatpush.xpose.msra.mxu0 0.0
        %1116 = vmatpush.xpose.msra.mxu0 0.0
        %1117 = vmatpush.xpose.msra.mxu0 0.0
        %1118 = vmatpush.xpose.msra.mxu0 0.0
        %1119 = vmatpush.xpose.msra.mxu0 0.0
        %1120 = vmatpush.xpose.msra.mxu0 0.0
        %1121 = vmatpush.xpose.msra.mxu0 0.0
        %1122 = vmatpush.xpose.msra.mxu0 0.0
        %1123 = vmatpush.xpose.msra.mxu0 %v1106
        %1124 = vmatmul.f32.gmra.mxu0 %v1104
        %v1125 = vpop.f32.mrf.mxu0
        %v1126 = vadd.f32 0.0, %v1125
        %1127 = vdwg.mxu0
        %v1128 = vmul.f32 %v1126, 0.35355338
        %v1129 = vadd.f32 %v1128, %v816
        %v1130 = vsel %vm897, %v1129, -inf
        %1131 = vmax.xlane.f32.xlu0 %v1130
        %v1132 = vpop.xlane.xlu0 %1131
        %v1133 = vsub.f32 %v1129, %v1132
        %v1134 = vmul.f32 %v1133, 1.442695
        %v1135 = vpow.pop %v1134
        %v1136 = vsel %vm897, %v1135, 0.0
        %1137 = vadd.xlane.f32.xlu0 %v1136
        %v1138 = vpop.xlane.xlu0 %1137
        %v1139 = vrcp.pop %v1138
        %v1140 = vmul.f32 %v1138, %v1139
        %v1141 = vsub.f32 1.0, %v1140
        %v1142 = vmul.f32 %v1139, %v1141
        %v1143 = vadd.f32 %v1139, %v1142
        %vm1144 = vweird.f32 %v1138
        %vm1145 = vweird.f32 %v1139
        %vm1146 = vmor %vm1144, %vm1145
        %v1147 = vsel %vm1146, %v1139, %v1143
        %v1148 = vand.u32 2147483647, %v1138
        %vm1149 = vcmp.eq.f32.partialorder %v1148, 8.507059e+37
        %v1150 = vand.u32 %v1138, 2147483648
        %v1151 = vor.u32 1.1754944e-38, %v1150
        %v1152 = vsel %vm1149, %v1151, %v1147
        %v1153 = vmul.f32 %v1135, %v1152
        %1154 = vrot.lane.b32.xlu0 %v887, 48
        %v1155 = vpop.permute.xlu0 %1154
        %v1158 = vsel %vm897, %v1153, 0
        %1160 = vmatpush.msra.mxu0 0.0
        %1161 = vmatpush.msra.mxu0 0.0
        %1162 = vmatpush.msra.mxu0 0.0
        %1163 = vmatpush.msra.mxu0 0.0
        %1164 = vmatpush.msra.mxu0 0.0
        %1165 = vmatpush.msra.mxu0 0.0
        %1166 = vmatpush.msra.mxu0 0.0
        %1167 = vmatpush.msra.mxu0 0.0
        %1168 = vmatpush.msra.mxu0 0.0
        %1169 = vmatpush.msra.mxu0 0.0
        %1170 = vmatpush.msra.mxu0 0.0
        %1171 = vmatpush.msra.mxu0 0.0
        %1172 = vmatpush.msra.mxu0 0.0
        %1173 = vmatpush.msra.mxu0 0.0
        %1174 = vmatpush.msra.mxu0 0.0
        %1175 = vmatpush.msra.mxu0 %v1155
        %1176 = vmatmul.f32.gmra.mxu0 %v1158
        %v1177 = vpop.f32.mrf.mxu0
        %v1178 = vadd.f32 0.0, %v1177
        %1179 = vdwg.mxu0
        %v1181 = vsel %vm897, %v1178, 0
        %1183 = vmatpush.msra.mxu0 0.0
        %1184 = vmatpush.msra.mxu0 0.0
        %1185 = vmatpush.msra.mxu0 0.0
        %1186 = vmatpush.msra.mxu0 0.0
        %1187 = vmatpush.msra.mxu0 0.0
        %1188 = vmatpush.msra.mxu0 0.0
        %1189 = vmatpush.msra.mxu0 0.0
        %1190 = vmatpush.msra.mxu0 0.0
        %1191 = vmatpush.msra.mxu0 0.0
        %1192 = vmatpush.msra.mxu0 0.0
        %1193 = vmatpush.msra.mxu0 0.0
        %1194 = vmatpush.msra.mxu0 0.0
        %1195 = vmatpush.msra.mxu0 0.0
        %1196 = vmatpush.msra.mxu0 0.0
        %1197 = vmatpush.msra.mxu0 0.0
        %1198 = vmatpush.msra.mxu0 %v891
        %1199 = vmatmul.f32.gmra.mxu0 %v1181
        %v1200 = vpop.f32.mrf.mxu0
        %v1201 = vadd.f32 0.0, %v1200
        %1202 = vdwg.mxu0
        %v1203 = vadd.f32 %v1098, %v1201
        %1204 = vrot.lane.b32.xlu0 %v887, 104
        %v1205 = vpop.permute.xlu0 %1204
        %1206 = vrot.lane.b32.xlu0 %v887, 72
        %v1207 = vpop.permute.xlu0 %1206
        %v1208 = vsel %vm897, %v1205, 0
        %v1210 = vsel %vm897, %v1207, 0
        %1212 = vmatpush.xpose.msra.mxu0 0.0
        %1213 = vmatpush.xpose.msra.mxu0 0.0
        %1214 = vmatpush.xpose.msra.mxu0 0.0
        %1215 = vmatpush.xpose.msra.mxu0 0.0
        %1216 = vmatpush.xpose.msra.mxu0 0.0
        %1217 = vmatpush.xpose.msra.mxu0 0.0
        %1218 = vmatpush.xpose.msra.mxu0 0.0
        %1219 = vmatpush.xpose.msra.mxu0 0.0
        %1220 = vmatpush.xpose.msra.mxu0 0.0
        %1221 = vmatpush.xpose.msra.mxu0 0.0
        %1222 = vmatpush.xpose.msra.mxu0 0.0
        %1223 = vmatpush.xpose.msra.mxu0 0.0
        %1224 = vmatpush.xpose.msra.mxu0 0.0
        %1225 = vmatpush.xpose.msra.mxu0 0.0
        %1226 = vmatpush.xpose.msra.mxu0 0.0
        %1227 = vmatpush.xpose.msra.mxu0 %v1210
        %1228 = vmatmul.f32.gmra.mxu0 %v1208
        %v1229 = vpop.f32.mrf.mxu0
        %v1230 = vadd.f32 0.0, %v1229
        %1231 = vdwg.mxu0
        %v1232 = vmul.f32 %v1230, 0.35355338
        %v1233 = vadd.f32 %v1232, %v816
        %v1234 = vsel %vm897, %v1233, -inf
        %1235 = vmax.xlane.f32.xlu0 %v1234
        %v1236 = vpop.xlane.xlu0 %1235
        %v1237 = vsub.f32 %v1233, %v1236
        %v1238 = vmul.f32 %v1237, 1.442695
        %v1239 = vpow.pop %v1238
        %v1240 = vsel %vm897, %v1239, 0.0
        %1241 = vadd.xlane.f32.xlu0 %v1240
        %v1242 = vpop.xlane.xlu0 %1241
        %v1243 = vrcp.pop %v1242
        %v1244 = vmul.f32 %v1242, %v1243
        %v1245 = vsub.f32 1.0, %v1244
        %v1246 = vmul.f32 %v1243, %v1245
        %v1247 = vadd.f32 %v1243, %v1246
        %vm1248 = vweird.f32 %v1242
        %vm1249 = vweird.f32 %v1243
        %vm1250 = vmor %vm1248, %vm1249
        %v1251 = vsel %vm1250, %v1243, %v1247
        %v1252 = vand.u32 2147483647, %v1242
        %vm1253 = vcmp.eq.f32.partialorder %v1252, 8.507059e+37
        %v1254 = vand.u32 %v1242, 2147483648
        %v1255 = vor.u32 1.1754944e-38, %v1254
        %v1256 = vsel %vm1253, %v1255, %v1251
        %v1257 = vmul.f32 %v1239, %v1256
        %1258 = vrot.lane.b32.xlu0 %v887, 40
        %v1259 = vpop.permute.xlu0 %1258
        %v1262 = vsel %vm897, %v1257, 0
        %1264 = vmatpush.msra.mxu0 0.0
        %1265 = vmatpush.msra.mxu0 0.0
        %1266 = vmatpush.msra.mxu0 0.0
        %1267 = vmatpush.msra.mxu0 0.0
        %1268 = vmatpush.msra.mxu0 0.0
        %1269 = vmatpush.msra.mxu0 0.0
        %1270 = vmatpush.msra.mxu0 0.0
        %1271 = vmatpush.msra.mxu0 0.0
        %1272 = vmatpush.msra.mxu0 0.0
        %1273 = vmatpush.msra.mxu0 0.0
        %1274 = vmatpush.msra.mxu0 0.0
        %1275 = vmatpush.msra.mxu0 0.0
        %1276 = vmatpush.msra.mxu0 0.0
        %1277 = vmatpush.msra.mxu0 0.0
        %1278 = vmatpush.msra.mxu0 0.0
        %1279 = vmatpush.msra.mxu0 %v1259
        %1280 = vmatmul.f32.gmra.mxu0 %v1262
        %v1281 = vpop.f32.mrf.mxu0
        %v1282 = vadd.f32 0.0, %v1281
        %1283 = vdwg.mxu0
        %v1285 = vsel %vm897, %v1282, 0
        %1287 = vmatpush.msra.mxu0 0.0
        %1288 = vmatpush.msra.mxu0 0.0
        %1289 = vmatpush.msra.mxu0 0.0
        %1290 = vmatpush.msra.mxu0 0.0
        %1291 = vmatpush.msra.mxu0 0.0
        %1292 = vmatpush.msra.mxu0 0.0
        %1293 = vmatpush.msra.mxu0 0.0
        %1294 = vmatpush.msra.mxu0 0.0
        %1295 = vmatpush.msra.mxu0 0.0
        %1296 = vmatpush.msra.mxu0 0.0
        %1297 = vmatpush.msra.mxu0 0.0
        %1298 = vmatpush.msra.mxu0 0.0
        %1299 = vmatpush.msra.mxu0 0.0
        %1300 = vmatpush.msra.mxu0 0.0
        %1301 = vmatpush.msra.mxu0 0.0
        %1302 = vmatpush.msra.mxu0 %v892
        %1303 = vmatmul.f32.gmra.mxu0 %v1285
        %v1304 = vpop.f32.mrf.mxu0
        %v1305 = vadd.f32 0.0, %v1304
        %1306 = vdwg.mxu0
        %v1307 = vadd.f32 %v1203, %v1305
        %v1309 = vperm.slane %v893, 0
        %v1311 = vadd.f32 %v1307, %v1309
        %v1312 = vadd.f32 %v814, %v1311
        %v1313 = vld [vmem:[%s10] sm:$0x1]
        %v1314 = vld [vmem:[%s11] sm:$0x1]
        %v1315 = vsel %vm820, %v1312, 0.0
        %1316 = vadd.xlane.f32.xlu0 %v1315
        %v1317 = vpop.xlane.xlu0 %1316
        %v1318 = vmul.f32 %v1317, %v830
        %v1319 = vsub.f32 %v1312, %v1318
        %v1320 = vmul.f32 %v1319, %v1319
        %v1321 = vsel %vm820, %v1320, 0.0
        %1322 = vadd.xlane.f32.xlu0 %v1321
        %v1323 = vpop.xlane.xlu0 %1322
        %v1324 = vmul.f32 %v1323, %v830
        %v1325 = vadd.f32 %v1324, 1e-06
        %v1326 = vrsqrt.pop %v1325
        %v1327 = vmul.f32 %v1326, %v1325
        %v1328 = vmul.f32 %v1327, %v1326
        %v1329 = vmul.f32 0.5, %v1328
        %v1330 = vsub.f32 1.5, %v1329
        %v1331 = vmul.f32 %v1326, %v1330
        %vm1332 = vweird.f32 %v1325
        %vm1333 = vweird.f32 %v1326
        %vm1334 = vmor %vm1332, %vm1333
        %v1335 = vsel %vm1334, %v1326, %v1331
        %v1336 = vmul.f32 %v1319, %v1335
        %v1338 = vperm.slane %v1313, 0
        %v1340 = vmul.f32 %v1336, %v1338
        %v1342 = vperm.slane %v1314, 0
        %v1344 = vadd.f32 %v1340, %v1342
        %v1345 = vld [vmem:[%s12] sm:$0xff]
        %v1346 = vld [vmem:[%s12 + $0x8] sm:$0xff]
        %v1347 = vld [vmem:[%s12 + $0x10] sm:$0xff]
        %v1348 = vld [vmem:[%s12 + $0x18] sm:$0xff]
        %v1349 = vld [vmem:[%s13] sm:$0x1]
        %v1351 = vperm.slane %v1349, 0
        %v1354 = vsel %vm820, %v1344, 0
        %1356 = vmatpush.msra.mxu0 0.0
        %1357 = vmatpush.msra.mxu0 0.0
        %1358 = vmatpush.msra.mxu0 0.0
        %1359 = vmatpush.msra.mxu0 0.0
        %1360 = vmatpush.msra.mxu0 0.0
        %1361 = vmatpush.msra.mxu0 0.0
        %1362 = vmatpush.msra.mxu0 0.0
        %1363 = vmatpush.msra.mxu0 0.0
        %1364 = vmatpush.msra.mxu0 0.0
        %1365 = vmatpush.msra.mxu0 0.0
        %1366 = vmatpush.msra.mxu0 0.0
        %1367 = vmatpush.msra.mxu0 0.0
        %1368 = vmatpush.msra.mxu0 %v1348
        %1369 = vmatpush.msra.mxu0 %v1347
        %1370 = vmatpush.msra.mxu0 %v1346
        %1371 = vmatpush.msra.mxu0 %v1345
        %1372 = vmatmul.f32.gmra.mxu0 %v1354
        %v1373 = vpop.f32.mrf.mxu0
        %v1374 = vadd.f32 %v1351, %v1373
        %1375 = vdwg.mxu0
        %v1376 = vld [vmem:[%s14] sm:$0xff]
        %v1377 = vld [vmem:[%s14 + $0x8] sm:$0xff]
        %v1378 = vld [vmem:[%s14 + $0x10] sm:$0xff]
        %v1379 = vld [vmem:[%s14 + $0x18] sm:$0xff]
        %v1380 = vld [vmem:[%s15] sm:$0x1]
        %v1382 = vperm.slane %v1380, 0
        %v1385 = vsel %vm820, %v815, 0
        %1387 = vmatpush.msra.mxu0 0.0
        %1388 = vmatpush.msra.mxu0 0.0
        %1389 = vmatpush.msra.mxu0 0.0
        %1390 = vmatpush.msra.mxu0 0.0
        %1391 = vmatpush.msra.mxu0 0.0
        %1392 = vmatpush.msra.mxu0 0.0
        %1393 = vmatpush.msra.mxu0 0.0
        %1394 = vmatpush.msra.mxu0 0.0
        %1395 = vmatpush.msra.mxu0 0.0
        %1396 = vmatpush.msra.mxu0 0.0
        %1397 = vmatpush.msra.mxu0 0.0
        %1398 = vmatpush.msra.mxu0 0.0
        %1399 = vmatpush.msra.mxu0 %v1379
        %1400 = vmatpush.msra.mxu0 %v1378
        %1401 = vmatpush.msra.mxu0 %v1377
        %1402 = vmatpush.msra.mxu0 %v1376
        %1403 = vmatmul.f32.gmra.mxu0 %v1385
        %v1404 = vpop.f32.mrf.mxu0
        %v1405 = vadd.f32 %v1382, %v1404
        %1406 = vdwg.mxu0
        %v1407 = vld [vmem:[%s16] sm:$0xff]
        %v1408 = vld [vmem:[%s16 + $0x8] sm:$0xff]
        %v1409 = vld [vmem:[%s16 + $0x10] sm:$0xff]
        %v1410 = vld [vmem:[%s16 + $0x18] sm:$0xff]
        %v1411 = vld [vmem:[%s17] sm:$0x1]
        %v1413 = vsel %vm897, %v1374, 0
        %v1416 = vsel %vm897, %v1405, 0
        %1418 = vmatpush.xpose.msra.mxu0 0.0
        %1419 = vmatpush.xpose.msra.mxu0 0.0
        %1420 = vmatpush.xpose.msra.mxu0 0.0
        %1421 = vmatpush.xpose.msra.mxu0 0.0
        %1422 = vmatpush.xpose.msra.mxu0 0.0
        %1423 = vmatpush.xpose.msra.mxu0 0.0
        %1424 = vmatpush.xpose.msra.mxu0 0.0
        %1425 = vmatpush.xpose.msra.mxu0 0.0
        %1426 = vmatpush.xpose.msra.mxu0 0.0
        %1427 = vmatpush.xpose.msra.mxu0 0.0
        %1428 = vmatpush.xpose.msra.mxu0 0.0
        %1429 = vmatpush.xpose.msra.mxu0 0.0
        %1430 = vmatpush.xpose.msra.mxu0 0.0
        %1431 = vmatpush.xpose.msra.mxu0 0.0
        %1432 = vmatpush.xpose.msra.mxu0 0.0
        %1433 = vmatpush.xpose.msra.mxu0 %v1416
        %1434 = vmatmul.f32.gmra.mxu0 %v1413
        %v1435 = vpop.f32.mrf.mxu0
        %v1436 = vadd.f32 0.0, %v1435
        %1437 = vdwg.mxu0
        %v1438 = vmul.f32 %v1436, 0.35355338
        %v1439 = vadd.f32 %v1438, %v817
        %v1440 = vsel %vm897, %v1439, -inf
        %1441 = vmax.xlane.f32.xlu0 %v1440
        %v1442 = vpop.xlane.xlu0 %1441
        %v1443 = vsub.f32 %v1439, %v1442
        %v1444 = vmul.f32 %v1443, 1.442695
        %v1445 = vpow.pop %v1444
        %v1446 = vsel %vm897, %v1445, 0.0
        %1447 = vadd.xlane.f32.xlu0 %v1446
        %v1448 = vpop.xlane.xlu0 %1447
        %v1449 = vrcp.pop %v1448
        %v1450 = vmul.f32 %v1448, %v1449
        %v1451 = vsub.f32 1.0, %v1450
        %v1452 = vmul.f32 %v1449, %v1451
        %v1453 = vadd.f32 %v1449, %v1452
        %vm1454 = vweird.f32 %v1448
        %vm1455 = vweird.f32 %v1449
        %vm1456 = vmor %vm1454, %vm1455
        %v1457 = vsel %vm1456, %v1449, %v1453
        %v1458 = vand.u32 2147483647, %v1448
        %vm1459 = vcmp.eq.f32.partialorder %v1458, 8.507059e+37
        %v1460 = vand.u32 %v1448, 2147483648
        %v1461 = vor.u32 1.1754944e-38, %v1460
        %v1462 = vsel %vm1459, %v1461, %v1457
        %v1463 = vmul.f32 %v1445, %v1462
        %1464 = vrot.lane.b32.xlu0 %v1405, 96
        %v1465 = vpop.permute.xlu0 %1464
        %v1468 = vsel %vm897, %v1463, 0
        %1470 = vmatpush.msra.mxu0 0.0
        %1471 = vmatpush.msra.mxu0 0.0
        %1472 = vmatpush.msra.mxu0 0.0
        %1473 = vmatpush.msra.mxu0 0.0
        %1474 = vmatpush.msra.mxu0 0.0
        %1475 = vmatpush.msra.mxu0 0.0
        %1476 = vmatpush.msra.mxu0 0.0
        %1477 = vmatpush.msra.mxu0 0.0
        %1478 = vmatpush.msra.mxu0 0.0
        %1479 = vmatpush.msra.mxu0 0.0
        %1480 = vmatpush.msra.mxu0 0.0
        %1481 = vmatpush.msra.mxu0 0.0
        %1482 = vmatpush.msra.mxu0 0.0
        %1483 = vmatpush.msra.mxu0 0.0
        %1484 = vmatpush.msra.mxu0 0.0
        %1485 = vmatpush.msra.mxu0 %v1465
        %1486 = vmatmul.f32.gmra.mxu0 %v1468
        %v1487 = vpop.f32.mrf.mxu0
        %v1488 = vadd.f32 0.0, %v1487
        %1489 = vdwg.mxu0
        %1490 = vrot.lane.b32.xlu0 %v1374, 120
        %v1491 = vpop.permute.xlu0 %1490
        %1492 = vrot.lane.b32.xlu0 %v1405, 120
        %v1493 = vpop.permute.xlu0 %1492
        %v1494 = vsel %vm897, %v1491, 0
        %v1496 = vsel %vm897, %v1493, 0
        %1498 = vmatpush.xpose.msra.mxu0 0.0
        %1499 = vmatpush.xpose.msra.mxu0 0.0
        %1500 = vmatpush.xpose.msra.mxu0 0.0
        %1501 = vmatpush.xpose.msra.mxu0 0.0
        %1502 = vmatpush.xpose.msra.mxu0 0.0
        %1503 = vmatpush.xpose.msra.mxu0 0.0
        %1504 = vmatpush.xpose.msra.mxu0 0.0
        %1505 = vmatpush.xpose.msra.mxu0 0.0
        %1506 = vmatpush.xpose.msra.mxu0 0.0
        %1507 = vmatpush.xpose.msra.mxu0 0.0
        %1508 = vmatpush.xpose.msra.mxu0 0.0
        %1509 = vmatpush.xpose.msra.mxu0 0.0
        %1510 = vmatpush.xpose.msra.mxu0 0.0
        %1511 = vmatpush.xpose.msra.mxu0 0.0
        %1512 = vmatpush.xpose.msra.mxu0 0.0
        %1513 = vmatpush.xpose.msra.mxu0 %v1496
        %1514 = vmatmul.f32.gmra.mxu0 %v1494
        %v1515 = vpop.f32.mrf.mxu0
        %v1516 = vadd.f32 0.0, %v1515
        %1517 = vdwg.mxu0
        %v1518 = vmul.f32 %v1516, 0.35355338
        %v1519 = vadd.f32 %v1518, %v817
        %v1520 = vsel %vm897, %v1519, -inf
        %1521 = vmax.xlane.f32.xlu0 %v1520
        %v1522 = vpop.xlane.xlu0 %1521
        %v1523 = vsub.f32 %v1519, %v1522
        %v1524 = vmul.f32 %v1523, 1.442695
        %v1525 = vpow.pop %v1524
        %v1526 = vsel %vm897, %v1525, 0.0
        %1527 = vadd.xlane.f32.xlu0 %v1526
        %v1528 = vpop.xlane.xlu0 %1527
        %v1529 = vrcp.pop %v1528
        %v1530 = vmul.f32 %v1528, %v1529
        %v1531 = vsub.f32 1.0, %v1530
        %v1532 = vmul.f32 %v1529, %v1531
        %v1533 = vadd.f32 %v1529, %v1532
        %vm1534 = vweird.f32 %v1528
        %vm1535 = vweird.f32 %v1529
        %vm1536 = vmor %vm1534, %vm1535
        %v1537 = vsel %vm1536, %v1529, %v1533
        %v1538 = vand.u32 2147483647, %v1528
        %vm1539 = vcmp.eq.f32.partialorder %v1538, 8.507059e+37
        %v1540 = vand.u32 %v1528, 2147483648
        %v1541 = vor.u32 1.1754944e-38, %v1540
        %v1542 = vsel %vm1539, %v1541, %v1537
        %v1543 = vmul.f32 %v1525, %v1542
        %1544 = vrot.lane.b32.xlu0 %v1405, 88
        %v1545 = vpop.permute.xlu0 %1544
        %v1548 = vsel %vm897, %v1543, 0
        %1550 = vmatpush.msra.mxu0 0.0
        %1551 = vmatpush.msra.mxu0 0.0
        %1552 = vmatpush.msra.mxu0 0.0
        %1553 = vmatpush.msra.mxu0 0.0
        %1554 = vmatpush.msra.mxu0 0.0
        %1555 = vmatpush.msra.mxu0 0.0
        %1556 = vmatpush.msra.mxu0 0.0
        %1557 = vmatpush.msra.mxu0 0.0
        %1558 = vmatpush.msra.mxu0 0.0
        %1559 = vmatpush.msra.mxu0 0.0
        %1560 = vmatpush.msra.mxu0 0.0
        %1561 = vmatpush.msra.mxu0 0.0
        %1562 = vmatpush.msra.mxu0 0.0
        %1563 = vmatpush.msra.mxu0 0.0
        %1564 = vmatpush.msra.mxu0 0.0
        %1565 = vmatpush.msra.mxu0 %v1545
        %1566 = vmatmul.f32.gmra.mxu0 %v1548
        %v1567 = vpop.f32.mrf.mxu0
        %v1568 = vadd.f32 0.0, %v1567
        %1569 = vdwg.mxu0
        %v1571 = vsel %vm897, %v1568, 0
        %1573 = vmatpush.msra.mxu0 0.0
        %1574 = vmatpush.msra.mxu0 0.0
        %1575 = vmatpush.msra.mxu0 0.0
        %1576 = vmatpush.msra.mxu0 0.0
        %1577 = vmatpush.msra.mxu0 0.0
        %1578 = vmatpush.msra.mxu0 0.0
        %1579 = vmatpush.msra.mxu0 0.0
        %1580 = vmatpush.msra.mxu0 0.0
        %1581 = vmatpush.msra.mxu0 0.0
        %1582 = vmatpush.msra.mxu0 0.0
        %1583 = vmatpush.msra.mxu0 0.0
        %1584 = vmatpush.msra.mxu0 0.0
        %1585 = vmatpush.msra.mxu0 0.0
        %1586 = vmatpush.msra.mxu0 0.0
        %1587 = vmatpush.msra.mxu0 0.0
        %1588 = vmatpush.msra.mxu0 %v1408
        %1589 = vmatmul.f32.gmra.mxu0 %v1571
        %v1590 = vpop.f32.mrf.mxu0
        %v1591 = vadd.f32 0.0, %v1590
        %1592 = vdwg.mxu0
        %v1594 = vsel %vm897, %v1488, 0
        %1596 = vmatpush.msra.mxu0 0.0
        %1597 = vmatpush.msra.mxu0 0.0
        %1598 = vmatpush.msra.mxu0 0.0
        %1599 = vmatpush.msra.mxu0 0.0
        %1600 = vmatpush.msra.mxu0 0.0
        %1601 = vmatpush.msra.mxu0 0.0
        %1602 = vmatpush.msra.mxu0 0.0
        %1603 = vmatpush.msra.mxu0 0.0
        %1604 = vmatpush.msra.mxu0 0.0
        %1605 = vmatpush.msra.mxu0 0.0
        %1606 = vmatpush.msra.mxu0 0.0
        %1607 = vmatpush.msra.mxu0 0.0
        %1608 = vmatpush.msra.mxu0 0.0
        %1609 = vmatpush.msra.mxu0 0.0
        %1610 = vmatpush.msra.mxu0 0.0
        %1611 = vmatpush.msra.mxu0 %v1407
        %1612 = vmatmul.f32.gmra.mxu0 %v1594
        %v1613 = vpop.f32.mrf.mxu0
        %v1614 = vadd.f32 %v1591, %v1613
        %1615 = vdwg.mxu0
        %1616 = vrot.lane.b32.xlu0 %v1374, 112
        %v1617 = vpop.permute.xlu0 %1616
        %1618 = vrot.lane.b32.xlu0 %v1405, 112
        %v1619 = vpop.permute.xlu0 %1618
        %v1620 = vsel %vm897, %v1617, 0
        %v1622 = vsel %vm897, %v1619, 0
        %1624 = vmatpush.xpose.msra.mxu0 0.0
        %1625 = vmatpush.xpose.msra.mxu0 0.0
        %1626 = vmatpush.xpose.msra.mxu0 0.0
        %1627 = vmatpush.xpose.msra.mxu0 0.0
        %1628 = vmatpush.xpose.msra.mxu0 0.0
        %1629 = vmatpush.xpose.msra.mxu0 0.0
        %1630 = vmatpush.xpose.msra.mxu0 0.0
        %1631 = vmatpush.xpose.msra.mxu0 0.0
        %1632 = vmatpush.xpose.msra.mxu0 0.0
        %1633 = vmatpush.xpose.msra.mxu0 0.0
        %1634 = vmatpush.xpose.msra.mxu0 0.0
        %1635 = vmatpush.xpose.msra.mxu0 0.0
        %1636 = vmatpush.xpose.msra.mxu0 0.0
        %1637 = vmatpush.xpose.msra.mxu0 0.0
        %1638 = vmatpush.xpose.msra.mxu0 0.0
        %1639 = vmatpush.xpose.msra.mxu0 %v1622
        %1640 = vmatmul.f32.gmra.mxu0 %v1620
        %v1641 = vpop.f32.mrf.mxu0
        %v1642 = vadd.f32 0.0, %v1641
        %1643 = vdwg.mxu0
        %v1644 = vmul.f32 %v1642, 0.35355338
        %v1645 = vadd.f32 %v1644, %v817
        %v1646 = vsel %vm897, %v1645, -inf
        %1647 = vmax.xlane.f32.xlu0 %v1646
        %v1648 = vpop.xlane.xlu0 %1647
        %v1649 = vsub.f32 %v1645, %v1648
        %v1650 = vmul.f32 %v1649, 1.442695
        %v1651 = vpow.pop %v1650
        %v1652 = vsel %vm897, %v1651, 0.0
        %1653 = vadd.xlane.f32.xlu0 %v1652
        %v1654 = vpop.xlane.xlu0 %1653
        %v1655 = vrcp.pop %v1654
        %v1656 = vmul.f32 %v1654, %v1655
        %v1657 = vsub.f32 1.0, %v1656
        %v1658 = vmul.f32 %v1655, %v1657
        %v1659 = vadd.f32 %v1655, %v1658
        %vm1660 = vweird.f32 %v1654
        %vm1661 = vweird.f32 %v1655
        %vm1662 = vmor %vm1660, %vm1661
        %v1663 = vsel %vm1662, %v1655, %v1659
        %v1664 = vand.u32 2147483647, %v1654
        %vm1665 = vcmp.eq.f32.partialorder %v1664, 8.507059e+37
        %v1666 = vand.u32 %v1654, 2147483648
        %v1667 = vor.u32 1.1754944e-38, %v1666
        %v1668 = vsel %vm1665, %v1667, %v1663
        %v1669 = vmul.f32 %v1651, %v1668
        %1670 = vrot.lane.b32.xlu0 %v1405, 80
        %v1671 = vpop.permute.xlu0 %1670
        %v1674 = vsel %vm897, %v1669, 0
        %1676 = vmatpush.msra.mxu0 0.0
        %1677 = vmatpush.msra.mxu0 0.0
        %1678 = vmatpush.msra.mxu0 0.0
        %1679 = vmatpush.msra.mxu0 0.0
        %1680 = vmatpush.msra.mxu0 0.0
        %1681 = vmatpush.msra.mxu0 0.0
        %1682 = vmatpush.msra.mxu0 0.0
        %1683 = vmatpush.msra.mxu0 0.0
        %1684 = vmatpush.msra.mxu0 0.0
        %1685 = vmatpush.msra.mxu0 0.0
        %1686 = vmatpush.msra.mxu0 0.0
        %1687 = vmatpush.msra.mxu0 0.0
        %1688 = vmatpush.msra.mxu0 0.0
        %1689 = vmatpush.msra.mxu0 0.0
        %1690 = vmatpush.msra.mxu0 0.0
        %1691 = vmatpush.msra.mxu0 %v1671
        %1692 = vmatmul.f32.gmra.mxu0 %v1674
        %v1693 = vpop.f32.mrf.mxu0
        %v1694 = vadd.f32 0.0, %v1693
        %1695 = vdwg.mxu0
        %v1697 = vsel %vm897, %v1694, 0
        %1699 = vmatpush.msra.mxu0 0.0
        %1700 = vmatpush.msra.mxu0 0.0
        %1701 = vmatpush.msra.mxu0 0.0
        %1702 = vmatpush.msra.mxu0 0.0
        %1703 = vmatpush.msra.mxu0 0.0
        %1704 = vmatpush.msra.mxu0 0.0
        %1705 = vmatpush.msra.mxu0 0.0
        %1706 = vmatpush.msra.mxu0 0.0
        %1707 = vmatpush.msra.mxu0 0.0
        %1708 = vmatpush.msra.mxu0 0.0
        %1709 = vmatpush.msra.mxu0 0.0
        %1710 = vmatpush.msra.mxu0 0.0
        %1711 = vmatpush.msra.mxu0 0.0
        %1712 = vmatpush.msra.mxu0 0.0
        %1713 = vmatpush.msra.mxu0 0.0
        %1714 = vmatpush.msra.mxu0 %v1409
        %1715 = vmatmul.f32.gmra.mxu0 %v1697
        %v1716 = vpop.f32.mrf.mxu0
        %v1717 = vadd.f32 0.0, %v1716
        %1718 = vdwg.mxu0
        %v1719 = vadd.f32 %v1614, %v1717
        %1720 = vrot.lane.b32.xlu0 %v1374, 104
        %v1721 = vpop.permute.xlu0 %1720
        %1722 = vrot.lane.b32.xlu0 %v1405, 104
        %v1723 = vpop.permute.xlu0 %1722
        %v1724 = vsel %vm897, %v1721, 0
        %v1726 = vsel %vm897, %v1723, 0
        %1728 = vmatpush.xpose.msra.mxu0 0.0
        %1729 = vmatpush.xpose.msra.mxu0 0.0
        %1730 = vmatpush.xpose.msra.mxu0 0.0
        %1731 = vmatpush.xpose.msra.mxu0 0.0
        %1732 = vmatpush.xpose.msra.mxu0 0.0
        %1733 = vmatpush.xpose.msra.mxu0 0.0
        %1734 = vmatpush.xpose.msra.mxu0 0.0
        %1735 = vmatpush.xpose.msra.mxu0 0.0
        %1736 = vmatpush.xpose.msra.mxu0 0.0
        %1737 = vmatpush.xpose.msra.mxu0 0.0
        %1738 = vmatpush.xpose.msra.mxu0 0.0
        %1739 = vmatpush.xpose.msra.mxu0 0.0
        %1740 = vmatpush.xpose.msra.mxu0 0.0
        %1741 = vmatpush.xpose.msra.mxu0 0.0
        %1742 = vmatpush.xpose.msra.mxu0 0.0
        %1743 = vmatpush.xpose.msra.mxu0 %v1726
        %1744 = vmatmul.f32.gmra.mxu0 %v1724
        %v1745 = vpop.f32.mrf.mxu0
        %v1746 = vadd.f32 0.0, %v1745
        %1747 = vdwg.mxu0
        %v1748 = vmul.f32 %v1746, 0.35355338
        %v1749 = vadd.f32 %v1748, %v817
        %v1750 = vsel %vm897, %v1749, -inf
        %1751 = vmax.xlane.f32.xlu0 %v1750
        %v1752 = vpop.xlane.xlu0 %1751
        %v1753 = vsub.f32 %v1749, %v1752
        %v1754 = vmul.f32 %v1753, 1.442695
        %v1755 = vpow.pop %v1754
        %v1756 = vsel %vm897, %v1755, 0.0
        %1757 = vadd.xlane.f32.xlu0 %v1756
        %v1758 = vpop.xlane.xlu0 %1757
        %v1759 = vrcp.pop %v1758
        %v1760 = vmul.f32 %v1758, %v1759
        %v1761 = vsub.f32 1.0, %v1760
        %v1762 = vmul.f32 %v1759, %v1761
        %v1763 = vadd.f32 %v1759, %v1762
        %vm1764 = vweird.f32 %v1758
        %vm1765 = vweird.f32 %v1759
        %vm1766 = vmor %vm1764, %vm1765
        %v1767 = vsel %vm1766, %v1759, %v1763
        %v1768 = vand.u32 2147483647, %v1758
        %vm1769 = vcmp.eq.f32.partialorder %v1768, 8.507059e+37
        %v1770 = vand.u32 %v1758, 2147483648
        %v1771 = vor.u32 1.1754944e-38, %v1770
        %v1772 = vsel %vm1769, %v1771, %v1767
        %v1773 = vmul.f32 %v1755, %v1772
        %1774 = vrot.lane.b32.xlu0 %v1405, 72
        %v1775 = vpop.permute.xlu0 %1774
        %v1778 = vsel %vm897, %v1773, 0
        %1780 = vmatpush.msra.mxu0 0.0
        %1781 = vmatpush.msra.mxu0 0.0
        %1782 = vmatpush.msra.mxu0 0.0
        %1783 = vmatpush.msra.mxu0 0.0
        %1784 = vmatpush.msra.mxu0 0.0
        %1785 = vmatpush.msra.mxu0 0.0
        %1786 = vmatpush.msra.mxu0 0.0
        %1787 = vmatpush.msra.mxu0 0.0
        %1788 = vmatpush.msra.mxu0 0.0
        %1789 = vmatpush.msra.mxu0 0.0
        %1790 = vmatpush.msra.mxu0 0.0
        %1791 = vmatpush.msra.mxu0 0.0
        %1792 = vmatpush.msra.mxu0 0.0
        %1793 = vmatpush.msra.mxu0 0.0
        %1794 = vmatpush.msra.mxu0 0.0
        %1795 = vmatpush.msra.mxu0 %v1775
        %1796 = vmatmul.f32.gmra.mxu0 %v1778
        %v1797 = vpop.f32.mrf.mxu0
        %v1798 = vadd.f32 0.0, %v1797
        %1799 = vdwg.mxu0
        %v1801 = vsel %vm897, %v1798, 0
        %1803 = vmatpush.msra.mxu0 0.0
        %1804 = vmatpush.msra.mxu0 0.0
        %1805 = vmatpush.msra.mxu0 0.0
        %1806 = vmatpush.msra.mxu0 0.0
        %1807 = vmatpush.msra.mxu0 0.0
        %1808 = vmatpush.msra.mxu0 0.0
        %1809 = vmatpush.msra.mxu0 0.0
        %1810 = vmatpush.msra.mxu0 0.0
        %1811 = vmatpush.msra.mxu0 0.0
        %1812 = vmatpush.msra.mxu0 0.0
        %1813 = vmatpush.msra.mxu0 0.0
        %1814 = vmatpush.msra.mxu0 0.0
        %1815 = vmatpush.msra.mxu0 0.0
        %1816 = vmatpush.msra.mxu0 0.0
        %1817 = vmatpush.msra.mxu0 0.0
        %1818 = vmatpush.msra.mxu0 %v1410
        %1819 = vmatmul.f32.gmra.mxu0 %v1801
        %v1820 = vpop.f32.mrf.mxu0
        %v1821 = vadd.f32 0.0, %v1820
        %1822 = vdwg.mxu0
        %v1823 = vadd.f32 %v1719, %v1821
        %v1825 = vperm.slane %v1411, 0
        %v1827 = vadd.f32 %v1823, %v1825
        %v1828 = vadd.f32 %v1312, %v1827
        %v1829 = vld [vmem:[%s18] sm:$0x1]
        %v1830 = vld [vmem:[%s19] sm:$0x1]
        %v1831 = vsel %vm820, %v1828, 0.0
        %1832 = vadd.xlane.f32.xlu0 %v1831
        %v1833 = vpop.xlane.xlu0 %1832
        %v1834 = vmul.f32 %v1833, %v830
        %v1835 = vsub.f32 %v1828, %v1834
        %v1836 = vmul.f32 %v1835, %v1835
        %v1837 = vsel %vm820, %v1836, 0.0
        %1838 = vadd.xlane.f32.xlu0 %v1837
        %v1839 = vpop.xlane.xlu0 %1838
        %v1840 = vmul.f32 %v1839, %v830
        %v1841 = vadd.f32 %v1840, 1e-06
        %v1842 = vrsqrt.pop %v1841
        %v1843 = vmul.f32 %v1842, %v1841
        %v1844 = vmul.f32 %v1843, %v1842
        %v1845 = vmul.f32 0.5, %v1844
        %v1846 = vsub.f32 1.5, %v1845
        %v1847 = vmul.f32 %v1842, %v1846
        %vm1848 = vweird.f32 %v1841
        %vm1849 = vweird.f32 %v1842
        %vm1850 = vmor %vm1848, %vm1849
        %v1851 = vsel %vm1850, %v1842, %v1847
        %v1852 = vmul.f32 %v1835, %v1851
        %v1854 = vperm.slane %v1829, 0
        %v1856 = vmul.f32 %v1852, %v1854
        %v1858 = vperm.slane %v1830, 0
        %v1860 = vadd.f32 %v1856, %v1858
        %v1861 = vld [vmem:[%s20] sm:$0xff]
        %v1862 = vld [vmem:[%s20 + $0x8] sm:$0xff]
        %v1863 = vld [vmem:[%s20 + $0x10] sm:$0xff]
        %v1864 = vld [vmem:[%s20 + $0x18] sm:$0xff]
        %v1865 = vld [vmem:[#allocation2] sm:$0x1]
        %v1867 = vperm.slane %v1865, 0
        %v1870 = vsel %vm820, %v1860, 0
        %1872 = vmatpush.msra.mxu0 0.0
        %1873 = vmatpush.msra.mxu0 0.0
        %1874 = vmatpush.msra.mxu0 0.0
        %1875 = vmatpush.msra.mxu0 0.0
        %1876 = vmatpush.msra.mxu0 0.0
        %1877 = vmatpush.msra.mxu0 0.0
        %1878 = vmatpush.msra.mxu0 0.0
        %1879 = vmatpush.msra.mxu0 0.0
        %1880 = vmatpush.msra.mxu0 0.0
        %1881 = vmatpush.msra.mxu0 0.0
        %1882 = vmatpush.msra.mxu0 0.0
        %1883 = vmatpush.msra.mxu0 0.0
        %1884 = vmatpush.msra.mxu0 %v1864
        %1885 = vmatpush.msra.mxu0 %v1863
        %1886 = vmatpush.msra.mxu0 %v1862
        %1887 = vmatpush.msra.mxu0 %v1861
        %1888 = vmatmul.f32.gmra.mxu0 %v1870
        %v1889 = vpop.f32.mrf.mxu0
        %v1890 = vadd.f32 %v1867, %v1889
        %1891 = vdwg.mxu0
        %v1892 = vmul.f32 %v1890, %v1890
        %v1893 = vmul.f32 %v1890, %v1892
        %v1894 = vmul.f32 %v1893, 0.044715
        %v1895 = vadd.f32 %v1890, %v1894
        %v1896 = vmul.f32 %v1895, 0.7978846
        %v1897 = vtanh.pop %v1896
        %v1898 = vadd.f32 %v1897, 1.0
        %v1899 = vmul.f32 %v1898, 0.5
        %v1900 = vmul.f32 %v1890, %v1899
        %v1901 = vld [vmem:[%s22] sm:$0xff]
        %v1902 = vld [vmem:[%s22 + $0x8] sm:$0xff]
        %v1903 = vld [vmem:[%s22 + $0x10] sm:$0xff]
        %v1904 = vld [vmem:[%s22 + $0x18] sm:$0xff]
        %v1905 = vld [vmem:[%s22 + $0x20] sm:$0xff]
        %v1906 = vld [vmem:[%s22 + $0x28] sm:$0xff]
        %v1907 = vld [vmem:[%s22 + $0x30] sm:$0xff]
        %v1908 = vld [vmem:[%s22 + $0x38] sm:$0xff]
        %v1909 = vld [vmem:[%s22 + $0x40] sm:$0xff]
        %v1910 = vld [vmem:[%s22 + $0x48] sm:$0xff]
        %v1911 = vld [vmem:[%s22 + $0x50] sm:$0xff]
        %v1912 = vld [vmem:[%s22 + $0x58] sm:$0xff]
        %v1913 = vld [vmem:[%s22 + $0x60] sm:$0xff]
        %v1914 = vld [vmem:[%s22 + $0x68] sm:$0xff]
        %v1915 = vld [vmem:[%s22 + $0x70] sm:$0xff]
        %v1916 = vld [vmem:[%s22 + $0x78] sm:$0xff]
        %v1917 = vld [vmem:[#allocation4] sm:$0x1]
        %v1919 = vperm.slane %v1917, 0
        %1921 = vmatpush.msra.mxu0 %v1916
        %1922 = vmatpush.msra.mxu0 %v1915
        %1923 = vmatpush.msra.mxu0 %v1914
        %1924 = vmatpush.msra.mxu0 %v1913
        %1925 = vmatpush.msra.mxu0 %v1912
        %1926 = vmatpush.msra.mxu0 %v1911
        %1927 = vmatpush.msra.mxu0 %v1910
        %1928 = vmatpush.msra.mxu0 %v1909
        %1929 = vmatpush.msra.mxu0 %v1908
        %1930 = vmatpush.msra.mxu0 %v1907
        %1931 = vmatpush.msra.mxu0 %v1906
        %1932 = vmatpush.msra.mxu0 %v1905
        %1933 = vmatpush.msra.mxu0 %v1904
        %1934 = vmatpush.msra.mxu0 %v1903
        %1935 = vmatpush.msra.mxu0 %v1902
        %1936 = vmatpush.msra.mxu0 %v1901
        %1937 = vmatmul.f32.gmra.mxu0 %v1900
        %v1938 = vpop.f32.mrf.mxu0
        %v1939 = vadd.f32 %v1919, %v1938
        %1940 = vdwg.mxu0
        %v1941 = vadd.f32 %v1828, %v1939
        %1942 = vst.msk [vmem:[%s813] sm:$0xff] %vm820, %v1941
        %p1943 = scmp.lt.s32.totalorder %s37, 1
        %s1944 = scalar_select %p1943, %s37, 1
        %s1945 = smul.addr %s1944, 8
        %s1946 = scalar_lea.vmem %s24, %s1945
        // Predicated region
        $region125: #{bert_translation_forward.12} parent=115 // pred_check
          %p1947 = pneg %p579
        $region126: #{bert_translation_forward.12} parent=115 // pred_check_branch
          %1949 = sbr.rel (%p1947) target = $region128
        $region127: #{bert_translation_forward.12} parent=115 // pred_region
          _
        $region128: #{bert_translation_forward.12} parent=115 // pred_fallthru
          _
      $region116: #{bert_translation_forward.12} parent=5 // pred_fallthru
        _
      %p1950 = scmp.le.s32.totalorder 2, %s32
      // Predicated region
      $region129: #{bert_translation_forward.12} parent=5 // pred_check
        %p1951 = pneg %p1950
      $region130: #{bert_translation_forward.12} parent=5 // pred_check_branch
        %1953 = sbr.rel (%p1951) target = $region132
      $region131: #{bert_translation_forward.12} parent=5 // pred_region
        %s1954 = ssub.s32 %s32, 2
        // Predicated region
        $region133: #{bert_translation_forward.12} parent=131 // pred_check
          %p1955 = pneg %p585
        $region134: #{bert_translation_forward.12} parent=131 // pred_check_branch
          %1957 = sbr.rel (%p1955) target = $region136
        $region135: #{bert_translation_forward.12} parent=131 // pred_region
          %p1958 = scmp.lt.s32.totalorder %s38, 1
          %s1959 = scalar_select %p1958, %s38, 1
          %s1960 = smul.addr %s1959, 8
          %s1961 = scalar_lea.vmem %s24, %s1960
        $region136: #{bert_translation_forward.12} parent=131 // pred_fallthru
          _
      $region132: #{bert_translation_forward.12} parent=5 // pred_fallthru
        _
    $region6: #{bert_translation_forward.12} parent=1 // loop_footer
      %s36 = sadd.s32 1, %s32
    $region7: #{bert_translation_forward.12} parent=1 // loop_footer_branch
      %31 = sbr.rel target = $region3
    $region8: #{bert_translation_forward.12} parent=1 // loop_exit
      _
    %1962 = vsyncpa [#allocation3], 1
    %s1963 = scalar_lea.sflag [#allocation3], 1
    %1964 = vsyncpa %s1963, 1
    %1965 = vsyncpa [#allocation5], 1

// kernel: bert_translation_forward.13
$region0: #{bert_translation_forward.13}
  #allocation0 [shape = 'u32[]', space=smem, size = 0x4, offset = 0x4, fixed_abs, tag = 'smem constant byte address 0x4 - core index']
  #allocation1 [shape = 'u32[72,128]{1,0:T(1,128)}', space=vmem, size = 0x9000, scoped, tag = 'internal scratch']
  %s0 = inlined_call_operand.vmem [shape: f32[16,32], index: 0, kind: input, shape index: {}]
  %s1 = inlined_call_operand.vmem [shape: f32[32,128], index: 1, kind: input, shape index: {}]
  %s2 = inlined_call_operand.vmem [shape: f32[1,128], index: 2, kind: input, shape index: {}]
  %s3 = inlined_call_operand.vmem [shape: f32[16,128], index: 3, kind: output, shape index: {}]
  %s4 = sld [smem:[#allocation0]]
  $region22: #{bert_translation_forward.13} parent=0
    _
  %s6 = ssub.s32 1, %s4
  %s7 = scalar_select 0, %s6, %s4
  // Predicated region
  $region2: #{bert_translation_forward.13} parent=0 // pred_check
    _
  $region3: #{bert_translation_forward.13} parent=0 // pred_check_branch
    %9 = sbr.rel (0) target = $region5
  $region4: #{bert_translation_forward.13} parent=0 // pred_region
    _
  $region5: #{bert_translation_forward.13} parent=0 // pred_fallthru
    _
  // Predicated region
  $region6: #{bert_translation_forward.13} parent=0 // pred_check
    _
  $region7: #{bert_translation_forward.13} parent=0 // pred_check_branch
    %11 = sbr.rel (0) target = $region9
  $region8: #{bert_translation_forward.13} parent=0 // pred_region
    _
  $region9: #{bert_translation_forward.13} parent=0 // pred_fallthru
    _
  // Predicated region
  $region10: #{bert_translation_forward.13} parent=0 // pred_check
    _
  $region11: #{bert_translation_forward.13} parent=0 // pred_check_branch
    %13 = sbr.rel (0) target = $region13
  $region12: #{bert_translation_forward.13} parent=0 // pred_region
    _
  $region13: #{bert_translation_forward.13} parent=0 // pred_fallthru
    _
  %v14 = vld [vmem:[%s0] sm:$0xff]
  %v15 = vld [vmem:[%s0 + $0x8] sm:$0xff]
  %v16 = vld [vmem:[%s1] sm:$0xff]
  %v17 = vld [vmem:[%s1 + $0x8] sm:$0xff]
  %v18 = vld [vmem:[%s1 + $0x10] sm:$0xff]
  %v19 = vld [vmem:[%s1 + $0x18] sm:$0xff]
  %v20 = vld [vmem:[%s2] sm:$0x1]
  %v22 = vperm.slane %v20, 0
  %vm24 = vcmask 261120
  %v26 = vsel %vm24, %v14, 0
  %v29 = vsel %vm24, %v15, 0
  %31 = vmatpush.msra.mxu0 0.0
  %32 = vmatpush.msra.mxu0 0.0
  %33 = vmatpush.msra.mxu0 0.0
  %34 = vmatpush.msra.mxu0 0.0
  %35 = vmatpush.msra.mxu0 0.0
  %36 = vmatpush.msra.mxu0 0.0
  %37 = vmatpush.msra.mxu0 0.0
  %38 = vmatpush.msra.mxu0 0.0
  %39 = vmatpush.msra.mxu0 0.0
  %40 = vmatpush.msra.mxu0 0.0
  %41 = vmatpush.msra.mxu0 0.0
  %42 = vmatpush.msra.mxu0 0.0
  %43 = vmatpush.msra.mxu0 %v19
  %44 = vmatpush.msra.mxu0 %v18
  %45 = vmatpush.msra.mxu0 %v17
  %46 = vmatpush.msra.mxu0 %v16
  %47 = vmatmul.f32.gmra.mxu0 %v26
  %v48 = vpop.f32.mrf.mxu0
  %v49 = vadd.f32 %v22, %v48
  %50 = vmatmul.f32.gmra.mxu0 %v29
  %v51 = vpop.f32.mrf.mxu0
  %v52 = vadd.f32 %v22, %v51
  %53 = vdwg.mxu0
  %54 = vst [vmem:[%s3] sm:$0xff] %v49
  %55 = vst [vmem:[%s3 + $0x8] sm:$0xff] %v52
  // Predicated region
  $region14: #{bert_translation_forward.13} parent=0 // pred_check
    _
  $region15: #{bert_translation_forward.13} parent=0 // pred_check_branch
    %57 = sbr.rel (0) target = $region17
  $region16: #{bert_translation_forward.13} parent=0 // pred_region
    _
  $region17: #{bert_translation_forward.13} parent=0 // pred_fallthru
    _
  // Predicated region
  $region18: #{bert_translation_forward.13} parent=0 // pred_check
    _
  $region19: #{bert_translation_forward.13} parent=0 // pred_check_branch
    %59 = sbr.rel (0) target = $region21
  $region20: #{bert_translation_forward.13} parent=0 // pred_region
    _
  $region21: #{bert_translation_forward.13} parent=0 // pred_fallthru
    _

</llo_original>
